<compile_context>
chip_gen: v5e
topology: v5e:2x2
jax: 0.10.0
libtpu: 0.0.40
codegen_flags: <defaults>
</compile_context>

<pallas_src>
import functools

import jax
import jax.numpy as jnp
from jax import lax
from jax.experimental import pallas as pl
from jax.experimental.pallas import tpu as pltpu


# Ample for these small blocks, safe on v5e/v6e (128 MiB) and v7x (64 MiB).
_VMEM_LIMIT = 32 * 1024 * 1024


def _cparams(dims):
    return pltpu.CompilerParams(dimension_semantics=dims,
                                vmem_limit_bytes=_VMEM_LIMIT)


def _pick_block(n, cap):
    # Largest divisor of n that is <= cap, preferring >= 2 grid blocks (v7x).
    divs = [d for d in range(1, n + 1) if n % d == 0 and d <= cap]
    good = [d for d in divs if n // d >= 2]
    return max(good) if good else max(divs)


def _pick_row_tile(length, cap):
    # Divisor of `length`, multiple of 8 (sublane), <= cap; else whole length.
    if length <= cap:
        return length
    best = None
    for d in range(8, length + 1, 8):
        if length % d == 0 and d <= cap:
            best = d
    return best if best is not None else length


# ----------------------------- Pallas kernels ------------------------------

def _pointwise_kernel(x_ref, p_ref, w0_ref, w12_ref, w3_ref,
                      b0_ref, b12_ref, b3_ref, o0_ref, o12_ref, o3_ref):
    # x: (tm, 192) activations; p: (tm, 192) maxpooled activations.
    # Three lane-clean outputs: branch0 (64), fused branch1.0+branch2.0 (112),
    # branch3 1x1-on-pool (32).  BN folded into weights -> bias + ReLU epilogue.
    x = x_ref[...]
    a0 = jnp.dot(x, w0_ref[...], preferred_element_type=jnp.float32)
    o0_ref[...] = jnp.maximum(a0 + b0_ref[...], 0.0).astype(o0_ref.dtype)
    a12 = jnp.dot(x, w12_ref[...], preferred_element_type=jnp.float32)
    o12_ref[...] = jnp.maximum(a12 + b12_ref[...], 0.0).astype(o12_ref.dtype)
    a3 = jnp.dot(p_ref[...], w3_ref[...], preferred_element_type=jnp.float32)
    o3_ref[...] = jnp.maximum(a3 + b3_ref[...], 0.0).astype(o3_ref.dtype)


def _spatial_kernel(x_ref, w_ref, b_ref, o_ref, *, wp_stride):
    # x: (P, Hp*Wp + 2, C)  P spatially padded planes, flattened, with one
    #    guard row at each end (guards only feed discarded border rows).
    # w: (9, C, Cout) taps (dy-major, dx-minor), block-diagonal (branch1|branch2).
    # Output row m (= y'*Wp + x' in padded coords, y' of the *unpadded* row)
    # accumulates the 9 taps as pure row-offset slices m + dy*Wp + dx.
    P, _, c = x_ref.shape
    _, L, cout = o_ref.shape
    acc = jnp.zeros((P * L, cout), jnp.float32)
    for dy in range(3):
        for dx in range(3):
            start = dy * wp_stride + dx
            xs = x_ref[:, start:start + L, :].reshape(P * L, c)
            acc = acc + jnp.dot(xs, w_ref[dy * 3 + dx],
                                preferred_element_type=jnp.float32)
    y = jnp.maximum(acc + b_ref[...], 0.0)
    o_ref[...] = y.reshape(P, L, cout).astype(o_ref.dtype)
    # TODO(synk): pad Wp to a multiple of 8 and generate the dx taps with
    # pltpu.roll to keep all slices sublane-aligned.


def _temporal_kernel(x_ref, w_ref, b_ref, o_ref):
    # x: (1, T+2, tl, C) whole temporally padded window for one (n, row-tile).
    # The 3 taps are static slices of the resident window, so each frame is
    # DMA'd from HBM exactly once (vs 3x with a per-(t,k) grid).
    _, T, tl, cout = o_ref.shape
    c = x_ref.shape[-1]
    acc = jnp.zeros((T * tl, cout), jnp.float32)
    for k in range(3):
        xs = x_ref[0, k:k + T].reshape(T * tl, c)
        acc = acc + jnp.dot(xs, w_ref[k], preferred_element_type=jnp.float32)
    y = jnp.maximum(acc + b_ref[...], 0.0)
    o_ref[0] = y.reshape(T, tl, cout).astype(o_ref.dtype)


# ----------------------------- kernel wrappers ------------------------------

def fused_pointwise(x2d, p2d, w0, b0, w12, b12, w3, b3, *, out_dtype, tm=256):
    M, K = x2d.shape
    c0, c12, c3 = w0.shape[1], w12.shape[1], w3.shape[1]
    tm = min(tm, max(128, ((M + 127) // 128) * 128))
    Mp = ((M + tm - 1) // tm) * tm
    if Mp != M:
        x2d = jnp.pad(x2d, ((0, Mp - M), (0, 0)))
        p2d = jnp.pad(p2d, ((0, Mp - M), (0, 0)))
    o0, o12, o3 = pl.pallas_call(
        _pointwise_kernel,
        out_shape=(jax.ShapeDtypeStruct((Mp, c0), out_dtype),
                   jax.ShapeDtypeStruct((Mp, c12), out_dtype),
                   jax.ShapeDtypeStruct((Mp, c3), out_dtype)),
        grid=(Mp // tm,),
        in_specs=[
            pl.BlockSpec((tm, K), lambda i: (i, 0)),
            pl.BlockSpec((tm, K), lambda i: (i, 0)),
            pl.BlockSpec((K, c0), lambda i: (0, 0)),    # constant -> resident
            pl.BlockSpec((K, c12), lambda i: (0, 0)),
            pl.BlockSpec((K, c3), lambda i: (0, 0)),
            pl.BlockSpec((1, c0), lambda i: (0, 0)),
            pl.BlockSpec((1, c12), lambda i: (0, 0)),
            pl.BlockSpec((1, c3), lambda i: (0, 0)),
        ],
        out_specs=(pl.BlockSpec((tm, c0), lambda i: (i, 0)),
                   pl.BlockSpec((tm, c12), lambda i: (i, 0)),
                   pl.BlockSpec((tm, c3), lambda i: (i, 0))),
        compiler_params=_cparams(("parallel",)),
    )(x2d, p2d, w0, w12, w3,
      b0.reshape(1, -1), b12.reshape(1, -1), b3.reshape(1, -1))
    return o0[:M], o12[:M], o3[:M]


def spatial_conv(x5, w9, b, *, out_dtype, planes_cap=8):
    # SepConv3d's (1,3,3) spatial conv (+ folded BN + ReLU), fused for both
    # branches via block-diagonal weights.  Output keeps the padded-column
    # (H, W+2) layout; those columns are dropped after the temporal conv.
    N, T, H, W, C = x5.shape
    Hp, Wp = H + 2, W + 2
    Cout = w9.shape[-1]
    L = H * Wp
    xp = jnp.pad(x5, ((0, 0), (0, 0), (1, 1), (1, 1), (0, 0)))
    xg = jnp.pad(xp.reshape(N * T, Hp * Wp, C), ((0, 0), (1, 1), (0, 0)))
    P2 = Hp * Wp + 2
    NT = N * T
    P = _pick_block(NT, planes_cap)
    out = pl.pallas_call(
        functools.partial(_spatial_kernel, wp_stride=Wp),
        out_shape=jax.ShapeDtypeStruct((NT, L, Cout), out_dtype),
        grid=(NT // P,),
        in_specs=[
            pl.BlockSpec((P, P2, C), lambda i: (i, 0, 0)),
            pl.BlockSpec((9, C, Cout), lambda i: (0, 0, 0)),
            pl.BlockSpec((1, Cout), lambda i: (0, 0)),
        ],
        out_specs=pl.BlockSpec((P, L, Cout), lambda i: (i, 0, 0)),
        compiler_params=_cparams(("parallel",)),
    )(xg, w9, b.reshape(1, -1))
    return out.reshape(N, T, L, Cout)


def temporal_conv(y, wt, b, *, out_dtype, rows_cap=2048):
    # SepConv3d's (3,1,1) temporal conv (+ folded BN + ReLU), fused branches.
    # Whole (T+2)-frame window per (n, row-tile) step; taps unrolled in-kernel.
    N, T, L, C = y.shape
    Cout = wt.shape[-1]
    yp = jnp.pad(y, ((0, 0), (1, 1), (0, 0), (0, 0)))
    tl = _pick_row_tile(L, rows_cap)
    out = pl.pallas_call(
        _temporal_kernel,
        out_shape=jax.ShapeDtypeStruct((N, T, L, Cout), out_dtype),
        grid=(N, L // tl),
        in_specs=[
            pl.BlockSpec((1, T + 2, tl, C), lambda n, l: (n, 0, l, 0)),
            pl.BlockSpec((3, C, Cout), lambda n, l: (0, 0, 0)),
            pl.BlockSpec((1, Cout), lambda n, l: (0, 0)),
        ],
        out_specs=pl.BlockSpec((1, T, tl, Cout), lambda n, l: (n, 0, l, 0)),
        compiler_params=_cparams(("parallel", "parallel")),
    )(yp, wt, b.reshape(1, -1))
    return out


# --------------------------- parameter folding -------------------------------
# Eval-mode BN was already reduced to per-channel (scale, bias); the scale is
# folded into the conv weights, and branch1/branch2 weights are merged into
# block-diagonal matrices so both branches run in one kernel.

def fold_params(p, compute_dtype):
    def fw(w, s):
        return (w * s).astype(compute_dtype)

    f = {}
    f['w0'] = fw(p['w0'], p['s0'])                                  # (192, 64)
    f['b0'] = p['b0'].astype(jnp.float32)
    f['w12a'] = jnp.concatenate([fw(p['w1a'], p['s1a']),
                                 fw(p['w2a'], p['s2a'])], axis=1)   # (192, 112)
    f['b12a'] = jnp.concatenate([p['b1a'], p['b2a']]).astype(jnp.float32)
    f['w3'] = fw(p['w3'], p['s3'])                                  # (192, 32)
    f['b3'] = p['b3'].astype(jnp.float32)

    w1s = fw(p['w1s'], p['s1s']).reshape(9, 96, 128)
    w2s = fw(p['w2s'], p['s2s']).reshape(9, 16, 32)
    w12s = jnp.zeros((9, 112, 160), compute_dtype)
    f['w12s'] = w12s.at[:, :96, :128].set(w1s).at[:, 96:, 128:].set(w2s)
    f['b12s'] = jnp.concatenate([p['b1s'], p['b2s']]).astype(jnp.float32)

    w1t = fw(p['w1t'], p['s1t'])                                    # (3,128,128)
    w2t = fw(p['w2t'], p['s2t'])                                    # (3, 32, 32)
    w12t = jnp.zeros((3, 160, 160), compute_dtype)
    f['w12t'] = w12t.at[:, :128, :128].set(w1t).at[:, 128:, 128:].set(w2t)
    f['b12t'] = jnp.concatenate([p['b1t'], p['b2t']]).astype(jnp.float32)
    return f


# -------------------------------- Mixed_3b ----------------------------------

def mixed_3b_forward(x_ncdhw, p, *, compute_dtype=jnp.bfloat16, tm=256):
    f = fold_params(p, compute_dtype)
    # Cast before the layout transpose (full pass over 192 channels).
    xq = jnp.transpose(x_ncdhw.astype(compute_dtype), (0, 2, 3, 4, 1))
    N, T, H, W, C = xq.shape
    Wp = W + 2

    # branch3 MaxPool3d(3,1,1): single reduce_window pass in compute dtype
    # (max is order-preserving, so this matches f32 pooling + cast exactly).
    pooled = lax.reduce_window(
        xq, jnp.asarray(-jnp.inf, xq.dtype), lax.max,
        (1, 3, 3, 3, 1), (1, 1, 1, 1, 1),
        [(0, 0), (1, 1), (1, 1), (1, 1), (0, 0)])
    # TODO(synk): fuse the max-pool into the pointwise kernel from a haloed x
    # block to remove this extra 192-channel write+read.

    x0, y12, x3 = fused_pointwise(
        xq.reshape(-1, C), pooled.reshape(-1, C),
        f['w0'], f['b0'], f['w12a'], f['b12a'], f['w3'], f['b3'],
        out_dtype=compute_dtype, tm=tm)

    c0, c3 = f['w0'].shape[1], f['w3'].shape[1]
    c12in = f['w12a'].shape[1]          # 96 + 16
    c1 = 128                            # branch1 output channels
    c12out = f['w12t'].shape[-1]        # 128 + 32

    # Fused branch1+branch2 SepConv3d (block-diagonal weights).
    y12 = y12.reshape(N, T, H, W, c12in)
    y12 = spatial_conv(y12, f['w12s'], f['b12s'], out_dtype=compute_dtype)
    x12 = temporal_conv(y12, f['w12t'], f['b12t'], out_dtype=compute_dtype)
    # Padded columns were carried through (temporal conv is pointwise in space);
    # drop them here, fused by XLA into the concat read.
    x12 = x12.reshape(N, T, H, Wp, c12out)[:, :, :, 1:1 + W, :]

    x0 = x0.reshape(N, T, H, W, c0)
    x3 = x3.reshape(N, T, H, W, c3)
    # TODO(synk): write each branch lane-dense at its channel offset into one
    # preallocated (N,T,H,W,256) buffer via out_specs / input_output_aliases to
    # skip this concat pass.
    out = jnp.concatenate(
        [x0, x12[..., :c1], x12[..., c1:], x3], axis=-1).astype(jnp.float32)
    return jnp.transpose(out, (0, 4, 1, 2, 3))            # back to NCDHW


# --------------------------- deterministic params ----------------------------

def init_params(key):
    ks = list(jax.random.split(key, 32))
    it = iter(ks)

    def conv_w(shape, fan_in):
        return jax.random.normal(next(it), shape, jnp.float32) / jnp.sqrt(fan_in)

    def bn(c):
        scale = jax.random.uniform(next(it), (c,), jnp.float32, 0.5, 1.5)
        bias = jax.random.normal(next(it), (c,), jnp.float32) * 0.1
        return scale, bias

    p = {}
    p['w0'] = conv_w((192, 64), 192);            p['s0'], p['b0'] = bn(64)
    p['w1a'] = conv_w((192, 96), 192);           p['s1a'], p['b1a'] = bn(96)
    p['w1s'] = conv_w((3, 3, 96, 128), 9 * 96);  p['s1s'], p['b1s'] = bn(128)
    p['w1t'] = conv_w((3, 128, 128), 3 * 128);   p['s1t'], p['b1t'] = bn(128)
    p['w2a'] = conv_w((192, 16), 192);           p['s2a'], p['b2a'] = bn(16)
    p['w2s'] = conv_w((3, 3, 16, 32), 9 * 16);   p['s2s'], p['b2s'] = bn(32)
    p['w2t'] = conv_w((3, 32, 32), 3 * 32);      p['s2t'], p['b2t'] = bn(32)
    p['w3'] = conv_w((192, 32), 192);            p['s3'], p['b3'] = bn(32)
    return p


# ----------------------------- pure-JAX reference ----------------------------

def ref_forward(x, p):
    def conv(xx, w_oidhw, pad):
        return lax.conv_general_dilated(
            xx, w_oidhw, window_strides=(1, 1, 1), padding=pad,
            dimension_numbers=('NCDHW', 'OIDHW', 'NCDHW'))

    def bnrelu(y, s, b):
        return jnp.maximum(y * s.reshape(1, -1, 1, 1, 1)
                           + b.reshape(1, -1, 1, 1, 1), 0.0)

    def w1x1(w):   # (Cin,Cout) -> OIDHW
        return jnp.transpose(w, (1, 0))[:, :, None, None, None]

    def wsp(w):    # (3,3,Cin,Cout) -> (Cout,Cin,1,3,3)
        return jnp.transpose(w, (3, 2, 0, 1))[:, :, None, :, :]

    def wtm(w):    # (3,Cin,Cout) -> (Cout,Cin,3,1,1)
        return jnp.transpose(w, (2, 1, 0))[:, :, :, None, None]

    p0 = [(0, 0)] * 3
    x0 = bnrelu(conv(x, w1x1(p['w0']), p0), p['s0'], p['b0'])
    x1 = bnrelu(conv(x, w1x1(p['w1a']), p0), p['s1a'], p['b1a'])
    x1 = bnrelu(conv(x1, wsp(p['w1s']), [(0, 0), (1, 1), (1, 1)]), p['s1s'], p['b1s'])
    x1 = bnrelu(conv(x1, wtm(p['w1t']), [(1, 1), (0, 0), (0, 0)]), p['s1t'], p['b1t'])
    x2 = bnrelu(conv(x, w1x1(p['w2a']), p0), p['s2a'], p['b2a'])
    x2 = bnrelu(conv(x2, wsp(p['w2s']), [(0, 0), (1, 1), (1, 1)]), p['s2s'], p['b2s'])
    x2 = bnrelu(conv(x2, wtm(p['w2t']), [(1, 1), (0, 0), (0, 0)]), p['s2t'], p['b2t'])
    xp = lax.reduce_window(x, -jnp.inf, lax.max,
                           (1, 1, 3, 3, 3), (1, 1, 1, 1, 1),
                           [(0, 0), (0, 0), (1, 1), (1, 1), (1, 1)])
    x3 = bnrelu(conv(xp, w1x1(p['w3']), p0), p['s3'], p['b3'])
    return jnp.concatenate([x0, x1, x2, x3], axis=1)


# ---------------------------------- main -------------------------------------

if __name__ == "__main__":
    key = jax.random.PRNGKey(0)
    kp, kx = jax.random.split(key)
    params = init_params(kp)

    # Small shapes; 192 input channels are fixed by the module.
    N, C, T, H, W = 2, 192, 4, 8, 8
    x = jax.random.normal(kx, (N, C, T, H, W), jnp.float32)

    ref = ref_forward(x, params)

    # 1) f32 compute path: checks conv / pooling / tap / fusion indexing.
    fwd32 = jax.jit(functools.partial(mixed_3b_forward,
                                      compute_dtype=jnp.float32))
    out32 = jax.block_until_ready(fwd32(x, params))
    assert out32.shape == (N, 64 + 128 + 32 + 32, T, H, W), out32.shape
    err32 = float(jnp.max(jnp.abs(out32 - ref)))
    assert err32 < 5e-2, f"f32 path mismatch vs reference: max abs err = {err32}"

    # 2) bf16 compute path (halved HBM traffic, bf16 MXU): loose tolerance.
    fwd16 = jax.jit(functools.partial(mixed_3b_forward,
                                      compute_dtype=jnp.bfloat16))
    out16 = jax.block_until_ready(fwd16(x, params))
    assert out16.shape == (N, 256, T, H, W), out16.shape
    err16 = float(jnp.max(jnp.abs(out16 - ref)))
    mean16 = float(jnp.mean(jnp.abs(out16 - ref)))
    assert err16 < 3e-1 and mean16 < 3e-2, (
        f"bf16 path mismatch vs f32 reference: max={err16}, mean={mean16}")

    print("KERNEL_OK")
</pallas_src>

<mosaic_0001>
module attributes {stable_mosaic.version = 11 : i64} {
  func.func @_pointwise_kernel(%arg0: i32, %arg1: memref<256x192xf32, #tpu.memory_space<vmem>>, %arg2: memref<256x192xf32, #tpu.memory_space<vmem>>, %arg3: memref<192x64xf32, #tpu.memory_space<vmem>>, %arg4: memref<192x112xf32, #tpu.memory_space<vmem>>, %arg5: memref<192x32xf32, #tpu.memory_space<vmem>>, %arg6: memref<1x64xf32, #tpu.memory_space<vmem>>, %arg7: memref<1x112xf32, #tpu.memory_space<vmem>>, %arg8: memref<1x32xf32, #tpu.memory_space<vmem>>, %arg9: memref<256x64xf32, #tpu.memory_space<vmem>>, %arg10: memref<256x112xf32, #tpu.memory_space<vmem>>, %arg11: memref<256x32xf32, #tpu.memory_space<vmem>>) attributes {dimension_semantics = [#tpu.dimension_semantics<parallel>], iteration_bounds = array<i64: 2>, scalar_prefetch = 0 : i64, scratch_operands = 0 : i64, tpu.core_type = #tpu.core_type<tc>, window_params = [{transform_indices = @transform_0, window_bounds = array<i64: 256, 192>}, {transform_indices = @transform_1, window_bounds = array<i64: 256, 192>}, {pipeline_mode = #tpu.pipeline_mode<synchronous>, transform_indices = @transform_2, window_bounds = array<i64: 192, 64>}, {pipeline_mode = #tpu.pipeline_mode<synchronous>, transform_indices = @transform_3, window_bounds = array<i64: 192, 112>}, {pipeline_mode = #tpu.pipeline_mode<synchronous>, transform_indices = @transform_4, window_bounds = array<i64: 192, 32>}, {pipeline_mode = #tpu.pipeline_mode<synchronous>, transform_indices = @transform_5, window_bounds = array<i64: 1, 64>}, {pipeline_mode = #tpu.pipeline_mode<synchronous>, transform_indices = @transform_6, window_bounds = array<i64: 1, 112>}, {pipeline_mode = #tpu.pipeline_mode<synchronous>, transform_indices = @transform_7, window_bounds = array<i64: 1, 32>}, {transform_indices = @transform_8, window_bounds = array<i64: 256, 64>}, {transform_indices = @transform_9, window_bounds = array<i64: 256, 112>}, {transform_indices = @transform_10, window_bounds = array<i64: 256, 32>}]} {
    %c0 = arith.constant 0 : index
    %c0_0 = arith.constant 0 : index
    %0 = vector.load %arg1[%c0, %c0_0] : memref<256x192xf32, #tpu.memory_space<vmem>>, vector<256x192xf32>
    %c0_1 = arith.constant 0 : index
    %c0_2 = arith.constant 0 : index
    %1 = vector.load %arg3[%c0_1, %c0_2] : memref<192x64xf32, #tpu.memory_space<vmem>>, vector<192x64xf32>
    %cst = arith.constant dense<0.000000e+00> : vector<256x64xf32>
    %2 = tpu.matmul %0, %1, %cst {dimension_numbers = #tpu.dot_dimension_numbers<[1], [0], [0], [1], [0, 0, 1, 1], [], []>} : vector<256x192xf32>, vector<192x64xf32>, vector<256x64xf32> -> vector<256x64xf32>
    %c0_3 = arith.constant 0 : index
    %c0_4 = arith.constant 0 : index
    %3 = vector.load %arg6[%c0_3, %c0_4] : memref<1x64xf32, #tpu.memory_space<vmem>>, vector<1x64xf32>
    %4 = vector.broadcast %3 : vector<1x64xf32> to vector<256x64xf32>
    %5 = arith.addf %2, %4 : vector<256x64xf32>
    %cst_5 = arith.constant 0.000000e+00 : f32
    %6 = vector.broadcast %cst_5 : f32 to vector<256x64xf32>
    %7 = arith.maximumf %5, %6 : vector<256x64xf32>
    %c0_6 = arith.constant 0 : index
    %c0_7 = arith.constant 0 : index
    %8 = vector.load %arg9[%c0_6, %c0_7] : memref<256x64xf32, #tpu.memory_space<vmem>>, vector<256x64xf32>
    tpu.vector_store %arg9[%c0_6, %c0_7], %7 {strides = array<i32>} : memref<256x64xf32, #tpu.memory_space<vmem>>, vector<256x64xf32>,
    %c0_8 = arith.constant 0 : index
    %c0_9 = arith.constant 0 : index
    %9 = vector.load %arg4[%c0_8, %c0_9] : memref<192x112xf32, #tpu.memory_space<vmem>>, vector<192x112xf32>
    %cst_10 = arith.constant dense<0.000000e+00> : vector<256x112xf32>
    %10 = tpu.matmul %0, %9, %cst_10 {dimension_numbers = #tpu.dot_dimension_numbers<[1], [0], [0], [1], [0, 0, 1, 1], [], []>} : vector<256x192xf32>, vector<192x112xf32>, vector<256x112xf32> -> vector<256x112xf32>
    %c0_11 = arith.constant 0 : index
    %c0_12 = arith.constant 0 : index
    %11 = vector.load %arg7[%c0_11, %c0_12] : memref<1x112xf32, #tpu.memory_space<vmem>>, vector<1x112xf32>
    %12 = vector.broadcast %11 : vector<1x112xf32> to vector<256x112xf32>
    %13 = arith.addf %10, %12 : vector<256x112xf32>
    %cst_13 = arith.constant 0.000000e+00 : f32
    %14 = vector.broadcast %cst_13 : f32 to vector<256x112xf32>
    %15 = arith.maximumf %13, %14 : vector<256x112xf32>
    %c0_14 = arith.constant 0 : index
    %c0_15 = arith.constant 0 : index
    %16 = vector.load %arg10[%c0_14, %c0_15] : memref<256x112xf32, #tpu.memory_space<vmem>>, vector<256x112xf32>
    tpu.vector_store %arg10[%c0_14, %c0_15], %15 {strides = array<i32>} : memref<256x112xf32, #tpu.memory_space<vmem>>, vector<256x112xf32>,
    %c0_16 = arith.constant 0 : index
    %c0_17 = arith.constant 0 : index
    %17 = vector.load %arg2[%c0_16, %c0_17] : memref<256x192xf32, #tpu.memory_space<vmem>>, vector<256x192xf32>
    %c0_18 = arith.constant 0 : index
    %c0_19 = arith.constant 0 : index
    %18 = vector.load %arg5[%c0_18, %c0_19] : memref<192x32xf32, #tpu.memory_space<vmem>>, vector<192x32xf32>
    %cst_20 = arith.constant dense<0.000000e+00> : vector<256x32xf32>
    %19 = tpu.matmul %17, %18, %cst_20 {dimension_numbers = #tpu.dot_dimension_numbers<[1], [0], [0], [1], [0, 0, 1, 1], [], []>} : vector<256x192xf32>, vector<192x32xf32>, vector<256x32xf32> -> vector<256x32xf32>
    %c0_21 = arith.constant 0 : index
    %c0_22 = arith.constant 0 : index
    %20 = vector.load %arg8[%c0_21, %c0_22] : memref<1x32xf32, #tpu.memory_space<vmem>>, vector<1x32xf32>
    %21 = vector.broadcast %20 : vector<1x32xf32> to vector<256x32xf32>
    %22 = arith.addf %19, %21 : vector<256x32xf32>
    %cst_23 = arith.constant 0.000000e+00 : f32
    %23 = vector.broadcast %cst_23 : f32 to vector<256x32xf32>
    %24 = arith.maximumf %22, %23 : vector<256x32xf32>
    %c0_24 = arith.constant 0 : index
    %c0_25 = arith.constant 0 : index
    %25 = vector.load %arg11[%c0_24, %c0_25] : memref<256x32xf32, #tpu.memory_space<vmem>>, vector<256x32xf32>
    tpu.vector_store %arg11[%c0_24, %c0_25], %24 {strides = array<i32>} : memref<256x32xf32, #tpu.memory_space<vmem>>, vector<256x32xf32>,
    return
  }
  func.func @transform_0(%arg0: i32) -> (i32, i32) {
    %c0_i32 = arith.constant 0 : i32
    %c0_i32_0 = arith.constant 0 : i32
    return %arg0, %c0_i32 : i32, i32
  }
  func.func @transform_1(%arg0: i32) -> (i32, i32) {
    %c0_i32 = arith.constant 0 : i32
    %c0_i32_0 = arith.constant 0 : i32
    return %arg0, %c0_i32 : i32, i32
  }
  func.func @transform_2(%arg0: i32) -> (i32, i32) {
    %c0_i32 = arith.constant 0 : i32
    %c0_i32_0 = arith.constant 0 : i32
    %c0_i32_1 = arith.constant 0 : i32
    return %c0_i32, %c0_i32_0 : i32, i32
  }
  func.func @transform_3(%arg0: i32) -> (i32, i32) {
    %c0_i32 = arith.constant 0 : i32
    %c0_i32_0 = arith.constant 0 : i32
    %c0_i32_1 = arith.constant 0 : i32
    return %c0_i32, %c0_i32_0 : i32, i32
  }
  func.func @transform_4(%arg0: i32) -> (i32, i32) {
    %c0_i32 = arith.constant 0 : i32
    %c0_i32_0 = arith.constant 0 : i32
    %c0_i32_1 = arith.constant 0 : i32
    return %c0_i32, %c0_i32_0 : i32, i32
  }
  func.func @transform_5(%arg0: i32) -> (i32, i32) {
    %c0_i32 = arith.constant 0 : i32
    %c0_i32_0 = arith.constant 0 : i32
    %c0_i32_1 = arith.constant 0 : i32
    return %c0_i32, %c0_i32_0 : i32, i32
  }
  func.func @transform_6(%arg0: i32) -> (i32, i32) {
    %c0_i32 = arith.constant 0 : i32
    %c0_i32_0 = arith.constant 0 : i32
    %c0_i32_1 = arith.constant 0 : i32
    return %c0_i32, %c0_i32_0 : i32, i32
  }
  func.func @transform_7(%arg0: i32) -> (i32, i32) {
    %c0_i32 = arith.constant 0 : i32
    %c0_i32_0 = arith.constant 0 : i32
    %c0_i32_1 = arith.constant 0 : i32
    return %c0_i32, %c0_i32_0 : i32, i32
  }
  func.func @transform_8(%arg0: i32) -> (i32, i32) {
    %c0_i32 = arith.constant 0 : i32
    %c0_i32_0 = arith.constant 0 : i32
    return %arg0, %c0_i32 : i32, i32
  }
  func.func @transform_9(%arg0: i32) -> (i32, i32) {
    %c0_i32 = arith.constant 0 : i32
    %c0_i32_0 = arith.constant 0 : i32
    return %arg0, %c0_i32 : i32, i32
  }
  func.func @transform_10(%arg0: i32) -> (i32, i32) {
    %c0_i32 = arith.constant 0 : i32
    %c0_i32_0 = arith.constant 0 : i32
    return %arg0, %c0_i32 : i32, i32
  }
}

module attributes {stable_mosaic.version = 11 : i64} {
  func.func @_spatial_kernel(%arg0: i32, %arg1: memref<4x102x112xf32, #tpu.memory_space<vmem>>, %arg2: memref<9x112x160xf32, #tpu.memory_space<vmem>>, %arg3: memref<1x160xf32, #tpu.memory_space<vmem>>, %arg4: memref<4x80x160xf32, #tpu.memory_space<vmem>>) attributes {dimension_semantics = [#tpu.dimension_semantics<parallel>], iteration_bounds = array<i64: 2>, scalar_prefetch = 0 : i64, scratch_operands = 0 : i64, tpu.core_type = #tpu.core_type<tc>, window_params = [{transform_indices = @transform_0, window_bounds = array<i64: 4, 102, 112>}, {pipeline_mode = #tpu.pipeline_mode<synchronous>, transform_indices = @transform_1, window_bounds = array<i64: 9, 112, 160>}, {pipeline_mode = #tpu.pipeline_mode<synchronous>, transform_indices = @transform_2, window_bounds = array<i64: 1, 160>}, {transform_indices = @transform_3, window_bounds = array<i64: 4, 80, 160>}]} {
    %cst = arith.constant 0.000000e+00 : f32
    %0 = vector.broadcast %cst : f32 to vector<320x160xf32>
    %c0 = arith.constant 0 : index
    %c0_0 = arith.constant 0 : index
    %c0_1 = arith.constant 0 : index
    %1 = vector.load %arg1[%c0, %c0_0, %c0_1] : memref<4x102x112xf32, #tpu.memory_space<vmem>>, vector<4x80x112xf32>
    %2 = vector.shape_cast %1 : vector<4x80x112xf32> to vector<320x112xf32>
    %c0_2 = arith.constant 0 : index
    %c0_3 = arith.constant 0 : index
    %c0_4 = arith.constant 0 : index
    %3 = vector.load %arg2[%c0_2, %c0_3, %c0_4] : memref<9x112x160xf32, #tpu.memory_space<vmem>>, vector<1x112x160xf32>
    %4 = vector.shape_cast %3 : vector<1x112x160xf32> to vector<112x160xf32>
    %cst_5 = arith.constant dense<0.000000e+00> : vector<320x160xf32>
    %5 = tpu.matmul %2, %4, %cst_5 {dimension_numbers = #tpu.dot_dimension_numbers<[1], [0], [0], [1], [0, 0, 1, 1], [], []>} : vector<320x112xf32>, vector<112x160xf32>, vector<320x160xf32> -> vector<320x160xf32>
    %6 = arith.addf %0, %5 : vector<320x160xf32>
    %c0_6 = arith.constant 0 : index
    %c1 = arith.constant 1 : index
    %c0_7 = arith.constant 0 : index
    %7 = vector.load %arg1[%c0_6, %c1, %c0_7] : memref<4x102x112xf32, #tpu.memory_space<vmem>>, vector<4x80x112xf32>
    %8 = vector.shape_cast %7 : vector<4x80x112xf32> to vector<320x112xf32>
    %c1_8 = arith.constant 1 : index
    %c0_9 = arith.constant 0 : index
    %c0_10 = arith.constant 0 : index
    %9 = vector.load %arg2[%c1_8, %c0_9, %c0_10] : memref<9x112x160xf32, #tpu.memory_space<vmem>>, vector<1x112x160xf32>
    %10 = vector.shape_cast %9 : vector<1x112x160xf32> to vector<112x160xf32>
    %cst_11 = arith.constant dense<0.000000e+00> : vector<320x160xf32>
    %11 = tpu.matmul %8, %10, %cst_11 {dimension_numbers = #tpu.dot_dimension_numbers<[1], [0], [0], [1], [0, 0, 1, 1], [], []>} : vector<320x112xf32>, vector<112x160xf32>, vector<320x160xf32> -> vector<320x160xf32>
    %12 = arith.addf %6, %11 : vector<320x160xf32>
    %c0_12 = arith.constant 0 : index
    %c2 = arith.constant 2 : index
    %c0_13 = arith.constant 0 : index
    %13 = vector.load %arg1[%c0_12, %c2, %c0_13] : memref<4x102x112xf32, #tpu.memory_space<vmem>>, vector<4x80x112xf32>
    %14 = vector.shape_cast %13 : vector<4x80x112xf32> to vector<320x112xf32>
    %c2_14 = arith.constant 2 : index
    %c0_15 = arith.constant 0 : index
    %c0_16 = arith.constant 0 : index
    %15 = vector.load %arg2[%c2_14, %c0_15, %c0_16] : memref<9x112x160xf32, #tpu.memory_space<vmem>>, vector<1x112x160xf32>
    %16 = vector.shape_cast %15 : vector<1x112x160xf32> to vector<112x160xf32>
    %cst_17 = arith.constant dense<0.000000e+00> : vector<320x160xf32>
    %17 = tpu.matmul %14, %16, %cst_17 {dimension_numbers = #tpu.dot_dimension_numbers<[1], [0], [0], [1], [0, 0, 1, 1], [], []>} : vector<320x112xf32>, vector<112x160xf32>, vector<320x160xf32> -> vector<320x160xf32>
    %18 = arith.addf %12, %17 : vector<320x160xf32>
    %c0_18 = arith.constant 0 : index
    %c10 = arith.constant 10 : index
    %c0_19 = arith.constant 0 : index
    %19 = vector.load %arg1[%c0_18, %c10, %c0_19] : memref<4x102x112xf32, #tpu.memory_space<vmem>>, vector<4x80x112xf32>
    %20 = vector.shape_cast %19 : vector<4x80x112xf32> to vector<320x112xf32>
    %c3 = arith.constant 3 : index
    %c0_20 = arith.constant 0 : index
    %c0_21 = arith.constant 0 : index
    %21 = vector.load %arg2[%c3, %c0_20, %c0_21] : memref<9x112x160xf32, #tpu.memory_space<vmem>>, vector<1x112x160xf32>
    %22 = vector.shape_cast %21 : vector<1x112x160xf32> to vector<112x160xf32>
    %cst_22 = arith.constant dense<0.000000e+00> : vector<320x160xf32>
    %23 = tpu.matmul %20, %22, %cst_22 {dimension_numbers = #tpu.dot_dimension_numbers<[1], [0], [0], [1], [0, 0, 1, 1], [], []>} : vector<320x112xf32>, vector<112x160xf32>, vector<320x160xf32> -> vector<320x160xf32>
    %24 = arith.addf %18, %23 : vector<320x160xf32>
    %c0_23 = arith.constant 0 : index
    %c11 = arith.constant 11 : index
    %c0_24 = arith.constant 0 : index
    %25 = vector.load %arg1[%c0_23, %c11, %c0_24] : memref<4x102x112xf32, #tpu.memory_space<vmem>>, vector<4x80x112xf32>
    %26 = vector.shape_cast %25 : vector<4x80x112xf32> to vector<320x112xf32>
    %c4 = arith.constant 4 : index
    %c0_25 = arith.constant 0 : index
    %c0_26 = arith.constant 0 : index
    %27 = vector.load %arg2[%c4, %c0_25, %c0_26] : memref<9x112x160xf32, #tpu.memory_space<vmem>>, vector<1x112x160xf32>
    %28 = vector.shape_cast %27 : vector<1x112x160xf32> to vector<112x160xf32>
    %cst_27 = arith.constant dense<0.000000e+00> : vector<320x160xf32>
    %29 = tpu.matmul %26, %28, %cst_27 {dimension_numbers = #tpu.dot_dimension_numbers<[1], [0], [0], [1], [0, 0, 1, 1], [], []>} : vector<320x112xf32>, vector<112x160xf32>, vector<320x160xf32> -> vector<320x160xf32>
    %30 = arith.addf %24, %29 : vector<320x160xf32>
    %c0_28 = arith.constant 0 : index
    %c12 = arith.constant 12 : index
    %c0_29 = arith.constant 0 : index
    %31 = vector.load %arg1[%c0_28, %c12, %c0_29] : memref<4x102x112xf32, #tpu.memory_space<vmem>>, vector<4x80x112xf32>
    %32 = vector.shape_cast %31 : vector<4x80x112xf32> to vector<320x112xf32>
    %c5 = arith.constant 5 : index
    %c0_30 = arith.constant 0 : index
    %c0_31 = arith.constant 0 : index
    %33 = vector.load %arg2[%c5, %c0_30, %c0_31] : memref<9x112x160xf32, #tpu.memory_space<vmem>>, vector<1x112x160xf32>
    %34 = vector.shape_cast %33 : vector<1x112x160xf32> to vector<112x160xf32>
    %cst_32 = arith.constant dense<0.000000e+00> : vector<320x160xf32>
    %35 = tpu.matmul %32, %34, %cst_32 {dimension_numbers = #tpu.dot_dimension_numbers<[1], [0], [0], [1], [0, 0, 1, 1], [], []>} : vector<320x112xf32>, vector<112x160xf32>, vector<320x160xf32> -> vector<320x160xf32>
    %36 = arith.addf %30, %35 : vector<320x160xf32>
    %c0_33 = arith.constant 0 : index
    %c20 = arith.constant 20 : index
    %c0_34 = arith.constant 0 : index
    %37 = vector.load %arg1[%c0_33, %c20, %c0_34] : memref<4x102x112xf32, #tpu.memory_space<vmem>>, vector<4x80x112xf32>
    %38 = vector.shape_cast %37 : vector<4x80x112xf32> to vector<320x112xf32>
    %c6 = arith.constant 6 : index
    %c0_35 = arith.constant 0 : index
    %c0_36 = arith.constant 0 : index
    %39 = vector.load %arg2[%c6, %c0_35, %c0_36] : memref<9x112x160xf32, #tpu.memory_space<vmem>>, vector<1x112x160xf32>
    %40 = vector.shape_cast %39 : vector<1x112x160xf32> to vector<112x160xf32>
    %cst_37 = arith.constant dense<0.000000e+00> : vector<320x160xf32>
    %41 = tpu.matmul %38, %40, %cst_37 {dimension_numbers = #tpu.dot_dimension_numbers<[1], [0], [0], [1], [0, 0, 1, 1], [], []>} : vector<320x112xf32>, vector<112x160xf32>, vector<320x160xf32> -> vector<320x160xf32>
    %42 = arith.addf %36, %41 : vector<320x160xf32>
    %c0_38 = arith.constant 0 : index
    %c21 = arith.constant 21 : index
    %c0_39 = arith.constant 0 : index
    %43 = vector.load %arg1[%c0_38, %c21, %c0_39] : memref<4x102x112xf32, #tpu.memory_space<vmem>>, vector<4x80x112xf32>
    %44 = vector.shape_cast %43 : vector<4x80x112xf32> to vector<320x112xf32>
    %c7 = arith.constant 7 : index
    %c0_40 = arith.constant 0 : index
    %c0_41 = arith.constant 0 : index
    %45 = vector.load %arg2[%c7, %c0_40, %c0_41] : memref<9x112x160xf32, #tpu.memory_space<vmem>>, vector<1x112x160xf32>
    %46 = vector.shape_cast %45 : vector<1x112x160xf32> to vector<112x160xf32>
    %cst_42 = arith.constant dense<0.000000e+00> : vector<320x160xf32>
    %47 = tpu.matmul %44, %46, %cst_42 {dimension_numbers = #tpu.dot_dimension_numbers<[1], [0], [0], [1], [0, 0, 1, 1], [], []>} : vector<320x112xf32>, vector<112x160xf32>, vector<320x160xf32> -> vector<320x160xf32>
    %48 = arith.addf %42, %47 : vector<320x160xf32>
    %c0_43 = arith.constant 0 : index
    %c22 = arith.constant 22 : index
    %c0_44 = arith.constant 0 : index
    %49 = vector.load %arg1[%c0_43, %c22, %c0_44] : memref<4x102x112xf32, #tpu.memory_space<vmem>>, vector<4x80x112xf32>
    %50 = vector.shape_cast %49 : vector<4x80x112xf32> to vector<320x112xf32>
    %c8 = arith.constant 8 : index
    %c0_45 = arith.constant 0 : index
    %c0_46 = arith.constant 0 : index
    %51 = vector.load %arg2[%c8, %c0_45, %c0_46] : memref<9x112x160xf32, #tpu.memory_space<vmem>>, vector<1x112x160xf32>
    %52 = vector.shape_cast %51 : vector<1x112x160xf32> to vector<112x160xf32>
    %cst_47 = arith.constant dense<0.000000e+00> : vector<320x160xf32>
    %53 = tpu.matmul %50, %52, %cst_47 {dimension_numbers = #tpu.dot_dimension_numbers<[1], [0], [0], [1], [0, 0, 1, 1], [], []>} : vector<320x112xf32>, vector<112x160xf32>, vector<320x160xf32> -> vector<320x160xf32>
    %54 = arith.addf %48, %53 : vector<320x160xf32>
    %c0_48 = arith.constant 0 : index
    %c0_49 = arith.constant 0 : index
    %55 = vector.load %arg3[%c0_48, %c0_49] : memref<1x160xf32, #tpu.memory_space<vmem>>, vector<1x160xf32>
    %56 = vector.broadcast %55 : vector<1x160xf32> to vector<320x160xf32>
    %57 = arith.addf %54, %56 : vector<320x160xf32>
    %cst_50 = arith.constant 0.000000e+00 : f32
    %58 = vector.broadcast %cst_50 : f32 to vector<320x160xf32>
    %59 = arith.maximumf %57, %58 : vector<320x160xf32>
    %60 = vector.shape_cast %59 : vector<320x160xf32> to vector<4x80x160xf32>
    %c0_51 = arith.constant 0 : index
    %c0_52 = arith.constant 0 : index
    %c0_53 = arith.constant 0 : index
    %61 = vector.load %arg4[%c0_51, %c0_52, %c0_53] : memref<4x80x160xf32, #tpu.memory_space<vmem>>, vector<4x80x160xf32>
    tpu.vector_store %arg4[%c0_51, %c0_52, %c0_53], %60 {strides = array<i32>} : memref<4x80x160xf32, #tpu.memory_space<vmem>>, vector<4x80x160xf32>,
    return
  }
  func.func @transform_0(%arg0: i32) -> (i32, i32, i32) {
    %c0_i32 = arith.constant 0 : i32
    %c0_i32_0 = arith.constant 0 : i32
    %c0_i32_1 = arith.constant 0 : i32
    return %arg0, %c0_i32, %c0_i32_0 : i32, i32, i32
  }
  func.func @transform_1(%arg0: i32) -> (i32, i32, i32) {
    %c0_i32 = arith.constant 0 : i32
    %c0_i32_0 = arith.constant 0 : i32
    %c0_i32_1 = arith.constant 0 : i32
    %c0_i32_2 = arith.constant 0 : i32
    return %c0_i32, %c0_i32_0, %c0_i32_1 : i32, i32, i32
  }
  func.func @transform_2(%arg0: i32) -> (i32, i32) {
    %c0_i32 = arith.constant 0 : i32
    %c0_i32_0 = arith.constant 0 : i32
    %c0_i32_1 = arith.constant 0 : i32
    return %c0_i32, %c0_i32_0 : i32, i32
  }
  func.func @transform_3(%arg0: i32) -> (i32, i32, i32) {
    %c0_i32 = arith.constant 0 : i32
    %c0_i32_0 = arith.constant 0 : i32
    %c0_i32_1 = arith.constant 0 : i32
    return %arg0, %c0_i32, %c0_i32_0 : i32, i32, i32
  }
}

module attributes {stable_mosaic.version = 11 : i64} {
  func.func @_temporal_kernel(%arg0: i32, %arg1: i32, %arg2: memref<1x6x80x160xf32, #tpu.memory_space<vmem>>, %arg3: memref<3x160x160xf32, #tpu.memory_space<vmem>>, %arg4: memref<1x160xf32, #tpu.memory_space<vmem>>, %arg5: memref<1x4x80x160xf32, #tpu.memory_space<vmem>>) attributes {dimension_semantics = [#tpu.dimension_semantics<parallel>, #tpu.dimension_semantics<parallel>], iteration_bounds = array<i64: 2, 1>, scalar_prefetch = 0 : i64, scratch_operands = 0 : i64, tpu.core_type = #tpu.core_type<tc>, window_params = [{transform_indices = @transform_0, window_bounds = array<i64: 1, 6, 80, 160>}, {pipeline_mode = #tpu.pipeline_mode<synchronous>, transform_indices = @transform_1, window_bounds = array<i64: 3, 160, 160>}, {pipeline_mode = #tpu.pipeline_mode<synchronous>, transform_indices = @transform_2, window_bounds = array<i64: 1, 160>}, {transform_indices = @transform_3, window_bounds = array<i64: 1, 4, 80, 160>}]} {
    %cst = arith.constant 0.000000e+00 : f32
    %0 = vector.broadcast %cst : f32 to vector<320x160xf32>
    %c0 = arith.constant 0 : index
    %c0_0 = arith.constant 0 : index
    %c0_1 = arith.constant 0 : index
    %c0_2 = arith.constant 0 : index
    %1 = vector.load %arg2[%c0, %c0_0, %c0_1, %c0_2] : memref<1x6x80x160xf32, #tpu.memory_space<vmem>>, vector<1x4x80x160xf32>
    %2 = vector.shape_cast %1 : vector<1x4x80x160xf32> to vector<4x80x160xf32>
    %3 = vector.shape_cast %2 : vector<4x80x160xf32> to vector<320x160xf32>
    %c0_3 = arith.constant 0 : index
    %c0_4 = arith.constant 0 : index
    %c0_5 = arith.constant 0 : index
    %4 = vector.load %arg3[%c0_3, %c0_4, %c0_5] : memref<3x160x160xf32, #tpu.memory_space<vmem>>, vector<1x160x160xf32>
    %5 = vector.shape_cast %4 : vector<1x160x160xf32> to vector<160x160xf32>
    %cst_6 = arith.constant dense<0.000000e+00> : vector<320x160xf32>
    %6 = tpu.matmul %3, %5, %cst_6 {dimension_numbers = #tpu.dot_dimension_numbers<[1], [0], [0], [1], [0, 0, 1, 1], [], []>} : vector<320x160xf32>, vector<160x160xf32>, vector<320x160xf32> -> vector<320x160xf32>
    %7 = arith.addf %0, %6 : vector<320x160xf32>
    %c0_7 = arith.constant 0 : index
    %c1 = arith.constant 1 : index
    %c0_8 = arith.constant 0 : index
    %c0_9 = arith.constant 0 : index
    %8 = vector.load %arg2[%c0_7, %c1, %c0_8, %c0_9] : memref<1x6x80x160xf32, #tpu.memory_space<vmem>>, vector<1x4x80x160xf32>
    %9 = vector.shape_cast %8 : vector<1x4x80x160xf32> to vector<4x80x160xf32>
    %10 = vector.shape_cast %9 : vector<4x80x160xf32> to vector<320x160xf32>
    %c1_10 = arith.constant 1 : index
    %c0_11 = arith.constant 0 : index
    %c0_12 = arith.constant 0 : index
    %11 = vector.load %arg3[%c1_10, %c0_11, %c0_12] : memref<3x160x160xf32, #tpu.memory_space<vmem>>, vector<1x160x160xf32>
    %12 = vector.shape_cast %11 : vector<1x160x160xf32> to vector<160x160xf32>
    %cst_13 = arith.constant dense<0.000000e+00> : vector<320x160xf32>
    %13 = tpu.matmul %10, %12, %cst_13 {dimension_numbers = #tpu.dot_dimension_numbers<[1], [0], [0], [1], [0, 0, 1, 1], [], []>} : vector<320x160xf32>, vector<160x160xf32>, vector<320x160xf32> -> vector<320x160xf32>
    %14 = arith.addf %7, %13 : vector<320x160xf32>
    %c0_14 = arith.constant 0 : index
    %c2 = arith.constant 2 : index
    %c0_15 = arith.constant 0 : index
    %c0_16 = arith.constant 0 : index
    %15 = vector.load %arg2[%c0_14, %c2, %c0_15, %c0_16] : memref<1x6x80x160xf32, #tpu.memory_space<vmem>>, vector<1x4x80x160xf32>
    %16 = vector.shape_cast %15 : vector<1x4x80x160xf32> to vector<4x80x160xf32>
    %17 = vector.shape_cast %16 : vector<4x80x160xf32> to vector<320x160xf32>
    %c2_17 = arith.constant 2 : index
    %c0_18 = arith.constant 0 : index
    %c0_19 = arith.constant 0 : index
    %18 = vector.load %arg3[%c2_17, %c0_18, %c0_19] : memref<3x160x160xf32, #tpu.memory_space<vmem>>, vector<1x160x160xf32>
    %19 = vector.shape_cast %18 : vector<1x160x160xf32> to vector<160x160xf32>
    %cst_20 = arith.constant dense<0.000000e+00> : vector<320x160xf32>
    %20 = tpu.matmul %17, %19, %cst_20 {dimension_numbers = #tpu.dot_dimension_numbers<[1], [0], [0], [1], [0, 0, 1, 1], [], []>} : vector<320x160xf32>, vector<160x160xf32>, vector<320x160xf32> -> vector<320x160xf32>
    %21 = arith.addf %14, %20 : vector<320x160xf32>
    %c0_21 = arith.constant 0 : index
    %c0_22 = arith.constant 0 : index
    %22 = vector.load %arg4[%c0_21, %c0_22] : memref<1x160xf32, #tpu.memory_space<vmem>>, vector<1x160xf32>
    %23 = vector.broadcast %22 : vector<1x160xf32> to vector<320x160xf32>
    %24 = arith.addf %21, %23 : vector<320x160xf32>
    %cst_23 = arith.constant 0.000000e+00 : f32
    %25 = vector.broadcast %cst_23 : f32 to vector<320x160xf32>
    %26 = arith.maximumf %24, %25 : vector<320x160xf32>
    %27 = vector.shape_cast %26 : vector<320x160xf32> to vector<4x80x160xf32>
    %c0_24 = arith.constant 0 : index
    %c0_25 = arith.constant 0 : index
    %c0_26 = arith.constant 0 : index
    %c0_27 = arith.constant 0 : index
    %28 = vector.load %arg5[%c0_24, %c0_25, %c0_26, %c0_27] : memref<1x4x80x160xf32, #tpu.memory_space<vmem>>, vector<1x4x80x160xf32>
    %29 = vector.shape_cast %28 : vector<1x4x80x160xf32> to vector<4x80x160xf32>
    %30 = vector.shape_cast %27 : vector<4x80x160xf32> to vector<1x4x80x160xf32>
    tpu.vector_store %arg5[%c0_24, %c0_25, %c0_26, %c0_27], %30 {strides = array<i32>} : memref<1x4x80x160xf32, #tpu.memory_space<vmem>>, vector<1x4x80x160xf32>,
    return
  }
  func.func @transform_0(%arg0: i32, %arg1: i32) -> (i32, i32, i32, i32) {
    %c0_i32 = arith.constant 0 : i32
    %c0_i32_0 = arith.constant 0 : i32
    %c0_i32_1 = arith.constant 0 : i32
    return %arg0, %c0_i32, %arg1, %c0_i32_0 : i32, i32, i32, i32
  }
  func.func @transform_1(%arg0: i32, %arg1: i32) -> (i32, i32, i32) {
    %c0_i32 = arith.constant 0 : i32
    %c0_i32_0 = arith.constant 0 : i32
    %c0_i32_1 = arith.constant 0 : i32
    %c0_i32_2 = arith.constant 0 : i32
    return %c0_i32, %c0_i32_0, %c0_i32_1 : i32, i32, i32
  }
  func.func @transform_2(%arg0: i32, %arg1: i32) -> (i32, i32) {
    %c0_i32 = arith.constant 0 : i32
    %c0_i32_0 = arith.constant 0 : i32
    %c0_i32_1 = arith.constant 0 : i32
    return %c0_i32, %c0_i32_0 : i32, i32
  }
  func.func @transform_3(%arg0: i32, %arg1: i32) -> (i32, i32, i32, i32) {
    %c0_i32 = arith.constant 0 : i32
    %c0_i32_0 = arith.constant 0 : i32
    %c0_i32_1 = arith.constant 0 : i32
    return %arg0, %c0_i32, %arg1, %c0_i32_0 : i32, i32, i32, i32
  }
}

</mosaic_0001>

<llo_original>
// kernel: mixed_3b_forward.3
$region0: #{mixed_3b_forward.3}
  #allocation0 [shape = 'u32[]', space=smem, size = 0x4, offset = 0x4, fixed_abs, tag = 'smem constant byte address 0x4 - core index']
  #allocation1 [shape = 'u32[72,128]{1,0:T(1,128)}', space=vmem, size = 0x9000, scoped, tag = 'internal scratch']
  %s0 = inlined_call_operand.vmem [shape: f32[512,192], index: 0, kind: input, shape index: {}]
  %s1 = inlined_call_operand.vmem [shape: f32[512,192], index: 1, kind: input, shape index: {}]
  %s2 = inlined_call_operand.vmem [shape: f32[192,64], index: 2, kind: input, shape index: {}]
  %s3 = inlined_call_operand.vmem [shape: f32[192,112], index: 3, kind: input, shape index: {}]
  %s4 = inlined_call_operand.vmem [shape: f32[192,32], index: 4, kind: input, shape index: {}]
  %s5 = inlined_call_operand.vmem [shape: f32[1,64], index: 5, kind: input, shape index: {}]
  %s6 = inlined_call_operand.vmem [shape: f32[1,112], index: 6, kind: input, shape index: {}]
  %s7 = inlined_call_operand.vmem [shape: f32[1,32], index: 7, kind: input, shape index: {}]
  %s8 = inlined_call_operand.vmem [shape: f32[512,64], index: 8, kind: output, shape index: {0}]
  %s9 = inlined_call_operand.vmem [shape: f32[512,112], index: 9, kind: output, shape index: {1}]
  %s10 = inlined_call_operand.vmem [shape: f32[512,32], index: 10, kind: output, shape index: {2}]
  %11 = xla_tuple %s8, %s9, %s10
  %s12 = sld [smem:[#allocation0]]
  $region81: #{mixed_3b_forward.3} parent=0
    _
  %s14 = ssub.s32 1, %s12
  %s15 = scalar_select 0, %s14, %s12
  loop: start=0, step=1, limit=4
  $region2: #{mixed_3b_forward.3} parent=0 // loop_pre_header
    _
  $region3: #{mixed_3b_forward.3} parent=0 // loop_header
    %s17 = sphi 0, %s21
    %p18 = scmp.ge.s32.totalorder %s17, 4
    %s27 = sphi 0, %s29
    %s30 = sphi 0, %s27
    %s31 = sphi 0, %s30
    %s47 = sphi 0, %s31
    %s53 = sphi 0, %s55
    %s56 = sphi 0, %s53
    %s57 = sphi 0, %s56
    %s73 = sphi 0, %s57
    %s77 = sphi 0, %s77
    %s79 = sphi 0, %s77
    %s80 = sphi 0, %s79
    %s94 = sphi 0, %s80
    %s98 = sphi 0, %s98
    %s100 = sphi 0, %s98
    %s101 = sphi 0, %s100
    %s115 = sphi 0, %s101
    %s119 = sphi 0, %s119
    %s121 = sphi 0, %s119
    %s122 = sphi 0, %s121
    %s136 = sphi 0, %s122
    %s140 = sphi 0, %s140
    %s142 = sphi 0, %s140
    %s143 = sphi 0, %s142
    %s157 = sphi 0, %s143
    %s161 = sphi 0, %s161
    %s163 = sphi 0, %s161
    %s164 = sphi 0, %s163
    %s178 = sphi 0, %s164
    %s182 = sphi 0, %s182
    %s184 = sphi 0, %s182
    %s185 = sphi 0, %s184
    %s199 = sphi 0, %s185
    %s205 = sphi 0, %s207
    %s208 = sphi 0, %s205
    %s209 = sphi 0, %s208
    %s225 = sphi 0, %s209
    %s231 = sphi 0, %s233
    %s234 = sphi 0, %s231
    %s235 = sphi 0, %s234
    %s251 = sphi 0, %s235
    %s257 = sphi 0, %s259
    %s260 = sphi 0, %s257
    %s261 = sphi 0, %s260
    %s277 = sphi 0, %s261
  $region4: #{mixed_3b_forward.3} parent=0 // loop_header_branch
    %20 = sbr.rel (%p18) target = $region8
  $region5: #{mixed_3b_forward.3} parent=0 // loop_body
    %s22 = ssub.s32 %s17, 1
    %s23 = ssub.s32 %s17, 2
    %s24 = sadd.s32 %s17, 1
    %s25 = ssub.s32 %s17, %s24
    %p26 = scmp.eq.s32.totalorder %s25, 0
    %s28 = sadd.s32 %s27, 1
    %s29 = scalar_select %p26, %s27, %s28
    %p32 = pneg %p26
    %p33 = scmp.eq.s32.totalorder %s17, 1
    %p34 = por %p32, %p33
    %p35 = scmp.ne.s32.totalorder %s27, %s30
    %p36 = scmp.eq.s32.totalorder %s17, 0
    %p37 = por %p35, %p36
    %p38 = scmp.ne.s32.totalorder %s27, %s30
    %p39 = scmp.eq.s32.totalorder %s22, 1
    %p40 = por %p38, %p39
    %p41 = scmp.ne.s32.totalorder %s30, %s31
    %p42 = scmp.eq.s32.totalorder %s22, 0
    %p43 = por %p41, %p42
    %p44 = scmp.ne.s32.totalorder %s30, %s31
    %p45 = scmp.eq.s32.totalorder %s23, 1
    %p46 = por %p44, %p45
    %p48 = scmp.ne.s32.totalorder %s31, %s47
    %p49 = scmp.eq.s32.totalorder %s23, 0
    %p50 = por %p48, %p49
    %s51 = ssub.s32 %s17, %s24
    %p52 = scmp.eq.s32.totalorder %s51, 0
    %s54 = sadd.s32 %s53, 1
    %s55 = scalar_select %p52, %s53, %s54
    %p58 = pneg %p52
    %p59 = scmp.eq.s32.totalorder %s17, 1
    %p60 = por %p58, %p59
    %p61 = scmp.ne.s32.totalorder %s53, %s56
    %p62 = scmp.eq.s32.totalorder %s17, 0
    %p63 = por %p61, %p62
    %p64 = scmp.ne.s32.totalorder %s53, %s56
    %p65 = scmp.eq.s32.totalorder %s22, 1
    %p66 = por %p64, %p65
    %p67 = scmp.ne.s32.totalorder %s56, %s57
    %p68 = scmp.eq.s32.totalorder %s22, 0
    %p69 = por %p67, %p68
    %p70 = scmp.ne.s32.totalorder %s56, %s57
    %p71 = scmp.eq.s32.totalorder %s23, 1
    %p72 = por %p70, %p71
    %p74 = scmp.ne.s32.totalorder %s57, %s73
    %p75 = scmp.eq.s32.totalorder %s23, 0
    %p76 = por %p74, %p75
    %s78 = sadd.s32 %s77, 1
    %p81 = scmp.eq.s32.totalorder %s17, 1
    %p82 = scmp.ne.s32.totalorder %s77, %s79
    %p83 = scmp.eq.s32.totalorder %s17, 0
    %p84 = por %p82, %p83
    %p85 = scmp.ne.s32.totalorder %s77, %s79
    %p86 = scmp.eq.s32.totalorder %s22, 1
    %p87 = por %p85, %p86
    %p88 = scmp.ne.s32.totalorder %s79, %s80
    %p89 = scmp.eq.s32.totalorder %s22, 0
    %p90 = por %p88, %p89
    %p91 = scmp.ne.s32.totalorder %s79, %s80
    %p92 = scmp.eq.s32.totalorder %s23, 1
    %p93 = por %p91, %p92
    %p95 = scmp.ne.s32.totalorder %s80, %s94
    %p96 = scmp.eq.s32.totalorder %s23, 0
    %p97 = por %p95, %p96
    %s99 = sadd.s32 %s98, 1
    %p102 = scmp.eq.s32.totalorder %s17, 1
    %p103 = scmp.ne.s32.totalorder %s98, %s100
    %p104 = scmp.eq.s32.totalorder %s17, 0
    %p105 = por %p103, %p104
    %p106 = scmp.ne.s32.totalorder %s98, %s100
    %p107 = scmp.eq.s32.totalorder %s22, 1
    %p108 = por %p106, %p107
    %p109 = scmp.ne.s32.totalorder %s100, %s101
    %p110 = scmp.eq.s32.totalorder %s22, 0
    %p111 = por %p109, %p110
    %p112 = scmp.ne.s32.totalorder %s100, %s101
    %p113 = scmp.eq.s32.totalorder %s23, 1
    %p114 = por %p112, %p113
    %p116 = scmp.ne.s32.totalorder %s101, %s115
    %p117 = scmp.eq.s32.totalorder %s23, 0
    %p118 = por %p116, %p117
    %s120 = sadd.s32 %s119, 1
    %p123 = scmp.eq.s32.totalorder %s17, 1
    %p124 = scmp.ne.s32.totalorder %s119, %s121
    %p125 = scmp.eq.s32.totalorder %s17, 0
    %p126 = por %p124, %p125
    %p127 = scmp.ne.s32.totalorder %s119, %s121
    %p128 = scmp.eq.s32.totalorder %s22, 1
    %p129 = por %p127, %p128
    %p130 = scmp.ne.s32.totalorder %s121, %s122
    %p131 = scmp.eq.s32.totalorder %s22, 0
    %p132 = por %p130, %p131
    %p133 = scmp.ne.s32.totalorder %s121, %s122
    %p134 = scmp.eq.s32.totalorder %s23, 1
    %p135 = por %p133, %p134
    %p137 = scmp.ne.s32.totalorder %s122, %s136
    %p138 = scmp.eq.s32.totalorder %s23, 0
    %p139 = por %p137, %p138
    %s141 = sadd.s32 %s140, 1
    %p144 = scmp.eq.s32.totalorder %s17, 1
    %p145 = scmp.ne.s32.totalorder %s140, %s142
    %p146 = scmp.eq.s32.totalorder %s17, 0
    %p147 = por %p145, %p146
    %p148 = scmp.ne.s32.totalorder %s140, %s142
    %p149 = scmp.eq.s32.totalorder %s22, 1
    %p150 = por %p148, %p149
    %p151 = scmp.ne.s32.totalorder %s142, %s143
    %p152 = scmp.eq.s32.totalorder %s22, 0
    %p153 = por %p151, %p152
    %p154 = scmp.ne.s32.totalorder %s142, %s143
    %p155 = scmp.eq.s32.totalorder %s23, 1
    %p156 = por %p154, %p155
    %p158 = scmp.ne.s32.totalorder %s143, %s157
    %p159 = scmp.eq.s32.totalorder %s23, 0
    %p160 = por %p158, %p159
    %s162 = sadd.s32 %s161, 1
    %p165 = scmp.eq.s32.totalorder %s17, 1
    %p166 = scmp.ne.s32.totalorder %s161, %s163
    %p167 = scmp.eq.s32.totalorder %s17, 0
    %p168 = por %p166, %p167
    %p169 = scmp.ne.s32.totalorder %s161, %s163
    %p170 = scmp.eq.s32.totalorder %s22, 1
    %p171 = por %p169, %p170
    %p172 = scmp.ne.s32.totalorder %s163, %s164
    %p173 = scmp.eq.s32.totalorder %s22, 0
    %p174 = por %p172, %p173
    %p175 = scmp.ne.s32.totalorder %s163, %s164
    %p176 = scmp.eq.s32.totalorder %s23, 1
    %p177 = por %p175, %p176
    %p179 = scmp.ne.s32.totalorder %s164, %s178
    %p180 = scmp.eq.s32.totalorder %s23, 0
    %p181 = por %p179, %p180
    %s183 = sadd.s32 %s182, 1
    %p186 = scmp.eq.s32.totalorder %s17, 1
    %p187 = scmp.ne.s32.totalorder %s182, %s184
    %p188 = scmp.eq.s32.totalorder %s17, 0
    %p189 = por %p187, %p188
    %p190 = scmp.ne.s32.totalorder %s182, %s184
    %p191 = scmp.eq.s32.totalorder %s22, 1
    %p192 = por %p190, %p191
    %p193 = scmp.ne.s32.totalorder %s184, %s185
    %p194 = scmp.eq.s32.totalorder %s22, 0
    %p195 = por %p193, %p194
    %p196 = scmp.ne.s32.totalorder %s184, %s185
    %p197 = scmp.eq.s32.totalorder %s23, 1
    %p198 = por %p196, %p197
    %p200 = scmp.ne.s32.totalorder %s185, %s199
    %p201 = scmp.eq.s32.totalorder %s23, 0
    %p202 = por %p200, %p201
    %s203 = ssub.s32 %s17, %s24
    %p204 = scmp.eq.s32.totalorder %s203, 0
    %s206 = sadd.s32 %s205, 1
    %s207 = scalar_select %p204, %s205, %s206
    %p210 = pneg %p204
    %p211 = scmp.eq.s32.totalorder %s17, 1
    %p212 = por %p210, %p211
    %p213 = scmp.ne.s32.totalorder %s205, %s208
    %p214 = scmp.eq.s32.totalorder %s17, 0
    %p215 = por %p213, %p214
    %p216 = scmp.ne.s32.totalorder %s205, %s208
    %p217 = scmp.eq.s32.totalorder %s22, 1
    %p218 = por %p216, %p217
    %p219 = scmp.ne.s32.totalorder %s208, %s209
    %p220 = scmp.eq.s32.totalorder %s22, 0
    %p221 = por %p219, %p220
    %p222 = scmp.ne.s32.totalorder %s208, %s209
    %p223 = scmp.eq.s32.totalorder %s23, 1
    %p224 = por %p222, %p223
    %p226 = scmp.ne.s32.totalorder %s209, %s225
    %p227 = scmp.eq.s32.totalorder %s23, 0
    %p228 = por %p226, %p227
    %s229 = ssub.s32 %s17, %s24
    %p230 = scmp.eq.s32.totalorder %s229, 0
    %s232 = sadd.s32 %s231, 1
    %s233 = scalar_select %p230, %s231, %s232
    %p236 = pneg %p230
    %p237 = scmp.eq.s32.totalorder %s17, 1
    %p238 = por %p236, %p237
    %p239 = scmp.ne.s32.totalorder %s231, %s234
    %p240 = scmp.eq.s32.totalorder %s17, 0
    %p241 = por %p239, %p240
    %p242 = scmp.ne.s32.totalorder %s231, %s234
    %p243 = scmp.eq.s32.totalorder %s22, 1
    %p244 = por %p242, %p243
    %p245 = scmp.ne.s32.totalorder %s234, %s235
    %p246 = scmp.eq.s32.totalorder %s22, 0
    %p247 = por %p245, %p246
    %p248 = scmp.ne.s32.totalorder %s234, %s235
    %p249 = scmp.eq.s32.totalorder %s23, 1
    %p250 = por %p248, %p249
    %p252 = scmp.ne.s32.totalorder %s235, %s251
    %p253 = scmp.eq.s32.totalorder %s23, 0
    %p254 = por %p252, %p253
    %s255 = ssub.s32 %s17, %s24
    %p256 = scmp.eq.s32.totalorder %s255, 0
    %s258 = sadd.s32 %s257, 1
    %s259 = scalar_select %p256, %s257, %s258
    %p262 = pneg %p256
    %p263 = scmp.eq.s32.totalorder %s17, 1
    %p264 = por %p262, %p263
    %p265 = scmp.ne.s32.totalorder %s257, %s260
    %p266 = scmp.eq.s32.totalorder %s17, 0
    %p267 = por %p265, %p266
    %p268 = scmp.ne.s32.totalorder %s257, %s260
    %p269 = scmp.eq.s32.totalorder %s22, 1
    %p270 = por %p268, %p269
    %p271 = scmp.ne.s32.totalorder %s260, %s261
    %p272 = scmp.eq.s32.totalorder %s22, 0
    %p273 = por %p271, %p272
    %p274 = scmp.ne.s32.totalorder %s260, %s261
    %p275 = scmp.eq.s32.totalorder %s23, 1
    %p276 = por %p274, %p275
    %p278 = scmp.ne.s32.totalorder %s261, %s277
    %p279 = scmp.eq.s32.totalorder %s23, 0
    %p280 = por %p278, %p279
    %p281 = scmp.le.s32.totalorder 1, %s17
    %p282 = scmp.lt.s32.totalorder %s17, 3
    %p283 = pnand %p281, %p282
    %p284 = pneg %p283
    // Predicated region
    $region9: #{mixed_3b_forward.3} parent=5 // pred_check
      _
    $region10: #{mixed_3b_forward.3} parent=5 // pred_check_branch
      %286 = sbr.rel (%p283) target = $region12
    $region11: #{mixed_3b_forward.3} parent=5 // pred_region
      %s287 = ssub.s32 %s17, 1
      // Predicated region
      $region13: #{mixed_3b_forward.3} parent=11 // pred_check
        %p288 = pneg %p90
      $region14: #{mixed_3b_forward.3} parent=11 // pred_check_branch
        %290 = sbr.rel (%p288) target = $region16
      $region15: #{mixed_3b_forward.3} parent=11 // pred_region
        _
      $region16: #{mixed_3b_forward.3} parent=11 // pred_fallthru
        _
      // Predicated region
      $region17: #{mixed_3b_forward.3} parent=11 // pred_check
        %p291 = pneg %p111
      $region18: #{mixed_3b_forward.3} parent=11 // pred_check_branch
        %293 = sbr.rel (%p291) target = $region20
      $region19: #{mixed_3b_forward.3} parent=11 // pred_region
        _
      $region20: #{mixed_3b_forward.3} parent=11 // pred_fallthru
        _
      // Predicated region
      $region21: #{mixed_3b_forward.3} parent=11 // pred_check
        %p294 = pneg %p132
      $region22: #{mixed_3b_forward.3} parent=11 // pred_check_branch
        %296 = sbr.rel (%p294) target = $region24
      $region23: #{mixed_3b_forward.3} parent=11 // pred_region
        _
      $region24: #{mixed_3b_forward.3} parent=11 // pred_fallthru
        _
      // Predicated region
      $region25: #{mixed_3b_forward.3} parent=11 // pred_check
        %p297 = pneg %p153
      $region26: #{mixed_3b_forward.3} parent=11 // pred_check_branch
        %299 = sbr.rel (%p297) target = $region28
      $region27: #{mixed_3b_forward.3} parent=11 // pred_region
        _
      $region28: #{mixed_3b_forward.3} parent=11 // pred_fallthru
        _
      // Predicated region
      $region29: #{mixed_3b_forward.3} parent=11 // pred_check
        %p300 = pneg %p174
      $region30: #{mixed_3b_forward.3} parent=11 // pred_check_branch
        %302 = sbr.rel (%p300) target = $region32
      $region31: #{mixed_3b_forward.3} parent=11 // pred_region
        _
      $region32: #{mixed_3b_forward.3} parent=11 // pred_fallthru
        _
      // Predicated region
      $region33: #{mixed_3b_forward.3} parent=11 // pred_check
        %p303 = pneg %p195
      $region34: #{mixed_3b_forward.3} parent=11 // pred_check_branch
        %305 = sbr.rel (%p303) target = $region36
      $region35: #{mixed_3b_forward.3} parent=11 // pred_region
        _
      $region36: #{mixed_3b_forward.3} parent=11 // pred_fallthru
        _
    $region12: #{mixed_3b_forward.3} parent=5 // pred_fallthru
      _
    %p306 = scmp.lt.s32.totalorder %s17, 2
    // Predicated region
    $region37: #{mixed_3b_forward.3} parent=5 // pred_check
      %p307 = pneg %p306
    $region38: #{mixed_3b_forward.3} parent=5 // pred_check_branch
      %309 = sbr.rel (%p307) target = $region40
    $region39: #{mixed_3b_forward.3} parent=5 // pred_region
      // Predicated region
      $region41: #{mixed_3b_forward.3} parent=39 // pred_check
        %p310 = pneg %p37
      $region42: #{mixed_3b_forward.3} parent=39 // pred_check_branch
        %312 = sbr.rel (%p310) target = $region44
      $region43: #{mixed_3b_forward.3} parent=39 // pred_region
        %s313 = smul.u32 32, %s17
        %p314 = scmp.lt.s32.totalorder %s313, 63
        %s315 = scalar_select %p314, %s313, 63
        %s316 = smul.addr %s315, 2
        %s317 = smul.addr %s316, 8
        %s318 = scalar_lea.vmem %s0, %s317
        %s319 = smul.u32 32, %s17
      $region44: #{mixed_3b_forward.3} parent=39 // pred_fallthru
        _
      // Predicated region
      $region45: #{mixed_3b_forward.3} parent=39 // pred_check
        %p320 = pneg %p63
      $region46: #{mixed_3b_forward.3} parent=39 // pred_check_branch
        %322 = sbr.rel (%p320) target = $region48
      $region47: #{mixed_3b_forward.3} parent=39 // pred_region
        %s323 = smul.u32 32, %s17
        %p324 = scmp.lt.s32.totalorder %s323, 63
        %s325 = scalar_select %p324, %s323, 63
        %s326 = smul.addr %s325, 2
        %s327 = smul.addr %s326, 8
        %s328 = scalar_lea.vmem %s1, %s327
        %s329 = smul.u32 32, %s17
      $region48: #{mixed_3b_forward.3} parent=39 // pred_fallthru
        _
    $region40: #{mixed_3b_forward.3} parent=5 // pred_fallthru
      _
    %p330 = scmp.le.s32.totalorder 1, %s17
    %p331 = scmp.lt.s32.totalorder %s17, 3
    %p332 = pnand %p330, %p331
    %p333 = pneg %p332
    // Predicated region
    $region49: #{mixed_3b_forward.3} parent=5 // pred_check
      _
    $region50: #{mixed_3b_forward.3} parent=5 // pred_check_branch
      %335 = sbr.rel (%p332) target = $region52
    $region51: #{mixed_3b_forward.3} parent=5 // pred_region
      %s336 = ssub.s32 %s17, 1
      %s337 = smul.u32 32, %s22
      %p338 = scmp.lt.s32.totalorder %s337, 63
      %s339 = scalar_select %p338, %s337, 63
      %s340 = smul.addr %s339, 2
      %s341 = smul.addr %s340, 8
      %s342 = scalar_lea.vmem %s0, %s341
      %p343 = pneg %p43
      %p344 = pneg %p40
      %s345 = smul.u32 32, %s22
      %p346 = scmp.lt.s32.totalorder %s345, 63
      %s347 = scalar_select %p346, %s345, 63
      %s348 = smul.addr %s347, 2
      %s349 = smul.addr %s348, 8
      %s350 = scalar_lea.vmem %s1, %s349
      %p351 = pneg %p69
      %p352 = pneg %p66
      %p353 = pneg %p90
      %p354 = pneg %p87
      %p355 = pneg %p111
      %p356 = pneg %p108
      %p357 = pneg %p132
      %p358 = pneg %p129
      %p359 = pneg %p153
      %p360 = pneg %p150
      %p361 = pneg %p174
      %p362 = pneg %p171
      %p363 = pneg %p195
      %p364 = pneg %p192
      %p365 = pneg %p221
      %p366 = pneg %p218
      %s367 = smul.u32 32, %s22
      %p368 = scmp.lt.s32.totalorder %s367, 63
      %s369 = scalar_select %p368, %s367, 63
      %s370 = smul.addr %s369, 8
      %s371 = scalar_lea.vmem %s8, %s370
      %p372 = pneg %p247
      %p373 = pneg %p244
      %s374 = smul.u32 32, %s22
      %p375 = scmp.lt.s32.totalorder %s374, 63
      %s376 = scalar_select %p375, %s374, 63
      %s377 = smul.addr %s376, 8
      %s378 = scalar_lea.vmem %s9, %s377
      %p379 = pneg %p273
      %p380 = pneg %p270
      %s381 = smul.u32 32, %s22
      %p382 = scmp.lt.s32.totalorder %s381, 63
      %s383 = scalar_select %p382, %s381, 63
      %s384 = smul.addr %s383, 8
      %s385 = scalar_lea.vmem %s10, %s384
      %s386 = smul.u32 32, %s22
      %p387 = scmp.lt.s32.totalorder %s386, 63
      %s388 = scalar_select %p387, %s386, 63
      %s389 = smul.addr %s388, 2
      %s390 = smul.addr %s389, 8
      %s391 = scalar_lea.vmem %s0, %s390
      %s392 = smul.u32 32, %s22
      %s393 = smul.u32 32, %s22
      %p394 = scmp.lt.s32.totalorder %s393, 63
      %s395 = scalar_select %p394, %s393, 63
      %s396 = smul.addr %s395, 2
      %s397 = smul.addr %s396, 8
      %s398 = scalar_lea.vmem %s1, %s397
      %s399 = smul.u32 32, %s22
      %s400 = smul.u32 32, %s22
      %p401 = scmp.lt.s32.totalorder %s400, 63
      %s402 = scalar_select %p401, %s400, 63
      %s403 = smul.addr %s402, 8
      %s404 = scalar_lea.vmem %s8, %s403
      %s405 = smul.u32 32, %s22
      %s406 = smul.u32 32, %s22
      %p407 = scmp.lt.s32.totalorder %s406, 63
      %s408 = scalar_select %p407, %s406, 63
      %s409 = smul.addr %s408, 8
      %s410 = scalar_lea.vmem %s9, %s409
      %s411 = smul.u32 32, %s22
      %s412 = smul.u32 32, %s22
      %p413 = scmp.lt.s32.totalorder %s412, 63
      %s414 = scalar_select %p413, %s412, 63
      %s415 = smul.addr %s414, 8
      %s416 = scalar_lea.vmem %s10, %s415
      %s417 = smul.u32 32, %s22
      %v418 = vld [vmem:[%s391] sm:$0xff]
      %v419 = vld [vmem:[%s391 + $0x8] sm:$0xff]
      %v420 = vld [vmem:[%s391 + $0x10] sm:$0xff]
      %v421 = vld [vmem:[%s391 + $0x18] sm:$0xff]
      %v422 = vld [vmem:[%s391 + $0x20] sm:$0xff]
      %v423 = vld [vmem:[%s391 + $0x28] sm:$0xff]
      %v424 = vld [vmem:[%s391 + $0x30] sm:$0xff]
      %v425 = vld [vmem:[%s391 + $0x38] sm:$0xff]
      %v426 = vld [vmem:[%s391 + $0x40] sm:$0xff]
      %v427 = vld [vmem:[%s391 + $0x48] sm:$0xff]
      %v428 = vld [vmem:[%s391 + $0x50] sm:$0xff]
      %v429 = vld [vmem:[%s391 + $0x58] sm:$0xff]
      %v430 = vld [vmem:[%s391 + $0x60] sm:$0xff]
      %v431 = vld [vmem:[%s391 + $0x68] sm:$0xff]
      %v432 = vld [vmem:[%s391 + $0x70] sm:$0xff]
      %v433 = vld [vmem:[%s391 + $0x78] sm:$0xff]
      %v434 = vld [vmem:[%s391 + $0x80] sm:$0xff]
      %v435 = vld [vmem:[%s391 + $0x88] sm:$0xff]
      %v436 = vld [vmem:[%s391 + $0x90] sm:$0xff]
      %v437 = vld [vmem:[%s391 + $0x98] sm:$0xff]
      %v438 = vld [vmem:[%s391 + $0xa0] sm:$0xff]
      %v439 = vld [vmem:[%s391 + $0xa8] sm:$0xff]
      %v440 = vld [vmem:[%s391 + $0xb0] sm:$0xff]
      %v441 = vld [vmem:[%s391 + $0xb8] sm:$0xff]
      %v442 = vld [vmem:[%s391 + $0xc0] sm:$0xff]
      %v443 = vld [vmem:[%s391 + $0xc8] sm:$0xff]
      %v444 = vld [vmem:[%s391 + $0xd0] sm:$0xff]
      %v445 = vld [vmem:[%s391 + $0xd8] sm:$0xff]
      %v446 = vld [vmem:[%s391 + $0xe0] sm:$0xff]
      %v447 = vld [vmem:[%s391 + $0xe8] sm:$0xff]
      %v448 = vld [vmem:[%s391 + $0xf0] sm:$0xff]
      %v449 = vld [vmem:[%s391 + $0xf8] sm:$0xff]
      %v450 = vld [vmem:[%s391 + $0x100] sm:$0xff]
      %v451 = vld [vmem:[%s391 + $0x108] sm:$0xff]
      %v452 = vld [vmem:[%s391 + $0x110] sm:$0xff]
      %v453 = vld [vmem:[%s391 + $0x118] sm:$0xff]
      %v454 = vld [vmem:[%s391 + $0x120] sm:$0xff]
      %v455 = vld [vmem:[%s391 + $0x128] sm:$0xff]
      %v456 = vld [vmem:[%s391 + $0x130] sm:$0xff]
      %v457 = vld [vmem:[%s391 + $0x138] sm:$0xff]
      %v458 = vld [vmem:[%s391 + $0x140] sm:$0xff]
      %v459 = vld [vmem:[%s391 + $0x148] sm:$0xff]
      %v460 = vld [vmem:[%s391 + $0x150] sm:$0xff]
      %v461 = vld [vmem:[%s391 + $0x158] sm:$0xff]
      %v462 = vld [vmem:[%s391 + $0x160] sm:$0xff]
      %v463 = vld [vmem:[%s391 + $0x168] sm:$0xff]
      %v464 = vld [vmem:[%s391 + $0x170] sm:$0xff]
      %v465 = vld [vmem:[%s391 + $0x178] sm:$0xff]
      %v466 = vld [vmem:[%s391 + $0x180] sm:$0xff]
      %v467 = vld [vmem:[%s391 + $0x188] sm:$0xff]
      %v468 = vld [vmem:[%s391 + $0x190] sm:$0xff]
      %v469 = vld [vmem:[%s391 + $0x198] sm:$0xff]
      %v470 = vld [vmem:[%s391 + $0x1a0] sm:$0xff]
      %v471 = vld [vmem:[%s391 + $0x1a8] sm:$0xff]
      %v472 = vld [vmem:[%s391 + $0x1b0] sm:$0xff]
      %v473 = vld [vmem:[%s391 + $0x1b8] sm:$0xff]
      %v474 = vld [vmem:[%s391 + $0x1c0] sm:$0xff]
      %v475 = vld [vmem:[%s391 + $0x1c8] sm:$0xff]
      %v476 = vld [vmem:[%s391 + $0x1d0] sm:$0xff]
      %v477 = vld [vmem:[%s391 + $0x1d8] sm:$0xff]
      %v478 = vld [vmem:[%s391 + $0x1e0] sm:$0xff]
      %v479 = vld [vmem:[%s391 + $0x1e8] sm:$0xff]
      %v480 = vld [vmem:[%s391 + $0x1f0] sm:$0xff]
      %v481 = vld [vmem:[%s391 + $0x1f8] sm:$0xff]
      %v482 = vld [vmem:[%s2] sm:$0xff]
      %v483 = vld [vmem:[%s2 + $0x8] sm:$0xff]
      %v484 = vld [vmem:[%s2 + $0x10] sm:$0xff]
      %v485 = vld [vmem:[%s2 + $0x18] sm:$0xff]
      %v486 = vld [vmem:[%s2 + $0x20] sm:$0xff]
      %v487 = vld [vmem:[%s2 + $0x28] sm:$0xff]
      %v488 = vld [vmem:[%s2 + $0x30] sm:$0xff]
      %v489 = vld [vmem:[%s2 + $0x38] sm:$0xff]
      %v490 = vld [vmem:[%s2 + $0x40] sm:$0xff]
      %v491 = vld [vmem:[%s2 + $0x48] sm:$0xff]
      %v492 = vld [vmem:[%s2 + $0x50] sm:$0xff]
      %v493 = vld [vmem:[%s2 + $0x58] sm:$0xff]
      %v494 = vld [vmem:[%s2 + $0x60] sm:$0xff]
      %v495 = vld [vmem:[%s2 + $0x68] sm:$0xff]
      %v496 = vld [vmem:[%s2 + $0x70] sm:$0xff]
      %v497 = vld [vmem:[%s2 + $0x78] sm:$0xff]
      %v498 = vld [vmem:[%s2 + $0x80] sm:$0xff]
      %v499 = vld [vmem:[%s2 + $0x88] sm:$0xff]
      %v500 = vld [vmem:[%s2 + $0x90] sm:$0xff]
      %v501 = vld [vmem:[%s2 + $0x98] sm:$0xff]
      %v502 = vld [vmem:[%s2 + $0xa0] sm:$0xff]
      %v503 = vld [vmem:[%s2 + $0xa8] sm:$0xff]
      %v504 = vld [vmem:[%s2 + $0xb0] sm:$0xff]
      %v505 = vld [vmem:[%s2 + $0xb8] sm:$0xff]
      %v506 = vld [vmem:[%s5] sm:$0x1]
      %v508 = vperm.slane %v506, 0
      %vm510 = vcmask 523264
      %v512 = vsel %vm510, %v419, 0
      %v515 = vsel %vm510, %v421, 0
      %v518 = vsel %vm510, %v423, 0
      %v521 = vsel %vm510, %v425, 0
      %v524 = vsel %vm510, %v427, 0
      %v527 = vsel %vm510, %v429, 0
      %v530 = vsel %vm510, %v431, 0
      %v533 = vsel %vm510, %v433, 0
      %v536 = vsel %vm510, %v435, 0
      %v539 = vsel %vm510, %v437, 0
      %v542 = vsel %vm510, %v439, 0
      %v545 = vsel %vm510, %v441, 0
      %v548 = vsel %vm510, %v443, 0
      %v551 = vsel %vm510, %v445, 0
      %v554 = vsel %vm510, %v447, 0
      %v557 = vsel %vm510, %v449, 0
      %v560 = vsel %vm510, %v451, 0
      %v563 = vsel %vm510, %v453, 0
      %v566 = vsel %vm510, %v455, 0
      %v569 = vsel %vm510, %v457, 0
      %v572 = vsel %vm510, %v459, 0
      %v575 = vsel %vm510, %v461, 0
      %v578 = vsel %vm510, %v463, 0
      %v581 = vsel %vm510, %v465, 0
      %v584 = vsel %vm510, %v467, 0
      %v587 = vsel %vm510, %v469, 0
      %v590 = vsel %vm510, %v471, 0
      %v593 = vsel %vm510, %v473, 0
      %v596 = vsel %vm510, %v475, 0
      %v599 = vsel %vm510, %v477, 0
      %v602 = vsel %vm510, %v479, 0
      %v605 = vsel %vm510, %v481, 0
      %607 = vmatpush.msra.mxu0 %v497
      %608 = vmatpush.msra.mxu0 %v496
      %609 = vmatpush.msra.mxu0 %v495
      %610 = vmatpush.msra.mxu0 %v494
      %611 = vmatpush.msra.mxu0 %v493
      %612 = vmatpush.msra.mxu0 %v492
      %613 = vmatpush.msra.mxu0 %v491
      %614 = vmatpush.msra.mxu0 %v490
      %615 = vmatpush.msra.mxu0 %v489
      %616 = vmatpush.msra.mxu0 %v488
      %617 = vmatpush.msra.mxu0 %v487
      %618 = vmatpush.msra.mxu0 %v486
      %619 = vmatpush.msra.mxu0 %v485
      %620 = vmatpush.msra.mxu0 %v484
      %621 = vmatpush.msra.mxu0 %v483
      %622 = vmatpush.msra.mxu0 %v482
      %623 = vmatmul.f32.gmra.mxu0 %v418
      %v624 = vpop.f32.mrf.mxu0
      %v625 = vadd.f32 %v508, %v624
      %626 = vmatmul.f32.gmra.mxu0 %v420
      %v627 = vpop.f32.mrf.mxu0
      %v628 = vadd.f32 %v508, %v627
      %629 = vmatmul.f32.gmra.mxu0 %v422
      %v630 = vpop.f32.mrf.mxu0
      %v631 = vadd.f32 %v508, %v630
      %632 = vmatmul.f32.gmra.mxu0 %v424
      %v633 = vpop.f32.mrf.mxu0
      %v634 = vadd.f32 %v508, %v633
      %635 = vmatmul.f32.gmra.mxu0 %v426
      %v636 = vpop.f32.mrf.mxu0
      %v637 = vadd.f32 %v508, %v636
      %638 = vmatmul.f32.gmra.mxu0 %v428
      %v639 = vpop.f32.mrf.mxu0
      %v640 = vadd.f32 %v508, %v639
      %641 = vmatmul.f32.gmra.mxu0 %v430
      %v642 = vpop.f32.mrf.mxu0
      %v643 = vadd.f32 %v508, %v642
      %644 = vmatmul.f32.gmra.mxu0 %v432
      %v645 = vpop.f32.mrf.mxu0
      %v646 = vadd.f32 %v508, %v645
      %647 = vmatmul.f32.gmra.mxu0 %v434
      %v648 = vpop.f32.mrf.mxu0
      %v649 = vadd.f32 %v508, %v648
      %650 = vmatmul.f32.gmra.mxu0 %v436
      %v651 = vpop.f32.mrf.mxu0
      %v652 = vadd.f32 %v508, %v651
      %653 = vmatmul.f32.gmra.mxu0 %v438
      %v654 = vpop.f32.mrf.mxu0
      %v655 = vadd.f32 %v508, %v654
      %656 = vmatmul.f32.gmra.mxu0 %v440
      %v657 = vpop.f32.mrf.mxu0
      %v658 = vadd.f32 %v508, %v657
      %659 = vmatmul.f32.gmra.mxu0 %v442
      %v660 = vpop.f32.mrf.mxu0
      %v661 = vadd.f32 %v508, %v660
      %662 = vmatmul.f32.gmra.mxu0 %v444
      %v663 = vpop.f32.mrf.mxu0
      %v664 = vadd.f32 %v508, %v663
      %665 = vmatmul.f32.gmra.mxu0 %v446
      %v666 = vpop.f32.mrf.mxu0
      %v667 = vadd.f32 %v508, %v666
      %668 = vmatmul.f32.gmra.mxu0 %v448
      %v669 = vpop.f32.mrf.mxu0
      %v670 = vadd.f32 %v508, %v669
      %671 = vmatmul.f32.gmra.mxu0 %v450
      %v672 = vpop.f32.mrf.mxu0
      %v673 = vadd.f32 %v508, %v672
      %674 = vmatmul.f32.gmra.mxu0 %v452
      %v675 = vpop.f32.mrf.mxu0
      %v676 = vadd.f32 %v508, %v675
      %677 = vmatmul.f32.gmra.mxu0 %v454
      %v678 = vpop.f32.mrf.mxu0
      %v679 = vadd.f32 %v508, %v678
      %680 = vmatmul.f32.gmra.mxu0 %v456
      %v681 = vpop.f32.mrf.mxu0
      %v682 = vadd.f32 %v508, %v681
      %683 = vmatmul.f32.gmra.mxu0 %v458
      %v684 = vpop.f32.mrf.mxu0
      %v685 = vadd.f32 %v508, %v684
      %686 = vmatmul.f32.gmra.mxu0 %v460
      %v687 = vpop.f32.mrf.mxu0
      %v688 = vadd.f32 %v508, %v687
      %689 = vmatmul.f32.gmra.mxu0 %v462
      %v690 = vpop.f32.mrf.mxu0
      %v691 = vadd.f32 %v508, %v690
      %692 = vmatmul.f32.gmra.mxu0 %v464
      %v693 = vpop.f32.mrf.mxu0
      %v694 = vadd.f32 %v508, %v693
      %695 = vmatmul.f32.gmra.mxu0 %v466
      %v696 = vpop.f32.mrf.mxu0
      %v697 = vadd.f32 %v508, %v696
      %698 = vmatmul.f32.gmra.mxu0 %v468
      %v699 = vpop.f32.mrf.mxu0
      %v700 = vadd.f32 %v508, %v699
      %701 = vmatmul.f32.gmra.mxu0 %v470
      %v702 = vpop.f32.mrf.mxu0
      %v703 = vadd.f32 %v508, %v702
      %704 = vmatmul.f32.gmra.mxu0 %v472
      %v705 = vpop.f32.mrf.mxu0
      %v706 = vadd.f32 %v508, %v705
      %707 = vmatmul.f32.gmra.mxu0 %v474
      %v708 = vpop.f32.mrf.mxu0
      %v709 = vadd.f32 %v508, %v708
      %710 = vmatmul.f32.gmra.mxu0 %v476
      %v711 = vpop.f32.mrf.mxu0
      %v712 = vadd.f32 %v508, %v711
      %713 = vmatmul.f32.gmra.mxu0 %v478
      %v714 = vpop.f32.mrf.mxu0
      %v715 = vadd.f32 %v508, %v714
      %716 = vmatmul.f32.gmra.mxu0 %v480
      %v717 = vpop.f32.mrf.mxu0
      %v718 = vadd.f32 %v508, %v717
      %719 = vdwg.mxu0
      %720 = vmatpush.msra.mxu0 0.0
      %721 = vmatpush.msra.mxu0 0.0
      %722 = vmatpush.msra.mxu0 0.0
      %723 = vmatpush.msra.mxu0 0.0
      %724 = vmatpush.msra.mxu0 0.0
      %725 = vmatpush.msra.mxu0 0.0
      %726 = vmatpush.msra.mxu0 0.0
      %727 = vmatpush.msra.mxu0 0.0
      %728 = vmatpush.msra.mxu0 %v505
      %729 = vmatpush.msra.mxu0 %v504
      %730 = vmatpush.msra.mxu0 %v503
      %731 = vmatpush.msra.mxu0 %v502
      %732 = vmatpush.msra.mxu0 %v501
      %733 = vmatpush.msra.mxu0 %v500
      %734 = vmatpush.msra.mxu0 %v499
      %735 = vmatpush.msra.mxu0 %v498
      %736 = vmatmul.f32.gmra.mxu0 %v512
      %v737 = vpop.f32.mrf.mxu0
      %v738 = vadd.f32 %v625, %v737
      %739 = vmatmul.f32.gmra.mxu0 %v515
      %v740 = vpop.f32.mrf.mxu0
      %v741 = vadd.f32 %v628, %v740
      %742 = vmatmul.f32.gmra.mxu0 %v518
      %v743 = vpop.f32.mrf.mxu0
      %v744 = vadd.f32 %v631, %v743
      %745 = vmatmul.f32.gmra.mxu0 %v521
      %v746 = vpop.f32.mrf.mxu0
      %v747 = vadd.f32 %v634, %v746
      %748 = vmatmul.f32.gmra.mxu0 %v524
      %v749 = vpop.f32.mrf.mxu0
      %v750 = vadd.f32 %v637, %v749
      %751 = vmatmul.f32.gmra.mxu0 %v527
      %v752 = vpop.f32.mrf.mxu0
      %v753 = vadd.f32 %v640, %v752
      %754 = vmatmul.f32.gmra.mxu0 %v530
      %v755 = vpop.f32.mrf.mxu0
      %v756 = vadd.f32 %v643, %v755
      %757 = vmatmul.f32.gmra.mxu0 %v533
      %v758 = vpop.f32.mrf.mxu0
      %v759 = vadd.f32 %v646, %v758
      %760 = vmatmul.f32.gmra.mxu0 %v536
      %v761 = vpop.f32.mrf.mxu0
      %v762 = vadd.f32 %v649, %v761
      %763 = vmatmul.f32.gmra.mxu0 %v539
      %v764 = vpop.f32.mrf.mxu0
      %v765 = vadd.f32 %v652, %v764
      %766 = vmatmul.f32.gmra.mxu0 %v542
      %v767 = vpop.f32.mrf.mxu0
      %v768 = vadd.f32 %v655, %v767
      %769 = vmatmul.f32.gmra.mxu0 %v545
      %v770 = vpop.f32.mrf.mxu0
      %v771 = vadd.f32 %v658, %v770
      %772 = vmatmul.f32.gmra.mxu0 %v548
      %v773 = vpop.f32.mrf.mxu0
      %v774 = vadd.f32 %v661, %v773
      %775 = vmatmul.f32.gmra.mxu0 %v551
      %v776 = vpop.f32.mrf.mxu0
      %v777 = vadd.f32 %v664, %v776
      %778 = vmatmul.f32.gmra.mxu0 %v554
      %v779 = vpop.f32.mrf.mxu0
      %v780 = vadd.f32 %v667, %v779
      %781 = vmatmul.f32.gmra.mxu0 %v557
      %v782 = vpop.f32.mrf.mxu0
      %v783 = vadd.f32 %v670, %v782
      %784 = vmatmul.f32.gmra.mxu0 %v560
      %v785 = vpop.f32.mrf.mxu0
      %v786 = vadd.f32 %v673, %v785
      %787 = vmatmul.f32.gmra.mxu0 %v563
      %v788 = vpop.f32.mrf.mxu0
      %v789 = vadd.f32 %v676, %v788
      %790 = vmatmul.f32.gmra.mxu0 %v566
      %v791 = vpop.f32.mrf.mxu0
      %v792 = vadd.f32 %v679, %v791
      %793 = vmatmul.f32.gmra.mxu0 %v569
      %v794 = vpop.f32.mrf.mxu0
      %v795 = vadd.f32 %v682, %v794
      %796 = vmatmul.f32.gmra.mxu0 %v572
      %v797 = vpop.f32.mrf.mxu0
      %v798 = vadd.f32 %v685, %v797
      %799 = vmatmul.f32.gmra.mxu0 %v575
      %v800 = vpop.f32.mrf.mxu0
      %v801 = vadd.f32 %v688, %v800
      %802 = vmatmul.f32.gmra.mxu0 %v578
      %v803 = vpop.f32.mrf.mxu0
      %v804 = vadd.f32 %v691, %v803
      %805 = vmatmul.f32.gmra.mxu0 %v581
      %v806 = vpop.f32.mrf.mxu0
      %v807 = vadd.f32 %v694, %v806
      %808 = vmatmul.f32.gmra.mxu0 %v584
      %v809 = vpop.f32.mrf.mxu0
      %v810 = vadd.f32 %v697, %v809
      %811 = vmatmul.f32.gmra.mxu0 %v587
      %v812 = vpop.f32.mrf.mxu0
      %v813 = vadd.f32 %v700, %v812
      %814 = vmatmul.f32.gmra.mxu0 %v590
      %v815 = vpop.f32.mrf.mxu0
      %v816 = vadd.f32 %v703, %v815
      %817 = vmatmul.f32.gmra.mxu0 %v593
      %v818 = vpop.f32.mrf.mxu0
      %v819 = vadd.f32 %v706, %v818
      %820 = vmatmul.f32.gmra.mxu0 %v596
      %v821 = vpop.f32.mrf.mxu0
      %v822 = vadd.f32 %v709, %v821
      %823 = vmatmul.f32.gmra.mxu0 %v599
      %v824 = vpop.f32.mrf.mxu0
      %v825 = vadd.f32 %v712, %v824
      %826 = vmatmul.f32.gmra.mxu0 %v602
      %v827 = vpop.f32.mrf.mxu0
      %v828 = vadd.f32 %v715, %v827
      %829 = vmatmul.f32.gmra.mxu0 %v605
      %v830 = vpop.f32.mrf.mxu0
      %v831 = vadd.f32 %v718, %v830
      %832 = vdwg.mxu0
      %v833 = vmax.f32 %v738, 0.0
      %v834 = vmax.f32 %v741, 0.0
      %v835 = vmax.f32 %v744, 0.0
      %v836 = vmax.f32 %v747, 0.0
      %v837 = vmax.f32 %v750, 0.0
      %v838 = vmax.f32 %v753, 0.0
      %v839 = vmax.f32 %v756, 0.0
      %v840 = vmax.f32 %v759, 0.0
      %v841 = vmax.f32 %v762, 0.0
      %v842 = vmax.f32 %v765, 0.0
      %v843 = vmax.f32 %v768, 0.0
      %v844 = vmax.f32 %v771, 0.0
      %v845 = vmax.f32 %v774, 0.0
      %v846 = vmax.f32 %v777, 0.0
      %v847 = vmax.f32 %v780, 0.0
      %v848 = vmax.f32 %v783, 0.0
      %v849 = vmax.f32 %v786, 0.0
      %v850 = vmax.f32 %v789, 0.0
      %v851 = vmax.f32 %v792, 0.0
      %v852 = vmax.f32 %v795, 0.0
      %v853 = vmax.f32 %v798, 0.0
      %v854 = vmax.f32 %v801, 0.0
      %v855 = vmax.f32 %v804, 0.0
      %v856 = vmax.f32 %v807, 0.0
      %v857 = vmax.f32 %v810, 0.0
      %v858 = vmax.f32 %v813, 0.0
      %v859 = vmax.f32 %v816, 0.0
      %v860 = vmax.f32 %v819, 0.0
      %v861 = vmax.f32 %v822, 0.0
      %v862 = vmax.f32 %v825, 0.0
      %v863 = vmax.f32 %v828, 0.0
      %v864 = vmax.f32 %v831, 0.0
      %865 = vst.msk [vmem:[%s404] sm:$0xff] %vm510, %v833
      %866 = vst.msk [vmem:[%s404 + $0x8] sm:$0xff] %vm510, %v834
      %867 = vst.msk [vmem:[%s404 + $0x10] sm:$0xff] %vm510, %v835
      %868 = vst.msk [vmem:[%s404 + $0x18] sm:$0xff] %vm510, %v836
      %869 = vst.msk [vmem:[%s404 + $0x20] sm:$0xff] %vm510, %v837
      %870 = vst.msk [vmem:[%s404 + $0x28] sm:$0xff] %vm510, %v838
      %871 = vst.msk [vmem:[%s404 + $0x30] sm:$0xff] %vm510, %v839
      %872 = vst.msk [vmem:[%s404 + $0x38] sm:$0xff] %vm510, %v840
      %873 = vst.msk [vmem:[%s404 + $0x40] sm:$0xff] %vm510, %v841
      %874 = vst.msk [vmem:[%s404 + $0x48] sm:$0xff] %vm510, %v842
      %875 = vst.msk [vmem:[%s404 + $0x50] sm:$0xff] %vm510, %v843
      %876 = vst.msk [vmem:[%s404 + $0x58] sm:$0xff] %vm510, %v844
      %877 = vst.msk [vmem:[%s404 + $0x60] sm:$0xff] %vm510, %v845
      %878 = vst.msk [vmem:[%s404 + $0x68] sm:$0xff] %vm510, %v846
      %879 = vst.msk [vmem:[%s404 + $0x70] sm:$0xff] %vm510, %v847
      %880 = vst.msk [vmem:[%s404 + $0x78] sm:$0xff] %vm510, %v848
      %881 = vst.msk [vmem:[%s404 + $0x80] sm:$0xff] %vm510, %v849
      %882 = vst.msk [vmem:[%s404 + $0x88] sm:$0xff] %vm510, %v850
      %883 = vst.msk [vmem:[%s404 + $0x90] sm:$0xff] %vm510, %v851
      %884 = vst.msk [vmem:[%s404 + $0x98] sm:$0xff] %vm510, %v852
      %885 = vst.msk [vmem:[%s404 + $0xa0] sm:$0xff] %vm510, %v853
      %886 = vst.msk [vmem:[%s404 + $0xa8] sm:$0xff] %vm510, %v854
      %887 = vst.msk [vmem:[%s404 + $0xb0] sm:$0xff] %vm510, %v855
      %888 = vst.msk [vmem:[%s404 + $0xb8] sm:$0xff] %vm510, %v856
      %889 = vst.msk [vmem:[%s404 + $0xc0] sm:$0xff] %vm510, %v857
      %890 = vst.msk [vmem:[%s404 + $0xc8] sm:$0xff] %vm510, %v858
      %891 = vst.msk [vmem:[%s404 + $0xd0] sm:$0xff] %vm510, %v859
      %892 = vst.msk [vmem:[%s404 + $0xd8] sm:$0xff] %vm510, %v860
      %893 = vst.msk [vmem:[%s404 + $0xe0] sm:$0xff] %vm510, %v861
      %894 = vst.msk [vmem:[%s404 + $0xe8] sm:$0xff] %vm510, %v862
      %895 = vst.msk [vmem:[%s404 + $0xf0] sm:$0xff] %vm510, %v863
      %896 = vst.msk [vmem:[%s404 + $0xf8] sm:$0xff] %vm510, %v864
      %v897 = vld [vmem:[%s3] sm:$0xff]
      %v898 = vld [vmem:[%s3 + $0x8] sm:$0xff]
      %v899 = vld [vmem:[%s3 + $0x10] sm:$0xff]
      %v900 = vld [vmem:[%s3 + $0x18] sm:$0xff]
      %v901 = vld [vmem:[%s3 + $0x20] sm:$0xff]
      %v902 = vld [vmem:[%s3 + $0x28] sm:$0xff]
      %v903 = vld [vmem:[%s3 + $0x30] sm:$0xff]
      %v904 = vld [vmem:[%s3 + $0x38] sm:$0xff]
      %v905 = vld [vmem:[%s3 + $0x40] sm:$0xff]
      %v906 = vld [vmem:[%s3 + $0x48] sm:$0xff]
      %v907 = vld [vmem:[%s3 + $0x50] sm:$0xff]
      %v908 = vld [vmem:[%s3 + $0x58] sm:$0xff]
      %v909 = vld [vmem:[%s3 + $0x60] sm:$0xff]
      %v910 = vld [vmem:[%s3 + $0x68] sm:$0xff]
      %v911 = vld [vmem:[%s3 + $0x70] sm:$0xff]
      %v912 = vld [vmem:[%s3 + $0x78] sm:$0xff]
      %v913 = vld [vmem:[%s3 + $0x80] sm:$0xff]
      %v914 = vld [vmem:[%s3 + $0x88] sm:$0xff]
      %v915 = vld [vmem:[%s3 + $0x90] sm:$0xff]
      %v916 = vld [vmem:[%s3 + $0x98] sm:$0xff]
      %v917 = vld [vmem:[%s3 + $0xa0] sm:$0xff]
      %v918 = vld [vmem:[%s3 + $0xa8] sm:$0xff]
      %v919 = vld [vmem:[%s3 + $0xb0] sm:$0xff]
      %v920 = vld [vmem:[%s3 + $0xb8] sm:$0xff]
      %v921 = vld [vmem:[%s6] sm:$0x1]
      %v923 = vperm.slane %v921, 0
      %925 = vmatpush.msra.mxu0 %v912
      %926 = vmatpush.msra.mxu0 %v911
      %927 = vmatpush.msra.mxu0 %v910
      %928 = vmatpush.msra.mxu0 %v909
      %929 = vmatpush.msra.mxu0 %v908
      %930 = vmatpush.msra.mxu0 %v907
      %931 = vmatpush.msra.mxu0 %v906
      %932 = vmatpush.msra.mxu0 %v905
      %933 = vmatpush.msra.mxu0 %v904
      %934 = vmatpush.msra.mxu0 %v903
      %935 = vmatpush.msra.mxu0 %v902
      %936 = vmatpush.msra.mxu0 %v901
      %937 = vmatpush.msra.mxu0 %v900
      %938 = vmatpush.msra.mxu0 %v899
      %939 = vmatpush.msra.mxu0 %v898
      %940 = vmatpush.msra.mxu0 %v897
      %941 = vmatmul.f32.gmra.mxu0 %v418
      %v942 = vpop.f32.mrf.mxu0
      %v943 = vadd.f32 %v923, %v942
      %944 = vmatmul.f32.gmra.mxu0 %v420
      %v945 = vpop.f32.mrf.mxu0
      %v946 = vadd.f32 %v923, %v945
      %947 = vmatmul.f32.gmra.mxu0 %v422
      %v948 = vpop.f32.mrf.mxu0
      %v949 = vadd.f32 %v923, %v948
      %950 = vmatmul.f32.gmra.mxu0 %v424
      %v951 = vpop.f32.mrf.mxu0
      %v952 = vadd.f32 %v923, %v951
      %953 = vmatmul.f32.gmra.mxu0 %v426
      %v954 = vpop.f32.mrf.mxu0
      %v955 = vadd.f32 %v923, %v954
      %956 = vmatmul.f32.gmra.mxu0 %v428
      %v957 = vpop.f32.mrf.mxu0
      %v958 = vadd.f32 %v923, %v957
      %959 = vmatmul.f32.gmra.mxu0 %v430
      %v960 = vpop.f32.mrf.mxu0
      %v961 = vadd.f32 %v923, %v960
      %962 = vmatmul.f32.gmra.mxu0 %v432
      %v963 = vpop.f32.mrf.mxu0
      %v964 = vadd.f32 %v923, %v963
      %965 = vmatmul.f32.gmra.mxu0 %v434
      %v966 = vpop.f32.mrf.mxu0
      %v967 = vadd.f32 %v923, %v966
      %968 = vmatmul.f32.gmra.mxu0 %v436
      %v969 = vpop.f32.mrf.mxu0
      %v970 = vadd.f32 %v923, %v969
      %971 = vmatmul.f32.gmra.mxu0 %v438
      %v972 = vpop.f32.mrf.mxu0
      %v973 = vadd.f32 %v923, %v972
      %974 = vmatmul.f32.gmra.mxu0 %v440
      %v975 = vpop.f32.mrf.mxu0
      %v976 = vadd.f32 %v923, %v975
      %977 = vmatmul.f32.gmra.mxu0 %v442
      %v978 = vpop.f32.mrf.mxu0
      %v979 = vadd.f32 %v923, %v978
      %980 = vmatmul.f32.gmra.mxu0 %v444
      %v981 = vpop.f32.mrf.mxu0
      %v982 = vadd.f32 %v923, %v981
      %983 = vmatmul.f32.gmra.mxu0 %v446
      %v984 = vpop.f32.mrf.mxu0
      %v985 = vadd.f32 %v923, %v984
      %986 = vmatmul.f32.gmra.mxu0 %v448
      %v987 = vpop.f32.mrf.mxu0
      %v988 = vadd.f32 %v923, %v987
      %989 = vmatmul.f32.gmra.mxu0 %v450
      %v990 = vpop.f32.mrf.mxu0
      %v991 = vadd.f32 %v923, %v990
      %992 = vmatmul.f32.gmra.mxu0 %v452
      %v993 = vpop.f32.mrf.mxu0
      %v994 = vadd.f32 %v923, %v993
      %995 = vmatmul.f32.gmra.mxu0 %v454
      %v996 = vpop.f32.mrf.mxu0
      %v997 = vadd.f32 %v923, %v996
      %998 = vmatmul.f32.gmra.mxu0 %v456
      %v999 = vpop.f32.mrf.mxu0
      %v1000 = vadd.f32 %v923, %v999
      %1001 = vmatmul.f32.gmra.mxu0 %v458
      %v1002 = vpop.f32.mrf.mxu0
      %v1003 = vadd.f32 %v923, %v1002
      %1004 = vmatmul.f32.gmra.mxu0 %v460
      %v1005 = vpop.f32.mrf.mxu0
      %v1006 = vadd.f32 %v923, %v1005
      %1007 = vmatmul.f32.gmra.mxu0 %v462
      %v1008 = vpop.f32.mrf.mxu0
      %v1009 = vadd.f32 %v923, %v1008
      %1010 = vmatmul.f32.gmra.mxu0 %v464
      %v1011 = vpop.f32.mrf.mxu0
      %v1012 = vadd.f32 %v923, %v1011
      %1013 = vmatmul.f32.gmra.mxu0 %v466
      %v1014 = vpop.f32.mrf.mxu0
      %v1015 = vadd.f32 %v923, %v1014
      %1016 = vmatmul.f32.gmra.mxu0 %v468
      %v1017 = vpop.f32.mrf.mxu0
      %v1018 = vadd.f32 %v923, %v1017
      %1019 = vmatmul.f32.gmra.mxu0 %v470
      %v1020 = vpop.f32.mrf.mxu0
      %v1021 = vadd.f32 %v923, %v1020
      %1022 = vmatmul.f32.gmra.mxu0 %v472
      %v1023 = vpop.f32.mrf.mxu0
      %v1024 = vadd.f32 %v923, %v1023
      %1025 = vmatmul.f32.gmra.mxu0 %v474
      %v1026 = vpop.f32.mrf.mxu0
      %v1027 = vadd.f32 %v923, %v1026
      %1028 = vmatmul.f32.gmra.mxu0 %v476
      %v1029 = vpop.f32.mrf.mxu0
      %v1030 = vadd.f32 %v923, %v1029
      %1031 = vmatmul.f32.gmra.mxu0 %v478
      %v1032 = vpop.f32.mrf.mxu0
      %v1033 = vadd.f32 %v923, %v1032
      %1034 = vmatmul.f32.gmra.mxu0 %v480
      %v1035 = vpop.f32.mrf.mxu0
      %v1036 = vadd.f32 %v923, %v1035
      %1037 = vdwg.mxu0
      %1038 = vmatpush.msra.mxu0 0.0
      %1039 = vmatpush.msra.mxu0 0.0
      %1040 = vmatpush.msra.mxu0 0.0
      %1041 = vmatpush.msra.mxu0 0.0
      %1042 = vmatpush.msra.mxu0 0.0
      %1043 = vmatpush.msra.mxu0 0.0
      %1044 = vmatpush.msra.mxu0 0.0
      %1045 = vmatpush.msra.mxu0 0.0
      %1046 = vmatpush.msra.mxu0 %v920
      %1047 = vmatpush.msra.mxu0 %v919
      %1048 = vmatpush.msra.mxu0 %v918
      %1049 = vmatpush.msra.mxu0 %v917
      %1050 = vmatpush.msra.mxu0 %v916
      %1051 = vmatpush.msra.mxu0 %v915
      %1052 = vmatpush.msra.mxu0 %v914
      %1053 = vmatpush.msra.mxu0 %v913
      %1054 = vmatmul.f32.gmra.mxu0 %v512
      %v1055 = vpop.f32.mrf.mxu0
      %v1056 = vadd.f32 %v943, %v1055
      %1057 = vmatmul.f32.gmra.mxu0 %v515
      %v1058 = vpop.f32.mrf.mxu0
      %v1059 = vadd.f32 %v946, %v1058
      %1060 = vmatmul.f32.gmra.mxu0 %v518
      %v1061 = vpop.f32.mrf.mxu0
      %v1062 = vadd.f32 %v949, %v1061
      %1063 = vmatmul.f32.gmra.mxu0 %v521
      %v1064 = vpop.f32.mrf.mxu0
      %v1065 = vadd.f32 %v952, %v1064
      %1066 = vmatmul.f32.gmra.mxu0 %v524
      %v1067 = vpop.f32.mrf.mxu0
      %v1068 = vadd.f32 %v955, %v1067
      %1069 = vmatmul.f32.gmra.mxu0 %v527
      %v1070 = vpop.f32.mrf.mxu0
      %v1071 = vadd.f32 %v958, %v1070
      %1072 = vmatmul.f32.gmra.mxu0 %v530
      %v1073 = vpop.f32.mrf.mxu0
      %v1074 = vadd.f32 %v961, %v1073
      %1075 = vmatmul.f32.gmra.mxu0 %v533
      %v1076 = vpop.f32.mrf.mxu0
      %v1077 = vadd.f32 %v964, %v1076
      %1078 = vmatmul.f32.gmra.mxu0 %v536
      %v1079 = vpop.f32.mrf.mxu0
      %v1080 = vadd.f32 %v967, %v1079
      %1081 = vmatmul.f32.gmra.mxu0 %v539
      %v1082 = vpop.f32.mrf.mxu0
      %v1083 = vadd.f32 %v970, %v1082
      %1084 = vmatmul.f32.gmra.mxu0 %v542
      %v1085 = vpop.f32.mrf.mxu0
      %v1086 = vadd.f32 %v973, %v1085
      %1087 = vmatmul.f32.gmra.mxu0 %v545
      %v1088 = vpop.f32.mrf.mxu0
      %v1089 = vadd.f32 %v976, %v1088
      %1090 = vmatmul.f32.gmra.mxu0 %v548
      %v1091 = vpop.f32.mrf.mxu0
      %v1092 = vadd.f32 %v979, %v1091
      %1093 = vmatmul.f32.gmra.mxu0 %v551
      %v1094 = vpop.f32.mrf.mxu0
      %v1095 = vadd.f32 %v982, %v1094
      %1096 = vmatmul.f32.gmra.mxu0 %v554
      %v1097 = vpop.f32.mrf.mxu0
      %v1098 = vadd.f32 %v985, %v1097
      %1099 = vmatmul.f32.gmra.mxu0 %v557
      %v1100 = vpop.f32.mrf.mxu0
      %v1101 = vadd.f32 %v988, %v1100
      %1102 = vmatmul.f32.gmra.mxu0 %v560
      %v1103 = vpop.f32.mrf.mxu0
      %v1104 = vadd.f32 %v991, %v1103
      %1105 = vmatmul.f32.gmra.mxu0 %v563
      %v1106 = vpop.f32.mrf.mxu0
      %v1107 = vadd.f32 %v994, %v1106
      %1108 = vmatmul.f32.gmra.mxu0 %v566
      %v1109 = vpop.f32.mrf.mxu0
      %v1110 = vadd.f32 %v997, %v1109
      %1111 = vmatmul.f32.gmra.mxu0 %v569
      %v1112 = vpop.f32.mrf.mxu0
      %v1113 = vadd.f32 %v1000, %v1112
      %1114 = vmatmul.f32.gmra.mxu0 %v572
      %v1115 = vpop.f32.mrf.mxu0
      %v1116 = vadd.f32 %v1003, %v1115
      %1117 = vmatmul.f32.gmra.mxu0 %v575
      %v1118 = vpop.f32.mrf.mxu0
      %v1119 = vadd.f32 %v1006, %v1118
      %1120 = vmatmul.f32.gmra.mxu0 %v578
      %v1121 = vpop.f32.mrf.mxu0
      %v1122 = vadd.f32 %v1009, %v1121
      %1123 = vmatmul.f32.gmra.mxu0 %v581
      %v1124 = vpop.f32.mrf.mxu0
      %v1125 = vadd.f32 %v1012, %v1124
      %1126 = vmatmul.f32.gmra.mxu0 %v584
      %v1127 = vpop.f32.mrf.mxu0
      %v1128 = vadd.f32 %v1015, %v1127
      %1129 = vmatmul.f32.gmra.mxu0 %v587
      %v1130 = vpop.f32.mrf.mxu0
      %v1131 = vadd.f32 %v1018, %v1130
      %1132 = vmatmul.f32.gmra.mxu0 %v590
      %v1133 = vpop.f32.mrf.mxu0
      %v1134 = vadd.f32 %v1021, %v1133
      %1135 = vmatmul.f32.gmra.mxu0 %v593
      %v1136 = vpop.f32.mrf.mxu0
      %v1137 = vadd.f32 %v1024, %v1136
      %1138 = vmatmul.f32.gmra.mxu0 %v596
      %v1139 = vpop.f32.mrf.mxu0
      %v1140 = vadd.f32 %v1027, %v1139
      %1141 = vmatmul.f32.gmra.mxu0 %v599
      %v1142 = vpop.f32.mrf.mxu0
      %v1143 = vadd.f32 %v1030, %v1142
      %1144 = vmatmul.f32.gmra.mxu0 %v602
      %v1145 = vpop.f32.mrf.mxu0
      %v1146 = vadd.f32 %v1033, %v1145
      %1147 = vmatmul.f32.gmra.mxu0 %v605
      %v1148 = vpop.f32.mrf.mxu0
      %v1149 = vadd.f32 %v1036, %v1148
      %1150 = vdwg.mxu0
      %v1151 = vmax.f32 %v1056, 0.0
      %v1152 = vmax.f32 %v1059, 0.0
      %v1153 = vmax.f32 %v1062, 0.0
      %v1154 = vmax.f32 %v1065, 0.0
      %v1155 = vmax.f32 %v1068, 0.0
      %v1156 = vmax.f32 %v1071, 0.0
      %v1157 = vmax.f32 %v1074, 0.0
      %v1158 = vmax.f32 %v1077, 0.0
      %v1159 = vmax.f32 %v1080, 0.0
      %v1160 = vmax.f32 %v1083, 0.0
      %v1161 = vmax.f32 %v1086, 0.0
      %v1162 = vmax.f32 %v1089, 0.0
      %v1163 = vmax.f32 %v1092, 0.0
      %v1164 = vmax.f32 %v1095, 0.0
      %v1165 = vmax.f32 %v1098, 0.0
      %v1166 = vmax.f32 %v1101, 0.0
      %v1167 = vmax.f32 %v1104, 0.0
      %v1168 = vmax.f32 %v1107, 0.0
      %v1169 = vmax.f32 %v1110, 0.0
      %v1170 = vmax.f32 %v1113, 0.0
      %v1171 = vmax.f32 %v1116, 0.0
      %v1172 = vmax.f32 %v1119, 0.0
      %v1173 = vmax.f32 %v1122, 0.0
      %v1174 = vmax.f32 %v1125, 0.0
      %v1175 = vmax.f32 %v1128, 0.0
      %v1176 = vmax.f32 %v1131, 0.0
      %v1177 = vmax.f32 %v1134, 0.0
      %v1178 = vmax.f32 %v1137, 0.0
      %v1179 = vmax.f32 %v1140, 0.0
      %v1180 = vmax.f32 %v1143, 0.0
      %v1181 = vmax.f32 %v1146, 0.0
      %v1182 = vmax.f32 %v1149, 0.0
      %vm1183 = vcmask 916480
      %1184 = vst.msk [vmem:[%s410] sm:$0xff] %vm1183, %v1151
      %1185 = vst.msk [vmem:[%s410 + $0x8] sm:$0xff] %vm1183, %v1152
      %1186 = vst.msk [vmem:[%s410 + $0x10] sm:$0xff] %vm1183, %v1153
      %1187 = vst.msk [vmem:[%s410 + $0x18] sm:$0xff] %vm1183, %v1154
      %1188 = vst.msk [vmem:[%s410 + $0x20] sm:$0xff] %vm1183, %v1155
      %1189 = vst.msk [vmem:[%s410 + $0x28] sm:$0xff] %vm1183, %v1156
      %1190 = vst.msk [vmem:[%s410 + $0x30] sm:$0xff] %vm1183, %v1157
      %1191 = vst.msk [vmem:[%s410 + $0x38] sm:$0xff] %vm1183, %v1158
      %1192 = vst.msk [vmem:[%s410 + $0x40] sm:$0xff] %vm1183, %v1159
      %1193 = vst.msk [vmem:[%s410 + $0x48] sm:$0xff] %vm1183, %v1160
      %1194 = vst.msk [vmem:[%s410 + $0x50] sm:$0xff] %vm1183, %v1161
      %1195 = vst.msk [vmem:[%s410 + $0x58] sm:$0xff] %vm1183, %v1162
      %1196 = vst.msk [vmem:[%s410 + $0x60] sm:$0xff] %vm1183, %v1163
      %1197 = vst.msk [vmem:[%s410 + $0x68] sm:$0xff] %vm1183, %v1164
      %1198 = vst.msk [vmem:[%s410 + $0x70] sm:$0xff] %vm1183, %v1165
      %1199 = vst.msk [vmem:[%s410 + $0x78] sm:$0xff] %vm1183, %v1166
      %1200 = vst.msk [vmem:[%s410 + $0x80] sm:$0xff] %vm1183, %v1167
      %1201 = vst.msk [vmem:[%s410 + $0x88] sm:$0xff] %vm1183, %v1168
      %1202 = vst.msk [vmem:[%s410 + $0x90] sm:$0xff] %vm1183, %v1169
      %1203 = vst.msk [vmem:[%s410 + $0x98] sm:$0xff] %vm1183, %v1170
      %1204 = vst.msk [vmem:[%s410 + $0xa0] sm:$0xff] %vm1183, %v1171
      %1205 = vst.msk [vmem:[%s410 + $0xa8] sm:$0xff] %vm1183, %v1172
      %1206 = vst.msk [vmem:[%s410 + $0xb0] sm:$0xff] %vm1183, %v1173
      %1207 = vst.msk [vmem:[%s410 + $0xb8] sm:$0xff] %vm1183, %v1174
      %1208 = vst.msk [vmem:[%s410 + $0xc0] sm:$0xff] %vm1183, %v1175
      %1209 = vst.msk [vmem:[%s410 + $0xc8] sm:$0xff] %vm1183, %v1176
      %1210 = vst.msk [vmem:[%s410 + $0xd0] sm:$0xff] %vm1183, %v1177
      %1211 = vst.msk [vmem:[%s410 + $0xd8] sm:$0xff] %vm1183, %v1178
      %1212 = vst.msk [vmem:[%s410 + $0xe0] sm:$0xff] %vm1183, %v1179
      %1213 = vst.msk [vmem:[%s410 + $0xe8] sm:$0xff] %vm1183, %v1180
      %1214 = vst.msk [vmem:[%s410 + $0xf0] sm:$0xff] %vm1183, %v1181
      %1215 = vst.msk [vmem:[%s410 + $0xf8] sm:$0xff] %vm1183, %v1182
      %v1216 = vld [vmem:[%s398] sm:$0xff]
      %v1217 = vld [vmem:[%s398 + $0x8] sm:$0xff]
      %v1218 = vld [vmem:[%s398 + $0x10] sm:$0xff]
      %v1219 = vld [vmem:[%s398 + $0x18] sm:$0xff]
      %v1220 = vld [vmem:[%s398 + $0x20] sm:$0xff]
      %v1221 = vld [vmem:[%s398 + $0x28] sm:$0xff]
      %v1222 = vld [vmem:[%s398 + $0x30] sm:$0xff]
      %v1223 = vld [vmem:[%s398 + $0x38] sm:$0xff]
      %v1224 = vld [vmem:[%s398 + $0x40] sm:$0xff]
      %v1225 = vld [vmem:[%s398 + $0x48] sm:$0xff]
      %v1226 = vld [vmem:[%s398 + $0x50] sm:$0xff]
      %v1227 = vld [vmem:[%s398 + $0x58] sm:$0xff]
      %v1228 = vld [vmem:[%s398 + $0x60] sm:$0xff]
      %v1229 = vld [vmem:[%s398 + $0x68] sm:$0xff]
      %v1230 = vld [vmem:[%s398 + $0x70] sm:$0xff]
      %v1231 = vld [vmem:[%s398 + $0x78] sm:$0xff]
      %v1232 = vld [vmem:[%s398 + $0x80] sm:$0xff]
      %v1233 = vld [vmem:[%s398 + $0x88] sm:$0xff]
      %v1234 = vld [vmem:[%s398 + $0x90] sm:$0xff]
      %v1235 = vld [vmem:[%s398 + $0x98] sm:$0xff]
      %v1236 = vld [vmem:[%s398 + $0xa0] sm:$0xff]
      %v1237 = vld [vmem:[%s398 + $0xa8] sm:$0xff]
      %v1238 = vld [vmem:[%s398 + $0xb0] sm:$0xff]
      %v1239 = vld [vmem:[%s398 + $0xb8] sm:$0xff]
      %v1240 = vld [vmem:[%s398 + $0xc0] sm:$0xff]
      %v1241 = vld [vmem:[%s398 + $0xc8] sm:$0xff]
      %v1242 = vld [vmem:[%s398 + $0xd0] sm:$0xff]
      %v1243 = vld [vmem:[%s398 + $0xd8] sm:$0xff]
      %v1244 = vld [vmem:[%s398 + $0xe0] sm:$0xff]
      %v1245 = vld [vmem:[%s398 + $0xe8] sm:$0xff]
      %v1246 = vld [vmem:[%s398 + $0xf0] sm:$0xff]
      %v1247 = vld [vmem:[%s398 + $0xf8] sm:$0xff]
      %v1248 = vld [vmem:[%s398 + $0x100] sm:$0xff]
      %v1249 = vld [vmem:[%s398 + $0x108] sm:$0xff]
      %v1250 = vld [vmem:[%s398 + $0x110] sm:$0xff]
      %v1251 = vld [vmem:[%s398 + $0x118] sm:$0xff]
      %v1252 = vld [vmem:[%s398 + $0x120] sm:$0xff]
      %v1253 = vld [vmem:[%s398 + $0x128] sm:$0xff]
      %v1254 = vld [vmem:[%s398 + $0x130] sm:$0xff]
      %v1255 = vld [vmem:[%s398 + $0x138] sm:$0xff]
      %v1256 = vld [vmem:[%s398 + $0x140] sm:$0xff]
      %v1257 = vld [vmem:[%s398 + $0x148] sm:$0xff]
      %v1258 = vld [vmem:[%s398 + $0x150] sm:$0xff]
      %v1259 = vld [vmem:[%s398 + $0x158] sm:$0xff]
      %v1260 = vld [vmem:[%s398 + $0x160] sm:$0xff]
      %v1261 = vld [vmem:[%s398 + $0x168] sm:$0xff]
      %v1262 = vld [vmem:[%s398 + $0x170] sm:$0xff]
      %v1263 = vld [vmem:[%s398 + $0x178] sm:$0xff]
      %v1264 = vld [vmem:[%s398 + $0x180] sm:$0xff]
      %v1265 = vld [vmem:[%s398 + $0x188] sm:$0xff]
      %v1266 = vld [vmem:[%s398 + $0x190] sm:$0xff]
      %v1267 = vld [vmem:[%s398 + $0x198] sm:$0xff]
      %v1268 = vld [vmem:[%s398 + $0x1a0] sm:$0xff]
      %v1269 = vld [vmem:[%s398 + $0x1a8] sm:$0xff]
      %v1270 = vld [vmem:[%s398 + $0x1b0] sm:$0xff]
      %v1271 = vld [vmem:[%s398 + $0x1b8] sm:$0xff]
      %v1272 = vld [vmem:[%s398 + $0x1c0] sm:$0xff]
      %v1273 = vld [vmem:[%s398 + $0x1c8] sm:$0xff]
      %v1274 = vld [vmem:[%s398 + $0x1d0] sm:$0xff]
      %v1275 = vld [vmem:[%s398 + $0x1d8] sm:$0xff]
      %v1276 = vld [vmem:[%s398 + $0x1e0] sm:$0xff]
      %v1277 = vld [vmem:[%s398 + $0x1e8] sm:$0xff]
      %v1278 = vld [vmem:[%s398 + $0x1f0] sm:$0xff]
      %v1279 = vld [vmem:[%s398 + $0x1f8] sm:$0xff]
      %v1280 = vld [vmem:[%s4] sm:$0xff]
      %v1281 = vld [vmem:[%s4 + $0x8] sm:$0xff]
      %v1282 = vld [vmem:[%s4 + $0x10] sm:$0xff]
      %v1283 = vld [vmem:[%s4 + $0x18] sm:$0xff]
      %v1284 = vld [vmem:[%s4 + $0x20] sm:$0xff]
      %v1285 = vld [vmem:[%s4 + $0x28] sm:$0xff]
      %v1286 = vld [vmem:[%s4 + $0x30] sm:$0xff]
      %v1287 = vld [vmem:[%s4 + $0x38] sm:$0xff]
      %v1288 = vld [vmem:[%s4 + $0x40] sm:$0xff]
      %v1289 = vld [vmem:[%s4 + $0x48] sm:$0xff]
      %v1290 = vld [vmem:[%s4 + $0x50] sm:$0xff]
      %v1291 = vld [vmem:[%s4 + $0x58] sm:$0xff]
      %v1292 = vld [vmem:[%s4 + $0x60] sm:$0xff]
      %v1293 = vld [vmem:[%s4 + $0x68] sm:$0xff]
      %v1294 = vld [vmem:[%s4 + $0x70] sm:$0xff]
      %v1295 = vld [vmem:[%s4 + $0x78] sm:$0xff]
      %v1296 = vld [vmem:[%s4 + $0x80] sm:$0xff]
      %v1297 = vld [vmem:[%s4 + $0x88] sm:$0xff]
      %v1298 = vld [vmem:[%s4 + $0x90] sm:$0xff]
      %v1299 = vld [vmem:[%s4 + $0x98] sm:$0xff]
      %v1300 = vld [vmem:[%s4 + $0xa0] sm:$0xff]
      %v1301 = vld [vmem:[%s4 + $0xa8] sm:$0xff]
      %v1302 = vld [vmem:[%s4 + $0xb0] sm:$0xff]
      %v1303 = vld [vmem:[%s4 + $0xb8] sm:$0xff]
      %v1304 = vld [vmem:[%s7] sm:$0x1]
      %v1306 = vperm.slane %v1304, 0
      %v1309 = vsel %vm510, %v1217, 0
      %v1312 = vsel %vm510, %v1219, 0
      %v1315 = vsel %vm510, %v1221, 0
      %v1318 = vsel %vm510, %v1223, 0
      %v1321 = vsel %vm510, %v1225, 0
      %v1324 = vsel %vm510, %v1227, 0
      %v1327 = vsel %vm510, %v1229, 0
      %v1330 = vsel %vm510, %v1231, 0
      %v1333 = vsel %vm510, %v1233, 0
      %v1336 = vsel %vm510, %v1235, 0
      %v1339 = vsel %vm510, %v1237, 0
      %v1342 = vsel %vm510, %v1239, 0
      %v1345 = vsel %vm510, %v1241, 0
      %v1348 = vsel %vm510, %v1243, 0
      %v1351 = vsel %vm510, %v1245, 0
      %v1354 = vsel %vm510, %v1247, 0
      %v1357 = vsel %vm510, %v1249, 0
      %v1360 = vsel %vm510, %v1251, 0
      %v1363 = vsel %vm510, %v1253, 0
      %v1366 = vsel %vm510, %v1255, 0
      %v1369 = vsel %vm510, %v1257, 0
      %v1372 = vsel %vm510, %v1259, 0
      %v1375 = vsel %vm510, %v1261, 0
      %v1378 = vsel %vm510, %v1263, 0
      %v1381 = vsel %vm510, %v1265, 0
      %v1384 = vsel %vm510, %v1267, 0
      %v1387 = vsel %vm510, %v1269, 0
      %v1390 = vsel %vm510, %v1271, 0
      %v1393 = vsel %vm510, %v1273, 0
      %v1396 = vsel %vm510, %v1275, 0
      %v1399 = vsel %vm510, %v1277, 0
      %v1402 = vsel %vm510, %v1279, 0
      %1404 = vmatpush.msra.mxu0 %v1295
      %1405 = vmatpush.msra.mxu0 %v1294
      %1406 = vmatpush.msra.mxu0 %v1293
      %1407 = vmatpush.msra.mxu0 %v1292
      %1408 = vmatpush.msra.mxu0 %v1291
      %1409 = vmatpush.msra.mxu0 %v1290
      %1410 = vmatpush.msra.mxu0 %v1289
      %1411 = vmatpush.msra.mxu0 %v1288
      %1412 = vmatpush.msra.mxu0 %v1287
      %1413 = vmatpush.msra.mxu0 %v1286
      %1414 = vmatpush.msra.mxu0 %v1285
      %1415 = vmatpush.msra.mxu0 %v1284
      %1416 = vmatpush.msra.mxu0 %v1283
      %1417 = vmatpush.msra.mxu0 %v1282
      %1418 = vmatpush.msra.mxu0 %v1281
      %1419 = vmatpush.msra.mxu0 %v1280
      %1420 = vmatmul.f32.gmra.mxu0 %v1216
      %v1421 = vpop.f32.mrf.mxu0
      %v1422 = vadd.f32 %v1306, %v1421
      %1423 = vmatmul.f32.gmra.mxu0 %v1218
      %v1424 = vpop.f32.mrf.mxu0
      %v1425 = vadd.f32 %v1306, %v1424
      %1426 = vmatmul.f32.gmra.mxu0 %v1220
      %v1427 = vpop.f32.mrf.mxu0
      %v1428 = vadd.f32 %v1306, %v1427
      %1429 = vmatmul.f32.gmra.mxu0 %v1222
      %v1430 = vpop.f32.mrf.mxu0
      %v1431 = vadd.f32 %v1306, %v1430
      %1432 = vmatmul.f32.gmra.mxu0 %v1224
      %v1433 = vpop.f32.mrf.mxu0
      %v1434 = vadd.f32 %v1306, %v1433
      %1435 = vmatmul.f32.gmra.mxu0 %v1226
      %v1436 = vpop.f32.mrf.mxu0
      %v1437 = vadd.f32 %v1306, %v1436
      %1438 = vmatmul.f32.gmra.mxu0 %v1228
      %v1439 = vpop.f32.mrf.mxu0
      %v1440 = vadd.f32 %v1306, %v1439
      %1441 = vmatmul.f32.gmra.mxu0 %v1230
      %v1442 = vpop.f32.mrf.mxu0
      %v1443 = vadd.f32 %v1306, %v1442
      %1444 = vmatmul.f32.gmra.mxu0 %v1232
      %v1445 = vpop.f32.mrf.mxu0
      %v1446 = vadd.f32 %v1306, %v1445
      %1447 = vmatmul.f32.gmra.mxu0 %v1234
      %v1448 = vpop.f32.mrf.mxu0
      %v1449 = vadd.f32 %v1306, %v1448
      %1450 = vmatmul.f32.gmra.mxu0 %v1236
      %v1451 = vpop.f32.mrf.mxu0
      %v1452 = vadd.f32 %v1306, %v1451
      %1453 = vmatmul.f32.gmra.mxu0 %v1238
      %v1454 = vpop.f32.mrf.mxu0
      %v1455 = vadd.f32 %v1306, %v1454
      %1456 = vmatmul.f32.gmra.mxu0 %v1240
      %v1457 = vpop.f32.mrf.mxu0
      %v1458 = vadd.f32 %v1306, %v1457
      %1459 = vmatmul.f32.gmra.mxu0 %v1242
      %v1460 = vpop.f32.mrf.mxu0
      %v1461 = vadd.f32 %v1306, %v1460
      %1462 = vmatmul.f32.gmra.mxu0 %v1244
      %v1463 = vpop.f32.mrf.mxu0
      %v1464 = vadd.f32 %v1306, %v1463
      %1465 = vmatmul.f32.gmra.mxu0 %v1246
      %v1466 = vpop.f32.mrf.mxu0
      %v1467 = vadd.f32 %v1306, %v1466
      %1468 = vmatmul.f32.gmra.mxu0 %v1248
      %v1469 = vpop.f32.mrf.mxu0
      %v1470 = vadd.f32 %v1306, %v1469
      %1471 = vmatmul.f32.gmra.mxu0 %v1250
      %v1472 = vpop.f32.mrf.mxu0
      %v1473 = vadd.f32 %v1306, %v1472
      %1474 = vmatmul.f32.gmra.mxu0 %v1252
      %v1475 = vpop.f32.mrf.mxu0
      %v1476 = vadd.f32 %v1306, %v1475
      %1477 = vmatmul.f32.gmra.mxu0 %v1254
      %v1478 = vpop.f32.mrf.mxu0
      %v1479 = vadd.f32 %v1306, %v1478
      %1480 = vmatmul.f32.gmra.mxu0 %v1256
      %v1481 = vpop.f32.mrf.mxu0
      %v1482 = vadd.f32 %v1306, %v1481
      %1483 = vmatmul.f32.gmra.mxu0 %v1258
      %v1484 = vpop.f32.mrf.mxu0
      %v1485 = vadd.f32 %v1306, %v1484
      %1486 = vmatmul.f32.gmra.mxu0 %v1260
      %v1487 = vpop.f32.mrf.mxu0
      %v1488 = vadd.f32 %v1306, %v1487
      %1489 = vmatmul.f32.gmra.mxu0 %v1262
      %v1490 = vpop.f32.mrf.mxu0
      %v1491 = vadd.f32 %v1306, %v1490
      %1492 = vmatmul.f32.gmra.mxu0 %v1264
      %v1493 = vpop.f32.mrf.mxu0
      %v1494 = vadd.f32 %v1306, %v1493
      %1495 = vmatmul.f32.gmra.mxu0 %v1266
      %v1496 = vpop.f32.mrf.mxu0
      %v1497 = vadd.f32 %v1306, %v1496
      %1498 = vmatmul.f32.gmra.mxu0 %v1268
      %v1499 = vpop.f32.mrf.mxu0
      %v1500 = vadd.f32 %v1306, %v1499
      %1501 = vmatmul.f32.gmra.mxu0 %v1270
      %v1502 = vpop.f32.mrf.mxu0
      %v1503 = vadd.f32 %v1306, %v1502
      %1504 = vmatmul.f32.gmra.mxu0 %v1272
      %v1505 = vpop.f32.mrf.mxu0
      %v1506 = vadd.f32 %v1306, %v1505
      %1507 = vmatmul.f32.gmra.mxu0 %v1274
      %v1508 = vpop.f32.mrf.mxu0
      %v1509 = vadd.f32 %v1306, %v1508
      %1510 = vmatmul.f32.gmra.mxu0 %v1276
      %v1511 = vpop.f32.mrf.mxu0
      %v1512 = vadd.f32 %v1306, %v1511
      %1513 = vmatmul.f32.gmra.mxu0 %v1278
      %v1514 = vpop.f32.mrf.mxu0
      %v1515 = vadd.f32 %v1306, %v1514
      %1516 = vdwg.mxu0
      %1517 = vmatpush.msra.mxu0 0.0
      %1518 = vmatpush.msra.mxu0 0.0
      %1519 = vmatpush.msra.mxu0 0.0
      %1520 = vmatpush.msra.mxu0 0.0
      %1521 = vmatpush.msra.mxu0 0.0
      %1522 = vmatpush.msra.mxu0 0.0
      %1523 = vmatpush.msra.mxu0 0.0
      %1524 = vmatpush.msra.mxu0 0.0
      %1525 = vmatpush.msra.mxu0 %v1303
      %1526 = vmatpush.msra.mxu0 %v1302
      %1527 = vmatpush.msra.mxu0 %v1301
      %1528 = vmatpush.msra.mxu0 %v1300
      %1529 = vmatpush.msra.mxu0 %v1299
      %1530 = vmatpush.msra.mxu0 %v1298
      %1531 = vmatpush.msra.mxu0 %v1297
      %1532 = vmatpush.msra.mxu0 %v1296
      %1533 = vmatmul.f32.gmra.mxu0 %v1309
      %v1534 = vpop.f32.mrf.mxu0
      %v1535 = vadd.f32 %v1422, %v1534
      %1536 = vmatmul.f32.gmra.mxu0 %v1312
      %v1537 = vpop.f32.mrf.mxu0
      %v1538 = vadd.f32 %v1425, %v1537
      %1539 = vmatmul.f32.gmra.mxu0 %v1315
      %v1540 = vpop.f32.mrf.mxu0
      %v1541 = vadd.f32 %v1428, %v1540
      %1542 = vmatmul.f32.gmra.mxu0 %v1318
      %v1543 = vpop.f32.mrf.mxu0
      %v1544 = vadd.f32 %v1431, %v1543
      %1545 = vmatmul.f32.gmra.mxu0 %v1321
      %v1546 = vpop.f32.mrf.mxu0
      %v1547 = vadd.f32 %v1434, %v1546
      %1548 = vmatmul.f32.gmra.mxu0 %v1324
      %v1549 = vpop.f32.mrf.mxu0
      %v1550 = vadd.f32 %v1437, %v1549
      %1551 = vmatmul.f32.gmra.mxu0 %v1327
      %v1552 = vpop.f32.mrf.mxu0
      %v1553 = vadd.f32 %v1440, %v1552
      %1554 = vmatmul.f32.gmra.mxu0 %v1330
      %v1555 = vpop.f32.mrf.mxu0
      %v1556 = vadd.f32 %v1443, %v1555
      %1557 = vmatmul.f32.gmra.mxu0 %v1333
      %v1558 = vpop.f32.mrf.mxu0
      %v1559 = vadd.f32 %v1446, %v1558
      %1560 = vmatmul.f32.gmra.mxu0 %v1336
      %v1561 = vpop.f32.mrf.mxu0
      %v1562 = vadd.f32 %v1449, %v1561
      %1563 = vmatmul.f32.gmra.mxu0 %v1339
      %v1564 = vpop.f32.mrf.mxu0
      %v1565 = vadd.f32 %v1452, %v1564
      %1566 = vmatmul.f32.gmra.mxu0 %v1342
      %v1567 = vpop.f32.mrf.mxu0
      %v1568 = vadd.f32 %v1455, %v1567
      %1569 = vmatmul.f32.gmra.mxu0 %v1345
      %v1570 = vpop.f32.mrf.mxu0
      %v1571 = vadd.f32 %v1458, %v1570
      %1572 = vmatmul.f32.gmra.mxu0 %v1348
      %v1573 = vpop.f32.mrf.mxu0
      %v1574 = vadd.f32 %v1461, %v1573
      %1575 = vmatmul.f32.gmra.mxu0 %v1351
      %v1576 = vpop.f32.mrf.mxu0
      %v1577 = vadd.f32 %v1464, %v1576
      %1578 = vmatmul.f32.gmra.mxu0 %v1354
      %v1579 = vpop.f32.mrf.mxu0
      %v1580 = vadd.f32 %v1467, %v1579
      %1581 = vmatmul.f32.gmra.mxu0 %v1357
      %v1582 = vpop.f32.mrf.mxu0
      %v1583 = vadd.f32 %v1470, %v1582
      %1584 = vmatmul.f32.gmra.mxu0 %v1360
      %v1585 = vpop.f32.mrf.mxu0
      %v1586 = vadd.f32 %v1473, %v1585
      %1587 = vmatmul.f32.gmra.mxu0 %v1363
      %v1588 = vpop.f32.mrf.mxu0
      %v1589 = vadd.f32 %v1476, %v1588
      %1590 = vmatmul.f32.gmra.mxu0 %v1366
      %v1591 = vpop.f32.mrf.mxu0
      %v1592 = vadd.f32 %v1479, %v1591
      %1593 = vmatmul.f32.gmra.mxu0 %v1369
      %v1594 = vpop.f32.mrf.mxu0
      %v1595 = vadd.f32 %v1482, %v1594
      %1596 = vmatmul.f32.gmra.mxu0 %v1372
      %v1597 = vpop.f32.mrf.mxu0
      %v1598 = vadd.f32 %v1485, %v1597
      %1599 = vmatmul.f32.gmra.mxu0 %v1375
      %v1600 = vpop.f32.mrf.mxu0
      %v1601 = vadd.f32 %v1488, %v1600
      %1602 = vmatmul.f32.gmra.mxu0 %v1378
      %v1603 = vpop.f32.mrf.mxu0
      %v1604 = vadd.f32 %v1491, %v1603
      %1605 = vmatmul.f32.gmra.mxu0 %v1381
      %v1606 = vpop.f32.mrf.mxu0
      %v1607 = vadd.f32 %v1494, %v1606
      %1608 = vmatmul.f32.gmra.mxu0 %v1384
      %v1609 = vpop.f32.mrf.mxu0
      %v1610 = vadd.f32 %v1497, %v1609
      %1611 = vmatmul.f32.gmra.mxu0 %v1387
      %v1612 = vpop.f32.mrf.mxu0
      %v1613 = vadd.f32 %v1500, %v1612
      %1614 = vmatmul.f32.gmra.mxu0 %v1390
      %v1615 = vpop.f32.mrf.mxu0
      %v1616 = vadd.f32 %v1503, %v1615
      %1617 = vmatmul.f32.gmra.mxu0 %v1393
      %v1618 = vpop.f32.mrf.mxu0
      %v1619 = vadd.f32 %v1506, %v1618
      %1620 = vmatmul.f32.gmra.mxu0 %v1396
      %v1621 = vpop.f32.mrf.mxu0
      %v1622 = vadd.f32 %v1509, %v1621
      %1623 = vmatmul.f32.gmra.mxu0 %v1399
      %v1624 = vpop.f32.mrf.mxu0
      %v1625 = vadd.f32 %v1512, %v1624
      %1626 = vmatmul.f32.gmra.mxu0 %v1402
      %v1627 = vpop.f32.mrf.mxu0
      %v1628 = vadd.f32 %v1515, %v1627
      %1629 = vdwg.mxu0
      %v1630 = vmax.f32 %v1535, 0.0
      %v1631 = vmax.f32 %v1538, 0.0
      %v1632 = vmax.f32 %v1541, 0.0
      %v1633 = vmax.f32 %v1544, 0.0
      %v1634 = vmax.f32 %v1547, 0.0
      %v1635 = vmax.f32 %v1550, 0.0
      %v1636 = vmax.f32 %v1553, 0.0
      %v1637 = vmax.f32 %v1556, 0.0
      %v1638 = vmax.f32 %v1559, 0.0
      %v1639 = vmax.f32 %v1562, 0.0
      %v1640 = vmax.f32 %v1565, 0.0
      %v1641 = vmax.f32 %v1568, 0.0
      %v1642 = vmax.f32 %v1571, 0.0
      %v1643 = vmax.f32 %v1574, 0.0
      %v1644 = vmax.f32 %v1577, 0.0
      %v1645 = vmax.f32 %v1580, 0.0
      %v1646 = vmax.f32 %v1583, 0.0
      %v1647 = vmax.f32 %v1586, 0.0
      %v1648 = vmax.f32 %v1589, 0.0
      %v1649 = vmax.f32 %v1592, 0.0
      %v1650 = vmax.f32 %v1595, 0.0
      %v1651 = vmax.f32 %v1598, 0.0
      %v1652 = vmax.f32 %v1601, 0.0
      %v1653 = vmax.f32 %v1604, 0.0
      %v1654 = vmax.f32 %v1607, 0.0
      %v1655 = vmax.f32 %v1610, 0.0
      %v1656 = vmax.f32 %v1613, 0.0
      %v1657 = vmax.f32 %v1616, 0.0
      %v1658 = vmax.f32 %v1619, 0.0
      %v1659 = vmax.f32 %v1622, 0.0
      %v1660 = vmax.f32 %v1625, 0.0
      %v1661 = vmax.f32 %v1628, 0.0
      %vm1662 = vcmask 261120
      %1663 = vst.msk [vmem:[%s416] sm:$0xff] %vm1662, %v1630
      %1664 = vst.msk [vmem:[%s416 + $0x8] sm:$0xff] %vm1662, %v1631
      %1665 = vst.msk [vmem:[%s416 + $0x10] sm:$0xff] %vm1662, %v1632
      %1666 = vst.msk [vmem:[%s416 + $0x18] sm:$0xff] %vm1662, %v1633
      %1667 = vst.msk [vmem:[%s416 + $0x20] sm:$0xff] %vm1662, %v1634
      %1668 = vst.msk [vmem:[%s416 + $0x28] sm:$0xff] %vm1662, %v1635
      %1669 = vst.msk [vmem:[%s416 + $0x30] sm:$0xff] %vm1662, %v1636
      %1670 = vst.msk [vmem:[%s416 + $0x38] sm:$0xff] %vm1662, %v1637
      %1671 = vst.msk [vmem:[%s416 + $0x40] sm:$0xff] %vm1662, %v1638
      %1672 = vst.msk [vmem:[%s416 + $0x48] sm:$0xff] %vm1662, %v1639
      %1673 = vst.msk [vmem:[%s416 + $0x50] sm:$0xff] %vm1662, %v1640
      %1674 = vst.msk [vmem:[%s416 + $0x58] sm:$0xff] %vm1662, %v1641
      %1675 = vst.msk [vmem:[%s416 + $0x60] sm:$0xff] %vm1662, %v1642
      %1676 = vst.msk [vmem:[%s416 + $0x68] sm:$0xff] %vm1662, %v1643
      %1677 = vst.msk [vmem:[%s416 + $0x70] sm:$0xff] %vm1662, %v1644
      %1678 = vst.msk [vmem:[%s416 + $0x78] sm:$0xff] %vm1662, %v1645
      %1679 = vst.msk [vmem:[%s416 + $0x80] sm:$0xff] %vm1662, %v1646
      %1680 = vst.msk [vmem:[%s416 + $0x88] sm:$0xff] %vm1662, %v1647
      %1681 = vst.msk [vmem:[%s416 + $0x90] sm:$0xff] %vm1662, %v1648
      %1682 = vst.msk [vmem:[%s416 + $0x98] sm:$0xff] %vm1662, %v1649
      %1683 = vst.msk [vmem:[%s416 + $0xa0] sm:$0xff] %vm1662, %v1650
      %1684 = vst.msk [vmem:[%s416 + $0xa8] sm:$0xff] %vm1662, %v1651
      %1685 = vst.msk [vmem:[%s416 + $0xb0] sm:$0xff] %vm1662, %v1652
      %1686 = vst.msk [vmem:[%s416 + $0xb8] sm:$0xff] %vm1662, %v1653
      %1687 = vst.msk [vmem:[%s416 + $0xc0] sm:$0xff] %vm1662, %v1654
      %1688 = vst.msk [vmem:[%s416 + $0xc8] sm:$0xff] %vm1662, %v1655
      %1689 = vst.msk [vmem:[%s416 + $0xd0] sm:$0xff] %vm1662, %v1656
      %1690 = vst.msk [vmem:[%s416 + $0xd8] sm:$0xff] %vm1662, %v1657
      %1691 = vst.msk [vmem:[%s416 + $0xe0] sm:$0xff] %vm1662, %v1658
      %1692 = vst.msk [vmem:[%s416 + $0xe8] sm:$0xff] %vm1662, %v1659
      %1693 = vst.msk [vmem:[%s416 + $0xf0] sm:$0xff] %vm1662, %v1660
      %1694 = vst.msk [vmem:[%s416 + $0xf8] sm:$0xff] %vm1662, %v1661
      %s1695 = smul.u32 32, %s22
      %p1696 = scmp.lt.s32.totalorder %s1695, 63
      %s1697 = scalar_select %p1696, %s1695, 63
      %s1698 = smul.addr %s1697, 8
      %s1699 = scalar_lea.vmem %s8, %s1698
      %s1700 = smul.u32 32, %s22
      %p1701 = scmp.lt.s32.totalorder %s1700, 63
      %s1702 = scalar_select %p1701, %s1700, 63
      %s1703 = smul.addr %s1702, 8
      %s1704 = scalar_lea.vmem %s9, %s1703
      %s1705 = smul.u32 32, %s22
      %p1706 = scmp.lt.s32.totalorder %s1705, 63
      %s1707 = scalar_select %p1706, %s1705, 63
      %s1708 = smul.addr %s1707, 8
      %s1709 = scalar_lea.vmem %s10, %s1708
      // Predicated region
      $region53: #{mixed_3b_forward.3} parent=51 // pred_check
        %p1710 = pneg %p218
      $region54: #{mixed_3b_forward.3} parent=51 // pred_check_branch
        %1712 = sbr.rel (%p1710) target = $region56
      $region55: #{mixed_3b_forward.3} parent=51 // pred_region
        %s1713 = smul.u32 32, %s22
      $region56: #{mixed_3b_forward.3} parent=51 // pred_fallthru
        _
      // Predicated region
      $region57: #{mixed_3b_forward.3} parent=51 // pred_check
        %p1714 = pneg %p244
      $region58: #{mixed_3b_forward.3} parent=51 // pred_check_branch
        %1716 = sbr.rel (%p1714) target = $region60
      $region59: #{mixed_3b_forward.3} parent=51 // pred_region
        %s1717 = smul.u32 32, %s22
      $region60: #{mixed_3b_forward.3} parent=51 // pred_fallthru
        _
      // Predicated region
      $region61: #{mixed_3b_forward.3} parent=51 // pred_check
        %p1718 = pneg %p270
      $region62: #{mixed_3b_forward.3} parent=51 // pred_check_branch
        %1720 = sbr.rel (%p1718) target = $region64
      $region63: #{mixed_3b_forward.3} parent=51 // pred_region
        %s1721 = smul.u32 32, %s22
      $region64: #{mixed_3b_forward.3} parent=51 // pred_fallthru
        _
    $region52: #{mixed_3b_forward.3} parent=5 // pred_fallthru
      _
    %p1722 = scmp.le.s32.totalorder 2, %s17
    // Predicated region
    $region65: #{mixed_3b_forward.3} parent=5 // pred_check
      %p1723 = pneg %p1722
    $region66: #{mixed_3b_forward.3} parent=5 // pred_check_branch
      %1725 = sbr.rel (%p1723) target = $region68
    $region67: #{mixed_3b_forward.3} parent=5 // pred_region
      %s1726 = ssub.s32 %s17, 2
      // Predicated region
      $region69: #{mixed_3b_forward.3} parent=67 // pred_check
        %p1727 = pneg %p224
      $region70: #{mixed_3b_forward.3} parent=67 // pred_check_branch
        %1729 = sbr.rel (%p1727) target = $region72
      $region71: #{mixed_3b_forward.3} parent=67 // pred_region
        %s1730 = smul.u32 32, %s23
        %p1731 = scmp.lt.s32.totalorder %s1730, 63
        %s1732 = scalar_select %p1731, %s1730, 63
        %s1733 = smul.addr %s1732, 8
        %s1734 = scalar_lea.vmem %s8, %s1733
      $region72: #{mixed_3b_forward.3} parent=67 // pred_fallthru
        _
      // Predicated region
      $region73: #{mixed_3b_forward.3} parent=67 // pred_check
        %p1735 = pneg %p250
      $region74: #{mixed_3b_forward.3} parent=67 // pred_check_branch
        %1737 = sbr.rel (%p1735) target = $region76
      $region75: #{mixed_3b_forward.3} parent=67 // pred_region
        %s1738 = smul.u32 32, %s23
        %p1739 = scmp.lt.s32.totalorder %s1738, 63
        %s1740 = scalar_select %p1739, %s1738, 63
        %s1741 = smul.addr %s1740, 8
        %s1742 = scalar_lea.vmem %s9, %s1741
      $region76: #{mixed_3b_forward.3} parent=67 // pred_fallthru
        _
      // Predicated region
      $region77: #{mixed_3b_forward.3} parent=67 // pred_check
        %p1743 = pneg %p276
      $region78: #{mixed_3b_forward.3} parent=67 // pred_check_branch
        %1745 = sbr.rel (%p1743) target = $region80
      $region79: #{mixed_3b_forward.3} parent=67 // pred_region
        %s1746 = smul.u32 32, %s23
        %p1747 = scmp.lt.s32.totalorder %s1746, 63
        %s1748 = scalar_select %p1747, %s1746, 63
        %s1749 = smul.addr %s1748, 8
        %s1750 = scalar_lea.vmem %s10, %s1749
      $region80: #{mixed_3b_forward.3} parent=67 // pred_fallthru
        _
    $region68: #{mixed_3b_forward.3} parent=5 // pred_fallthru
      _
  $region6: #{mixed_3b_forward.3} parent=0 // loop_footer
    %s21 = sadd.s32 1, %s17
  $region7: #{mixed_3b_forward.3} parent=0 // loop_footer_branch
    %16 = sbr.rel target = $region3
  $region8: #{mixed_3b_forward.3} parent=0 // loop_exit
    _

// kernel: mixed_3b_forward.4
$region0: #{mixed_3b_forward.4}
  #allocation0 [shape = 'u32[]', space=smem, size = 0x4, offset = 0x4, fixed_abs, tag = 'smem constant byte address 0x4 - core index']
  #allocation1 [shape = 'u32[72,128]{1,0:T(1,128)}', space=vmem, size = 0x9000, scoped, tag = 'internal scratch']
  %s0 = inlined_call_operand.vmem [shape: f32[8,102,112], index: 0, kind: input, shape index: {}]
  %s1 = inlined_call_operand.vmem [shape: f32[9,112,160], index: 1, kind: input, shape index: {}]
  %s2 = inlined_call_operand.vmem [shape: f32[1,160], index: 2, kind: input, shape index: {}]
  %s3 = inlined_call_operand.vmem [shape: f32[8,80,160], index: 3, kind: output, shape index: {}]
  %s4 = sld [smem:[#allocation0]]
  $region45: #{mixed_3b_forward.4} parent=0
    _
  %s6 = ssub.s32 1, %s4
  %s7 = scalar_select 0, %s6, %s4
  loop: start=0, step=1, limit=4
  $region2: #{mixed_3b_forward.4} parent=0 // loop_pre_header
    _
  $region3: #{mixed_3b_forward.4} parent=0 // loop_header
    %s9 = sphi 0, %s13
    %p10 = scmp.ge.s32.totalorder %s9, 4
    %s19 = sphi 0, %s21
    %s22 = sphi 0, %s19
    %s23 = sphi 0, %s22
    %s39 = sphi 0, %s23
    %s43 = sphi 0, %s43
    %s45 = sphi 0, %s43
    %s46 = sphi 0, %s45
    %s60 = sphi 0, %s46
    %s64 = sphi 0, %s64
    %s66 = sphi 0, %s64
    %s67 = sphi 0, %s66
    %s81 = sphi 0, %s67
    %s87 = sphi 0, %s89
    %s90 = sphi 0, %s87
    %s91 = sphi 0, %s90
    %s107 = sphi 0, %s91
  $region4: #{mixed_3b_forward.4} parent=0 // loop_header_branch
    %12 = sbr.rel (%p10) target = $region8
  $region5: #{mixed_3b_forward.4} parent=0 // loop_body
    %s14 = ssub.s32 %s9, 1
    %s15 = ssub.s32 %s9, 2
    %s16 = sadd.s32 %s9, 1
    %s17 = ssub.s32 %s9, %s16
    %p18 = scmp.eq.s32.totalorder %s17, 0
    %s20 = sadd.s32 %s19, 1
    %s21 = scalar_select %p18, %s19, %s20
    %p24 = pneg %p18
    %p25 = scmp.eq.s32.totalorder %s9, 1
    %p26 = por %p24, %p25
    %p27 = scmp.ne.s32.totalorder %s19, %s22
    %p28 = scmp.eq.s32.totalorder %s9, 0
    %p29 = por %p27, %p28
    %p30 = scmp.ne.s32.totalorder %s19, %s22
    %p31 = scmp.eq.s32.totalorder %s14, 1
    %p32 = por %p30, %p31
    %p33 = scmp.ne.s32.totalorder %s22, %s23
    %p34 = scmp.eq.s32.totalorder %s14, 0
    %p35 = por %p33, %p34
    %p36 = scmp.ne.s32.totalorder %s22, %s23
    %p37 = scmp.eq.s32.totalorder %s15, 1
    %p38 = por %p36, %p37
    %p40 = scmp.ne.s32.totalorder %s23, %s39
    %p41 = scmp.eq.s32.totalorder %s15, 0
    %p42 = por %p40, %p41
    %s44 = sadd.s32 %s43, 1
    %p47 = scmp.eq.s32.totalorder %s9, 1
    %p48 = scmp.ne.s32.totalorder %s43, %s45
    %p49 = scmp.eq.s32.totalorder %s9, 0
    %p50 = por %p48, %p49
    %p51 = scmp.ne.s32.totalorder %s43, %s45
    %p52 = scmp.eq.s32.totalorder %s14, 1
    %p53 = por %p51, %p52
    %p54 = scmp.ne.s32.totalorder %s45, %s46
    %p55 = scmp.eq.s32.totalorder %s14, 0
    %p56 = por %p54, %p55
    %p57 = scmp.ne.s32.totalorder %s45, %s46
    %p58 = scmp.eq.s32.totalorder %s15, 1
    %p59 = por %p57, %p58
    %p61 = scmp.ne.s32.totalorder %s46, %s60
    %p62 = scmp.eq.s32.totalorder %s15, 0
    %p63 = por %p61, %p62
    %s65 = sadd.s32 %s64, 1
    %p68 = scmp.eq.s32.totalorder %s9, 1
    %p69 = scmp.ne.s32.totalorder %s64, %s66
    %p70 = scmp.eq.s32.totalorder %s9, 0
    %p71 = por %p69, %p70
    %p72 = scmp.ne.s32.totalorder %s64, %s66
    %p73 = scmp.eq.s32.totalorder %s14, 1
    %p74 = por %p72, %p73
    %p75 = scmp.ne.s32.totalorder %s66, %s67
    %p76 = scmp.eq.s32.totalorder %s14, 0
    %p77 = por %p75, %p76
    %p78 = scmp.ne.s32.totalorder %s66, %s67
    %p79 = scmp.eq.s32.totalorder %s15, 1
    %p80 = por %p78, %p79
    %p82 = scmp.ne.s32.totalorder %s67, %s81
    %p83 = scmp.eq.s32.totalorder %s15, 0
    %p84 = por %p82, %p83
    %s85 = ssub.s32 %s9, %s16
    %p86 = scmp.eq.s32.totalorder %s85, 0
    %s88 = sadd.s32 %s87, 1
    %s89 = scalar_select %p86, %s87, %s88
    %p92 = pneg %p86
    %p93 = scmp.eq.s32.totalorder %s9, 1
    %p94 = por %p92, %p93
    %p95 = scmp.ne.s32.totalorder %s87, %s90
    %p96 = scmp.eq.s32.totalorder %s9, 0
    %p97 = por %p95, %p96
    %p98 = scmp.ne.s32.totalorder %s87, %s90
    %p99 = scmp.eq.s32.totalorder %s14, 1
    %p100 = por %p98, %p99
    %p101 = scmp.ne.s32.totalorder %s90, %s91
    %p102 = scmp.eq.s32.totalorder %s14, 0
    %p103 = por %p101, %p102
    %p104 = scmp.ne.s32.totalorder %s90, %s91
    %p105 = scmp.eq.s32.totalorder %s15, 1
    %p106 = por %p104, %p105
    %p108 = scmp.ne.s32.totalorder %s91, %s107
    %p109 = scmp.eq.s32.totalorder %s15, 0
    %p110 = por %p108, %p109
    %p111 = scmp.le.s32.totalorder 1, %s9
    %p112 = scmp.lt.s32.totalorder %s9, 3
    %p113 = pnand %p111, %p112
    %p114 = pneg %p113
    // Predicated region
    $region9: #{mixed_3b_forward.4} parent=5 // pred_check
      _
    $region10: #{mixed_3b_forward.4} parent=5 // pred_check_branch
      %116 = sbr.rel (%p113) target = $region12
    $region11: #{mixed_3b_forward.4} parent=5 // pred_region
      %s117 = ssub.s32 %s9, 1
      // Predicated region
      $region13: #{mixed_3b_forward.4} parent=11 // pred_check
        %p118 = pneg %p56
      $region14: #{mixed_3b_forward.4} parent=11 // pred_check_branch
        %120 = sbr.rel (%p118) target = $region16
      $region15: #{mixed_3b_forward.4} parent=11 // pred_region
        _
      $region16: #{mixed_3b_forward.4} parent=11 // pred_fallthru
        _
      // Predicated region
      $region17: #{mixed_3b_forward.4} parent=11 // pred_check
        %p121 = pneg %p77
      $region18: #{mixed_3b_forward.4} parent=11 // pred_check_branch
        %123 = sbr.rel (%p121) target = $region20
      $region19: #{mixed_3b_forward.4} parent=11 // pred_region
        _
      $region20: #{mixed_3b_forward.4} parent=11 // pred_fallthru
        _
    $region12: #{mixed_3b_forward.4} parent=5 // pred_fallthru
      _
    %p124 = scmp.lt.s32.totalorder %s9, 2
    // Predicated region
    $region21: #{mixed_3b_forward.4} parent=5 // pred_check
      %p125 = pneg %p124
    $region22: #{mixed_3b_forward.4} parent=5 // pred_check_branch
      %127 = sbr.rel (%p125) target = $region24
    $region23: #{mixed_3b_forward.4} parent=5 // pred_region
      // Predicated region
      $region25: #{mixed_3b_forward.4} parent=23 // pred_check
        %p128 = pneg %p29
      $region26: #{mixed_3b_forward.4} parent=23 // pred_check_branch
        %130 = sbr.rel (%p128) target = $region28
      $region27: #{mixed_3b_forward.4} parent=23 // pred_region
        %s131 = smul.u32 4, %s9
        %p132 = scmp.lt.s32.totalorder %s131, 7
        %s133 = scalar_select %p132, %s131, 7
        %s134 = smul.addr %s133, 13
        %s135 = smul.addr %s134, 8
        %s136 = scalar_lea.vmem %s0, %s135
        %s137 = smul.u32 4, %s9
      $region28: #{mixed_3b_forward.4} parent=23 // pred_fallthru
        _
    $region24: #{mixed_3b_forward.4} parent=5 // pred_fallthru
      _
    %p138 = scmp.le.s32.totalorder 1, %s9
    %p139 = scmp.lt.s32.totalorder %s9, 3
    %p140 = pnand %p138, %p139
    %p141 = pneg %p140
    // Predicated region
    $region29: #{mixed_3b_forward.4} parent=5 // pred_check
      _
    $region30: #{mixed_3b_forward.4} parent=5 // pred_check_branch
      %143 = sbr.rel (%p140) target = $region32
    $region31: #{mixed_3b_forward.4} parent=5 // pred_region
      %s144 = ssub.s32 %s9, 1
      %s145 = smul.u32 4, %s14
      %p146 = scmp.lt.s32.totalorder %s145, 7
      %s147 = scalar_select %p146, %s145, 7
      %s148 = smul.addr %s147, 13
      %s149 = smul.addr %s148, 8
      %s150 = scalar_lea.vmem %s0, %s149
      %p151 = pneg %p35
      %p152 = pneg %p32
      %p153 = pneg %p56
      %p154 = pneg %p53
      %p155 = pneg %p77
      %p156 = pneg %p74
      %p157 = pneg %p103
      %p158 = pneg %p100
      %s159 = smul.u32 4, %s14
      %p160 = scmp.lt.s32.totalorder %s159, 7
      %s161 = scalar_select %p160, %s159, 7
      %s162 = smul.addr %s161, 20
      %s163 = smul.addr %s162, 8
      %s164 = scalar_lea.vmem %s3, %s163
      %s165 = smul.u32 4, %s14
      %p166 = scmp.lt.s32.totalorder %s165, 7
      %s167 = scalar_select %p166, %s165, 7
      %s168 = smul.addr %s167, 13
      %s169 = smul.addr %s168, 8
      %s170 = scalar_lea.vmem %s0, %s169
      %s171 = smul.u32 4, %s14
      %s172 = smul.u32 4, %s14
      %p173 = scmp.lt.s32.totalorder %s172, 7
      %s174 = scalar_select %p173, %s172, 7
      %s175 = smul.addr %s174, 20
      %s176 = smul.addr %s175, 8
      %s177 = scalar_lea.vmem %s3, %s176
      %s178 = smul.u32 4, %s14
      %v179 = vld [vmem:[%s170] sm:$0xff]
      %v180 = vld [vmem:[%s170 + $0x8] sm:$0xff]
      %v181 = vld [vmem:[%s170 + $0x10] sm:$0xff]
      %v182 = vld [vmem:[%s170 + $0x18] sm:$0xff]
      %v183 = vld [vmem:[%s170 + $0x20] sm:$0xff]
      %v184 = vld [vmem:[%s170 + $0x28] sm:$0xff]
      %v185 = vld [vmem:[%s170 + $0x30] sm:$0xff]
      %v186 = vld [vmem:[%s170 + $0x38] sm:$0xff]
      %v187 = vld [vmem:[%s170 + $0x40] sm:$0xff]
      %v188 = vld [vmem:[%s170 + $0x48] sm:$0xff]
      %v189 = vld [vmem:[%s170 + $0x68] sm:$0xff]
      %v190 = vld [vmem:[%s170 + $0x70] sm:$0xff]
      %v191 = vld [vmem:[%s170 + $0x78] sm:$0xff]
      %v192 = vld [vmem:[%s170 + $0x80] sm:$0xff]
      %v193 = vld [vmem:[%s170 + $0x88] sm:$0xff]
      %v194 = vld [vmem:[%s170 + $0x90] sm:$0xff]
      %v195 = vld [vmem:[%s170 + $0x98] sm:$0xff]
      %v196 = vld [vmem:[%s170 + $0xa0] sm:$0xff]
      %v197 = vld [vmem:[%s170 + $0xa8] sm:$0xff]
      %v198 = vld [vmem:[%s170 + $0xb0] sm:$0xff]
      %v199 = vld [vmem:[%s170 + $0xd0] sm:$0xff]
      %v200 = vld [vmem:[%s170 + $0xd8] sm:$0xff]
      %v201 = vld [vmem:[%s170 + $0xe0] sm:$0xff]
      %v202 = vld [vmem:[%s170 + $0xe8] sm:$0xff]
      %v203 = vld [vmem:[%s170 + $0xf0] sm:$0xff]
      %v204 = vld [vmem:[%s170 + $0xf8] sm:$0xff]
      %v205 = vld [vmem:[%s170 + $0x100] sm:$0xff]
      %v206 = vld [vmem:[%s170 + $0x108] sm:$0xff]
      %v207 = vld [vmem:[%s170 + $0x110] sm:$0xff]
      %v208 = vld [vmem:[%s170 + $0x118] sm:$0xff]
      %v209 = vld [vmem:[%s170 + $0x138] sm:$0xff]
      %v210 = vld [vmem:[%s170 + $0x140] sm:$0xff]
      %v211 = vld [vmem:[%s170 + $0x148] sm:$0xff]
      %v212 = vld [vmem:[%s170 + $0x150] sm:$0xff]
      %v213 = vld [vmem:[%s170 + $0x158] sm:$0xff]
      %v214 = vld [vmem:[%s170 + $0x160] sm:$0xff]
      %v215 = vld [vmem:[%s170 + $0x168] sm:$0xff]
      %v216 = vld [vmem:[%s170 + $0x170] sm:$0xff]
      %v217 = vld [vmem:[%s170 + $0x178] sm:$0xff]
      %v218 = vld [vmem:[%s170 + $0x180] sm:$0xff]
      %v219 = vld [vmem:[%s1] sm:$0xff]
      %v220 = vld [vmem:[%s1 + $0x8] sm:$0xff]
      %v221 = vld [vmem:[%s1 + $0x10] sm:$0xff]
      %v222 = vld [vmem:[%s1 + $0x18] sm:$0xff]
      %v223 = vld [vmem:[%s1 + $0x20] sm:$0xff]
      %v224 = vld [vmem:[%s1 + $0x28] sm:$0xff]
      %v225 = vld [vmem:[%s1 + $0x30] sm:$0xff]
      %v226 = vld [vmem:[%s1 + $0x38] sm:$0xff]
      %v227 = vld [vmem:[%s1 + $0x40] sm:$0xff]
      %v228 = vld [vmem:[%s1 + $0x48] sm:$0xff]
      %v229 = vld [vmem:[%s1 + $0x50] sm:$0xff]
      %v230 = vld [vmem:[%s1 + $0x58] sm:$0xff]
      %v231 = vld [vmem:[%s1 + $0x60] sm:$0xff]
      %v232 = vld [vmem:[%s1 + $0x68] sm:$0xff]
      %v233 = vld [vmem:[%s1 + $0x70] sm:$0xff]
      %v234 = vld [vmem:[%s1 + $0x78] sm:$0xff]
      %v235 = vld [vmem:[%s1 + $0x80] sm:$0xff]
      %v236 = vld [vmem:[%s1 + $0x88] sm:$0xff]
      %v237 = vld [vmem:[%s1 + $0x90] sm:$0xff]
      %v238 = vld [vmem:[%s1 + $0x98] sm:$0xff]
      %v239 = vld [vmem:[%s1 + $0xa0] sm:$0xff]
      %v240 = vld [vmem:[%s1 + $0xa8] sm:$0xff]
      %v241 = vld [vmem:[%s1 + $0xb0] sm:$0xff]
      %v242 = vld [vmem:[%s1 + $0xb8] sm:$0xff]
      %v243 = vld [vmem:[%s1 + $0xc0] sm:$0xff]
      %v244 = vld [vmem:[%s1 + $0xc8] sm:$0xff]
      %v245 = vld [vmem:[%s1 + $0xd0] sm:$0xff]
      %v246 = vld [vmem:[%s1 + $0xd8] sm:$0xff]
      %v247 = vld [vmem:[%s170 + $0x1] sm:$0xff]
      %v248 = vld [vmem:[%s170 + $0x9] sm:$0xff]
      %v249 = vld [vmem:[%s170 + $0x11] sm:$0xff]
      %v250 = vld [vmem:[%s170 + $0x19] sm:$0xff]
      %v251 = vld [vmem:[%s170 + $0x21] sm:$0xff]
      %v252 = vld [vmem:[%s170 + $0x29] sm:$0xff]
      %v253 = vld [vmem:[%s170 + $0x31] sm:$0xff]
      %v254 = vld [vmem:[%s170 + $0x39] sm:$0xff]
      %v255 = vld [vmem:[%s170 + $0x41] sm:$0xff]
      %v256 = vld [vmem:[%s170 + $0x49] sm:$0xff]
      %v257 = vld [vmem:[%s170 + $0x69] sm:$0xff]
      %v258 = vld [vmem:[%s170 + $0x71] sm:$0xff]
      %v259 = vld [vmem:[%s170 + $0x79] sm:$0xff]
      %v260 = vld [vmem:[%s170 + $0x81] sm:$0xff]
      %v261 = vld [vmem:[%s170 + $0x89] sm:$0xff]
      %v262 = vld [vmem:[%s170 + $0x91] sm:$0xff]
      %v263 = vld [vmem:[%s170 + $0x99] sm:$0xff]
      %v264 = vld [vmem:[%s170 + $0xa1] sm:$0xff]
      %v265 = vld [vmem:[%s170 + $0xa9] sm:$0xff]
      %v266 = vld [vmem:[%s170 + $0xb1] sm:$0xff]
      %v267 = vld [vmem:[%s170 + $0xd1] sm:$0xff]
      %v268 = vld [vmem:[%s170 + $0xd9] sm:$0xff]
      %v269 = vld [vmem:[%s170 + $0xe1] sm:$0xff]
      %v270 = vld [vmem:[%s170 + $0xe9] sm:$0xff]
      %v271 = vld [vmem:[%s170 + $0xf1] sm:$0xff]
      %v272 = vld [vmem:[%s170 + $0xf9] sm:$0xff]
      %v273 = vld [vmem:[%s170 + $0x101] sm:$0xff]
      %v274 = vld [vmem:[%s170 + $0x109] sm:$0xff]
      %v275 = vld [vmem:[%s170 + $0x111] sm:$0xff]
      %v276 = vld [vmem:[%s170 + $0x119] sm:$0xff]
      %v277 = vld [vmem:[%s170 + $0x139] sm:$0xff]
      %v278 = vld [vmem:[%s170 + $0x141] sm:$0xff]
      %v279 = vld [vmem:[%s170 + $0x149] sm:$0xff]
      %v280 = vld [vmem:[%s170 + $0x151] sm:$0xff]
      %v281 = vld [vmem:[%s170 + $0x159] sm:$0xff]
      %v282 = vld [vmem:[%s170 + $0x161] sm:$0xff]
      %v283 = vld [vmem:[%s170 + $0x169] sm:$0xff]
      %v284 = vld [vmem:[%s170 + $0x171] sm:$0xff]
      %v285 = vld [vmem:[%s170 + $0x179] sm:$0xff]
      %v286 = vld [vmem:[%s170 + $0x181] sm:$0xff]
      %s287 = scalar_lea.vmem %s1, 224
      %v288 = vld [vmem:[%s287] sm:$0xff]
      %v289 = vld [vmem:[%s287 + $0x8] sm:$0xff]
      %v290 = vld [vmem:[%s287 + $0x10] sm:$0xff]
      %v291 = vld [vmem:[%s287 + $0x18] sm:$0xff]
      %v292 = vld [vmem:[%s287 + $0x20] sm:$0xff]
      %v293 = vld [vmem:[%s287 + $0x28] sm:$0xff]
      %v294 = vld [vmem:[%s287 + $0x30] sm:$0xff]
      %v295 = vld [vmem:[%s287 + $0x38] sm:$0xff]
      %v296 = vld [vmem:[%s287 + $0x40] sm:$0xff]
      %v297 = vld [vmem:[%s287 + $0x48] sm:$0xff]
      %v298 = vld [vmem:[%s287 + $0x50] sm:$0xff]
      %v299 = vld [vmem:[%s287 + $0x58] sm:$0xff]
      %v300 = vld [vmem:[%s287 + $0x60] sm:$0xff]
      %v301 = vld [vmem:[%s287 + $0x68] sm:$0xff]
      %v302 = vld [vmem:[%s287 + $0x70] sm:$0xff]
      %v303 = vld [vmem:[%s287 + $0x78] sm:$0xff]
      %v304 = vld [vmem:[%s287 + $0x80] sm:$0xff]
      %v305 = vld [vmem:[%s287 + $0x88] sm:$0xff]
      %v306 = vld [vmem:[%s287 + $0x90] sm:$0xff]
      %v307 = vld [vmem:[%s287 + $0x98] sm:$0xff]
      %v308 = vld [vmem:[%s287 + $0xa0] sm:$0xff]
      %v309 = vld [vmem:[%s287 + $0xa8] sm:$0xff]
      %v310 = vld [vmem:[%s287 + $0xb0] sm:$0xff]
      %v311 = vld [vmem:[%s287 + $0xb8] sm:$0xff]
      %v312 = vld [vmem:[%s287 + $0xc0] sm:$0xff]
      %v313 = vld [vmem:[%s287 + $0xc8] sm:$0xff]
      %v314 = vld [vmem:[%s287 + $0xd0] sm:$0xff]
      %v315 = vld [vmem:[%s287 + $0xd8] sm:$0xff]
      %vm316 = vcmask 916480
      %v318 = vsel %vm316, %v247, 0
      %v321 = vsel %vm316, %v248, 0
      %v324 = vsel %vm316, %v249, 0
      %v327 = vsel %vm316, %v250, 0
      %v330 = vsel %vm316, %v251, 0
      %v333 = vsel %vm316, %v252, 0
      %v336 = vsel %vm316, %v253, 0
      %v339 = vsel %vm316, %v254, 0
      %v342 = vsel %vm316, %v255, 0
      %v345 = vsel %vm316, %v256, 0
      %v348 = vsel %vm316, %v257, 0
      %v351 = vsel %vm316, %v258, 0
      %v354 = vsel %vm316, %v259, 0
      %v357 = vsel %vm316, %v260, 0
      %v360 = vsel %vm316, %v261, 0
      %v363 = vsel %vm316, %v262, 0
      %v366 = vsel %vm316, %v263, 0
      %v369 = vsel %vm316, %v264, 0
      %v372 = vsel %vm316, %v265, 0
      %v375 = vsel %vm316, %v266, 0
      %v378 = vsel %vm316, %v267, 0
      %v381 = vsel %vm316, %v268, 0
      %v384 = vsel %vm316, %v269, 0
      %v387 = vsel %vm316, %v270, 0
      %v390 = vsel %vm316, %v271, 0
      %v393 = vsel %vm316, %v272, 0
      %v396 = vsel %vm316, %v273, 0
      %v399 = vsel %vm316, %v274, 0
      %v402 = vsel %vm316, %v275, 0
      %v405 = vsel %vm316, %v276, 0
      %v408 = vsel %vm316, %v277, 0
      %v411 = vsel %vm316, %v278, 0
      %v414 = vsel %vm316, %v279, 0
      %v417 = vsel %vm316, %v280, 0
      %v420 = vsel %vm316, %v281, 0
      %v423 = vsel %vm316, %v282, 0
      %v426 = vsel %vm316, %v283, 0
      %v429 = vsel %vm316, %v284, 0
      %v432 = vsel %vm316, %v285, 0
      %v435 = vsel %vm316, %v286, 0
      %437 = vmatpush.msra.mxu0 0.0
      %438 = vmatpush.msra.mxu0 0.0
      %439 = vmatpush.msra.mxu0 %v314
      %440 = vmatpush.msra.mxu0 %v312
      %441 = vmatpush.msra.mxu0 %v310
      %442 = vmatpush.msra.mxu0 %v308
      %443 = vmatpush.msra.mxu0 %v306
      %444 = vmatpush.msra.mxu0 %v304
      %445 = vmatpush.msra.mxu0 %v302
      %446 = vmatpush.msra.mxu0 %v300
      %447 = vmatpush.msra.mxu0 %v298
      %448 = vmatpush.msra.mxu0 %v296
      %449 = vmatpush.msra.mxu0 %v294
      %450 = vmatpush.msra.mxu0 %v292
      %451 = vmatpush.msra.mxu0 %v290
      %452 = vmatpush.msra.mxu0 %v288
      %453 = vmatmul.f32.gmra.mxu0 %v318
      %v454 = vpop.f32.mrf.mxu0
      %v455 = vadd.f32 0.0, %v454
      %456 = vmatmul.f32.gmra.mxu0 %v321
      %v457 = vpop.f32.mrf.mxu0
      %v458 = vadd.f32 0.0, %v457
      %459 = vmatmul.f32.gmra.mxu0 %v324
      %v460 = vpop.f32.mrf.mxu0
      %v461 = vadd.f32 0.0, %v460
      %462 = vmatmul.f32.gmra.mxu0 %v327
      %v463 = vpop.f32.mrf.mxu0
      %v464 = vadd.f32 0.0, %v463
      %465 = vmatmul.f32.gmra.mxu0 %v330
      %v466 = vpop.f32.mrf.mxu0
      %v467 = vadd.f32 0.0, %v466
      %468 = vmatmul.f32.gmra.mxu0 %v333
      %v469 = vpop.f32.mrf.mxu0
      %v470 = vadd.f32 0.0, %v469
      %471 = vmatmul.f32.gmra.mxu0 %v336
      %v472 = vpop.f32.mrf.mxu0
      %v473 = vadd.f32 0.0, %v472
      %474 = vmatmul.f32.gmra.mxu0 %v339
      %v475 = vpop.f32.mrf.mxu0
      %v476 = vadd.f32 0.0, %v475
      %477 = vmatmul.f32.gmra.mxu0 %v342
      %v478 = vpop.f32.mrf.mxu0
      %v479 = vadd.f32 0.0, %v478
      %480 = vmatmul.f32.gmra.mxu0 %v345
      %v481 = vpop.f32.mrf.mxu0
      %v482 = vadd.f32 0.0, %v481
      %483 = vmatmul.f32.gmra.mxu0 %v348
      %v484 = vpop.f32.mrf.mxu0
      %v485 = vadd.f32 0.0, %v484
      %486 = vmatmul.f32.gmra.mxu0 %v351
      %v487 = vpop.f32.mrf.mxu0
      %v488 = vadd.f32 0.0, %v487
      %489 = vmatmul.f32.gmra.mxu0 %v354
      %v490 = vpop.f32.mrf.mxu0
      %v491 = vadd.f32 0.0, %v490
      %492 = vmatmul.f32.gmra.mxu0 %v357
      %v493 = vpop.f32.mrf.mxu0
      %v494 = vadd.f32 0.0, %v493
      %495 = vmatmul.f32.gmra.mxu0 %v360
      %v496 = vpop.f32.mrf.mxu0
      %v497 = vadd.f32 0.0, %v496
      %498 = vmatmul.f32.gmra.mxu0 %v363
      %v499 = vpop.f32.mrf.mxu0
      %v500 = vadd.f32 0.0, %v499
      %501 = vmatmul.f32.gmra.mxu0 %v366
      %v502 = vpop.f32.mrf.mxu0
      %v503 = vadd.f32 0.0, %v502
      %504 = vmatmul.f32.gmra.mxu0 %v369
      %v505 = vpop.f32.mrf.mxu0
      %v506 = vadd.f32 0.0, %v505
      %507 = vmatmul.f32.gmra.mxu0 %v372
      %v508 = vpop.f32.mrf.mxu0
      %v509 = vadd.f32 0.0, %v508
      %510 = vmatmul.f32.gmra.mxu0 %v375
      %v511 = vpop.f32.mrf.mxu0
      %v512 = vadd.f32 0.0, %v511
      %513 = vmatmul.f32.gmra.mxu0 %v378
      %v514 = vpop.f32.mrf.mxu0
      %v515 = vadd.f32 0.0, %v514
      %516 = vmatmul.f32.gmra.mxu0 %v381
      %v517 = vpop.f32.mrf.mxu0
      %v518 = vadd.f32 0.0, %v517
      %519 = vmatmul.f32.gmra.mxu0 %v384
      %v520 = vpop.f32.mrf.mxu0
      %v521 = vadd.f32 0.0, %v520
      %522 = vmatmul.f32.gmra.mxu0 %v387
      %v523 = vpop.f32.mrf.mxu0
      %v524 = vadd.f32 0.0, %v523
      %525 = vmatmul.f32.gmra.mxu0 %v390
      %v526 = vpop.f32.mrf.mxu0
      %v527 = vadd.f32 0.0, %v526
      %528 = vmatmul.f32.gmra.mxu0 %v393
      %v529 = vpop.f32.mrf.mxu0
      %v530 = vadd.f32 0.0, %v529
      %531 = vmatmul.f32.gmra.mxu0 %v396
      %v532 = vpop.f32.mrf.mxu0
      %v533 = vadd.f32 0.0, %v532
      %534 = vmatmul.f32.gmra.mxu0 %v399
      %v535 = vpop.f32.mrf.mxu0
      %v536 = vadd.f32 0.0, %v535
      %537 = vmatmul.f32.gmra.mxu0 %v402
      %v538 = vpop.f32.mrf.mxu0
      %v539 = vadd.f32 0.0, %v538
      %540 = vmatmul.f32.gmra.mxu0 %v405
      %v541 = vpop.f32.mrf.mxu0
      %v542 = vadd.f32 0.0, %v541
      %543 = vmatmul.f32.gmra.mxu0 %v408
      %v544 = vpop.f32.mrf.mxu0
      %v545 = vadd.f32 0.0, %v544
      %546 = vmatmul.f32.gmra.mxu0 %v411
      %v547 = vpop.f32.mrf.mxu0
      %v548 = vadd.f32 0.0, %v547
      %549 = vmatmul.f32.gmra.mxu0 %v414
      %v550 = vpop.f32.mrf.mxu0
      %v551 = vadd.f32 0.0, %v550
      %552 = vmatmul.f32.gmra.mxu0 %v417
      %v553 = vpop.f32.mrf.mxu0
      %v554 = vadd.f32 0.0, %v553
      %555 = vmatmul.f32.gmra.mxu0 %v420
      %v556 = vpop.f32.mrf.mxu0
      %v557 = vadd.f32 0.0, %v556
      %558 = vmatmul.f32.gmra.mxu0 %v423
      %v559 = vpop.f32.mrf.mxu0
      %v560 = vadd.f32 0.0, %v559
      %561 = vmatmul.f32.gmra.mxu0 %v426
      %v562 = vpop.f32.mrf.mxu0
      %v563 = vadd.f32 0.0, %v562
      %564 = vmatmul.f32.gmra.mxu0 %v429
      %v565 = vpop.f32.mrf.mxu0
      %v566 = vadd.f32 0.0, %v565
      %567 = vmatmul.f32.gmra.mxu0 %v432
      %v568 = vpop.f32.mrf.mxu0
      %v569 = vadd.f32 0.0, %v568
      %570 = vmatmul.f32.gmra.mxu0 %v435
      %v571 = vpop.f32.mrf.mxu0
      %v572 = vadd.f32 0.0, %v571
      %573 = vdwg.mxu0
      %574 = vmatpush.msra.mxu0 0.0
      %575 = vmatpush.msra.mxu0 0.0
      %576 = vmatpush.msra.mxu0 %v315
      %577 = vmatpush.msra.mxu0 %v313
      %578 = vmatpush.msra.mxu0 %v311
      %579 = vmatpush.msra.mxu0 %v309
      %580 = vmatpush.msra.mxu0 %v307
      %581 = vmatpush.msra.mxu0 %v305
      %582 = vmatpush.msra.mxu0 %v303
      %583 = vmatpush.msra.mxu0 %v301
      %584 = vmatpush.msra.mxu0 %v299
      %585 = vmatpush.msra.mxu0 %v297
      %586 = vmatpush.msra.mxu0 %v295
      %587 = vmatpush.msra.mxu0 %v293
      %588 = vmatpush.msra.mxu0 %v291
      %589 = vmatpush.msra.mxu0 %v289
      %590 = vmatmul.f32.gmra.mxu0 %v318
      %v591 = vpop.f32.mrf.mxu0
      %v592 = vadd.f32 0.0, %v591
      %593 = vmatmul.f32.gmra.mxu0 %v321
      %v594 = vpop.f32.mrf.mxu0
      %v595 = vadd.f32 0.0, %v594
      %596 = vmatmul.f32.gmra.mxu0 %v324
      %v597 = vpop.f32.mrf.mxu0
      %v598 = vadd.f32 0.0, %v597
      %599 = vmatmul.f32.gmra.mxu0 %v327
      %v600 = vpop.f32.mrf.mxu0
      %v601 = vadd.f32 0.0, %v600
      %602 = vmatmul.f32.gmra.mxu0 %v330
      %v603 = vpop.f32.mrf.mxu0
      %v604 = vadd.f32 0.0, %v603
      %605 = vmatmul.f32.gmra.mxu0 %v333
      %v606 = vpop.f32.mrf.mxu0
      %v607 = vadd.f32 0.0, %v606
      %608 = vmatmul.f32.gmra.mxu0 %v336
      %v609 = vpop.f32.mrf.mxu0
      %v610 = vadd.f32 0.0, %v609
      %611 = vmatmul.f32.gmra.mxu0 %v339
      %v612 = vpop.f32.mrf.mxu0
      %v613 = vadd.f32 0.0, %v612
      %614 = vmatmul.f32.gmra.mxu0 %v342
      %v615 = vpop.f32.mrf.mxu0
      %v616 = vadd.f32 0.0, %v615
      %617 = vmatmul.f32.gmra.mxu0 %v345
      %v618 = vpop.f32.mrf.mxu0
      %v619 = vadd.f32 0.0, %v618
      %620 = vmatmul.f32.gmra.mxu0 %v348
      %v621 = vpop.f32.mrf.mxu0
      %v622 = vadd.f32 0.0, %v621
      %623 = vmatmul.f32.gmra.mxu0 %v351
      %v624 = vpop.f32.mrf.mxu0
      %v625 = vadd.f32 0.0, %v624
      %626 = vmatmul.f32.gmra.mxu0 %v354
      %v627 = vpop.f32.mrf.mxu0
      %v628 = vadd.f32 0.0, %v627
      %629 = vmatmul.f32.gmra.mxu0 %v357
      %v630 = vpop.f32.mrf.mxu0
      %v631 = vadd.f32 0.0, %v630
      %632 = vmatmul.f32.gmra.mxu0 %v360
      %v633 = vpop.f32.mrf.mxu0
      %v634 = vadd.f32 0.0, %v633
      %635 = vmatmul.f32.gmra.mxu0 %v363
      %v636 = vpop.f32.mrf.mxu0
      %v637 = vadd.f32 0.0, %v636
      %638 = vmatmul.f32.gmra.mxu0 %v366
      %v639 = vpop.f32.mrf.mxu0
      %v640 = vadd.f32 0.0, %v639
      %641 = vmatmul.f32.gmra.mxu0 %v369
      %v642 = vpop.f32.mrf.mxu0
      %v643 = vadd.f32 0.0, %v642
      %644 = vmatmul.f32.gmra.mxu0 %v372
      %v645 = vpop.f32.mrf.mxu0
      %v646 = vadd.f32 0.0, %v645
      %647 = vmatmul.f32.gmra.mxu0 %v375
      %v648 = vpop.f32.mrf.mxu0
      %v649 = vadd.f32 0.0, %v648
      %650 = vmatmul.f32.gmra.mxu0 %v378
      %v651 = vpop.f32.mrf.mxu0
      %v652 = vadd.f32 0.0, %v651
      %653 = vmatmul.f32.gmra.mxu0 %v381
      %v654 = vpop.f32.mrf.mxu0
      %v655 = vadd.f32 0.0, %v654
      %656 = vmatmul.f32.gmra.mxu0 %v384
      %v657 = vpop.f32.mrf.mxu0
      %v658 = vadd.f32 0.0, %v657
      %659 = vmatmul.f32.gmra.mxu0 %v387
      %v660 = vpop.f32.mrf.mxu0
      %v661 = vadd.f32 0.0, %v660
      %662 = vmatmul.f32.gmra.mxu0 %v390
      %v663 = vpop.f32.mrf.mxu0
      %v664 = vadd.f32 0.0, %v663
      %665 = vmatmul.f32.gmra.mxu0 %v393
      %v666 = vpop.f32.mrf.mxu0
      %v667 = vadd.f32 0.0, %v666
      %668 = vmatmul.f32.gmra.mxu0 %v396
      %v669 = vpop.f32.mrf.mxu0
      %v670 = vadd.f32 0.0, %v669
      %671 = vmatmul.f32.gmra.mxu0 %v399
      %v672 = vpop.f32.mrf.mxu0
      %v673 = vadd.f32 0.0, %v672
      %674 = vmatmul.f32.gmra.mxu0 %v402
      %v675 = vpop.f32.mrf.mxu0
      %v676 = vadd.f32 0.0, %v675
      %677 = vmatmul.f32.gmra.mxu0 %v405
      %v678 = vpop.f32.mrf.mxu0
      %v679 = vadd.f32 0.0, %v678
      %680 = vmatmul.f32.gmra.mxu0 %v408
      %v681 = vpop.f32.mrf.mxu0
      %v682 = vadd.f32 0.0, %v681
      %683 = vmatmul.f32.gmra.mxu0 %v411
      %v684 = vpop.f32.mrf.mxu0
      %v685 = vadd.f32 0.0, %v684
      %686 = vmatmul.f32.gmra.mxu0 %v414
      %v687 = vpop.f32.mrf.mxu0
      %v688 = vadd.f32 0.0, %v687
      %689 = vmatmul.f32.gmra.mxu0 %v417
      %v690 = vpop.f32.mrf.mxu0
      %v691 = vadd.f32 0.0, %v690
      %692 = vmatmul.f32.gmra.mxu0 %v420
      %v693 = vpop.f32.mrf.mxu0
      %v694 = vadd.f32 0.0, %v693
      %695 = vmatmul.f32.gmra.mxu0 %v423
      %v696 = vpop.f32.mrf.mxu0
      %v697 = vadd.f32 0.0, %v696
      %698 = vmatmul.f32.gmra.mxu0 %v426
      %v699 = vpop.f32.mrf.mxu0
      %v700 = vadd.f32 0.0, %v699
      %701 = vmatmul.f32.gmra.mxu0 %v429
      %v702 = vpop.f32.mrf.mxu0
      %v703 = vadd.f32 0.0, %v702
      %704 = vmatmul.f32.gmra.mxu0 %v432
      %v705 = vpop.f32.mrf.mxu0
      %v706 = vadd.f32 0.0, %v705
      %707 = vmatmul.f32.gmra.mxu0 %v435
      %v708 = vpop.f32.mrf.mxu0
      %v709 = vadd.f32 0.0, %v708
      %710 = vdwg.mxu0
      %v712 = vsel %vm316, %v179, 0
      %v715 = vsel %vm316, %v180, 0
      %v718 = vsel %vm316, %v181, 0
      %v721 = vsel %vm316, %v182, 0
      %v724 = vsel %vm316, %v183, 0
      %v727 = vsel %vm316, %v184, 0
      %v730 = vsel %vm316, %v185, 0
      %v733 = vsel %vm316, %v186, 0
      %v736 = vsel %vm316, %v187, 0
      %v739 = vsel %vm316, %v188, 0
      %v742 = vsel %vm316, %v189, 0
      %v745 = vsel %vm316, %v190, 0
      %v748 = vsel %vm316, %v191, 0
      %v751 = vsel %vm316, %v192, 0
      %v754 = vsel %vm316, %v193, 0
      %v757 = vsel %vm316, %v194, 0
      %v760 = vsel %vm316, %v195, 0
      %v763 = vsel %vm316, %v196, 0
      %v766 = vsel %vm316, %v197, 0
      %v769 = vsel %vm316, %v198, 0
      %v772 = vsel %vm316, %v199, 0
      %v775 = vsel %vm316, %v200, 0
      %v778 = vsel %vm316, %v201, 0
      %v781 = vsel %vm316, %v202, 0
      %v784 = vsel %vm316, %v203, 0
      %v787 = vsel %vm316, %v204, 0
      %v790 = vsel %vm316, %v205, 0
      %v793 = vsel %vm316, %v206, 0
      %v796 = vsel %vm316, %v207, 0
      %v799 = vsel %vm316, %v208, 0
      %v802 = vsel %vm316, %v209, 0
      %v805 = vsel %vm316, %v210, 0
      %v808 = vsel %vm316, %v211, 0
      %v811 = vsel %vm316, %v212, 0
      %v814 = vsel %vm316, %v213, 0
      %v817 = vsel %vm316, %v214, 0
      %v820 = vsel %vm316, %v215, 0
      %v823 = vsel %vm316, %v216, 0
      %v826 = vsel %vm316, %v217, 0
      %v829 = vsel %vm316, %v218, 0
      %831 = vmatpush.msra.mxu0 0.0
      %832 = vmatpush.msra.mxu0 0.0
      %833 = vmatpush.msra.mxu0 %v245
      %834 = vmatpush.msra.mxu0 %v243
      %835 = vmatpush.msra.mxu0 %v241
      %836 = vmatpush.msra.mxu0 %v239
      %837 = vmatpush.msra.mxu0 %v237
      %838 = vmatpush.msra.mxu0 %v235
      %839 = vmatpush.msra.mxu0 %v233
      %840 = vmatpush.msra.mxu0 %v231
      %841 = vmatpush.msra.mxu0 %v229
      %842 = vmatpush.msra.mxu0 %v227
      %843 = vmatpush.msra.mxu0 %v225
      %844 = vmatpush.msra.mxu0 %v223
      %845 = vmatpush.msra.mxu0 %v221
      %846 = vmatpush.msra.mxu0 %v219
      %847 = vmatmul.f32.gmra.mxu0 %v712
      %v848 = vpop.f32.mrf.mxu0
      %v849 = vadd.f32 %v455, %v848
      %850 = vmatmul.f32.gmra.mxu0 %v715
      %v851 = vpop.f32.mrf.mxu0
      %v852 = vadd.f32 %v458, %v851
      %853 = vmatmul.f32.gmra.mxu0 %v718
      %v854 = vpop.f32.mrf.mxu0
      %v855 = vadd.f32 %v461, %v854
      %856 = vmatmul.f32.gmra.mxu0 %v721
      %v857 = vpop.f32.mrf.mxu0
      %v858 = vadd.f32 %v464, %v857
      %859 = vmatmul.f32.gmra.mxu0 %v724
      %v860 = vpop.f32.mrf.mxu0
      %v861 = vadd.f32 %v467, %v860
      %862 = vmatmul.f32.gmra.mxu0 %v727
      %v863 = vpop.f32.mrf.mxu0
      %v864 = vadd.f32 %v470, %v863
      %865 = vmatmul.f32.gmra.mxu0 %v730
      %v866 = vpop.f32.mrf.mxu0
      %v867 = vadd.f32 %v473, %v866
      %868 = vmatmul.f32.gmra.mxu0 %v733
      %v869 = vpop.f32.mrf.mxu0
      %v870 = vadd.f32 %v476, %v869
      %871 = vmatmul.f32.gmra.mxu0 %v736
      %v872 = vpop.f32.mrf.mxu0
      %v873 = vadd.f32 %v479, %v872
      %874 = vmatmul.f32.gmra.mxu0 %v739
      %v875 = vpop.f32.mrf.mxu0
      %v876 = vadd.f32 %v482, %v875
      %877 = vmatmul.f32.gmra.mxu0 %v742
      %v878 = vpop.f32.mrf.mxu0
      %v879 = vadd.f32 %v485, %v878
      %880 = vmatmul.f32.gmra.mxu0 %v745
      %v881 = vpop.f32.mrf.mxu0
      %v882 = vadd.f32 %v488, %v881
      %883 = vmatmul.f32.gmra.mxu0 %v748
      %v884 = vpop.f32.mrf.mxu0
      %v885 = vadd.f32 %v491, %v884
      %886 = vmatmul.f32.gmra.mxu0 %v751
      %v887 = vpop.f32.mrf.mxu0
      %v888 = vadd.f32 %v494, %v887
      %889 = vmatmul.f32.gmra.mxu0 %v754
      %v890 = vpop.f32.mrf.mxu0
      %v891 = vadd.f32 %v497, %v890
      %892 = vmatmul.f32.gmra.mxu0 %v757
      %v893 = vpop.f32.mrf.mxu0
      %v894 = vadd.f32 %v500, %v893
      %895 = vmatmul.f32.gmra.mxu0 %v760
      %v896 = vpop.f32.mrf.mxu0
      %v897 = vadd.f32 %v503, %v896
      %898 = vmatmul.f32.gmra.mxu0 %v763
      %v899 = vpop.f32.mrf.mxu0
      %v900 = vadd.f32 %v506, %v899
      %901 = vmatmul.f32.gmra.mxu0 %v766
      %v902 = vpop.f32.mrf.mxu0
      %v903 = vadd.f32 %v509, %v902
      %904 = vmatmul.f32.gmra.mxu0 %v769
      %v905 = vpop.f32.mrf.mxu0
      %v906 = vadd.f32 %v512, %v905
      %907 = vmatmul.f32.gmra.mxu0 %v772
      %v908 = vpop.f32.mrf.mxu0
      %v909 = vadd.f32 %v515, %v908
      %910 = vmatmul.f32.gmra.mxu0 %v775
      %v911 = vpop.f32.mrf.mxu0
      %v912 = vadd.f32 %v518, %v911
      %913 = vmatmul.f32.gmra.mxu0 %v778
      %v914 = vpop.f32.mrf.mxu0
      %v915 = vadd.f32 %v521, %v914
      %916 = vmatmul.f32.gmra.mxu0 %v781
      %v917 = vpop.f32.mrf.mxu0
      %v918 = vadd.f32 %v524, %v917
      %919 = vmatmul.f32.gmra.mxu0 %v784
      %v920 = vpop.f32.mrf.mxu0
      %v921 = vadd.f32 %v527, %v920
      %922 = vmatmul.f32.gmra.mxu0 %v787
      %v923 = vpop.f32.mrf.mxu0
      %v924 = vadd.f32 %v530, %v923
      %925 = vmatmul.f32.gmra.mxu0 %v790
      %v926 = vpop.f32.mrf.mxu0
      %v927 = vadd.f32 %v533, %v926
      %928 = vmatmul.f32.gmra.mxu0 %v793
      %v929 = vpop.f32.mrf.mxu0
      %v930 = vadd.f32 %v536, %v929
      %931 = vmatmul.f32.gmra.mxu0 %v796
      %v932 = vpop.f32.mrf.mxu0
      %v933 = vadd.f32 %v539, %v932
      %934 = vmatmul.f32.gmra.mxu0 %v799
      %v935 = vpop.f32.mrf.mxu0
      %v936 = vadd.f32 %v542, %v935
      %937 = vmatmul.f32.gmra.mxu0 %v802
      %v938 = vpop.f32.mrf.mxu0
      %v939 = vadd.f32 %v545, %v938
      %940 = vmatmul.f32.gmra.mxu0 %v805
      %v941 = vpop.f32.mrf.mxu0
      %v942 = vadd.f32 %v548, %v941
      %943 = vmatmul.f32.gmra.mxu0 %v808
      %v944 = vpop.f32.mrf.mxu0
      %v945 = vadd.f32 %v551, %v944
      %946 = vmatmul.f32.gmra.mxu0 %v811
      %v947 = vpop.f32.mrf.mxu0
      %v948 = vadd.f32 %v554, %v947
      %949 = vmatmul.f32.gmra.mxu0 %v814
      %v950 = vpop.f32.mrf.mxu0
      %v951 = vadd.f32 %v557, %v950
      %952 = vmatmul.f32.gmra.mxu0 %v817
      %v953 = vpop.f32.mrf.mxu0
      %v954 = vadd.f32 %v560, %v953
      %955 = vmatmul.f32.gmra.mxu0 %v820
      %v956 = vpop.f32.mrf.mxu0
      %v957 = vadd.f32 %v563, %v956
      %958 = vmatmul.f32.gmra.mxu0 %v823
      %v959 = vpop.f32.mrf.mxu0
      %v960 = vadd.f32 %v566, %v959
      %961 = vmatmul.f32.gmra.mxu0 %v826
      %v962 = vpop.f32.mrf.mxu0
      %v963 = vadd.f32 %v569, %v962
      %964 = vmatmul.f32.gmra.mxu0 %v829
      %v965 = vpop.f32.mrf.mxu0
      %v966 = vadd.f32 %v572, %v965
      %967 = vdwg.mxu0
      %968 = vmatpush.msra.mxu0 0.0
      %969 = vmatpush.msra.mxu0 0.0
      %970 = vmatpush.msra.mxu0 %v246
      %971 = vmatpush.msra.mxu0 %v244
      %972 = vmatpush.msra.mxu0 %v242
      %973 = vmatpush.msra.mxu0 %v240
      %974 = vmatpush.msra.mxu0 %v238
      %975 = vmatpush.msra.mxu0 %v236
      %976 = vmatpush.msra.mxu0 %v234
      %977 = vmatpush.msra.mxu0 %v232
      %978 = vmatpush.msra.mxu0 %v230
      %979 = vmatpush.msra.mxu0 %v228
      %980 = vmatpush.msra.mxu0 %v226
      %981 = vmatpush.msra.mxu0 %v224
      %982 = vmatpush.msra.mxu0 %v222
      %983 = vmatpush.msra.mxu0 %v220
      %984 = vmatmul.f32.gmra.mxu0 %v712
      %v985 = vpop.f32.mrf.mxu0
      %v986 = vadd.f32 %v592, %v985
      %987 = vmatmul.f32.gmra.mxu0 %v715
      %v988 = vpop.f32.mrf.mxu0
      %v989 = vadd.f32 %v595, %v988
      %990 = vmatmul.f32.gmra.mxu0 %v718
      %v991 = vpop.f32.mrf.mxu0
      %v992 = vadd.f32 %v598, %v991
      %993 = vmatmul.f32.gmra.mxu0 %v721
      %v994 = vpop.f32.mrf.mxu0
      %v995 = vadd.f32 %v601, %v994
      %996 = vmatmul.f32.gmra.mxu0 %v724
      %v997 = vpop.f32.mrf.mxu0
      %v998 = vadd.f32 %v604, %v997
      %999 = vmatmul.f32.gmra.mxu0 %v727
      %v1000 = vpop.f32.mrf.mxu0
      %v1001 = vadd.f32 %v607, %v1000
      %1002 = vmatmul.f32.gmra.mxu0 %v730
      %v1003 = vpop.f32.mrf.mxu0
      %v1004 = vadd.f32 %v610, %v1003
      %1005 = vmatmul.f32.gmra.mxu0 %v733
      %v1006 = vpop.f32.mrf.mxu0
      %v1007 = vadd.f32 %v613, %v1006
      %1008 = vmatmul.f32.gmra.mxu0 %v736
      %v1009 = vpop.f32.mrf.mxu0
      %v1010 = vadd.f32 %v616, %v1009
      %1011 = vmatmul.f32.gmra.mxu0 %v739
      %v1012 = vpop.f32.mrf.mxu0
      %v1013 = vadd.f32 %v619, %v1012
      %1014 = vmatmul.f32.gmra.mxu0 %v742
      %v1015 = vpop.f32.mrf.mxu0
      %v1016 = vadd.f32 %v622, %v1015
      %1017 = vmatmul.f32.gmra.mxu0 %v745
      %v1018 = vpop.f32.mrf.mxu0
      %v1019 = vadd.f32 %v625, %v1018
      %1020 = vmatmul.f32.gmra.mxu0 %v748
      %v1021 = vpop.f32.mrf.mxu0
      %v1022 = vadd.f32 %v628, %v1021
      %1023 = vmatmul.f32.gmra.mxu0 %v751
      %v1024 = vpop.f32.mrf.mxu0
      %v1025 = vadd.f32 %v631, %v1024
      %1026 = vmatmul.f32.gmra.mxu0 %v754
      %v1027 = vpop.f32.mrf.mxu0
      %v1028 = vadd.f32 %v634, %v1027
      %1029 = vmatmul.f32.gmra.mxu0 %v757
      %v1030 = vpop.f32.mrf.mxu0
      %v1031 = vadd.f32 %v637, %v1030
      %1032 = vmatmul.f32.gmra.mxu0 %v760
      %v1033 = vpop.f32.mrf.mxu0
      %v1034 = vadd.f32 %v640, %v1033
      %1035 = vmatmul.f32.gmra.mxu0 %v763
      %v1036 = vpop.f32.mrf.mxu0
      %v1037 = vadd.f32 %v643, %v1036
      %1038 = vmatmul.f32.gmra.mxu0 %v766
      %v1039 = vpop.f32.mrf.mxu0
      %v1040 = vadd.f32 %v646, %v1039
      %1041 = vmatmul.f32.gmra.mxu0 %v769
      %v1042 = vpop.f32.mrf.mxu0
      %v1043 = vadd.f32 %v649, %v1042
      %1044 = vmatmul.f32.gmra.mxu0 %v772
      %v1045 = vpop.f32.mrf.mxu0
      %v1046 = vadd.f32 %v652, %v1045
      %1047 = vmatmul.f32.gmra.mxu0 %v775
      %v1048 = vpop.f32.mrf.mxu0
      %v1049 = vadd.f32 %v655, %v1048
      %1050 = vmatmul.f32.gmra.mxu0 %v778
      %v1051 = vpop.f32.mrf.mxu0
      %v1052 = vadd.f32 %v658, %v1051
      %1053 = vmatmul.f32.gmra.mxu0 %v781
      %v1054 = vpop.f32.mrf.mxu0
      %v1055 = vadd.f32 %v661, %v1054
      %1056 = vmatmul.f32.gmra.mxu0 %v784
      %v1057 = vpop.f32.mrf.mxu0
      %v1058 = vadd.f32 %v664, %v1057
      %1059 = vmatmul.f32.gmra.mxu0 %v787
      %v1060 = vpop.f32.mrf.mxu0
      %v1061 = vadd.f32 %v667, %v1060
      %1062 = vmatmul.f32.gmra.mxu0 %v790
      %v1063 = vpop.f32.mrf.mxu0
      %v1064 = vadd.f32 %v670, %v1063
      %1065 = vmatmul.f32.gmra.mxu0 %v793
      %v1066 = vpop.f32.mrf.mxu0
      %v1067 = vadd.f32 %v673, %v1066
      %1068 = vmatmul.f32.gmra.mxu0 %v796
      %v1069 = vpop.f32.mrf.mxu0
      %v1070 = vadd.f32 %v676, %v1069
      %1071 = vmatmul.f32.gmra.mxu0 %v799
      %v1072 = vpop.f32.mrf.mxu0
      %v1073 = vadd.f32 %v679, %v1072
      %1074 = vmatmul.f32.gmra.mxu0 %v802
      %v1075 = vpop.f32.mrf.mxu0
      %v1076 = vadd.f32 %v682, %v1075
      %1077 = vmatmul.f32.gmra.mxu0 %v805
      %v1078 = vpop.f32.mrf.mxu0
      %v1079 = vadd.f32 %v685, %v1078
      %1080 = vmatmul.f32.gmra.mxu0 %v808
      %v1081 = vpop.f32.mrf.mxu0
      %v1082 = vadd.f32 %v688, %v1081
      %1083 = vmatmul.f32.gmra.mxu0 %v811
      %v1084 = vpop.f32.mrf.mxu0
      %v1085 = vadd.f32 %v691, %v1084
      %1086 = vmatmul.f32.gmra.mxu0 %v814
      %v1087 = vpop.f32.mrf.mxu0
      %v1088 = vadd.f32 %v694, %v1087
      %1089 = vmatmul.f32.gmra.mxu0 %v817
      %v1090 = vpop.f32.mrf.mxu0
      %v1091 = vadd.f32 %v697, %v1090
      %1092 = vmatmul.f32.gmra.mxu0 %v820
      %v1093 = vpop.f32.mrf.mxu0
      %v1094 = vadd.f32 %v700, %v1093
      %1095 = vmatmul.f32.gmra.mxu0 %v823
      %v1096 = vpop.f32.mrf.mxu0
      %v1097 = vadd.f32 %v703, %v1096
      %1098 = vmatmul.f32.gmra.mxu0 %v826
      %v1099 = vpop.f32.mrf.mxu0
      %v1100 = vadd.f32 %v706, %v1099
      %1101 = vmatmul.f32.gmra.mxu0 %v829
      %v1102 = vpop.f32.mrf.mxu0
      %v1103 = vadd.f32 %v709, %v1102
      %1104 = vdwg.mxu0
      %v1105 = vld [vmem:[%s170 + $0x2] sm:$0xff]
      %v1106 = vld [vmem:[%s170 + $0xa] sm:$0xff]
      %v1107 = vld [vmem:[%s170 + $0x12] sm:$0xff]
      %v1108 = vld [vmem:[%s170 + $0x1a] sm:$0xff]
      %v1109 = vld [vmem:[%s170 + $0x22] sm:$0xff]
      %v1110 = vld [vmem:[%s170 + $0x2a] sm:$0xff]
      %v1111 = vld [vmem:[%s170 + $0x32] sm:$0xff]
      %v1112 = vld [vmem:[%s170 + $0x3a] sm:$0xff]
      %v1113 = vld [vmem:[%s170 + $0x42] sm:$0xff]
      %v1114 = vld [vmem:[%s170 + $0x4a] sm:$0xff]
      %v1115 = vld [vmem:[%s170 + $0x6a] sm:$0xff]
      %v1116 = vld [vmem:[%s170 + $0x72] sm:$0xff]
      %v1117 = vld [vmem:[%s170 + $0x7a] sm:$0xff]
      %v1118 = vld [vmem:[%s170 + $0x82] sm:$0xff]
      %v1119 = vld [vmem:[%s170 + $0x8a] sm:$0xff]
      %v1120 = vld [vmem:[%s170 + $0x92] sm:$0xff]
      %v1121 = vld [vmem:[%s170 + $0x9a] sm:$0xff]
      %v1122 = vld [vmem:[%s170 + $0xa2] sm:$0xff]
      %v1123 = vld [vmem:[%s170 + $0xaa] sm:$0xff]
      %v1124 = vld [vmem:[%s170 + $0xb2] sm:$0xff]
      %v1125 = vld [vmem:[%s170 + $0xd2] sm:$0xff]
      %v1126 = vld [vmem:[%s170 + $0xda] sm:$0xff]
      %v1127 = vld [vmem:[%s170 + $0xe2] sm:$0xff]
      %v1128 = vld [vmem:[%s170 + $0xea] sm:$0xff]
      %v1129 = vld [vmem:[%s170 + $0xf2] sm:$0xff]
      %v1130 = vld [vmem:[%s170 + $0xfa] sm:$0xff]
      %v1131 = vld [vmem:[%s170 + $0x102] sm:$0xff]
      %v1132 = vld [vmem:[%s170 + $0x10a] sm:$0xff]
      %v1133 = vld [vmem:[%s170 + $0x112] sm:$0xff]
      %v1134 = vld [vmem:[%s170 + $0x11a] sm:$0xff]
      %v1135 = vld [vmem:[%s170 + $0x13a] sm:$0xff]
      %v1136 = vld [vmem:[%s170 + $0x142] sm:$0xff]
      %v1137 = vld [vmem:[%s170 + $0x14a] sm:$0xff]
      %v1138 = vld [vmem:[%s170 + $0x152] sm:$0xff]
      %v1139 = vld [vmem:[%s170 + $0x15a] sm:$0xff]
      %v1140 = vld [vmem:[%s170 + $0x162] sm:$0xff]
      %v1141 = vld [vmem:[%s170 + $0x16a] sm:$0xff]
      %v1142 = vld [vmem:[%s170 + $0x172] sm:$0xff]
      %v1143 = vld [vmem:[%s170 + $0x17a] sm:$0xff]
      %v1144 = vld [vmem:[%s170 + $0x182] sm:$0xff]
      %s1145 = scalar_lea.vmem %s1, 448
      %v1146 = vld [vmem:[%s1145] sm:$0xff]
      %v1147 = vld [vmem:[%s1145 + $0x8] sm:$0xff]
      %v1148 = vld [vmem:[%s1145 + $0x10] sm:$0xff]
      %v1149 = vld [vmem:[%s1145 + $0x18] sm:$0xff]
      %v1150 = vld [vmem:[%s1145 + $0x20] sm:$0xff]
      %v1151 = vld [vmem:[%s1145 + $0x28] sm:$0xff]
      %v1152 = vld [vmem:[%s1145 + $0x30] sm:$0xff]
      %v1153 = vld [vmem:[%s1145 + $0x38] sm:$0xff]
      %v1154 = vld [vmem:[%s1145 + $0x40] sm:$0xff]
      %v1155 = vld [vmem:[%s1145 + $0x48] sm:$0xff]
      %v1156 = vld [vmem:[%s1145 + $0x50] sm:$0xff]
      %v1157 = vld [vmem:[%s1145 + $0x58] sm:$0xff]
      %v1158 = vld [vmem:[%s1145 + $0x60] sm:$0xff]
      %v1159 = vld [vmem:[%s1145 + $0x68] sm:$0xff]
      %v1160 = vld [vmem:[%s1145 + $0x70] sm:$0xff]
      %v1161 = vld [vmem:[%s1145 + $0x78] sm:$0xff]
      %v1162 = vld [vmem:[%s1145 + $0x80] sm:$0xff]
      %v1163 = vld [vmem:[%s1145 + $0x88] sm:$0xff]
      %v1164 = vld [vmem:[%s1145 + $0x90] sm:$0xff]
      %v1165 = vld [vmem:[%s1145 + $0x98] sm:$0xff]
      %v1166 = vld [vmem:[%s1145 + $0xa0] sm:$0xff]
      %v1167 = vld [vmem:[%s1145 + $0xa8] sm:$0xff]
      %v1168 = vld [vmem:[%s1145 + $0xb0] sm:$0xff]
      %v1169 = vld [vmem:[%s1145 + $0xb8] sm:$0xff]
      %v1170 = vld [vmem:[%s1145 + $0xc0] sm:$0xff]
      %v1171 = vld [vmem:[%s1145 + $0xc8] sm:$0xff]
      %v1172 = vld [vmem:[%s1145 + $0xd0] sm:$0xff]
      %v1173 = vld [vmem:[%s1145 + $0xd8] sm:$0xff]
      %v1175 = vsel %vm316, %v1105, 0
      %v1178 = vsel %vm316, %v1106, 0
      %v1181 = vsel %vm316, %v1107, 0
      %v1184 = vsel %vm316, %v1108, 0
      %v1187 = vsel %vm316, %v1109, 0
      %v1190 = vsel %vm316, %v1110, 0
      %v1193 = vsel %vm316, %v1111, 0
      %v1196 = vsel %vm316, %v1112, 0
      %v1199 = vsel %vm316, %v1113, 0
      %v1202 = vsel %vm316, %v1114, 0
      %v1205 = vsel %vm316, %v1115, 0
      %v1208 = vsel %vm316, %v1116, 0
      %v1211 = vsel %vm316, %v1117, 0
      %v1214 = vsel %vm316, %v1118, 0
      %v1217 = vsel %vm316, %v1119, 0
      %v1220 = vsel %vm316, %v1120, 0
      %v1223 = vsel %vm316, %v1121, 0
      %v1226 = vsel %vm316, %v1122, 0
      %v1229 = vsel %vm316, %v1123, 0
      %v1232 = vsel %vm316, %v1124, 0
      %v1235 = vsel %vm316, %v1125, 0
      %v1238 = vsel %vm316, %v1126, 0
      %v1241 = vsel %vm316, %v1127, 0
      %v1244 = vsel %vm316, %v1128, 0
      %v1247 = vsel %vm316, %v1129, 0
      %v1250 = vsel %vm316, %v1130, 0
      %v1253 = vsel %vm316, %v1131, 0
      %v1256 = vsel %vm316, %v1132, 0
      %v1259 = vsel %vm316, %v1133, 0
      %v1262 = vsel %vm316, %v1134, 0
      %v1265 = vsel %vm316, %v1135, 0
      %v1268 = vsel %vm316, %v1136, 0
      %v1271 = vsel %vm316, %v1137, 0
      %v1274 = vsel %vm316, %v1138, 0
      %v1277 = vsel %vm316, %v1139, 0
      %v1280 = vsel %vm316, %v1140, 0
      %v1283 = vsel %vm316, %v1141, 0
      %v1286 = vsel %vm316, %v1142, 0
      %v1289 = vsel %vm316, %v1143, 0
      %v1292 = vsel %vm316, %v1144, 0
      %1294 = vmatpush.msra.mxu0 0.0
      %1295 = vmatpush.msra.mxu0 0.0
      %1296 = vmatpush.msra.mxu0 %v1172
      %1297 = vmatpush.msra.mxu0 %v1170
      %1298 = vmatpush.msra.mxu0 %v1168
      %1299 = vmatpush.msra.mxu0 %v1166
      %1300 = vmatpush.msra.mxu0 %v1164
      %1301 = vmatpush.msra.mxu0 %v1162
      %1302 = vmatpush.msra.mxu0 %v1160
      %1303 = vmatpush.msra.mxu0 %v1158
      %1304 = vmatpush.msra.mxu0 %v1156
      %1305 = vmatpush.msra.mxu0 %v1154
      %1306 = vmatpush.msra.mxu0 %v1152
      %1307 = vmatpush.msra.mxu0 %v1150
      %1308 = vmatpush.msra.mxu0 %v1148
      %1309 = vmatpush.msra.mxu0 %v1146
      %1310 = vmatmul.f32.gmra.mxu0 %v1175
      %v1311 = vpop.f32.mrf.mxu0
      %v1312 = vadd.f32 0.0, %v1311
      %1313 = vmatmul.f32.gmra.mxu0 %v1178
      %v1314 = vpop.f32.mrf.mxu0
      %v1315 = vadd.f32 0.0, %v1314
      %1316 = vmatmul.f32.gmra.mxu0 %v1181
      %v1317 = vpop.f32.mrf.mxu0
      %v1318 = vadd.f32 0.0, %v1317
      %1319 = vmatmul.f32.gmra.mxu0 %v1184
      %v1320 = vpop.f32.mrf.mxu0
      %v1321 = vadd.f32 0.0, %v1320
      %1322 = vmatmul.f32.gmra.mxu0 %v1187
      %v1323 = vpop.f32.mrf.mxu0
      %v1324 = vadd.f32 0.0, %v1323
      %1325 = vmatmul.f32.gmra.mxu0 %v1190
      %v1326 = vpop.f32.mrf.mxu0
      %v1327 = vadd.f32 0.0, %v1326
      %1328 = vmatmul.f32.gmra.mxu0 %v1193
      %v1329 = vpop.f32.mrf.mxu0
      %v1330 = vadd.f32 0.0, %v1329
      %1331 = vmatmul.f32.gmra.mxu0 %v1196
      %v1332 = vpop.f32.mrf.mxu0
      %v1333 = vadd.f32 0.0, %v1332
      %1334 = vmatmul.f32.gmra.mxu0 %v1199
      %v1335 = vpop.f32.mrf.mxu0
      %v1336 = vadd.f32 0.0, %v1335
      %1337 = vmatmul.f32.gmra.mxu0 %v1202
      %v1338 = vpop.f32.mrf.mxu0
      %v1339 = vadd.f32 0.0, %v1338
      %1340 = vmatmul.f32.gmra.mxu0 %v1205
      %v1341 = vpop.f32.mrf.mxu0
      %v1342 = vadd.f32 0.0, %v1341
      %1343 = vmatmul.f32.gmra.mxu0 %v1208
      %v1344 = vpop.f32.mrf.mxu0
      %v1345 = vadd.f32 0.0, %v1344
      %1346 = vmatmul.f32.gmra.mxu0 %v1211
      %v1347 = vpop.f32.mrf.mxu0
      %v1348 = vadd.f32 0.0, %v1347
      %1349 = vmatmul.f32.gmra.mxu0 %v1214
      %v1350 = vpop.f32.mrf.mxu0
      %v1351 = vadd.f32 0.0, %v1350
      %1352 = vmatmul.f32.gmra.mxu0 %v1217
      %v1353 = vpop.f32.mrf.mxu0
      %v1354 = vadd.f32 0.0, %v1353
      %1355 = vmatmul.f32.gmra.mxu0 %v1220
      %v1356 = vpop.f32.mrf.mxu0
      %v1357 = vadd.f32 0.0, %v1356
      %1358 = vmatmul.f32.gmra.mxu0 %v1223
      %v1359 = vpop.f32.mrf.mxu0
      %v1360 = vadd.f32 0.0, %v1359
      %1361 = vmatmul.f32.gmra.mxu0 %v1226
      %v1362 = vpop.f32.mrf.mxu0
      %v1363 = vadd.f32 0.0, %v1362
      %1364 = vmatmul.f32.gmra.mxu0 %v1229
      %v1365 = vpop.f32.mrf.mxu0
      %v1366 = vadd.f32 0.0, %v1365
      %1367 = vmatmul.f32.gmra.mxu0 %v1232
      %v1368 = vpop.f32.mrf.mxu0
      %v1369 = vadd.f32 0.0, %v1368
      %1370 = vmatmul.f32.gmra.mxu0 %v1235
      %v1371 = vpop.f32.mrf.mxu0
      %v1372 = vadd.f32 0.0, %v1371
      %1373 = vmatmul.f32.gmra.mxu0 %v1238
      %v1374 = vpop.f32.mrf.mxu0
      %v1375 = vadd.f32 0.0, %v1374
      %1376 = vmatmul.f32.gmra.mxu0 %v1241
      %v1377 = vpop.f32.mrf.mxu0
      %v1378 = vadd.f32 0.0, %v1377
      %1379 = vmatmul.f32.gmra.mxu0 %v1244
      %v1380 = vpop.f32.mrf.mxu0
      %v1381 = vadd.f32 0.0, %v1380
      %1382 = vmatmul.f32.gmra.mxu0 %v1247
      %v1383 = vpop.f32.mrf.mxu0
      %v1384 = vadd.f32 0.0, %v1383
      %1385 = vmatmul.f32.gmra.mxu0 %v1250
      %v1386 = vpop.f32.mrf.mxu0
      %v1387 = vadd.f32 0.0, %v1386
      %1388 = vmatmul.f32.gmra.mxu0 %v1253
      %v1389 = vpop.f32.mrf.mxu0
      %v1390 = vadd.f32 0.0, %v1389
      %1391 = vmatmul.f32.gmra.mxu0 %v1256
      %v1392 = vpop.f32.mrf.mxu0
      %v1393 = vadd.f32 0.0, %v1392
      %1394 = vmatmul.f32.gmra.mxu0 %v1259
      %v1395 = vpop.f32.mrf.mxu0
      %v1396 = vadd.f32 0.0, %v1395
      %1397 = vmatmul.f32.gmra.mxu0 %v1262
      %v1398 = vpop.f32.mrf.mxu0
      %v1399 = vadd.f32 0.0, %v1398
      %1400 = vmatmul.f32.gmra.mxu0 %v1265
      %v1401 = vpop.f32.mrf.mxu0
      %v1402 = vadd.f32 0.0, %v1401
      %1403 = vmatmul.f32.gmra.mxu0 %v1268
      %v1404 = vpop.f32.mrf.mxu0
      %v1405 = vadd.f32 0.0, %v1404
      %1406 = vmatmul.f32.gmra.mxu0 %v1271
      %v1407 = vpop.f32.mrf.mxu0
      %v1408 = vadd.f32 0.0, %v1407
      %1409 = vmatmul.f32.gmra.mxu0 %v1274
      %v1410 = vpop.f32.mrf.mxu0
      %v1411 = vadd.f32 0.0, %v1410
      %1412 = vmatmul.f32.gmra.mxu0 %v1277
      %v1413 = vpop.f32.mrf.mxu0
      %v1414 = vadd.f32 0.0, %v1413
      %1415 = vmatmul.f32.gmra.mxu0 %v1280
      %v1416 = vpop.f32.mrf.mxu0
      %v1417 = vadd.f32 0.0, %v1416
      %1418 = vmatmul.f32.gmra.mxu0 %v1283
      %v1419 = vpop.f32.mrf.mxu0
      %v1420 = vadd.f32 0.0, %v1419
      %1421 = vmatmul.f32.gmra.mxu0 %v1286
      %v1422 = vpop.f32.mrf.mxu0
      %v1423 = vadd.f32 0.0, %v1422
      %1424 = vmatmul.f32.gmra.mxu0 %v1289
      %v1425 = vpop.f32.mrf.mxu0
      %v1426 = vadd.f32 0.0, %v1425
      %1427 = vmatmul.f32.gmra.mxu0 %v1292
      %v1428 = vpop.f32.mrf.mxu0
      %v1429 = vadd.f32 0.0, %v1428
      %1430 = vdwg.mxu0
      %1431 = vmatpush.msra.mxu0 0.0
      %1432 = vmatpush.msra.mxu0 0.0
      %1433 = vmatpush.msra.mxu0 %v1173
      %1434 = vmatpush.msra.mxu0 %v1171
      %1435 = vmatpush.msra.mxu0 %v1169
      %1436 = vmatpush.msra.mxu0 %v1167
      %1437 = vmatpush.msra.mxu0 %v1165
      %1438 = vmatpush.msra.mxu0 %v1163
      %1439 = vmatpush.msra.mxu0 %v1161
      %1440 = vmatpush.msra.mxu0 %v1159
      %1441 = vmatpush.msra.mxu0 %v1157
      %1442 = vmatpush.msra.mxu0 %v1155
      %1443 = vmatpush.msra.mxu0 %v1153
      %1444 = vmatpush.msra.mxu0 %v1151
      %1445 = vmatpush.msra.mxu0 %v1149
      %1446 = vmatpush.msra.mxu0 %v1147
      %1447 = vmatmul.f32.gmra.mxu0 %v1175
      %v1448 = vpop.f32.mrf.mxu0
      %v1449 = vadd.f32 0.0, %v1448
      %1450 = vmatmul.f32.gmra.mxu0 %v1178
      %v1451 = vpop.f32.mrf.mxu0
      %v1452 = vadd.f32 0.0, %v1451
      %1453 = vmatmul.f32.gmra.mxu0 %v1181
      %v1454 = vpop.f32.mrf.mxu0
      %v1455 = vadd.f32 0.0, %v1454
      %1456 = vmatmul.f32.gmra.mxu0 %v1184
      %v1457 = vpop.f32.mrf.mxu0
      %v1458 = vadd.f32 0.0, %v1457
      %1459 = vmatmul.f32.gmra.mxu0 %v1187
      %v1460 = vpop.f32.mrf.mxu0
      %v1461 = vadd.f32 0.0, %v1460
      %1462 = vmatmul.f32.gmra.mxu0 %v1190
      %v1463 = vpop.f32.mrf.mxu0
      %v1464 = vadd.f32 0.0, %v1463
      %1465 = vmatmul.f32.gmra.mxu0 %v1193
      %v1466 = vpop.f32.mrf.mxu0
      %v1467 = vadd.f32 0.0, %v1466
      %1468 = vmatmul.f32.gmra.mxu0 %v1196
      %v1469 = vpop.f32.mrf.mxu0
      %v1470 = vadd.f32 0.0, %v1469
      %1471 = vmatmul.f32.gmra.mxu0 %v1199
      %v1472 = vpop.f32.mrf.mxu0
      %v1473 = vadd.f32 0.0, %v1472
      %1474 = vmatmul.f32.gmra.mxu0 %v1202
      %v1475 = vpop.f32.mrf.mxu0
      %v1476 = vadd.f32 0.0, %v1475
      %1477 = vmatmul.f32.gmra.mxu0 %v1205
      %v1478 = vpop.f32.mrf.mxu0
      %v1479 = vadd.f32 0.0, %v1478
      %1480 = vmatmul.f32.gmra.mxu0 %v1208
      %v1481 = vpop.f32.mrf.mxu0
      %v1482 = vadd.f32 0.0, %v1481
      %1483 = vmatmul.f32.gmra.mxu0 %v1211
      %v1484 = vpop.f32.mrf.mxu0
      %v1485 = vadd.f32 0.0, %v1484
      %1486 = vmatmul.f32.gmra.mxu0 %v1214
      %v1487 = vpop.f32.mrf.mxu0
      %v1488 = vadd.f32 0.0, %v1487
      %1489 = vmatmul.f32.gmra.mxu0 %v1217
      %v1490 = vpop.f32.mrf.mxu0
      %v1491 = vadd.f32 0.0, %v1490
      %1492 = vmatmul.f32.gmra.mxu0 %v1220
      %v1493 = vpop.f32.mrf.mxu0
      %v1494 = vadd.f32 0.0, %v1493
      %1495 = vmatmul.f32.gmra.mxu0 %v1223
      %v1496 = vpop.f32.mrf.mxu0
      %v1497 = vadd.f32 0.0, %v1496
      %1498 = vmatmul.f32.gmra.mxu0 %v1226
      %v1499 = vpop.f32.mrf.mxu0
      %v1500 = vadd.f32 0.0, %v1499
      %1501 = vmatmul.f32.gmra.mxu0 %v1229
      %v1502 = vpop.f32.mrf.mxu0
      %v1503 = vadd.f32 0.0, %v1502
      %1504 = vmatmul.f32.gmra.mxu0 %v1232
      %v1505 = vpop.f32.mrf.mxu0
      %v1506 = vadd.f32 0.0, %v1505
      %1507 = vmatmul.f32.gmra.mxu0 %v1235
      %v1508 = vpop.f32.mrf.mxu0
      %v1509 = vadd.f32 0.0, %v1508
      %1510 = vmatmul.f32.gmra.mxu0 %v1238
      %v1511 = vpop.f32.mrf.mxu0
      %v1512 = vadd.f32 0.0, %v1511
      %1513 = vmatmul.f32.gmra.mxu0 %v1241
      %v1514 = vpop.f32.mrf.mxu0
      %v1515 = vadd.f32 0.0, %v1514
      %1516 = vmatmul.f32.gmra.mxu0 %v1244
      %v1517 = vpop.f32.mrf.mxu0
      %v1518 = vadd.f32 0.0, %v1517
      %1519 = vmatmul.f32.gmra.mxu0 %v1247
      %v1520 = vpop.f32.mrf.mxu0
      %v1521 = vadd.f32 0.0, %v1520
      %1522 = vmatmul.f32.gmra.mxu0 %v1250
      %v1523 = vpop.f32.mrf.mxu0
      %v1524 = vadd.f32 0.0, %v1523
      %1525 = vmatmul.f32.gmra.mxu0 %v1253
      %v1526 = vpop.f32.mrf.mxu0
      %v1527 = vadd.f32 0.0, %v1526
      %1528 = vmatmul.f32.gmra.mxu0 %v1256
      %v1529 = vpop.f32.mrf.mxu0
      %v1530 = vadd.f32 0.0, %v1529
      %1531 = vmatmul.f32.gmra.mxu0 %v1259
      %v1532 = vpop.f32.mrf.mxu0
      %v1533 = vadd.f32 0.0, %v1532
      %1534 = vmatmul.f32.gmra.mxu0 %v1262
      %v1535 = vpop.f32.mrf.mxu0
      %v1536 = vadd.f32 0.0, %v1535
      %1537 = vmatmul.f32.gmra.mxu0 %v1265
      %v1538 = vpop.f32.mrf.mxu0
      %v1539 = vadd.f32 0.0, %v1538
      %1540 = vmatmul.f32.gmra.mxu0 %v1268
      %v1541 = vpop.f32.mrf.mxu0
      %v1542 = vadd.f32 0.0, %v1541
      %1543 = vmatmul.f32.gmra.mxu0 %v1271
      %v1544 = vpop.f32.mrf.mxu0
      %v1545 = vadd.f32 0.0, %v1544
      %1546 = vmatmul.f32.gmra.mxu0 %v1274
      %v1547 = vpop.f32.mrf.mxu0
      %v1548 = vadd.f32 0.0, %v1547
      %1549 = vmatmul.f32.gmra.mxu0 %v1277
      %v1550 = vpop.f32.mrf.mxu0
      %v1551 = vadd.f32 0.0, %v1550
      %1552 = vmatmul.f32.gmra.mxu0 %v1280
      %v1553 = vpop.f32.mrf.mxu0
      %v1554 = vadd.f32 0.0, %v1553
      %1555 = vmatmul.f32.gmra.mxu0 %v1283
      %v1556 = vpop.f32.mrf.mxu0
      %v1557 = vadd.f32 0.0, %v1556
      %1558 = vmatmul.f32.gmra.mxu0 %v1286
      %v1559 = vpop.f32.mrf.mxu0
      %v1560 = vadd.f32 0.0, %v1559
      %1561 = vmatmul.f32.gmra.mxu0 %v1289
      %v1562 = vpop.f32.mrf.mxu0
      %v1563 = vadd.f32 0.0, %v1562
      %1564 = vmatmul.f32.gmra.mxu0 %v1292
      %v1565 = vpop.f32.mrf.mxu0
      %v1566 = vadd.f32 0.0, %v1565
      %1567 = vdwg.mxu0
      %v1568 = vadd.f32 %v849, %v1312
      %v1569 = vadd.f32 %v986, %v1449
      %v1570 = vadd.f32 %v852, %v1315
      %v1571 = vadd.f32 %v989, %v1452
      %v1572 = vadd.f32 %v855, %v1318
      %v1573 = vadd.f32 %v992, %v1455
      %v1574 = vadd.f32 %v858, %v1321
      %v1575 = vadd.f32 %v995, %v1458
      %v1576 = vadd.f32 %v861, %v1324
      %v1577 = vadd.f32 %v998, %v1461
      %v1578 = vadd.f32 %v864, %v1327
      %v1579 = vadd.f32 %v1001, %v1464
      %v1580 = vadd.f32 %v867, %v1330
      %v1581 = vadd.f32 %v1004, %v1467
      %v1582 = vadd.f32 %v870, %v1333
      %v1583 = vadd.f32 %v1007, %v1470
      %v1584 = vadd.f32 %v873, %v1336
      %v1585 = vadd.f32 %v1010, %v1473
      %v1586 = vadd.f32 %v876, %v1339
      %v1587 = vadd.f32 %v1013, %v1476
      %v1588 = vadd.f32 %v879, %v1342
      %v1589 = vadd.f32 %v1016, %v1479
      %v1590 = vadd.f32 %v882, %v1345
      %v1591 = vadd.f32 %v1019, %v1482
      %v1592 = vadd.f32 %v885, %v1348
      %v1593 = vadd.f32 %v1022, %v1485
      %v1594 = vadd.f32 %v888, %v1351
      %v1595 = vadd.f32 %v1025, %v1488
      %v1596 = vadd.f32 %v891, %v1354
      %v1597 = vadd.f32 %v1028, %v1491
      %v1598 = vadd.f32 %v894, %v1357
      %v1599 = vadd.f32 %v1031, %v1494
      %v1600 = vadd.f32 %v897, %v1360
      %v1601 = vadd.f32 %v1034, %v1497
      %v1602 = vadd.f32 %v900, %v1363
      %v1603 = vadd.f32 %v1037, %v1500
      %v1604 = vadd.f32 %v903, %v1366
      %v1605 = vadd.f32 %v1040, %v1503
      %v1606 = vadd.f32 %v906, %v1369
      %v1607 = vadd.f32 %v1043, %v1506
      %v1608 = vadd.f32 %v909, %v1372
      %v1609 = vadd.f32 %v1046, %v1509
      %v1610 = vadd.f32 %v912, %v1375
      %v1611 = vadd.f32 %v1049, %v1512
      %v1612 = vadd.f32 %v915, %v1378
      %v1613 = vadd.f32 %v1052, %v1515
      %v1614 = vadd.f32 %v918, %v1381
      %v1615 = vadd.f32 %v1055, %v1518
      %v1616 = vadd.f32 %v921, %v1384
      %v1617 = vadd.f32 %v1058, %v1521
      %v1618 = vadd.f32 %v924, %v1387
      %v1619 = vadd.f32 %v1061, %v1524
      %v1620 = vadd.f32 %v927, %v1390
      %v1621 = vadd.f32 %v1064, %v1527
      %v1622 = vadd.f32 %v930, %v1393
      %v1623 = vadd.f32 %v1067, %v1530
      %v1624 = vadd.f32 %v933, %v1396
      %v1625 = vadd.f32 %v1070, %v1533
      %v1626 = vadd.f32 %v936, %v1399
      %v1627 = vadd.f32 %v1073, %v1536
      %v1628 = vadd.f32 %v939, %v1402
      %v1629 = vadd.f32 %v1076, %v1539
      %v1630 = vadd.f32 %v942, %v1405
      %v1631 = vadd.f32 %v1079, %v1542
      %v1632 = vadd.f32 %v945, %v1408
      %v1633 = vadd.f32 %v1082, %v1545
      %v1634 = vadd.f32 %v948, %v1411
      %v1635 = vadd.f32 %v1085, %v1548
      %v1636 = vadd.f32 %v951, %v1414
      %v1637 = vadd.f32 %v1088, %v1551
      %v1638 = vadd.f32 %v954, %v1417
      %v1639 = vadd.f32 %v1091, %v1554
      %v1640 = vadd.f32 %v957, %v1420
      %v1641 = vadd.f32 %v1094, %v1557
      %v1642 = vadd.f32 %v960, %v1423
      %v1643 = vadd.f32 %v1097, %v1560
      %v1644 = vadd.f32 %v963, %v1426
      %v1645 = vadd.f32 %v1100, %v1563
      %v1646 = vadd.f32 %v966, %v1429
      %v1647 = vadd.f32 %v1103, %v1566
      %v1648 = vld [vmem:[%s170 + $0xa] sm:$0xff]
      %v1649 = vld [vmem:[%s170 + $0x12] sm:$0xff]
      %v1650 = vld [vmem:[%s170 + $0x1a] sm:$0xff]
      %v1651 = vld [vmem:[%s170 + $0x22] sm:$0xff]
      %v1652 = vld [vmem:[%s170 + $0x2a] sm:$0xff]
      %v1653 = vld [vmem:[%s170 + $0x32] sm:$0xff]
      %v1654 = vld [vmem:[%s170 + $0x3a] sm:$0xff]
      %v1655 = vld [vmem:[%s170 + $0x42] sm:$0xff]
      %v1656 = vld [vmem:[%s170 + $0x4a] sm:$0xff]
      %v1657 = vld [vmem:[%s170 + $0x52] sm:$0xff]
      %v1658 = vld [vmem:[%s170 + $0x72] sm:$0xff]
      %v1659 = vld [vmem:[%s170 + $0x7a] sm:$0xff]
      %v1660 = vld [vmem:[%s170 + $0x82] sm:$0xff]
      %v1661 = vld [vmem:[%s170 + $0x8a] sm:$0xff]
      %v1662 = vld [vmem:[%s170 + $0x92] sm:$0xff]
      %v1663 = vld [vmem:[%s170 + $0x9a] sm:$0xff]
      %v1664 = vld [vmem:[%s170 + $0xa2] sm:$0xff]
      %v1665 = vld [vmem:[%s170 + $0xaa] sm:$0xff]
      %v1666 = vld [vmem:[%s170 + $0xb2] sm:$0xff]
      %v1667 = vld [vmem:[%s170 + $0xba] sm:$0xff]
      %v1668 = vld [vmem:[%s170 + $0xda] sm:$0xff]
      %v1669 = vld [vmem:[%s170 + $0xe2] sm:$0xff]
      %v1670 = vld [vmem:[%s170 + $0xea] sm:$0xff]
      %v1671 = vld [vmem:[%s170 + $0xf2] sm:$0xff]
      %v1672 = vld [vmem:[%s170 + $0xfa] sm:$0xff]
      %v1673 = vld [vmem:[%s170 + $0x102] sm:$0xff]
      %v1674 = vld [vmem:[%s170 + $0x10a] sm:$0xff]
      %v1675 = vld [vmem:[%s170 + $0x112] sm:$0xff]
      %v1676 = vld [vmem:[%s170 + $0x11a] sm:$0xff]
      %v1677 = vld [vmem:[%s170 + $0x122] sm:$0xff]
      %v1678 = vld [vmem:[%s170 + $0x142] sm:$0xff]
      %v1679 = vld [vmem:[%s170 + $0x14a] sm:$0xff]
      %v1680 = vld [vmem:[%s170 + $0x152] sm:$0xff]
      %v1681 = vld [vmem:[%s170 + $0x15a] sm:$0xff]
      %v1682 = vld [vmem:[%s170 + $0x162] sm:$0xff]
      %v1683 = vld [vmem:[%s170 + $0x16a] sm:$0xff]
      %v1684 = vld [vmem:[%s170 + $0x172] sm:$0xff]
      %v1685 = vld [vmem:[%s170 + $0x17a] sm:$0xff]
      %v1686 = vld [vmem:[%s170 + $0x182] sm:$0xff]
      %v1687 = vld [vmem:[%s170 + $0x18a] sm:$0xff]
      %s1688 = scalar_lea.vmem %s1, 672
      %v1689 = vld [vmem:[%s1688] sm:$0xff]
      %v1690 = vld [vmem:[%s1688 + $0x8] sm:$0xff]
      %v1691 = vld [vmem:[%s1688 + $0x10] sm:$0xff]
      %v1692 = vld [vmem:[%s1688 + $0x18] sm:$0xff]
      %v1693 = vld [vmem:[%s1688 + $0x20] sm:$0xff]
      %v1694 = vld [vmem:[%s1688 + $0x28] sm:$0xff]
      %v1695 = vld [vmem:[%s1688 + $0x30] sm:$0xff]
      %v1696 = vld [vmem:[%s1688 + $0x38] sm:$0xff]
      %v1697 = vld [vmem:[%s1688 + $0x40] sm:$0xff]
      %v1698 = vld [vmem:[%s1688 + $0x48] sm:$0xff]
      %v1699 = vld [vmem:[%s1688 + $0x50] sm:$0xff]
      %v1700 = vld [vmem:[%s1688 + $0x58] sm:$0xff]
      %v1701 = vld [vmem:[%s1688 + $0x60] sm:$0xff]
      %v1702 = vld [vmem:[%s1688 + $0x68] sm:$0xff]
      %v1703 = vld [vmem:[%s1688 + $0x70] sm:$0xff]
      %v1704 = vld [vmem:[%s1688 + $0x78] sm:$0xff]
      %v1705 = vld [vmem:[%s1688 + $0x80] sm:$0xff]
      %v1706 = vld [vmem:[%s1688 + $0x88] sm:$0xff]
      %v1707 = vld [vmem:[%s1688 + $0x90] sm:$0xff]
      %v1708 = vld [vmem:[%s1688 + $0x98] sm:$0xff]
      %v1709 = vld [vmem:[%s1688 + $0xa0] sm:$0xff]
      %v1710 = vld [vmem:[%s1688 + $0xa8] sm:$0xff]
      %v1711 = vld [vmem:[%s1688 + $0xb0] sm:$0xff]
      %v1712 = vld [vmem:[%s1688 + $0xb8] sm:$0xff]
      %v1713 = vld [vmem:[%s1688 + $0xc0] sm:$0xff]
      %v1714 = vld [vmem:[%s1688 + $0xc8] sm:$0xff]
      %v1715 = vld [vmem:[%s1688 + $0xd0] sm:$0xff]
      %v1716 = vld [vmem:[%s1688 + $0xd8] sm:$0xff]
      %v1718 = vsel %vm316, %v1648, 0
      %v1721 = vsel %vm316, %v1649, 0
      %v1724 = vsel %vm316, %v1650, 0
      %v1727 = vsel %vm316, %v1651, 0
      %v1730 = vsel %vm316, %v1652, 0
      %v1733 = vsel %vm316, %v1653, 0
      %v1736 = vsel %vm316, %v1654, 0
      %v1739 = vsel %vm316, %v1655, 0
      %v1742 = vsel %vm316, %v1656, 0
      %v1745 = vsel %vm316, %v1657, 0
      %v1748 = vsel %vm316, %v1658, 0
      %v1751 = vsel %vm316, %v1659, 0
      %v1754 = vsel %vm316, %v1660, 0
      %v1757 = vsel %vm316, %v1661, 0
      %v1760 = vsel %vm316, %v1662, 0
      %v1763 = vsel %vm316, %v1663, 0
      %v1766 = vsel %vm316, %v1664, 0
      %v1769 = vsel %vm316, %v1665, 0
      %v1772 = vsel %vm316, %v1666, 0
      %v1775 = vsel %vm316, %v1667, 0
      %v1778 = vsel %vm316, %v1668, 0
      %v1781 = vsel %vm316, %v1669, 0
      %v1784 = vsel %vm316, %v1670, 0
      %v1787 = vsel %vm316, %v1671, 0
      %v1790 = vsel %vm316, %v1672, 0
      %v1793 = vsel %vm316, %v1673, 0
      %v1796 = vsel %vm316, %v1674, 0
      %v1799 = vsel %vm316, %v1675, 0
      %v1802 = vsel %vm316, %v1676, 0
      %v1805 = vsel %vm316, %v1677, 0
      %v1808 = vsel %vm316, %v1678, 0
      %v1811 = vsel %vm316, %v1679, 0
      %v1814 = vsel %vm316, %v1680, 0
      %v1817 = vsel %vm316, %v1681, 0
      %v1820 = vsel %vm316, %v1682, 0
      %v1823 = vsel %vm316, %v1683, 0
      %v1826 = vsel %vm316, %v1684, 0
      %v1829 = vsel %vm316, %v1685, 0
      %v1832 = vsel %vm316, %v1686, 0
      %v1835 = vsel %vm316, %v1687, 0
      %1837 = vmatpush.msra.mxu0 0.0
      %1838 = vmatpush.msra.mxu0 0.0
      %1839 = vmatpush.msra.mxu0 %v1715
      %1840 = vmatpush.msra.mxu0 %v1713
      %1841 = vmatpush.msra.mxu0 %v1711
      %1842 = vmatpush.msra.mxu0 %v1709
      %1843 = vmatpush.msra.mxu0 %v1707
      %1844 = vmatpush.msra.mxu0 %v1705
      %1845 = vmatpush.msra.mxu0 %v1703
      %1846 = vmatpush.msra.mxu0 %v1701
      %1847 = vmatpush.msra.mxu0 %v1699
      %1848 = vmatpush.msra.mxu0 %v1697
      %1849 = vmatpush.msra.mxu0 %v1695
      %1850 = vmatpush.msra.mxu0 %v1693
      %1851 = vmatpush.msra.mxu0 %v1691
      %1852 = vmatpush.msra.mxu0 %v1689
      %1853 = vmatmul.f32.gmra.mxu0 %v1718
      %v1854 = vpop.f32.mrf.mxu0
      %v1855 = vadd.f32 0.0, %v1854
      %1856 = vmatmul.f32.gmra.mxu0 %v1721
      %v1857 = vpop.f32.mrf.mxu0
      %v1858 = vadd.f32 0.0, %v1857
      %1859 = vmatmul.f32.gmra.mxu0 %v1724
      %v1860 = vpop.f32.mrf.mxu0
      %v1861 = vadd.f32 0.0, %v1860
      %1862 = vmatmul.f32.gmra.mxu0 %v1727
      %v1863 = vpop.f32.mrf.mxu0
      %v1864 = vadd.f32 0.0, %v1863
      %1865 = vmatmul.f32.gmra.mxu0 %v1730
      %v1866 = vpop.f32.mrf.mxu0
      %v1867 = vadd.f32 0.0, %v1866
      %1868 = vmatmul.f32.gmra.mxu0 %v1733
      %v1869 = vpop.f32.mrf.mxu0
      %v1870 = vadd.f32 0.0, %v1869
      %1871 = vmatmul.f32.gmra.mxu0 %v1736
      %v1872 = vpop.f32.mrf.mxu0
      %v1873 = vadd.f32 0.0, %v1872
      %1874 = vmatmul.f32.gmra.mxu0 %v1739
      %v1875 = vpop.f32.mrf.mxu0
      %v1876 = vadd.f32 0.0, %v1875
      %1877 = vmatmul.f32.gmra.mxu0 %v1742
      %v1878 = vpop.f32.mrf.mxu0
      %v1879 = vadd.f32 0.0, %v1878
      %1880 = vmatmul.f32.gmra.mxu0 %v1745
      %v1881 = vpop.f32.mrf.mxu0
      %v1882 = vadd.f32 0.0, %v1881
      %1883 = vmatmul.f32.gmra.mxu0 %v1748
      %v1884 = vpop.f32.mrf.mxu0
      %v1885 = vadd.f32 0.0, %v1884
      %1886 = vmatmul.f32.gmra.mxu0 %v1751
      %v1887 = vpop.f32.mrf.mxu0
      %v1888 = vadd.f32 0.0, %v1887
      %1889 = vmatmul.f32.gmra.mxu0 %v1754
      %v1890 = vpop.f32.mrf.mxu0
      %v1891 = vadd.f32 0.0, %v1890
      %1892 = vmatmul.f32.gmra.mxu0 %v1757
      %v1893 = vpop.f32.mrf.mxu0
      %v1894 = vadd.f32 0.0, %v1893
      %1895 = vmatmul.f32.gmra.mxu0 %v1760
      %v1896 = vpop.f32.mrf.mxu0
      %v1897 = vadd.f32 0.0, %v1896
      %1898 = vmatmul.f32.gmra.mxu0 %v1763
      %v1899 = vpop.f32.mrf.mxu0
      %v1900 = vadd.f32 0.0, %v1899
      %1901 = vmatmul.f32.gmra.mxu0 %v1766
      %v1902 = vpop.f32.mrf.mxu0
      %v1903 = vadd.f32 0.0, %v1902
      %1904 = vmatmul.f32.gmra.mxu0 %v1769
      %v1905 = vpop.f32.mrf.mxu0
      %v1906 = vadd.f32 0.0, %v1905
      %1907 = vmatmul.f32.gmra.mxu0 %v1772
      %v1908 = vpop.f32.mrf.mxu0
      %v1909 = vadd.f32 0.0, %v1908
      %1910 = vmatmul.f32.gmra.mxu0 %v1775
      %v1911 = vpop.f32.mrf.mxu0
      %v1912 = vadd.f32 0.0, %v1911
      %1913 = vmatmul.f32.gmra.mxu0 %v1778
      %v1914 = vpop.f32.mrf.mxu0
      %v1915 = vadd.f32 0.0, %v1914
      %1916 = vmatmul.f32.gmra.mxu0 %v1781
      %v1917 = vpop.f32.mrf.mxu0
      %v1918 = vadd.f32 0.0, %v1917
      %1919 = vmatmul.f32.gmra.mxu0 %v1784
      %v1920 = vpop.f32.mrf.mxu0
      %v1921 = vadd.f32 0.0, %v1920
      %1922 = vmatmul.f32.gmra.mxu0 %v1787
      %v1923 = vpop.f32.mrf.mxu0
      %v1924 = vadd.f32 0.0, %v1923
      %1925 = vmatmul.f32.gmra.mxu0 %v1790
      %v1926 = vpop.f32.mrf.mxu0
      %v1927 = vadd.f32 0.0, %v1926
      %1928 = vmatmul.f32.gmra.mxu0 %v1793
      %v1929 = vpop.f32.mrf.mxu0
      %v1930 = vadd.f32 0.0, %v1929
      %1931 = vmatmul.f32.gmra.mxu0 %v1796
      %v1932 = vpop.f32.mrf.mxu0
      %v1933 = vadd.f32 0.0, %v1932
      %1934 = vmatmul.f32.gmra.mxu0 %v1799
      %v1935 = vpop.f32.mrf.mxu0
      %v1936 = vadd.f32 0.0, %v1935
      %1937 = vmatmul.f32.gmra.mxu0 %v1802
      %v1938 = vpop.f32.mrf.mxu0
      %v1939 = vadd.f32 0.0, %v1938
      %1940 = vmatmul.f32.gmra.mxu0 %v1805
      %v1941 = vpop.f32.mrf.mxu0
      %v1942 = vadd.f32 0.0, %v1941
      %1943 = vmatmul.f32.gmra.mxu0 %v1808
      %v1944 = vpop.f32.mrf.mxu0
      %v1945 = vadd.f32 0.0, %v1944
      %1946 = vmatmul.f32.gmra.mxu0 %v1811
      %v1947 = vpop.f32.mrf.mxu0
      %v1948 = vadd.f32 0.0, %v1947
      %1949 = vmatmul.f32.gmra.mxu0 %v1814
      %v1950 = vpop.f32.mrf.mxu0
      %v1951 = vadd.f32 0.0, %v1950
      %1952 = vmatmul.f32.gmra.mxu0 %v1817
      %v1953 = vpop.f32.mrf.mxu0
      %v1954 = vadd.f32 0.0, %v1953
      %1955 = vmatmul.f32.gmra.mxu0 %v1820
      %v1956 = vpop.f32.mrf.mxu0
      %v1957 = vadd.f32 0.0, %v1956
      %1958 = vmatmul.f32.gmra.mxu0 %v1823
      %v1959 = vpop.f32.mrf.mxu0
      %v1960 = vadd.f32 0.0, %v1959
      %1961 = vmatmul.f32.gmra.mxu0 %v1826
      %v1962 = vpop.f32.mrf.mxu0
      %v1963 = vadd.f32 0.0, %v1962
      %1964 = vmatmul.f32.gmra.mxu0 %v1829
      %v1965 = vpop.f32.mrf.mxu0
      %v1966 = vadd.f32 0.0, %v1965
      %1967 = vmatmul.f32.gmra.mxu0 %v1832
      %v1968 = vpop.f32.mrf.mxu0
      %v1969 = vadd.f32 0.0, %v1968
      %1970 = vmatmul.f32.gmra.mxu0 %v1835
      %v1971 = vpop.f32.mrf.mxu0
      %v1972 = vadd.f32 0.0, %v1971
      %1973 = vdwg.mxu0
      %1974 = vmatpush.msra.mxu0 0.0
      %1975 = vmatpush.msra.mxu0 0.0
      %1976 = vmatpush.msra.mxu0 %v1716
      %1977 = vmatpush.msra.mxu0 %v1714
      %1978 = vmatpush.msra.mxu0 %v1712
      %1979 = vmatpush.msra.mxu0 %v1710
      %1980 = vmatpush.msra.mxu0 %v1708
      %1981 = vmatpush.msra.mxu0 %v1706
      %1982 = vmatpush.msra.mxu0 %v1704
      %1983 = vmatpush.msra.mxu0 %v1702
      %1984 = vmatpush.msra.mxu0 %v1700
      %1985 = vmatpush.msra.mxu0 %v1698
      %1986 = vmatpush.msra.mxu0 %v1696
      %1987 = vmatpush.msra.mxu0 %v1694
      %1988 = vmatpush.msra.mxu0 %v1692
      %1989 = vmatpush.msra.mxu0 %v1690
      %1990 = vmatmul.f32.gmra.mxu0 %v1718
      %v1991 = vpop.f32.mrf.mxu0
      %v1992 = vadd.f32 0.0, %v1991
      %1993 = vmatmul.f32.gmra.mxu0 %v1721
      %v1994 = vpop.f32.mrf.mxu0
      %v1995 = vadd.f32 0.0, %v1994
      %1996 = vmatmul.f32.gmra.mxu0 %v1724
      %v1997 = vpop.f32.mrf.mxu0
      %v1998 = vadd.f32 0.0, %v1997
      %1999 = vmatmul.f32.gmra.mxu0 %v1727
      %v2000 = vpop.f32.mrf.mxu0
      %v2001 = vadd.f32 0.0, %v2000
      %2002 = vmatmul.f32.gmra.mxu0 %v1730
      %v2003 = vpop.f32.mrf.mxu0
      %v2004 = vadd.f32 0.0, %v2003
      %2005 = vmatmul.f32.gmra.mxu0 %v1733
      %v2006 = vpop.f32.mrf.mxu0
      %v2007 = vadd.f32 0.0, %v2006
      %2008 = vmatmul.f32.gmra.mxu0 %v1736
      %v2009 = vpop.f32.mrf.mxu0
      %v2010 = vadd.f32 0.0, %v2009
      %2011 = vmatmul.f32.gmra.mxu0 %v1739
      %v2012 = vpop.f32.mrf.mxu0
      %v2013 = vadd.f32 0.0, %v2012
      %2014 = vmatmul.f32.gmra.mxu0 %v1742
      %v2015 = vpop.f32.mrf.mxu0
      %v2016 = vadd.f32 0.0, %v2015
      %2017 = vmatmul.f32.gmra.mxu0 %v1745
      %v2018 = vpop.f32.mrf.mxu0
      %v2019 = vadd.f32 0.0, %v2018
      %2020 = vmatmul.f32.gmra.mxu0 %v1748
      %v2021 = vpop.f32.mrf.mxu0
      %v2022 = vadd.f32 0.0, %v2021
      %2023 = vmatmul.f32.gmra.mxu0 %v1751
      %v2024 = vpop.f32.mrf.mxu0
      %v2025 = vadd.f32 0.0, %v2024
      %2026 = vmatmul.f32.gmra.mxu0 %v1754
      %v2027 = vpop.f32.mrf.mxu0
      %v2028 = vadd.f32 0.0, %v2027
      %2029 = vmatmul.f32.gmra.mxu0 %v1757
      %v2030 = vpop.f32.mrf.mxu0
      %v2031 = vadd.f32 0.0, %v2030
      %2032 = vmatmul.f32.gmra.mxu0 %v1760
      %v2033 = vpop.f32.mrf.mxu0
      %v2034 = vadd.f32 0.0, %v2033
      %2035 = vmatmul.f32.gmra.mxu0 %v1763
      %v2036 = vpop.f32.mrf.mxu0
      %v2037 = vadd.f32 0.0, %v2036
      %2038 = vmatmul.f32.gmra.mxu0 %v1766
      %v2039 = vpop.f32.mrf.mxu0
      %v2040 = vadd.f32 0.0, %v2039
      %2041 = vmatmul.f32.gmra.mxu0 %v1769
      %v2042 = vpop.f32.mrf.mxu0
      %v2043 = vadd.f32 0.0, %v2042
      %2044 = vmatmul.f32.gmra.mxu0 %v1772
      %v2045 = vpop.f32.mrf.mxu0
      %v2046 = vadd.f32 0.0, %v2045
      %2047 = vmatmul.f32.gmra.mxu0 %v1775
      %v2048 = vpop.f32.mrf.mxu0
      %v2049 = vadd.f32 0.0, %v2048
      %2050 = vmatmul.f32.gmra.mxu0 %v1778
      %v2051 = vpop.f32.mrf.mxu0
      %v2052 = vadd.f32 0.0, %v2051
      %2053 = vmatmul.f32.gmra.mxu0 %v1781
      %v2054 = vpop.f32.mrf.mxu0
      %v2055 = vadd.f32 0.0, %v2054
      %2056 = vmatmul.f32.gmra.mxu0 %v1784
      %v2057 = vpop.f32.mrf.mxu0
      %v2058 = vadd.f32 0.0, %v2057
      %2059 = vmatmul.f32.gmra.mxu0 %v1787
      %v2060 = vpop.f32.mrf.mxu0
      %v2061 = vadd.f32 0.0, %v2060
      %2062 = vmatmul.f32.gmra.mxu0 %v1790
      %v2063 = vpop.f32.mrf.mxu0
      %v2064 = vadd.f32 0.0, %v2063
      %2065 = vmatmul.f32.gmra.mxu0 %v1793
      %v2066 = vpop.f32.mrf.mxu0
      %v2067 = vadd.f32 0.0, %v2066
      %2068 = vmatmul.f32.gmra.mxu0 %v1796
      %v2069 = vpop.f32.mrf.mxu0
      %v2070 = vadd.f32 0.0, %v2069
      %2071 = vmatmul.f32.gmra.mxu0 %v1799
      %v2072 = vpop.f32.mrf.mxu0
      %v2073 = vadd.f32 0.0, %v2072
      %2074 = vmatmul.f32.gmra.mxu0 %v1802
      %v2075 = vpop.f32.mrf.mxu0
      %v2076 = vadd.f32 0.0, %v2075
      %2077 = vmatmul.f32.gmra.mxu0 %v1805
      %v2078 = vpop.f32.mrf.mxu0
      %v2079 = vadd.f32 0.0, %v2078
      %2080 = vmatmul.f32.gmra.mxu0 %v1808
      %v2081 = vpop.f32.mrf.mxu0
      %v2082 = vadd.f32 0.0, %v2081
      %2083 = vmatmul.f32.gmra.mxu0 %v1811
      %v2084 = vpop.f32.mrf.mxu0
      %v2085 = vadd.f32 0.0, %v2084
      %2086 = vmatmul.f32.gmra.mxu0 %v1814
      %v2087 = vpop.f32.mrf.mxu0
      %v2088 = vadd.f32 0.0, %v2087
      %2089 = vmatmul.f32.gmra.mxu0 %v1817
      %v2090 = vpop.f32.mrf.mxu0
      %v2091 = vadd.f32 0.0, %v2090
      %2092 = vmatmul.f32.gmra.mxu0 %v1820
      %v2093 = vpop.f32.mrf.mxu0
      %v2094 = vadd.f32 0.0, %v2093
      %2095 = vmatmul.f32.gmra.mxu0 %v1823
      %v2096 = vpop.f32.mrf.mxu0
      %v2097 = vadd.f32 0.0, %v2096
      %2098 = vmatmul.f32.gmra.mxu0 %v1826
      %v2099 = vpop.f32.mrf.mxu0
      %v2100 = vadd.f32 0.0, %v2099
      %2101 = vmatmul.f32.gmra.mxu0 %v1829
      %v2102 = vpop.f32.mrf.mxu0
      %v2103 = vadd.f32 0.0, %v2102
      %2104 = vmatmul.f32.gmra.mxu0 %v1832
      %v2105 = vpop.f32.mrf.mxu0
      %v2106 = vadd.f32 0.0, %v2105
      %2107 = vmatmul.f32.gmra.mxu0 %v1835
      %v2108 = vpop.f32.mrf.mxu0
      %v2109 = vadd.f32 0.0, %v2108
      %2110 = vdwg.mxu0
      %v2111 = vadd.f32 %v1568, %v1855
      %v2112 = vadd.f32 %v1569, %v1992
      %v2113 = vadd.f32 %v1570, %v1858
      %v2114 = vadd.f32 %v1571, %v1995
      %v2115 = vadd.f32 %v1572, %v1861
      %v2116 = vadd.f32 %v1573, %v1998
      %v2117 = vadd.f32 %v1574, %v1864
      %v2118 = vadd.f32 %v1575, %v2001
      %v2119 = vadd.f32 %v1576, %v1867
      %v2120 = vadd.f32 %v1577, %v2004
      %v2121 = vadd.f32 %v1578, %v1870
      %v2122 = vadd.f32 %v1579, %v2007
      %v2123 = vadd.f32 %v1580, %v1873
      %v2124 = vadd.f32 %v1581, %v2010
      %v2125 = vadd.f32 %v1582, %v1876
      %v2126 = vadd.f32 %v1583, %v2013
      %v2127 = vadd.f32 %v1584, %v1879
      %v2128 = vadd.f32 %v1585, %v2016
      %v2129 = vadd.f32 %v1586, %v1882
      %v2130 = vadd.f32 %v1587, %v2019
      %v2131 = vadd.f32 %v1588, %v1885
      %v2132 = vadd.f32 %v1589, %v2022
      %v2133 = vadd.f32 %v1590, %v1888
      %v2134 = vadd.f32 %v1591, %v2025
      %v2135 = vadd.f32 %v1592, %v1891
      %v2136 = vadd.f32 %v1593, %v2028
      %v2137 = vadd.f32 %v1594, %v1894
      %v2138 = vadd.f32 %v1595, %v2031
      %v2139 = vadd.f32 %v1596, %v1897
      %v2140 = vadd.f32 %v1597, %v2034
      %v2141 = vadd.f32 %v1598, %v1900
      %v2142 = vadd.f32 %v1599, %v2037
      %v2143 = vadd.f32 %v1600, %v1903
      %v2144 = vadd.f32 %v1601, %v2040
      %v2145 = vadd.f32 %v1602, %v1906
      %v2146 = vadd.f32 %v1603, %v2043
      %v2147 = vadd.f32 %v1604, %v1909
      %v2148 = vadd.f32 %v1605, %v2046
      %v2149 = vadd.f32 %v1606, %v1912
      %v2150 = vadd.f32 %v1607, %v2049
      %v2151 = vadd.f32 %v1608, %v1915
      %v2152 = vadd.f32 %v1609, %v2052
      %v2153 = vadd.f32 %v1610, %v1918
      %v2154 = vadd.f32 %v1611, %v2055
      %v2155 = vadd.f32 %v1612, %v1921
      %v2156 = vadd.f32 %v1613, %v2058
      %v2157 = vadd.f32 %v1614, %v1924
      %v2158 = vadd.f32 %v1615, %v2061
      %v2159 = vadd.f32 %v1616, %v1927
      %v2160 = vadd.f32 %v1617, %v2064
      %v2161 = vadd.f32 %v1618, %v1930
      %v2162 = vadd.f32 %v1619, %v2067
      %v2163 = vadd.f32 %v1620, %v1933
      %v2164 = vadd.f32 %v1621, %v2070
      %v2165 = vadd.f32 %v1622, %v1936
      %v2166 = vadd.f32 %v1623, %v2073
      %v2167 = vadd.f32 %v1624, %v1939
      %v2168 = vadd.f32 %v1625, %v2076
      %v2169 = vadd.f32 %v1626, %v1942
      %v2170 = vadd.f32 %v1627, %v2079
      %v2171 = vadd.f32 %v1628, %v1945
      %v2172 = vadd.f32 %v1629, %v2082
      %v2173 = vadd.f32 %v1630, %v1948
      %v2174 = vadd.f32 %v1631, %v2085
      %v2175 = vadd.f32 %v1632, %v1951
      %v2176 = vadd.f32 %v1633, %v2088
      %v2177 = vadd.f32 %v1634, %v1954
      %v2178 = vadd.f32 %v1635, %v2091
      %v2179 = vadd.f32 %v1636, %v1957
      %v2180 = vadd.f32 %v1637, %v2094
      %v2181 = vadd.f32 %v1638, %v1960
      %v2182 = vadd.f32 %v1639, %v2097
      %v2183 = vadd.f32 %v1640, %v1963
      %v2184 = vadd.f32 %v1641, %v2100
      %v2185 = vadd.f32 %v1642, %v1966
      %v2186 = vadd.f32 %v1643, %v2103
      %v2187 = vadd.f32 %v1644, %v1969
      %v2188 = vadd.f32 %v1645, %v2106
      %v2189 = vadd.f32 %v1646, %v1972
      %v2190 = vadd.f32 %v1647, %v2109
      %v2191 = vld [vmem:[%s170 + $0xb] sm:$0xff]
      %v2192 = vld [vmem:[%s170 + $0x13] sm:$0xff]
      %v2193 = vld [vmem:[%s170 + $0x1b] sm:$0xff]
      %v2194 = vld [vmem:[%s170 + $0x23] sm:$0xff]
      %v2195 = vld [vmem:[%s170 + $0x2b] sm:$0xff]
      %v2196 = vld [vmem:[%s170 + $0x33] sm:$0xff]
      %v2197 = vld [vmem:[%s170 + $0x3b] sm:$0xff]
      %v2198 = vld [vmem:[%s170 + $0x43] sm:$0xff]
      %v2199 = vld [vmem:[%s170 + $0x4b] sm:$0xff]
      %v2200 = vld [vmem:[%s170 + $0x53] sm:$0xff]
      %v2201 = vld [vmem:[%s170 + $0x73] sm:$0xff]
      %v2202 = vld [vmem:[%s170 + $0x7b] sm:$0xff]
      %v2203 = vld [vmem:[%s170 + $0x83] sm:$0xff]
      %v2204 = vld [vmem:[%s170 + $0x8b] sm:$0xff]
      %v2205 = vld [vmem:[%s170 + $0x93] sm:$0xff]
      %v2206 = vld [vmem:[%s170 + $0x9b] sm:$0xff]
      %v2207 = vld [vmem:[%s170 + $0xa3] sm:$0xff]
      %v2208 = vld [vmem:[%s170 + $0xab] sm:$0xff]
      %v2209 = vld [vmem:[%s170 + $0xb3] sm:$0xff]
      %v2210 = vld [vmem:[%s170 + $0xbb] sm:$0xff]
      %v2211 = vld [vmem:[%s170 + $0xdb] sm:$0xff]
      %v2212 = vld [vmem:[%s170 + $0xe3] sm:$0xff]
      %v2213 = vld [vmem:[%s170 + $0xeb] sm:$0xff]
      %v2214 = vld [vmem:[%s170 + $0xf3] sm:$0xff]
      %v2215 = vld [vmem:[%s170 + $0xfb] sm:$0xff]
      %v2216 = vld [vmem:[%s170 + $0x103] sm:$0xff]
      %v2217 = vld [vmem:[%s170 + $0x10b] sm:$0xff]
      %v2218 = vld [vmem:[%s170 + $0x113] sm:$0xff]
      %v2219 = vld [vmem:[%s170 + $0x11b] sm:$0xff]
      %v2220 = vld [vmem:[%s170 + $0x123] sm:$0xff]
      %v2221 = vld [vmem:[%s170 + $0x143] sm:$0xff]
      %v2222 = vld [vmem:[%s170 + $0x14b] sm:$0xff]
      %v2223 = vld [vmem:[%s170 + $0x153] sm:$0xff]
      %v2224 = vld [vmem:[%s170 + $0x15b] sm:$0xff]
      %v2225 = vld [vmem:[%s170 + $0x163] sm:$0xff]
      %v2226 = vld [vmem:[%s170 + $0x16b] sm:$0xff]
      %v2227 = vld [vmem:[%s170 + $0x173] sm:$0xff]
      %v2228 = vld [vmem:[%s170 + $0x17b] sm:$0xff]
      %v2229 = vld [vmem:[%s170 + $0x183] sm:$0xff]
      %v2230 = vld [vmem:[%s170 + $0x18b] sm:$0xff]
      %s2231 = scalar_lea.vmem %s1, 896
      %v2232 = vld [vmem:[%s2231] sm:$0xff]
      %v2233 = vld [vmem:[%s2231 + $0x8] sm:$0xff]
      %v2234 = vld [vmem:[%s2231 + $0x10] sm:$0xff]
      %v2235 = vld [vmem:[%s2231 + $0x18] sm:$0xff]
      %v2236 = vld [vmem:[%s2231 + $0x20] sm:$0xff]
      %v2237 = vld [vmem:[%s2231 + $0x28] sm:$0xff]
      %v2238 = vld [vmem:[%s2231 + $0x30] sm:$0xff]
      %v2239 = vld [vmem:[%s2231 + $0x38] sm:$0xff]
      %v2240 = vld [vmem:[%s2231 + $0x40] sm:$0xff]
      %v2241 = vld [vmem:[%s2231 + $0x48] sm:$0xff]
      %v2242 = vld [vmem:[%s2231 + $0x50] sm:$0xff]
      %v2243 = vld [vmem:[%s2231 + $0x58] sm:$0xff]
      %v2244 = vld [vmem:[%s2231 + $0x60] sm:$0xff]
      %v2245 = vld [vmem:[%s2231 + $0x68] sm:$0xff]
      %v2246 = vld [vmem:[%s2231 + $0x70] sm:$0xff]
      %v2247 = vld [vmem:[%s2231 + $0x78] sm:$0xff]
      %v2248 = vld [vmem:[%s2231 + $0x80] sm:$0xff]
      %v2249 = vld [vmem:[%s2231 + $0x88] sm:$0xff]
      %v2250 = vld [vmem:[%s2231 + $0x90] sm:$0xff]
      %v2251 = vld [vmem:[%s2231 + $0x98] sm:$0xff]
      %v2252 = vld [vmem:[%s2231 + $0xa0] sm:$0xff]
      %v2253 = vld [vmem:[%s2231 + $0xa8] sm:$0xff]
      %v2254 = vld [vmem:[%s2231 + $0xb0] sm:$0xff]
      %v2255 = vld [vmem:[%s2231 + $0xb8] sm:$0xff]
      %v2256 = vld [vmem:[%s2231 + $0xc0] sm:$0xff]
      %v2257 = vld [vmem:[%s2231 + $0xc8] sm:$0xff]
      %v2258 = vld [vmem:[%s2231 + $0xd0] sm:$0xff]
      %v2259 = vld [vmem:[%s2231 + $0xd8] sm:$0xff]
      %v2261 = vsel %vm316, %v2191, 0
      %v2264 = vsel %vm316, %v2192, 0
      %v2267 = vsel %vm316, %v2193, 0
      %v2270 = vsel %vm316, %v2194, 0
      %v2273 = vsel %vm316, %v2195, 0
      %v2276 = vsel %vm316, %v2196, 0
      %v2279 = vsel %vm316, %v2197, 0
      %v2282 = vsel %vm316, %v2198, 0
      %v2285 = vsel %vm316, %v2199, 0
      %v2288 = vsel %vm316, %v2200, 0
      %v2291 = vsel %vm316, %v2201, 0
      %v2294 = vsel %vm316, %v2202, 0
      %v2297 = vsel %vm316, %v2203, 0
      %v2300 = vsel %vm316, %v2204, 0
      %v2303 = vsel %vm316, %v2205, 0
      %v2306 = vsel %vm316, %v2206, 0
      %v2309 = vsel %vm316, %v2207, 0
      %v2312 = vsel %vm316, %v2208, 0
      %v2315 = vsel %vm316, %v2209, 0
      %v2318 = vsel %vm316, %v2210, 0
      %v2321 = vsel %vm316, %v2211, 0
      %v2324 = vsel %vm316, %v2212, 0
      %v2327 = vsel %vm316, %v2213, 0
      %v2330 = vsel %vm316, %v2214, 0
      %v2333 = vsel %vm316, %v2215, 0
      %v2336 = vsel %vm316, %v2216, 0
      %v2339 = vsel %vm316, %v2217, 0
      %v2342 = vsel %vm316, %v2218, 0
      %v2345 = vsel %vm316, %v2219, 0
      %v2348 = vsel %vm316, %v2220, 0
      %v2351 = vsel %vm316, %v2221, 0
      %v2354 = vsel %vm316, %v2222, 0
      %v2357 = vsel %vm316, %v2223, 0
      %v2360 = vsel %vm316, %v2224, 0
      %v2363 = vsel %vm316, %v2225, 0
      %v2366 = vsel %vm316, %v2226, 0
      %v2369 = vsel %vm316, %v2227, 0
      %v2372 = vsel %vm316, %v2228, 0
      %v2375 = vsel %vm316, %v2229, 0
      %v2378 = vsel %vm316, %v2230, 0
      %2380 = vmatpush.msra.mxu0 0.0
      %2381 = vmatpush.msra.mxu0 0.0
      %2382 = vmatpush.msra.mxu0 %v2258
      %2383 = vmatpush.msra.mxu0 %v2256
      %2384 = vmatpush.msra.mxu0 %v2254
      %2385 = vmatpush.msra.mxu0 %v2252
      %2386 = vmatpush.msra.mxu0 %v2250
      %2387 = vmatpush.msra.mxu0 %v2248
      %2388 = vmatpush.msra.mxu0 %v2246
      %2389 = vmatpush.msra.mxu0 %v2244
      %2390 = vmatpush.msra.mxu0 %v2242
      %2391 = vmatpush.msra.mxu0 %v2240
      %2392 = vmatpush.msra.mxu0 %v2238
      %2393 = vmatpush.msra.mxu0 %v2236
      %2394 = vmatpush.msra.mxu0 %v2234
      %2395 = vmatpush.msra.mxu0 %v2232
      %2396 = vmatmul.f32.gmra.mxu0 %v2261
      %v2397 = vpop.f32.mrf.mxu0
      %v2398 = vadd.f32 0.0, %v2397
      %2399 = vmatmul.f32.gmra.mxu0 %v2264
      %v2400 = vpop.f32.mrf.mxu0
      %v2401 = vadd.f32 0.0, %v2400
      %2402 = vmatmul.f32.gmra.mxu0 %v2267
      %v2403 = vpop.f32.mrf.mxu0
      %v2404 = vadd.f32 0.0, %v2403
      %2405 = vmatmul.f32.gmra.mxu0 %v2270
      %v2406 = vpop.f32.mrf.mxu0
      %v2407 = vadd.f32 0.0, %v2406
      %2408 = vmatmul.f32.gmra.mxu0 %v2273
      %v2409 = vpop.f32.mrf.mxu0
      %v2410 = vadd.f32 0.0, %v2409
      %2411 = vmatmul.f32.gmra.mxu0 %v2276
      %v2412 = vpop.f32.mrf.mxu0
      %v2413 = vadd.f32 0.0, %v2412
      %2414 = vmatmul.f32.gmra.mxu0 %v2279
      %v2415 = vpop.f32.mrf.mxu0
      %v2416 = vadd.f32 0.0, %v2415
      %2417 = vmatmul.f32.gmra.mxu0 %v2282
      %v2418 = vpop.f32.mrf.mxu0
      %v2419 = vadd.f32 0.0, %v2418
      %2420 = vmatmul.f32.gmra.mxu0 %v2285
      %v2421 = vpop.f32.mrf.mxu0
      %v2422 = vadd.f32 0.0, %v2421
      %2423 = vmatmul.f32.gmra.mxu0 %v2288
      %v2424 = vpop.f32.mrf.mxu0
      %v2425 = vadd.f32 0.0, %v2424
      %2426 = vmatmul.f32.gmra.mxu0 %v2291
      %v2427 = vpop.f32.mrf.mxu0
      %v2428 = vadd.f32 0.0, %v2427
      %2429 = vmatmul.f32.gmra.mxu0 %v2294
      %v2430 = vpop.f32.mrf.mxu0
      %v2431 = vadd.f32 0.0, %v2430
      %2432 = vmatmul.f32.gmra.mxu0 %v2297
      %v2433 = vpop.f32.mrf.mxu0
      %v2434 = vadd.f32 0.0, %v2433
      %2435 = vmatmul.f32.gmra.mxu0 %v2300
      %v2436 = vpop.f32.mrf.mxu0
      %v2437 = vadd.f32 0.0, %v2436
      %2438 = vmatmul.f32.gmra.mxu0 %v2303
      %v2439 = vpop.f32.mrf.mxu0
      %v2440 = vadd.f32 0.0, %v2439
      %2441 = vmatmul.f32.gmra.mxu0 %v2306
      %v2442 = vpop.f32.mrf.mxu0
      %v2443 = vadd.f32 0.0, %v2442
      %2444 = vmatmul.f32.gmra.mxu0 %v2309
      %v2445 = vpop.f32.mrf.mxu0
      %v2446 = vadd.f32 0.0, %v2445
      %2447 = vmatmul.f32.gmra.mxu0 %v2312
      %v2448 = vpop.f32.mrf.mxu0
      %v2449 = vadd.f32 0.0, %v2448
      %2450 = vmatmul.f32.gmra.mxu0 %v2315
      %v2451 = vpop.f32.mrf.mxu0
      %v2452 = vadd.f32 0.0, %v2451
      %2453 = vmatmul.f32.gmra.mxu0 %v2318
      %v2454 = vpop.f32.mrf.mxu0
      %v2455 = vadd.f32 0.0, %v2454
      %2456 = vmatmul.f32.gmra.mxu0 %v2321
      %v2457 = vpop.f32.mrf.mxu0
      %v2458 = vadd.f32 0.0, %v2457
      %2459 = vmatmul.f32.gmra.mxu0 %v2324
      %v2460 = vpop.f32.mrf.mxu0
      %v2461 = vadd.f32 0.0, %v2460
      %2462 = vmatmul.f32.gmra.mxu0 %v2327
      %v2463 = vpop.f32.mrf.mxu0
      %v2464 = vadd.f32 0.0, %v2463
      %2465 = vmatmul.f32.gmra.mxu0 %v2330
      %v2466 = vpop.f32.mrf.mxu0
      %v2467 = vadd.f32 0.0, %v2466
      %2468 = vmatmul.f32.gmra.mxu0 %v2333
      %v2469 = vpop.f32.mrf.mxu0
      %v2470 = vadd.f32 0.0, %v2469
      %2471 = vmatmul.f32.gmra.mxu0 %v2336
      %v2472 = vpop.f32.mrf.mxu0
      %v2473 = vadd.f32 0.0, %v2472
      %2474 = vmatmul.f32.gmra.mxu0 %v2339
      %v2475 = vpop.f32.mrf.mxu0
      %v2476 = vadd.f32 0.0, %v2475
      %2477 = vmatmul.f32.gmra.mxu0 %v2342
      %v2478 = vpop.f32.mrf.mxu0
      %v2479 = vadd.f32 0.0, %v2478
      %2480 = vmatmul.f32.gmra.mxu0 %v2345
      %v2481 = vpop.f32.mrf.mxu0
      %v2482 = vadd.f32 0.0, %v2481
      %2483 = vmatmul.f32.gmra.mxu0 %v2348
      %v2484 = vpop.f32.mrf.mxu0
      %v2485 = vadd.f32 0.0, %v2484
      %2486 = vmatmul.f32.gmra.mxu0 %v2351
      %v2487 = vpop.f32.mrf.mxu0
      %v2488 = vadd.f32 0.0, %v2487
      %2489 = vmatmul.f32.gmra.mxu0 %v2354
      %v2490 = vpop.f32.mrf.mxu0
      %v2491 = vadd.f32 0.0, %v2490
      %2492 = vmatmul.f32.gmra.mxu0 %v2357
      %v2493 = vpop.f32.mrf.mxu0
      %v2494 = vadd.f32 0.0, %v2493
      %2495 = vmatmul.f32.gmra.mxu0 %v2360
      %v2496 = vpop.f32.mrf.mxu0
      %v2497 = vadd.f32 0.0, %v2496
      %2498 = vmatmul.f32.gmra.mxu0 %v2363
      %v2499 = vpop.f32.mrf.mxu0
      %v2500 = vadd.f32 0.0, %v2499
      %2501 = vmatmul.f32.gmra.mxu0 %v2366
      %v2502 = vpop.f32.mrf.mxu0
      %v2503 = vadd.f32 0.0, %v2502
      %2504 = vmatmul.f32.gmra.mxu0 %v2369
      %v2505 = vpop.f32.mrf.mxu0
      %v2506 = vadd.f32 0.0, %v2505
      %2507 = vmatmul.f32.gmra.mxu0 %v2372
      %v2508 = vpop.f32.mrf.mxu0
      %v2509 = vadd.f32 0.0, %v2508
      %2510 = vmatmul.f32.gmra.mxu0 %v2375
      %v2511 = vpop.f32.mrf.mxu0
      %v2512 = vadd.f32 0.0, %v2511
      %2513 = vmatmul.f32.gmra.mxu0 %v2378
      %v2514 = vpop.f32.mrf.mxu0
      %v2515 = vadd.f32 0.0, %v2514
      %2516 = vdwg.mxu0
      %2517 = vmatpush.msra.mxu0 0.0
      %2518 = vmatpush.msra.mxu0 0.0
      %2519 = vmatpush.msra.mxu0 %v2259
      %2520 = vmatpush.msra.mxu0 %v2257
      %2521 = vmatpush.msra.mxu0 %v2255
      %2522 = vmatpush.msra.mxu0 %v2253
      %2523 = vmatpush.msra.mxu0 %v2251
      %2524 = vmatpush.msra.mxu0 %v2249
      %2525 = vmatpush.msra.mxu0 %v2247
      %2526 = vmatpush.msra.mxu0 %v2245
      %2527 = vmatpush.msra.mxu0 %v2243
      %2528 = vmatpush.msra.mxu0 %v2241
      %2529 = vmatpush.msra.mxu0 %v2239
      %2530 = vmatpush.msra.mxu0 %v2237
      %2531 = vmatpush.msra.mxu0 %v2235
      %2532 = vmatpush.msra.mxu0 %v2233
      %2533 = vmatmul.f32.gmra.mxu0 %v2261
      %v2534 = vpop.f32.mrf.mxu0
      %v2535 = vadd.f32 0.0, %v2534
      %2536 = vmatmul.f32.gmra.mxu0 %v2264
      %v2537 = vpop.f32.mrf.mxu0
      %v2538 = vadd.f32 0.0, %v2537
      %2539 = vmatmul.f32.gmra.mxu0 %v2267
      %v2540 = vpop.f32.mrf.mxu0
      %v2541 = vadd.f32 0.0, %v2540
      %2542 = vmatmul.f32.gmra.mxu0 %v2270
      %v2543 = vpop.f32.mrf.mxu0
      %v2544 = vadd.f32 0.0, %v2543
      %2545 = vmatmul.f32.gmra.mxu0 %v2273
      %v2546 = vpop.f32.mrf.mxu0
      %v2547 = vadd.f32 0.0, %v2546
      %2548 = vmatmul.f32.gmra.mxu0 %v2276
      %v2549 = vpop.f32.mrf.mxu0
      %v2550 = vadd.f32 0.0, %v2549
      %2551 = vmatmul.f32.gmra.mxu0 %v2279
      %v2552 = vpop.f32.mrf.mxu0
      %v2553 = vadd.f32 0.0, %v2552
      %2554 = vmatmul.f32.gmra.mxu0 %v2282
      %v2555 = vpop.f32.mrf.mxu0
      %v2556 = vadd.f32 0.0, %v2555
      %2557 = vmatmul.f32.gmra.mxu0 %v2285
      %v2558 = vpop.f32.mrf.mxu0
      %v2559 = vadd.f32 0.0, %v2558
      %2560 = vmatmul.f32.gmra.mxu0 %v2288
      %v2561 = vpop.f32.mrf.mxu0
      %v2562 = vadd.f32 0.0, %v2561
      %2563 = vmatmul.f32.gmra.mxu0 %v2291
      %v2564 = vpop.f32.mrf.mxu0
      %v2565 = vadd.f32 0.0, %v2564
      %2566 = vmatmul.f32.gmra.mxu0 %v2294
      %v2567 = vpop.f32.mrf.mxu0
      %v2568 = vadd.f32 0.0, %v2567
      %2569 = vmatmul.f32.gmra.mxu0 %v2297
      %v2570 = vpop.f32.mrf.mxu0
      %v2571 = vadd.f32 0.0, %v2570
      %2572 = vmatmul.f32.gmra.mxu0 %v2300
      %v2573 = vpop.f32.mrf.mxu0
      %v2574 = vadd.f32 0.0, %v2573
      %2575 = vmatmul.f32.gmra.mxu0 %v2303
      %v2576 = vpop.f32.mrf.mxu0
      %v2577 = vadd.f32 0.0, %v2576
      %2578 = vmatmul.f32.gmra.mxu0 %v2306
      %v2579 = vpop.f32.mrf.mxu0
      %v2580 = vadd.f32 0.0, %v2579
      %2581 = vmatmul.f32.gmra.mxu0 %v2309
      %v2582 = vpop.f32.mrf.mxu0
      %v2583 = vadd.f32 0.0, %v2582
      %2584 = vmatmul.f32.gmra.mxu0 %v2312
      %v2585 = vpop.f32.mrf.mxu0
      %v2586 = vadd.f32 0.0, %v2585
      %2587 = vmatmul.f32.gmra.mxu0 %v2315
      %v2588 = vpop.f32.mrf.mxu0
      %v2589 = vadd.f32 0.0, %v2588
      %2590 = vmatmul.f32.gmra.mxu0 %v2318
      %v2591 = vpop.f32.mrf.mxu0
      %v2592 = vadd.f32 0.0, %v2591
      %2593 = vmatmul.f32.gmra.mxu0 %v2321
      %v2594 = vpop.f32.mrf.mxu0
      %v2595 = vadd.f32 0.0, %v2594
      %2596 = vmatmul.f32.gmra.mxu0 %v2324
      %v2597 = vpop.f32.mrf.mxu0
      %v2598 = vadd.f32 0.0, %v2597
      %2599 = vmatmul.f32.gmra.mxu0 %v2327
      %v2600 = vpop.f32.mrf.mxu0
      %v2601 = vadd.f32 0.0, %v2600
      %2602 = vmatmul.f32.gmra.mxu0 %v2330
      %v2603 = vpop.f32.mrf.mxu0
      %v2604 = vadd.f32 0.0, %v2603
      %2605 = vmatmul.f32.gmra.mxu0 %v2333
      %v2606 = vpop.f32.mrf.mxu0
      %v2607 = vadd.f32 0.0, %v2606
      %2608 = vmatmul.f32.gmra.mxu0 %v2336
      %v2609 = vpop.f32.mrf.mxu0
      %v2610 = vadd.f32 0.0, %v2609
      %2611 = vmatmul.f32.gmra.mxu0 %v2339
      %v2612 = vpop.f32.mrf.mxu0
      %v2613 = vadd.f32 0.0, %v2612
      %2614 = vmatmul.f32.gmra.mxu0 %v2342
      %v2615 = vpop.f32.mrf.mxu0
      %v2616 = vadd.f32 0.0, %v2615
      %2617 = vmatmul.f32.gmra.mxu0 %v2345
      %v2618 = vpop.f32.mrf.mxu0
      %v2619 = vadd.f32 0.0, %v2618
      %2620 = vmatmul.f32.gmra.mxu0 %v2348
      %v2621 = vpop.f32.mrf.mxu0
      %v2622 = vadd.f32 0.0, %v2621
      %2623 = vmatmul.f32.gmra.mxu0 %v2351
      %v2624 = vpop.f32.mrf.mxu0
      %v2625 = vadd.f32 0.0, %v2624
      %2626 = vmatmul.f32.gmra.mxu0 %v2354
      %v2627 = vpop.f32.mrf.mxu0
      %v2628 = vadd.f32 0.0, %v2627
      %2629 = vmatmul.f32.gmra.mxu0 %v2357
      %v2630 = vpop.f32.mrf.mxu0
      %v2631 = vadd.f32 0.0, %v2630
      %2632 = vmatmul.f32.gmra.mxu0 %v2360
      %v2633 = vpop.f32.mrf.mxu0
      %v2634 = vadd.f32 0.0, %v2633
      %2635 = vmatmul.f32.gmra.mxu0 %v2363
      %v2636 = vpop.f32.mrf.mxu0
      %v2637 = vadd.f32 0.0, %v2636
      %2638 = vmatmul.f32.gmra.mxu0 %v2366
      %v2639 = vpop.f32.mrf.mxu0
      %v2640 = vadd.f32 0.0, %v2639
      %2641 = vmatmul.f32.gmra.mxu0 %v2369
      %v2642 = vpop.f32.mrf.mxu0
      %v2643 = vadd.f32 0.0, %v2642
      %2644 = vmatmul.f32.gmra.mxu0 %v2372
      %v2645 = vpop.f32.mrf.mxu0
      %v2646 = vadd.f32 0.0, %v2645
      %2647 = vmatmul.f32.gmra.mxu0 %v2375
      %v2648 = vpop.f32.mrf.mxu0
      %v2649 = vadd.f32 0.0, %v2648
      %2650 = vmatmul.f32.gmra.mxu0 %v2378
      %v2651 = vpop.f32.mrf.mxu0
      %v2652 = vadd.f32 0.0, %v2651
      %2653 = vdwg.mxu0
      %v2654 = vadd.f32 %v2111, %v2398
      %v2655 = vadd.f32 %v2112, %v2535
      %v2656 = vadd.f32 %v2113, %v2401
      %v2657 = vadd.f32 %v2114, %v2538
      %v2658 = vadd.f32 %v2115, %v2404
      %v2659 = vadd.f32 %v2116, %v2541
      %v2660 = vadd.f32 %v2117, %v2407
      %v2661 = vadd.f32 %v2118, %v2544
      %v2662 = vadd.f32 %v2119, %v2410
      %v2663 = vadd.f32 %v2120, %v2547
      %v2664 = vadd.f32 %v2121, %v2413
      %v2665 = vadd.f32 %v2122, %v2550
      %v2666 = vadd.f32 %v2123, %v2416
      %v2667 = vadd.f32 %v2124, %v2553
      %v2668 = vadd.f32 %v2125, %v2419
      %v2669 = vadd.f32 %v2126, %v2556
      %v2670 = vadd.f32 %v2127, %v2422
      %v2671 = vadd.f32 %v2128, %v2559
      %v2672 = vadd.f32 %v2129, %v2425
      %v2673 = vadd.f32 %v2130, %v2562
      %v2674 = vadd.f32 %v2131, %v2428
      %v2675 = vadd.f32 %v2132, %v2565
      %v2676 = vadd.f32 %v2133, %v2431
      %v2677 = vadd.f32 %v2134, %v2568
      %v2678 = vadd.f32 %v2135, %v2434
      %v2679 = vadd.f32 %v2136, %v2571
      %v2680 = vadd.f32 %v2137, %v2437
      %v2681 = vadd.f32 %v2138, %v2574
      %v2682 = vadd.f32 %v2139, %v2440
      %v2683 = vadd.f32 %v2140, %v2577
      %v2684 = vadd.f32 %v2141, %v2443
      %v2685 = vadd.f32 %v2142, %v2580
      %v2686 = vadd.f32 %v2143, %v2446
      %v2687 = vadd.f32 %v2144, %v2583
      %v2688 = vadd.f32 %v2145, %v2449
      %v2689 = vadd.f32 %v2146, %v2586
      %v2690 = vadd.f32 %v2147, %v2452
      %v2691 = vadd.f32 %v2148, %v2589
      %v2692 = vadd.f32 %v2149, %v2455
      %v2693 = vadd.f32 %v2150, %v2592
      %v2694 = vadd.f32 %v2151, %v2458
      %v2695 = vadd.f32 %v2152, %v2595
      %v2696 = vadd.f32 %v2153, %v2461
      %v2697 = vadd.f32 %v2154, %v2598
      %v2698 = vadd.f32 %v2155, %v2464
      %v2699 = vadd.f32 %v2156, %v2601
      %v2700 = vadd.f32 %v2157, %v2467
      %v2701 = vadd.f32 %v2158, %v2604
      %v2702 = vadd.f32 %v2159, %v2470
      %v2703 = vadd.f32 %v2160, %v2607
      %v2704 = vadd.f32 %v2161, %v2473
      %v2705 = vadd.f32 %v2162, %v2610
      %v2706 = vadd.f32 %v2163, %v2476
      %v2707 = vadd.f32 %v2164, %v2613
      %v2708 = vadd.f32 %v2165, %v2479
      %v2709 = vadd.f32 %v2166, %v2616
      %v2710 = vadd.f32 %v2167, %v2482
      %v2711 = vadd.f32 %v2168, %v2619
      %v2712 = vadd.f32 %v2169, %v2485
      %v2713 = vadd.f32 %v2170, %v2622
      %v2714 = vadd.f32 %v2171, %v2488
      %v2715 = vadd.f32 %v2172, %v2625
      %v2716 = vadd.f32 %v2173, %v2491
      %v2717 = vadd.f32 %v2174, %v2628
      %v2718 = vadd.f32 %v2175, %v2494
      %v2719 = vadd.f32 %v2176, %v2631
      %v2720 = vadd.f32 %v2177, %v2497
      %v2721 = vadd.f32 %v2178, %v2634
      %v2722 = vadd.f32 %v2179, %v2500
      %v2723 = vadd.f32 %v2180, %v2637
      %v2724 = vadd.f32 %v2181, %v2503
      %v2725 = vadd.f32 %v2182, %v2640
      %v2726 = vadd.f32 %v2183, %v2506
      %v2727 = vadd.f32 %v2184, %v2643
      %v2728 = vadd.f32 %v2185, %v2509
      %v2729 = vadd.f32 %v2186, %v2646
      %v2730 = vadd.f32 %v2187, %v2512
      %v2731 = vadd.f32 %v2188, %v2649
      %v2732 = vadd.f32 %v2189, %v2515
      %v2733 = vadd.f32 %v2190, %v2652
      %v2734 = vld [vmem:[%s170 + $0xc] sm:$0xff]
      %v2735 = vld [vmem:[%s170 + $0x14] sm:$0xff]
      %v2736 = vld [vmem:[%s170 + $0x1c] sm:$0xff]
      %v2737 = vld [vmem:[%s170 + $0x24] sm:$0xff]
      %v2738 = vld [vmem:[%s170 + $0x2c] sm:$0xff]
      %v2739 = vld [vmem:[%s170 + $0x34] sm:$0xff]
      %v2740 = vld [vmem:[%s170 + $0x3c] sm:$0xff]
      %v2741 = vld [vmem:[%s170 + $0x44] sm:$0xff]
      %v2742 = vld [vmem:[%s170 + $0x4c] sm:$0xff]
      %v2743 = vld [vmem:[%s170 + $0x54] sm:$0xff]
      %v2744 = vld [vmem:[%s170 + $0x74] sm:$0xff]
      %v2745 = vld [vmem:[%s170 + $0x7c] sm:$0xff]
      %v2746 = vld [vmem:[%s170 + $0x84] sm:$0xff]
      %v2747 = vld [vmem:[%s170 + $0x8c] sm:$0xff]
      %v2748 = vld [vmem:[%s170 + $0x94] sm:$0xff]
      %v2749 = vld [vmem:[%s170 + $0x9c] sm:$0xff]
      %v2750 = vld [vmem:[%s170 + $0xa4] sm:$0xff]
      %v2751 = vld [vmem:[%s170 + $0xac] sm:$0xff]
      %v2752 = vld [vmem:[%s170 + $0xb4] sm:$0xff]
      %v2753 = vld [vmem:[%s170 + $0xbc] sm:$0xff]
      %v2754 = vld [vmem:[%s170 + $0xdc] sm:$0xff]
      %v2755 = vld [vmem:[%s170 + $0xe4] sm:$0xff]
      %v2756 = vld [vmem:[%s170 + $0xec] sm:$0xff]
      %v2757 = vld [vmem:[%s170 + $0xf4] sm:$0xff]
      %v2758 = vld [vmem:[%s170 + $0xfc] sm:$0xff]
      %v2759 = vld [vmem:[%s170 + $0x104] sm:$0xff]
      %v2760 = vld [vmem:[%s170 + $0x10c] sm:$0xff]
      %v2761 = vld [vmem:[%s170 + $0x114] sm:$0xff]
      %v2762 = vld [vmem:[%s170 + $0x11c] sm:$0xff]
      %v2763 = vld [vmem:[%s170 + $0x124] sm:$0xff]
      %v2764 = vld [vmem:[%s170 + $0x144] sm:$0xff]
      %v2765 = vld [vmem:[%s170 + $0x14c] sm:$0xff]
      %v2766 = vld [vmem:[%s170 + $0x154] sm:$0xff]
      %v2767 = vld [vmem:[%s170 + $0x15c] sm:$0xff]
      %v2768 = vld [vmem:[%s170 + $0x164] sm:$0xff]
      %v2769 = vld [vmem:[%s170 + $0x16c] sm:$0xff]
      %v2770 = vld [vmem:[%s170 + $0x174] sm:$0xff]
      %v2771 = vld [vmem:[%s170 + $0x17c] sm:$0xff]
      %v2772 = vld [vmem:[%s170 + $0x184] sm:$0xff]
      %v2773 = vld [vmem:[%s170 + $0x18c] sm:$0xff]
      %s2774 = scalar_lea.vmem %s1, 1120
      %v2775 = vld [vmem:[%s2774] sm:$0xff]
      %v2776 = vld [vmem:[%s2774 + $0x8] sm:$0xff]
      %v2777 = vld [vmem:[%s2774 + $0x10] sm:$0xff]
      %v2778 = vld [vmem:[%s2774 + $0x18] sm:$0xff]
      %v2779 = vld [vmem:[%s2774 + $0x20] sm:$0xff]
      %v2780 = vld [vmem:[%s2774 + $0x28] sm:$0xff]
      %v2781 = vld [vmem:[%s2774 + $0x30] sm:$0xff]
      %v2782 = vld [vmem:[%s2774 + $0x38] sm:$0xff]
      %v2783 = vld [vmem:[%s2774 + $0x40] sm:$0xff]
      %v2784 = vld [vmem:[%s2774 + $0x48] sm:$0xff]
      %v2785 = vld [vmem:[%s2774 + $0x50] sm:$0xff]
      %v2786 = vld [vmem:[%s2774 + $0x58] sm:$0xff]
      %v2787 = vld [vmem:[%s2774 + $0x60] sm:$0xff]
      %v2788 = vld [vmem:[%s2774 + $0x68] sm:$0xff]
      %v2789 = vld [vmem:[%s2774 + $0x70] sm:$0xff]
      %v2790 = vld [vmem:[%s2774 + $0x78] sm:$0xff]
      %v2791 = vld [vmem:[%s2774 + $0x80] sm:$0xff]
      %v2792 = vld [vmem:[%s2774 + $0x88] sm:$0xff]
      %v2793 = vld [vmem:[%s2774 + $0x90] sm:$0xff]
      %v2794 = vld [vmem:[%s2774 + $0x98] sm:$0xff]
      %v2795 = vld [vmem:[%s2774 + $0xa0] sm:$0xff]
      %v2796 = vld [vmem:[%s2774 + $0xa8] sm:$0xff]
      %v2797 = vld [vmem:[%s2774 + $0xb0] sm:$0xff]
      %v2798 = vld [vmem:[%s2774 + $0xb8] sm:$0xff]
      %v2799 = vld [vmem:[%s2774 + $0xc0] sm:$0xff]
      %v2800 = vld [vmem:[%s2774 + $0xc8] sm:$0xff]
      %v2801 = vld [vmem:[%s2774 + $0xd0] sm:$0xff]
      %v2802 = vld [vmem:[%s2774 + $0xd8] sm:$0xff]
      %v2804 = vsel %vm316, %v2734, 0
      %v2807 = vsel %vm316, %v2735, 0
      %v2810 = vsel %vm316, %v2736, 0
      %v2813 = vsel %vm316, %v2737, 0
      %v2816 = vsel %vm316, %v2738, 0
      %v2819 = vsel %vm316, %v2739, 0
      %v2822 = vsel %vm316, %v2740, 0
      %v2825 = vsel %vm316, %v2741, 0
      %v2828 = vsel %vm316, %v2742, 0
      %v2831 = vsel %vm316, %v2743, 0
      %v2834 = vsel %vm316, %v2744, 0
      %v2837 = vsel %vm316, %v2745, 0
      %v2840 = vsel %vm316, %v2746, 0
      %v2843 = vsel %vm316, %v2747, 0
      %v2846 = vsel %vm316, %v2748, 0
      %v2849 = vsel %vm316, %v2749, 0
      %v2852 = vsel %vm316, %v2750, 0
      %v2855 = vsel %vm316, %v2751, 0
      %v2858 = vsel %vm316, %v2752, 0
      %v2861 = vsel %vm316, %v2753, 0
      %v2864 = vsel %vm316, %v2754, 0
      %v2867 = vsel %vm316, %v2755, 0
      %v2870 = vsel %vm316, %v2756, 0
      %v2873 = vsel %vm316, %v2757, 0
      %v2876 = vsel %vm316, %v2758, 0
      %v2879 = vsel %vm316, %v2759, 0
      %v2882 = vsel %vm316, %v2760, 0
      %v2885 = vsel %vm316, %v2761, 0
      %v2888 = vsel %vm316, %v2762, 0
      %v2891 = vsel %vm316, %v2763, 0
      %v2894 = vsel %vm316, %v2764, 0
      %v2897 = vsel %vm316, %v2765, 0
      %v2900 = vsel %vm316, %v2766, 0
      %v2903 = vsel %vm316, %v2767, 0
      %v2906 = vsel %vm316, %v2768, 0
      %v2909 = vsel %vm316, %v2769, 0
      %v2912 = vsel %vm316, %v2770, 0
      %v2915 = vsel %vm316, %v2771, 0
      %v2918 = vsel %vm316, %v2772, 0
      %v2921 = vsel %vm316, %v2773, 0
      %2923 = vmatpush.msra.mxu0 0.0
      %2924 = vmatpush.msra.mxu0 0.0
      %2925 = vmatpush.msra.mxu0 %v2801
      %2926 = vmatpush.msra.mxu0 %v2799
      %2927 = vmatpush.msra.mxu0 %v2797
      %2928 = vmatpush.msra.mxu0 %v2795
      %2929 = vmatpush.msra.mxu0 %v2793
      %2930 = vmatpush.msra.mxu0 %v2791
      %2931 = vmatpush.msra.mxu0 %v2789
      %2932 = vmatpush.msra.mxu0 %v2787
      %2933 = vmatpush.msra.mxu0 %v2785
      %2934 = vmatpush.msra.mxu0 %v2783
      %2935 = vmatpush.msra.mxu0 %v2781
      %2936 = vmatpush.msra.mxu0 %v2779
      %2937 = vmatpush.msra.mxu0 %v2777
      %2938 = vmatpush.msra.mxu0 %v2775
      %2939 = vmatmul.f32.gmra.mxu0 %v2804
      %v2940 = vpop.f32.mrf.mxu0
      %v2941 = vadd.f32 0.0, %v2940
      %2942 = vmatmul.f32.gmra.mxu0 %v2807
      %v2943 = vpop.f32.mrf.mxu0
      %v2944 = vadd.f32 0.0, %v2943
      %2945 = vmatmul.f32.gmra.mxu0 %v2810
      %v2946 = vpop.f32.mrf.mxu0
      %v2947 = vadd.f32 0.0, %v2946
      %2948 = vmatmul.f32.gmra.mxu0 %v2813
      %v2949 = vpop.f32.mrf.mxu0
      %v2950 = vadd.f32 0.0, %v2949
      %2951 = vmatmul.f32.gmra.mxu0 %v2816
      %v2952 = vpop.f32.mrf.mxu0
      %v2953 = vadd.f32 0.0, %v2952
      %2954 = vmatmul.f32.gmra.mxu0 %v2819
      %v2955 = vpop.f32.mrf.mxu0
      %v2956 = vadd.f32 0.0, %v2955
      %2957 = vmatmul.f32.gmra.mxu0 %v2822
      %v2958 = vpop.f32.mrf.mxu0
      %v2959 = vadd.f32 0.0, %v2958
      %2960 = vmatmul.f32.gmra.mxu0 %v2825
      %v2961 = vpop.f32.mrf.mxu0
      %v2962 = vadd.f32 0.0, %v2961
      %2963 = vmatmul.f32.gmra.mxu0 %v2828
      %v2964 = vpop.f32.mrf.mxu0
      %v2965 = vadd.f32 0.0, %v2964
      %2966 = vmatmul.f32.gmra.mxu0 %v2831
      %v2967 = vpop.f32.mrf.mxu0
      %v2968 = vadd.f32 0.0, %v2967
      %2969 = vmatmul.f32.gmra.mxu0 %v2834
      %v2970 = vpop.f32.mrf.mxu0
      %v2971 = vadd.f32 0.0, %v2970
      %2972 = vmatmul.f32.gmra.mxu0 %v2837
      %v2973 = vpop.f32.mrf.mxu0
      %v2974 = vadd.f32 0.0, %v2973
      %2975 = vmatmul.f32.gmra.mxu0 %v2840
      %v2976 = vpop.f32.mrf.mxu0
      %v2977 = vadd.f32 0.0, %v2976
      %2978 = vmatmul.f32.gmra.mxu0 %v2843
      %v2979 = vpop.f32.mrf.mxu0
      %v2980 = vadd.f32 0.0, %v2979
      %2981 = vmatmul.f32.gmra.mxu0 %v2846
      %v2982 = vpop.f32.mrf.mxu0
      %v2983 = vadd.f32 0.0, %v2982
      %2984 = vmatmul.f32.gmra.mxu0 %v2849
      %v2985 = vpop.f32.mrf.mxu0
      %v2986 = vadd.f32 0.0, %v2985
      %2987 = vmatmul.f32.gmra.mxu0 %v2852
      %v2988 = vpop.f32.mrf.mxu0
      %v2989 = vadd.f32 0.0, %v2988
      %2990 = vmatmul.f32.gmra.mxu0 %v2855
      %v2991 = vpop.f32.mrf.mxu0
      %v2992 = vadd.f32 0.0, %v2991
      %2993 = vmatmul.f32.gmra.mxu0 %v2858
      %v2994 = vpop.f32.mrf.mxu0
      %v2995 = vadd.f32 0.0, %v2994
      %2996 = vmatmul.f32.gmra.mxu0 %v2861
      %v2997 = vpop.f32.mrf.mxu0
      %v2998 = vadd.f32 0.0, %v2997
      %2999 = vmatmul.f32.gmra.mxu0 %v2864
      %v3000 = vpop.f32.mrf.mxu0
      %v3001 = vadd.f32 0.0, %v3000
      %3002 = vmatmul.f32.gmra.mxu0 %v2867
      %v3003 = vpop.f32.mrf.mxu0
      %v3004 = vadd.f32 0.0, %v3003
      %3005 = vmatmul.f32.gmra.mxu0 %v2870
      %v3006 = vpop.f32.mrf.mxu0
      %v3007 = vadd.f32 0.0, %v3006
      %3008 = vmatmul.f32.gmra.mxu0 %v2873
      %v3009 = vpop.f32.mrf.mxu0
      %v3010 = vadd.f32 0.0, %v3009
      %3011 = vmatmul.f32.gmra.mxu0 %v2876
      %v3012 = vpop.f32.mrf.mxu0
      %v3013 = vadd.f32 0.0, %v3012
      %3014 = vmatmul.f32.gmra.mxu0 %v2879
      %v3015 = vpop.f32.mrf.mxu0
      %v3016 = vadd.f32 0.0, %v3015
      %3017 = vmatmul.f32.gmra.mxu0 %v2882
      %v3018 = vpop.f32.mrf.mxu0
      %v3019 = vadd.f32 0.0, %v3018
      %3020 = vmatmul.f32.gmra.mxu0 %v2885
      %v3021 = vpop.f32.mrf.mxu0
      %v3022 = vadd.f32 0.0, %v3021
      %3023 = vmatmul.f32.gmra.mxu0 %v2888
      %v3024 = vpop.f32.mrf.mxu0
      %v3025 = vadd.f32 0.0, %v3024
      %3026 = vmatmul.f32.gmra.mxu0 %v2891
      %v3027 = vpop.f32.mrf.mxu0
      %v3028 = vadd.f32 0.0, %v3027
      %3029 = vmatmul.f32.gmra.mxu0 %v2894
      %v3030 = vpop.f32.mrf.mxu0
      %v3031 = vadd.f32 0.0, %v3030
      %3032 = vmatmul.f32.gmra.mxu0 %v2897
      %v3033 = vpop.f32.mrf.mxu0
      %v3034 = vadd.f32 0.0, %v3033
      %3035 = vmatmul.f32.gmra.mxu0 %v2900
      %v3036 = vpop.f32.mrf.mxu0
      %v3037 = vadd.f32 0.0, %v3036
      %3038 = vmatmul.f32.gmra.mxu0 %v2903
      %v3039 = vpop.f32.mrf.mxu0
      %v3040 = vadd.f32 0.0, %v3039
      %3041 = vmatmul.f32.gmra.mxu0 %v2906
      %v3042 = vpop.f32.mrf.mxu0
      %v3043 = vadd.f32 0.0, %v3042
      %3044 = vmatmul.f32.gmra.mxu0 %v2909
      %v3045 = vpop.f32.mrf.mxu0
      %v3046 = vadd.f32 0.0, %v3045
      %3047 = vmatmul.f32.gmra.mxu0 %v2912
      %v3048 = vpop.f32.mrf.mxu0
      %v3049 = vadd.f32 0.0, %v3048
      %3050 = vmatmul.f32.gmra.mxu0 %v2915
      %v3051 = vpop.f32.mrf.mxu0
      %v3052 = vadd.f32 0.0, %v3051
      %3053 = vmatmul.f32.gmra.mxu0 %v2918
      %v3054 = vpop.f32.mrf.mxu0
      %v3055 = vadd.f32 0.0, %v3054
      %3056 = vmatmul.f32.gmra.mxu0 %v2921
      %v3057 = vpop.f32.mrf.mxu0
      %v3058 = vadd.f32 0.0, %v3057
      %3059 = vdwg.mxu0
      %3060 = vmatpush.msra.mxu0 0.0
      %3061 = vmatpush.msra.mxu0 0.0
      %3062 = vmatpush.msra.mxu0 %v2802
      %3063 = vmatpush.msra.mxu0 %v2800
      %3064 = vmatpush.msra.mxu0 %v2798
      %3065 = vmatpush.msra.mxu0 %v2796
      %3066 = vmatpush.msra.mxu0 %v2794
      %3067 = vmatpush.msra.mxu0 %v2792
      %3068 = vmatpush.msra.mxu0 %v2790
      %3069 = vmatpush.msra.mxu0 %v2788
      %3070 = vmatpush.msra.mxu0 %v2786
      %3071 = vmatpush.msra.mxu0 %v2784
      %3072 = vmatpush.msra.mxu0 %v2782
      %3073 = vmatpush.msra.mxu0 %v2780
      %3074 = vmatpush.msra.mxu0 %v2778
      %3075 = vmatpush.msra.mxu0 %v2776
      %3076 = vmatmul.f32.gmra.mxu0 %v2804
      %v3077 = vpop.f32.mrf.mxu0
      %v3078 = vadd.f32 0.0, %v3077
      %3079 = vmatmul.f32.gmra.mxu0 %v2807
      %v3080 = vpop.f32.mrf.mxu0
      %v3081 = vadd.f32 0.0, %v3080
      %3082 = vmatmul.f32.gmra.mxu0 %v2810
      %v3083 = vpop.f32.mrf.mxu0
      %v3084 = vadd.f32 0.0, %v3083
      %3085 = vmatmul.f32.gmra.mxu0 %v2813
      %v3086 = vpop.f32.mrf.mxu0
      %v3087 = vadd.f32 0.0, %v3086
      %3088 = vmatmul.f32.gmra.mxu0 %v2816
      %v3089 = vpop.f32.mrf.mxu0
      %v3090 = vadd.f32 0.0, %v3089
      %3091 = vmatmul.f32.gmra.mxu0 %v2819
      %v3092 = vpop.f32.mrf.mxu0
      %v3093 = vadd.f32 0.0, %v3092
      %3094 = vmatmul.f32.gmra.mxu0 %v2822
      %v3095 = vpop.f32.mrf.mxu0
      %v3096 = vadd.f32 0.0, %v3095
      %3097 = vmatmul.f32.gmra.mxu0 %v2825
      %v3098 = vpop.f32.mrf.mxu0
      %v3099 = vadd.f32 0.0, %v3098
      %3100 = vmatmul.f32.gmra.mxu0 %v2828
      %v3101 = vpop.f32.mrf.mxu0
      %v3102 = vadd.f32 0.0, %v3101
      %3103 = vmatmul.f32.gmra.mxu0 %v2831
      %v3104 = vpop.f32.mrf.mxu0
      %v3105 = vadd.f32 0.0, %v3104
      %3106 = vmatmul.f32.gmra.mxu0 %v2834
      %v3107 = vpop.f32.mrf.mxu0
      %v3108 = vadd.f32 0.0, %v3107
      %3109 = vmatmul.f32.gmra.mxu0 %v2837
      %v3110 = vpop.f32.mrf.mxu0
      %v3111 = vadd.f32 0.0, %v3110
      %3112 = vmatmul.f32.gmra.mxu0 %v2840
      %v3113 = vpop.f32.mrf.mxu0
      %v3114 = vadd.f32 0.0, %v3113
      %3115 = vmatmul.f32.gmra.mxu0 %v2843
      %v3116 = vpop.f32.mrf.mxu0
      %v3117 = vadd.f32 0.0, %v3116
      %3118 = vmatmul.f32.gmra.mxu0 %v2846
      %v3119 = vpop.f32.mrf.mxu0
      %v3120 = vadd.f32 0.0, %v3119
      %3121 = vmatmul.f32.gmra.mxu0 %v2849
      %v3122 = vpop.f32.mrf.mxu0
      %v3123 = vadd.f32 0.0, %v3122
      %3124 = vmatmul.f32.gmra.mxu0 %v2852
      %v3125 = vpop.f32.mrf.mxu0
      %v3126 = vadd.f32 0.0, %v3125
      %3127 = vmatmul.f32.gmra.mxu0 %v2855
      %v3128 = vpop.f32.mrf.mxu0
      %v3129 = vadd.f32 0.0, %v3128
      %3130 = vmatmul.f32.gmra.mxu0 %v2858
      %v3131 = vpop.f32.mrf.mxu0
      %v3132 = vadd.f32 0.0, %v3131
      %3133 = vmatmul.f32.gmra.mxu0 %v2861
      %v3134 = vpop.f32.mrf.mxu0
      %v3135 = vadd.f32 0.0, %v3134
      %3136 = vmatmul.f32.gmra.mxu0 %v2864
      %v3137 = vpop.f32.mrf.mxu0
      %v3138 = vadd.f32 0.0, %v3137
      %3139 = vmatmul.f32.gmra.mxu0 %v2867
      %v3140 = vpop.f32.mrf.mxu0
      %v3141 = vadd.f32 0.0, %v3140
      %3142 = vmatmul.f32.gmra.mxu0 %v2870
      %v3143 = vpop.f32.mrf.mxu0
      %v3144 = vadd.f32 0.0, %v3143
      %3145 = vmatmul.f32.gmra.mxu0 %v2873
      %v3146 = vpop.f32.mrf.mxu0
      %v3147 = vadd.f32 0.0, %v3146
      %3148 = vmatmul.f32.gmra.mxu0 %v2876
      %v3149 = vpop.f32.mrf.mxu0
      %v3150 = vadd.f32 0.0, %v3149
      %3151 = vmatmul.f32.gmra.mxu0 %v2879
      %v3152 = vpop.f32.mrf.mxu0
      %v3153 = vadd.f32 0.0, %v3152
      %3154 = vmatmul.f32.gmra.mxu0 %v2882
      %v3155 = vpop.f32.mrf.mxu0
      %v3156 = vadd.f32 0.0, %v3155
      %3157 = vmatmul.f32.gmra.mxu0 %v2885
      %v3158 = vpop.f32.mrf.mxu0
      %v3159 = vadd.f32 0.0, %v3158
      %3160 = vmatmul.f32.gmra.mxu0 %v2888
      %v3161 = vpop.f32.mrf.mxu0
      %v3162 = vadd.f32 0.0, %v3161
      %3163 = vmatmul.f32.gmra.mxu0 %v2891
      %v3164 = vpop.f32.mrf.mxu0
      %v3165 = vadd.f32 0.0, %v3164
      %3166 = vmatmul.f32.gmra.mxu0 %v2894
      %v3167 = vpop.f32.mrf.mxu0
      %v3168 = vadd.f32 0.0, %v3167
      %3169 = vmatmul.f32.gmra.mxu0 %v2897
      %v3170 = vpop.f32.mrf.mxu0
      %v3171 = vadd.f32 0.0, %v3170
      %3172 = vmatmul.f32.gmra.mxu0 %v2900
      %v3173 = vpop.f32.mrf.mxu0
      %v3174 = vadd.f32 0.0, %v3173
      %3175 = vmatmul.f32.gmra.mxu0 %v2903
      %v3176 = vpop.f32.mrf.mxu0
      %v3177 = vadd.f32 0.0, %v3176
      %3178 = vmatmul.f32.gmra.mxu0 %v2906
      %v3179 = vpop.f32.mrf.mxu0
      %v3180 = vadd.f32 0.0, %v3179
      %3181 = vmatmul.f32.gmra.mxu0 %v2909
      %v3182 = vpop.f32.mrf.mxu0
      %v3183 = vadd.f32 0.0, %v3182
      %3184 = vmatmul.f32.gmra.mxu0 %v2912
      %v3185 = vpop.f32.mrf.mxu0
      %v3186 = vadd.f32 0.0, %v3185
      %3187 = vmatmul.f32.gmra.mxu0 %v2915
      %v3188 = vpop.f32.mrf.mxu0
      %v3189 = vadd.f32 0.0, %v3188
      %3190 = vmatmul.f32.gmra.mxu0 %v2918
      %v3191 = vpop.f32.mrf.mxu0
      %v3192 = vadd.f32 0.0, %v3191
      %3193 = vmatmul.f32.gmra.mxu0 %v2921
      %v3194 = vpop.f32.mrf.mxu0
      %v3195 = vadd.f32 0.0, %v3194
      %3196 = vdwg.mxu0
      %v3197 = vadd.f32 %v2654, %v2941
      %v3198 = vadd.f32 %v2655, %v3078
      %v3199 = vadd.f32 %v2656, %v2944
      %v3200 = vadd.f32 %v2657, %v3081
      %v3201 = vadd.f32 %v2658, %v2947
      %v3202 = vadd.f32 %v2659, %v3084
      %v3203 = vadd.f32 %v2660, %v2950
      %v3204 = vadd.f32 %v2661, %v3087
      %v3205 = vadd.f32 %v2662, %v2953
      %v3206 = vadd.f32 %v2663, %v3090
      %v3207 = vadd.f32 %v2664, %v2956
      %v3208 = vadd.f32 %v2665, %v3093
      %v3209 = vadd.f32 %v2666, %v2959
      %v3210 = vadd.f32 %v2667, %v3096
      %v3211 = vadd.f32 %v2668, %v2962
      %v3212 = vadd.f32 %v2669, %v3099
      %v3213 = vadd.f32 %v2670, %v2965
      %v3214 = vadd.f32 %v2671, %v3102
      %v3215 = vadd.f32 %v2672, %v2968
      %v3216 = vadd.f32 %v2673, %v3105
      %v3217 = vadd.f32 %v2674, %v2971
      %v3218 = vadd.f32 %v2675, %v3108
      %v3219 = vadd.f32 %v2676, %v2974
      %v3220 = vadd.f32 %v2677, %v3111
      %v3221 = vadd.f32 %v2678, %v2977
      %v3222 = vadd.f32 %v2679, %v3114
      %v3223 = vadd.f32 %v2680, %v2980
      %v3224 = vadd.f32 %v2681, %v3117
      %v3225 = vadd.f32 %v2682, %v2983
      %v3226 = vadd.f32 %v2683, %v3120
      %v3227 = vadd.f32 %v2684, %v2986
      %v3228 = vadd.f32 %v2685, %v3123
      %v3229 = vadd.f32 %v2686, %v2989
      %v3230 = vadd.f32 %v2687, %v3126
      %v3231 = vadd.f32 %v2688, %v2992
      %v3232 = vadd.f32 %v2689, %v3129
      %v3233 = vadd.f32 %v2690, %v2995
      %v3234 = vadd.f32 %v2691, %v3132
      %v3235 = vadd.f32 %v2692, %v2998
      %v3236 = vadd.f32 %v2693, %v3135
      %v3237 = vadd.f32 %v2694, %v3001
      %v3238 = vadd.f32 %v2695, %v3138
      %v3239 = vadd.f32 %v2696, %v3004
      %v3240 = vadd.f32 %v2697, %v3141
      %v3241 = vadd.f32 %v2698, %v3007
      %v3242 = vadd.f32 %v2699, %v3144
      %v3243 = vadd.f32 %v2700, %v3010
      %v3244 = vadd.f32 %v2701, %v3147
      %v3245 = vadd.f32 %v2702, %v3013
      %v3246 = vadd.f32 %v2703, %v3150
      %v3247 = vadd.f32 %v2704, %v3016
      %v3248 = vadd.f32 %v2705, %v3153
      %v3249 = vadd.f32 %v2706, %v3019
      %v3250 = vadd.f32 %v2707, %v3156
      %v3251 = vadd.f32 %v2708, %v3022
      %v3252 = vadd.f32 %v2709, %v3159
      %v3253 = vadd.f32 %v2710, %v3025
      %v3254 = vadd.f32 %v2711, %v3162
      %v3255 = vadd.f32 %v2712, %v3028
      %v3256 = vadd.f32 %v2713, %v3165
      %v3257 = vadd.f32 %v2714, %v3031
      %v3258 = vadd.f32 %v2715, %v3168
      %v3259 = vadd.f32 %v2716, %v3034
      %v3260 = vadd.f32 %v2717, %v3171
      %v3261 = vadd.f32 %v2718, %v3037
      %v3262 = vadd.f32 %v2719, %v3174
      %v3263 = vadd.f32 %v2720, %v3040
      %v3264 = vadd.f32 %v2721, %v3177
      %v3265 = vadd.f32 %v2722, %v3043
      %v3266 = vadd.f32 %v2723, %v3180
      %v3267 = vadd.f32 %v2724, %v3046
      %v3268 = vadd.f32 %v2725, %v3183
      %v3269 = vadd.f32 %v2726, %v3049
      %v3270 = vadd.f32 %v2727, %v3186
      %v3271 = vadd.f32 %v2728, %v3052
      %v3272 = vadd.f32 %v2729, %v3189
      %v3273 = vadd.f32 %v2730, %v3055
      %v3274 = vadd.f32 %v2731, %v3192
      %v3275 = vadd.f32 %v2732, %v3058
      %v3276 = vadd.f32 %v2733, %v3195
      %v3277 = vld [vmem:[%s170 + $0x14] sm:$0xff]
      %v3278 = vld [vmem:[%s170 + $0x1c] sm:$0xff]
      %v3279 = vld [vmem:[%s170 + $0x24] sm:$0xff]
      %v3280 = vld [vmem:[%s170 + $0x2c] sm:$0xff]
      %v3281 = vld [vmem:[%s170 + $0x34] sm:$0xff]
      %v3282 = vld [vmem:[%s170 + $0x3c] sm:$0xff]
      %v3283 = vld [vmem:[%s170 + $0x44] sm:$0xff]
      %v3284 = vld [vmem:[%s170 + $0x4c] sm:$0xff]
      %v3285 = vld [vmem:[%s170 + $0x54] sm:$0xff]
      %v3286 = vld [vmem:[%s170 + $0x5c] sm:$0xff]
      %v3287 = vld [vmem:[%s170 + $0x7c] sm:$0xff]
      %v3288 = vld [vmem:[%s170 + $0x84] sm:$0xff]
      %v3289 = vld [vmem:[%s170 + $0x8c] sm:$0xff]
      %v3290 = vld [vmem:[%s170 + $0x94] sm:$0xff]
      %v3291 = vld [vmem:[%s170 + $0x9c] sm:$0xff]
      %v3292 = vld [vmem:[%s170 + $0xa4] sm:$0xff]
      %v3293 = vld [vmem:[%s170 + $0xac] sm:$0xff]
      %v3294 = vld [vmem:[%s170 + $0xb4] sm:$0xff]
      %v3295 = vld [vmem:[%s170 + $0xbc] sm:$0xff]
      %v3296 = vld [vmem:[%s170 + $0xc4] sm:$0xff]
      %v3297 = vld [vmem:[%s170 + $0xe4] sm:$0xff]
      %v3298 = vld [vmem:[%s170 + $0xec] sm:$0xff]
      %v3299 = vld [vmem:[%s170 + $0xf4] sm:$0xff]
      %v3300 = vld [vmem:[%s170 + $0xfc] sm:$0xff]
      %v3301 = vld [vmem:[%s170 + $0x104] sm:$0xff]
      %v3302 = vld [vmem:[%s170 + $0x10c] sm:$0xff]
      %v3303 = vld [vmem:[%s170 + $0x114] sm:$0xff]
      %v3304 = vld [vmem:[%s170 + $0x11c] sm:$0xff]
      %v3305 = vld [vmem:[%s170 + $0x124] sm:$0xff]
      %v3306 = vld [vmem:[%s170 + $0x12c] sm:$0xff]
      %v3307 = vld [vmem:[%s170 + $0x14c] sm:$0xff]
      %v3308 = vld [vmem:[%s170 + $0x154] sm:$0xff]
      %v3309 = vld [vmem:[%s170 + $0x15c] sm:$0xff]
      %v3310 = vld [vmem:[%s170 + $0x164] sm:$0xff]
      %v3311 = vld [vmem:[%s170 + $0x16c] sm:$0xff]
      %v3312 = vld [vmem:[%s170 + $0x174] sm:$0xff]
      %v3313 = vld [vmem:[%s170 + $0x17c] sm:$0xff]
      %v3314 = vld [vmem:[%s170 + $0x184] sm:$0xff]
      %v3315 = vld [vmem:[%s170 + $0x18c] sm:$0xff]
      %v3316 = vld [vmem:[%s170 + $0x194] sm:$0xff]
      %s3317 = scalar_lea.vmem %s1, 1344
      %v3318 = vld [vmem:[%s3317] sm:$0xff]
      %v3319 = vld [vmem:[%s3317 + $0x8] sm:$0xff]
      %v3320 = vld [vmem:[%s3317 + $0x10] sm:$0xff]
      %v3321 = vld [vmem:[%s3317 + $0x18] sm:$0xff]
      %v3322 = vld [vmem:[%s3317 + $0x20] sm:$0xff]
      %v3323 = vld [vmem:[%s3317 + $0x28] sm:$0xff]
      %v3324 = vld [vmem:[%s3317 + $0x30] sm:$0xff]
      %v3325 = vld [vmem:[%s3317 + $0x38] sm:$0xff]
      %v3326 = vld [vmem:[%s3317 + $0x40] sm:$0xff]
      %v3327 = vld [vmem:[%s3317 + $0x48] sm:$0xff]
      %v3328 = vld [vmem:[%s3317 + $0x50] sm:$0xff]
      %v3329 = vld [vmem:[%s3317 + $0x58] sm:$0xff]
      %v3330 = vld [vmem:[%s3317 + $0x60] sm:$0xff]
      %v3331 = vld [vmem:[%s3317 + $0x68] sm:$0xff]
      %v3332 = vld [vmem:[%s3317 + $0x70] sm:$0xff]
      %v3333 = vld [vmem:[%s3317 + $0x78] sm:$0xff]
      %v3334 = vld [vmem:[%s3317 + $0x80] sm:$0xff]
      %v3335 = vld [vmem:[%s3317 + $0x88] sm:$0xff]
      %v3336 = vld [vmem:[%s3317 + $0x90] sm:$0xff]
      %v3337 = vld [vmem:[%s3317 + $0x98] sm:$0xff]
      %v3338 = vld [vmem:[%s3317 + $0xa0] sm:$0xff]
      %v3339 = vld [vmem:[%s3317 + $0xa8] sm:$0xff]
      %v3340 = vld [vmem:[%s3317 + $0xb0] sm:$0xff]
      %v3341 = vld [vmem:[%s3317 + $0xb8] sm:$0xff]
      %v3342 = vld [vmem:[%s3317 + $0xc0] sm:$0xff]
      %v3343 = vld [vmem:[%s3317 + $0xc8] sm:$0xff]
      %v3344 = vld [vmem:[%s3317 + $0xd0] sm:$0xff]
      %v3345 = vld [vmem:[%s3317 + $0xd8] sm:$0xff]
      %v3347 = vsel %vm316, %v3277, 0
      %v3350 = vsel %vm316, %v3278, 0
      %v3353 = vsel %vm316, %v3279, 0
      %v3356 = vsel %vm316, %v3280, 0
      %v3359 = vsel %vm316, %v3281, 0
      %v3362 = vsel %vm316, %v3282, 0
      %v3365 = vsel %vm316, %v3283, 0
      %v3368 = vsel %vm316, %v3284, 0
      %v3371 = vsel %vm316, %v3285, 0
      %v3374 = vsel %vm316, %v3286, 0
      %v3377 = vsel %vm316, %v3287, 0
      %v3380 = vsel %vm316, %v3288, 0
      %v3383 = vsel %vm316, %v3289, 0
      %v3386 = vsel %vm316, %v3290, 0
      %v3389 = vsel %vm316, %v3291, 0
      %v3392 = vsel %vm316, %v3292, 0
      %v3395 = vsel %vm316, %v3293, 0
      %v3398 = vsel %vm316, %v3294, 0
      %v3401 = vsel %vm316, %v3295, 0
      %v3404 = vsel %vm316, %v3296, 0
      %v3407 = vsel %vm316, %v3297, 0
      %v3410 = vsel %vm316, %v3298, 0
      %v3413 = vsel %vm316, %v3299, 0
      %v3416 = vsel %vm316, %v3300, 0
      %v3419 = vsel %vm316, %v3301, 0
      %v3422 = vsel %vm316, %v3302, 0
      %v3425 = vsel %vm316, %v3303, 0
      %v3428 = vsel %vm316, %v3304, 0
      %v3431 = vsel %vm316, %v3305, 0
      %v3434 = vsel %vm316, %v3306, 0
      %v3437 = vsel %vm316, %v3307, 0
      %v3440 = vsel %vm316, %v3308, 0
      %v3443 = vsel %vm316, %v3309, 0
      %v3446 = vsel %vm316, %v3310, 0
      %v3449 = vsel %vm316, %v3311, 0
      %v3452 = vsel %vm316, %v3312, 0
      %v3455 = vsel %vm316, %v3313, 0
      %v3458 = vsel %vm316, %v3314, 0
      %v3461 = vsel %vm316, %v3315, 0
      %v3464 = vsel %vm316, %v3316, 0
      %3466 = vmatpush.msra.mxu0 0.0
      %3467 = vmatpush.msra.mxu0 0.0
      %3468 = vmatpush.msra.mxu0 %v3344
      %3469 = vmatpush.msra.mxu0 %v3342
      %3470 = vmatpush.msra.mxu0 %v3340
      %3471 = vmatpush.msra.mxu0 %v3338
      %3472 = vmatpush.msra.mxu0 %v3336
      %3473 = vmatpush.msra.mxu0 %v3334
      %3474 = vmatpush.msra.mxu0 %v3332
      %3475 = vmatpush.msra.mxu0 %v3330
      %3476 = vmatpush.msra.mxu0 %v3328
      %3477 = vmatpush.msra.mxu0 %v3326
      %3478 = vmatpush.msra.mxu0 %v3324
      %3479 = vmatpush.msra.mxu0 %v3322
      %3480 = vmatpush.msra.mxu0 %v3320
      %3481 = vmatpush.msra.mxu0 %v3318
      %3482 = vmatmul.f32.gmra.mxu0 %v3347
      %v3483 = vpop.f32.mrf.mxu0
      %v3484 = vadd.f32 0.0, %v3483
      %3485 = vmatmul.f32.gmra.mxu0 %v3350
      %v3486 = vpop.f32.mrf.mxu0
      %v3487 = vadd.f32 0.0, %v3486
      %3488 = vmatmul.f32.gmra.mxu0 %v3353
      %v3489 = vpop.f32.mrf.mxu0
      %v3490 = vadd.f32 0.0, %v3489
      %3491 = vmatmul.f32.gmra.mxu0 %v3356
      %v3492 = vpop.f32.mrf.mxu0
      %v3493 = vadd.f32 0.0, %v3492
      %3494 = vmatmul.f32.gmra.mxu0 %v3359
      %v3495 = vpop.f32.mrf.mxu0
      %v3496 = vadd.f32 0.0, %v3495
      %3497 = vmatmul.f32.gmra.mxu0 %v3362
      %v3498 = vpop.f32.mrf.mxu0
      %v3499 = vadd.f32 0.0, %v3498
      %3500 = vmatmul.f32.gmra.mxu0 %v3365
      %v3501 = vpop.f32.mrf.mxu0
      %v3502 = vadd.f32 0.0, %v3501
      %3503 = vmatmul.f32.gmra.mxu0 %v3368
      %v3504 = vpop.f32.mrf.mxu0
      %v3505 = vadd.f32 0.0, %v3504
      %3506 = vmatmul.f32.gmra.mxu0 %v3371
      %v3507 = vpop.f32.mrf.mxu0
      %v3508 = vadd.f32 0.0, %v3507
      %3509 = vmatmul.f32.gmra.mxu0 %v3374
      %v3510 = vpop.f32.mrf.mxu0
      %v3511 = vadd.f32 0.0, %v3510
      %3512 = vmatmul.f32.gmra.mxu0 %v3377
      %v3513 = vpop.f32.mrf.mxu0
      %v3514 = vadd.f32 0.0, %v3513
      %3515 = vmatmul.f32.gmra.mxu0 %v3380
      %v3516 = vpop.f32.mrf.mxu0
      %v3517 = vadd.f32 0.0, %v3516
      %3518 = vmatmul.f32.gmra.mxu0 %v3383
      %v3519 = vpop.f32.mrf.mxu0
      %v3520 = vadd.f32 0.0, %v3519
      %3521 = vmatmul.f32.gmra.mxu0 %v3386
      %v3522 = vpop.f32.mrf.mxu0
      %v3523 = vadd.f32 0.0, %v3522
      %3524 = vmatmul.f32.gmra.mxu0 %v3389
      %v3525 = vpop.f32.mrf.mxu0
      %v3526 = vadd.f32 0.0, %v3525
      %3527 = vmatmul.f32.gmra.mxu0 %v3392
      %v3528 = vpop.f32.mrf.mxu0
      %v3529 = vadd.f32 0.0, %v3528
      %3530 = vmatmul.f32.gmra.mxu0 %v3395
      %v3531 = vpop.f32.mrf.mxu0
      %v3532 = vadd.f32 0.0, %v3531
      %3533 = vmatmul.f32.gmra.mxu0 %v3398
      %v3534 = vpop.f32.mrf.mxu0
      %v3535 = vadd.f32 0.0, %v3534
      %3536 = vmatmul.f32.gmra.mxu0 %v3401
      %v3537 = vpop.f32.mrf.mxu0
      %v3538 = vadd.f32 0.0, %v3537
      %3539 = vmatmul.f32.gmra.mxu0 %v3404
      %v3540 = vpop.f32.mrf.mxu0
      %v3541 = vadd.f32 0.0, %v3540
      %3542 = vmatmul.f32.gmra.mxu0 %v3407
      %v3543 = vpop.f32.mrf.mxu0
      %v3544 = vadd.f32 0.0, %v3543
      %3545 = vmatmul.f32.gmra.mxu0 %v3410
      %v3546 = vpop.f32.mrf.mxu0
      %v3547 = vadd.f32 0.0, %v3546
      %3548 = vmatmul.f32.gmra.mxu0 %v3413
      %v3549 = vpop.f32.mrf.mxu0
      %v3550 = vadd.f32 0.0, %v3549
      %3551 = vmatmul.f32.gmra.mxu0 %v3416
      %v3552 = vpop.f32.mrf.mxu0
      %v3553 = vadd.f32 0.0, %v3552
      %3554 = vmatmul.f32.gmra.mxu0 %v3419
      %v3555 = vpop.f32.mrf.mxu0
      %v3556 = vadd.f32 0.0, %v3555
      %3557 = vmatmul.f32.gmra.mxu0 %v3422
      %v3558 = vpop.f32.mrf.mxu0
      %v3559 = vadd.f32 0.0, %v3558
      %3560 = vmatmul.f32.gmra.mxu0 %v3425
      %v3561 = vpop.f32.mrf.mxu0
      %v3562 = vadd.f32 0.0, %v3561
      %3563 = vmatmul.f32.gmra.mxu0 %v3428
      %v3564 = vpop.f32.mrf.mxu0
      %v3565 = vadd.f32 0.0, %v3564
      %3566 = vmatmul.f32.gmra.mxu0 %v3431
      %v3567 = vpop.f32.mrf.mxu0
      %v3568 = vadd.f32 0.0, %v3567
      %3569 = vmatmul.f32.gmra.mxu0 %v3434
      %v3570 = vpop.f32.mrf.mxu0
      %v3571 = vadd.f32 0.0, %v3570
      %3572 = vmatmul.f32.gmra.mxu0 %v3437
      %v3573 = vpop.f32.mrf.mxu0
      %v3574 = vadd.f32 0.0, %v3573
      %3575 = vmatmul.f32.gmra.mxu0 %v3440
      %v3576 = vpop.f32.mrf.mxu0
      %v3577 = vadd.f32 0.0, %v3576
      %3578 = vmatmul.f32.gmra.mxu0 %v3443
      %v3579 = vpop.f32.mrf.mxu0
      %v3580 = vadd.f32 0.0, %v3579
      %3581 = vmatmul.f32.gmra.mxu0 %v3446
      %v3582 = vpop.f32.mrf.mxu0
      %v3583 = vadd.f32 0.0, %v3582
      %3584 = vmatmul.f32.gmra.mxu0 %v3449
      %v3585 = vpop.f32.mrf.mxu0
      %v3586 = vadd.f32 0.0, %v3585
      %3587 = vmatmul.f32.gmra.mxu0 %v3452
      %v3588 = vpop.f32.mrf.mxu0
      %v3589 = vadd.f32 0.0, %v3588
      %3590 = vmatmul.f32.gmra.mxu0 %v3455
      %v3591 = vpop.f32.mrf.mxu0
      %v3592 = vadd.f32 0.0, %v3591
      %3593 = vmatmul.f32.gmra.mxu0 %v3458
      %v3594 = vpop.f32.mrf.mxu0
      %v3595 = vadd.f32 0.0, %v3594
      %3596 = vmatmul.f32.gmra.mxu0 %v3461
      %v3597 = vpop.f32.mrf.mxu0
      %v3598 = vadd.f32 0.0, %v3597
      %3599 = vmatmul.f32.gmra.mxu0 %v3464
      %v3600 = vpop.f32.mrf.mxu0
      %v3601 = vadd.f32 0.0, %v3600
      %3602 = vdwg.mxu0
      %3603 = vmatpush.msra.mxu0 0.0
      %3604 = vmatpush.msra.mxu0 0.0
      %3605 = vmatpush.msra.mxu0 %v3345
      %3606 = vmatpush.msra.mxu0 %v3343
      %3607 = vmatpush.msra.mxu0 %v3341
      %3608 = vmatpush.msra.mxu0 %v3339
      %3609 = vmatpush.msra.mxu0 %v3337
      %3610 = vmatpush.msra.mxu0 %v3335
      %3611 = vmatpush.msra.mxu0 %v3333
      %3612 = vmatpush.msra.mxu0 %v3331
      %3613 = vmatpush.msra.mxu0 %v3329
      %3614 = vmatpush.msra.mxu0 %v3327
      %3615 = vmatpush.msra.mxu0 %v3325
      %3616 = vmatpush.msra.mxu0 %v3323
      %3617 = vmatpush.msra.mxu0 %v3321
      %3618 = vmatpush.msra.mxu0 %v3319
      %3619 = vmatmul.f32.gmra.mxu0 %v3347
      %v3620 = vpop.f32.mrf.mxu0
      %v3621 = vadd.f32 0.0, %v3620
      %3622 = vmatmul.f32.gmra.mxu0 %v3350
      %v3623 = vpop.f32.mrf.mxu0
      %v3624 = vadd.f32 0.0, %v3623
      %3625 = vmatmul.f32.gmra.mxu0 %v3353
      %v3626 = vpop.f32.mrf.mxu0
      %v3627 = vadd.f32 0.0, %v3626
      %3628 = vmatmul.f32.gmra.mxu0 %v3356
      %v3629 = vpop.f32.mrf.mxu0
      %v3630 = vadd.f32 0.0, %v3629
      %3631 = vmatmul.f32.gmra.mxu0 %v3359
      %v3632 = vpop.f32.mrf.mxu0
      %v3633 = vadd.f32 0.0, %v3632
      %3634 = vmatmul.f32.gmra.mxu0 %v3362
      %v3635 = vpop.f32.mrf.mxu0
      %v3636 = vadd.f32 0.0, %v3635
      %3637 = vmatmul.f32.gmra.mxu0 %v3365
      %v3638 = vpop.f32.mrf.mxu0
      %v3639 = vadd.f32 0.0, %v3638
      %3640 = vmatmul.f32.gmra.mxu0 %v3368
      %v3641 = vpop.f32.mrf.mxu0
      %v3642 = vadd.f32 0.0, %v3641
      %3643 = vmatmul.f32.gmra.mxu0 %v3371
      %v3644 = vpop.f32.mrf.mxu0
      %v3645 = vadd.f32 0.0, %v3644
      %3646 = vmatmul.f32.gmra.mxu0 %v3374
      %v3647 = vpop.f32.mrf.mxu0
      %v3648 = vadd.f32 0.0, %v3647
      %3649 = vmatmul.f32.gmra.mxu0 %v3377
      %v3650 = vpop.f32.mrf.mxu0
      %v3651 = vadd.f32 0.0, %v3650
      %3652 = vmatmul.f32.gmra.mxu0 %v3380
      %v3653 = vpop.f32.mrf.mxu0
      %v3654 = vadd.f32 0.0, %v3653
      %3655 = vmatmul.f32.gmra.mxu0 %v3383
      %v3656 = vpop.f32.mrf.mxu0
      %v3657 = vadd.f32 0.0, %v3656
      %3658 = vmatmul.f32.gmra.mxu0 %v3386
      %v3659 = vpop.f32.mrf.mxu0
      %v3660 = vadd.f32 0.0, %v3659
      %3661 = vmatmul.f32.gmra.mxu0 %v3389
      %v3662 = vpop.f32.mrf.mxu0
      %v3663 = vadd.f32 0.0, %v3662
      %3664 = vmatmul.f32.gmra.mxu0 %v3392
      %v3665 = vpop.f32.mrf.mxu0
      %v3666 = vadd.f32 0.0, %v3665
      %3667 = vmatmul.f32.gmra.mxu0 %v3395
      %v3668 = vpop.f32.mrf.mxu0
      %v3669 = vadd.f32 0.0, %v3668
      %3670 = vmatmul.f32.gmra.mxu0 %v3398
      %v3671 = vpop.f32.mrf.mxu0
      %v3672 = vadd.f32 0.0, %v3671
      %3673 = vmatmul.f32.gmra.mxu0 %v3401
      %v3674 = vpop.f32.mrf.mxu0
      %v3675 = vadd.f32 0.0, %v3674
      %3676 = vmatmul.f32.gmra.mxu0 %v3404
      %v3677 = vpop.f32.mrf.mxu0
      %v3678 = vadd.f32 0.0, %v3677
      %3679 = vmatmul.f32.gmra.mxu0 %v3407
      %v3680 = vpop.f32.mrf.mxu0
      %v3681 = vadd.f32 0.0, %v3680
      %3682 = vmatmul.f32.gmra.mxu0 %v3410
      %v3683 = vpop.f32.mrf.mxu0
      %v3684 = vadd.f32 0.0, %v3683
      %3685 = vmatmul.f32.gmra.mxu0 %v3413
      %v3686 = vpop.f32.mrf.mxu0
      %v3687 = vadd.f32 0.0, %v3686
      %3688 = vmatmul.f32.gmra.mxu0 %v3416
      %v3689 = vpop.f32.mrf.mxu0
      %v3690 = vadd.f32 0.0, %v3689
      %3691 = vmatmul.f32.gmra.mxu0 %v3419
      %v3692 = vpop.f32.mrf.mxu0
      %v3693 = vadd.f32 0.0, %v3692
      %3694 = vmatmul.f32.gmra.mxu0 %v3422
      %v3695 = vpop.f32.mrf.mxu0
      %v3696 = vadd.f32 0.0, %v3695
      %3697 = vmatmul.f32.gmra.mxu0 %v3425
      %v3698 = vpop.f32.mrf.mxu0
      %v3699 = vadd.f32 0.0, %v3698
      %3700 = vmatmul.f32.gmra.mxu0 %v3428
      %v3701 = vpop.f32.mrf.mxu0
      %v3702 = vadd.f32 0.0, %v3701
      %3703 = vmatmul.f32.gmra.mxu0 %v3431
      %v3704 = vpop.f32.mrf.mxu0
      %v3705 = vadd.f32 0.0, %v3704
      %3706 = vmatmul.f32.gmra.mxu0 %v3434
      %v3707 = vpop.f32.mrf.mxu0
      %v3708 = vadd.f32 0.0, %v3707
      %3709 = vmatmul.f32.gmra.mxu0 %v3437
      %v3710 = vpop.f32.mrf.mxu0
      %v3711 = vadd.f32 0.0, %v3710
      %3712 = vmatmul.f32.gmra.mxu0 %v3440
      %v3713 = vpop.f32.mrf.mxu0
      %v3714 = vadd.f32 0.0, %v3713
      %3715 = vmatmul.f32.gmra.mxu0 %v3443
      %v3716 = vpop.f32.mrf.mxu0
      %v3717 = vadd.f32 0.0, %v3716
      %3718 = vmatmul.f32.gmra.mxu0 %v3446
      %v3719 = vpop.f32.mrf.mxu0
      %v3720 = vadd.f32 0.0, %v3719
      %3721 = vmatmul.f32.gmra.mxu0 %v3449
      %v3722 = vpop.f32.mrf.mxu0
      %v3723 = vadd.f32 0.0, %v3722
      %3724 = vmatmul.f32.gmra.mxu0 %v3452
      %v3725 = vpop.f32.mrf.mxu0
      %v3726 = vadd.f32 0.0, %v3725
      %3727 = vmatmul.f32.gmra.mxu0 %v3455
      %v3728 = vpop.f32.mrf.mxu0
      %v3729 = vadd.f32 0.0, %v3728
      %3730 = vmatmul.f32.gmra.mxu0 %v3458
      %v3731 = vpop.f32.mrf.mxu0
      %v3732 = vadd.f32 0.0, %v3731
      %3733 = vmatmul.f32.gmra.mxu0 %v3461
      %v3734 = vpop.f32.mrf.mxu0
      %v3735 = vadd.f32 0.0, %v3734
      %3736 = vmatmul.f32.gmra.mxu0 %v3464
      %v3737 = vpop.f32.mrf.mxu0
      %v3738 = vadd.f32 0.0, %v3737
      %3739 = vdwg.mxu0
      %v3740 = vadd.f32 %v3197, %v3484
      %v3741 = vadd.f32 %v3198, %v3621
      %v3742 = vadd.f32 %v3199, %v3487
      %v3743 = vadd.f32 %v3200, %v3624
      %v3744 = vadd.f32 %v3201, %v3490
      %v3745 = vadd.f32 %v3202, %v3627
      %v3746 = vadd.f32 %v3203, %v3493
      %v3747 = vadd.f32 %v3204, %v3630
      %v3748 = vadd.f32 %v3205, %v3496
      %v3749 = vadd.f32 %v3206, %v3633
      %v3750 = vadd.f32 %v3207, %v3499
      %v3751 = vadd.f32 %v3208, %v3636
      %v3752 = vadd.f32 %v3209, %v3502
      %v3753 = vadd.f32 %v3210, %v3639
      %v3754 = vadd.f32 %v3211, %v3505
      %v3755 = vadd.f32 %v3212, %v3642
      %v3756 = vadd.f32 %v3213, %v3508
      %v3757 = vadd.f32 %v3214, %v3645
      %v3758 = vadd.f32 %v3215, %v3511
      %v3759 = vadd.f32 %v3216, %v3648
      %v3760 = vadd.f32 %v3217, %v3514
      %v3761 = vadd.f32 %v3218, %v3651
      %v3762 = vadd.f32 %v3219, %v3517
      %v3763 = vadd.f32 %v3220, %v3654
      %v3764 = vadd.f32 %v3221, %v3520
      %v3765 = vadd.f32 %v3222, %v3657
      %v3766 = vadd.f32 %v3223, %v3523
      %v3767 = vadd.f32 %v3224, %v3660
      %v3768 = vadd.f32 %v3225, %v3526
      %v3769 = vadd.f32 %v3226, %v3663
      %v3770 = vadd.f32 %v3227, %v3529
      %v3771 = vadd.f32 %v3228, %v3666
      %v3772 = vadd.f32 %v3229, %v3532
      %v3773 = vadd.f32 %v3230, %v3669
      %v3774 = vadd.f32 %v3231, %v3535
      %v3775 = vadd.f32 %v3232, %v3672
      %v3776 = vadd.f32 %v3233, %v3538
      %v3777 = vadd.f32 %v3234, %v3675
      %v3778 = vadd.f32 %v3235, %v3541
      %v3779 = vadd.f32 %v3236, %v3678
      %v3780 = vadd.f32 %v3237, %v3544
      %v3781 = vadd.f32 %v3238, %v3681
      %v3782 = vadd.f32 %v3239, %v3547
      %v3783 = vadd.f32 %v3240, %v3684
      %v3784 = vadd.f32 %v3241, %v3550
      %v3785 = vadd.f32 %v3242, %v3687
      %v3786 = vadd.f32 %v3243, %v3553
      %v3787 = vadd.f32 %v3244, %v3690
      %v3788 = vadd.f32 %v3245, %v3556
      %v3789 = vadd.f32 %v3246, %v3693
      %v3790 = vadd.f32 %v3247, %v3559
      %v3791 = vadd.f32 %v3248, %v3696
      %v3792 = vadd.f32 %v3249, %v3562
      %v3793 = vadd.f32 %v3250, %v3699
      %v3794 = vadd.f32 %v3251, %v3565
      %v3795 = vadd.f32 %v3252, %v3702
      %v3796 = vadd.f32 %v3253, %v3568
      %v3797 = vadd.f32 %v3254, %v3705
      %v3798 = vadd.f32 %v3255, %v3571
      %v3799 = vadd.f32 %v3256, %v3708
      %v3800 = vadd.f32 %v3257, %v3574
      %v3801 = vadd.f32 %v3258, %v3711
      %v3802 = vadd.f32 %v3259, %v3577
      %v3803 = vadd.f32 %v3260, %v3714
      %v3804 = vadd.f32 %v3261, %v3580
      %v3805 = vadd.f32 %v3262, %v3717
      %v3806 = vadd.f32 %v3263, %v3583
      %v3807 = vadd.f32 %v3264, %v3720
      %v3808 = vadd.f32 %v3265, %v3586
      %v3809 = vadd.f32 %v3266, %v3723
      %v3810 = vadd.f32 %v3267, %v3589
      %v3811 = vadd.f32 %v3268, %v3726
      %v3812 = vadd.f32 %v3269, %v3592
      %v3813 = vadd.f32 %v3270, %v3729
      %v3814 = vadd.f32 %v3271, %v3595
      %v3815 = vadd.f32 %v3272, %v3732
      %v3816 = vadd.f32 %v3273, %v3598
      %v3817 = vadd.f32 %v3274, %v3735
      %v3818 = vadd.f32 %v3275, %v3601
      %v3819 = vadd.f32 %v3276, %v3738
      %v3820 = vld [vmem:[%s170 + $0x15] sm:$0xff]
      %v3821 = vld [vmem:[%s170 + $0x1d] sm:$0xff]
      %v3822 = vld [vmem:[%s170 + $0x25] sm:$0xff]
      %v3823 = vld [vmem:[%s170 + $0x2d] sm:$0xff]
      %v3824 = vld [vmem:[%s170 + $0x35] sm:$0xff]
      %v3825 = vld [vmem:[%s170 + $0x3d] sm:$0xff]
      %v3826 = vld [vmem:[%s170 + $0x45] sm:$0xff]
      %v3827 = vld [vmem:[%s170 + $0x4d] sm:$0xff]
      %v3828 = vld [vmem:[%s170 + $0x55] sm:$0xff]
      %v3829 = vld [vmem:[%s170 + $0x5d] sm:$0xff]
      %v3830 = vld [vmem:[%s170 + $0x7d] sm:$0xff]
      %v3831 = vld [vmem:[%s170 + $0x85] sm:$0xff]
      %v3832 = vld [vmem:[%s170 + $0x8d] sm:$0xff]
      %v3833 = vld [vmem:[%s170 + $0x95] sm:$0xff]
      %v3834 = vld [vmem:[%s170 + $0x9d] sm:$0xff]
      %v3835 = vld [vmem:[%s170 + $0xa5] sm:$0xff]
      %v3836 = vld [vmem:[%s170 + $0xad] sm:$0xff]
      %v3837 = vld [vmem:[%s170 + $0xb5] sm:$0xff]
      %v3838 = vld [vmem:[%s170 + $0xbd] sm:$0xff]
      %v3839 = vld [vmem:[%s170 + $0xc5] sm:$0xff]
      %v3840 = vld [vmem:[%s170 + $0xe5] sm:$0xff]
      %v3841 = vld [vmem:[%s170 + $0xed] sm:$0xff]
      %v3842 = vld [vmem:[%s170 + $0xf5] sm:$0xff]
      %v3843 = vld [vmem:[%s170 + $0xfd] sm:$0xff]
      %v3844 = vld [vmem:[%s170 + $0x105] sm:$0xff]
      %v3845 = vld [vmem:[%s170 + $0x10d] sm:$0xff]
      %v3846 = vld [vmem:[%s170 + $0x115] sm:$0xff]
      %v3847 = vld [vmem:[%s170 + $0x11d] sm:$0xff]
      %v3848 = vld [vmem:[%s170 + $0x125] sm:$0xff]
      %v3849 = vld [vmem:[%s170 + $0x12d] sm:$0xff]
      %v3850 = vld [vmem:[%s170 + $0x14d] sm:$0xff]
      %v3851 = vld [vmem:[%s170 + $0x155] sm:$0xff]
      %v3852 = vld [vmem:[%s170 + $0x15d] sm:$0xff]
      %v3853 = vld [vmem:[%s170 + $0x165] sm:$0xff]
      %v3854 = vld [vmem:[%s170 + $0x16d] sm:$0xff]
      %v3855 = vld [vmem:[%s170 + $0x175] sm:$0xff]
      %v3856 = vld [vmem:[%s170 + $0x17d] sm:$0xff]
      %v3857 = vld [vmem:[%s170 + $0x185] sm:$0xff]
      %v3858 = vld [vmem:[%s170 + $0x18d] sm:$0xff]
      %v3859 = vld [vmem:[%s170 + $0x195] sm:$0xff]
      %s3860 = scalar_lea.vmem %s1, 1568
      %v3861 = vld [vmem:[%s3860] sm:$0xff]
      %v3862 = vld [vmem:[%s3860 + $0x8] sm:$0xff]
      %v3863 = vld [vmem:[%s3860 + $0x10] sm:$0xff]
      %v3864 = vld [vmem:[%s3860 + $0x18] sm:$0xff]
      %v3865 = vld [vmem:[%s3860 + $0x20] sm:$0xff]
      %v3866 = vld [vmem:[%s3860 + $0x28] sm:$0xff]
      %v3867 = vld [vmem:[%s3860 + $0x30] sm:$0xff]
      %v3868 = vld [vmem:[%s3860 + $0x38] sm:$0xff]
      %v3869 = vld [vmem:[%s3860 + $0x40] sm:$0xff]
      %v3870 = vld [vmem:[%s3860 + $0x48] sm:$0xff]
      %v3871 = vld [vmem:[%s3860 + $0x50] sm:$0xff]
      %v3872 = vld [vmem:[%s3860 + $0x58] sm:$0xff]
      %v3873 = vld [vmem:[%s3860 + $0x60] sm:$0xff]
      %v3874 = vld [vmem:[%s3860 + $0x68] sm:$0xff]
      %v3875 = vld [vmem:[%s3860 + $0x70] sm:$0xff]
      %v3876 = vld [vmem:[%s3860 + $0x78] sm:$0xff]
      %v3877 = vld [vmem:[%s3860 + $0x80] sm:$0xff]
      %v3878 = vld [vmem:[%s3860 + $0x88] sm:$0xff]
      %v3879 = vld [vmem:[%s3860 + $0x90] sm:$0xff]
      %v3880 = vld [vmem:[%s3860 + $0x98] sm:$0xff]
      %v3881 = vld [vmem:[%s3860 + $0xa0] sm:$0xff]
      %v3882 = vld [vmem:[%s3860 + $0xa8] sm:$0xff]
      %v3883 = vld [vmem:[%s3860 + $0xb0] sm:$0xff]
      %v3884 = vld [vmem:[%s3860 + $0xb8] sm:$0xff]
      %v3885 = vld [vmem:[%s3860 + $0xc0] sm:$0xff]
      %v3886 = vld [vmem:[%s3860 + $0xc8] sm:$0xff]
      %v3887 = vld [vmem:[%s3860 + $0xd0] sm:$0xff]
      %v3888 = vld [vmem:[%s3860 + $0xd8] sm:$0xff]
      %v3890 = vsel %vm316, %v3820, 0
      %v3893 = vsel %vm316, %v3821, 0
      %v3896 = vsel %vm316, %v3822, 0
      %v3899 = vsel %vm316, %v3823, 0
      %v3902 = vsel %vm316, %v3824, 0
      %v3905 = vsel %vm316, %v3825, 0
      %v3908 = vsel %vm316, %v3826, 0
      %v3911 = vsel %vm316, %v3827, 0
      %v3914 = vsel %vm316, %v3828, 0
      %v3917 = vsel %vm316, %v3829, 0
      %v3920 = vsel %vm316, %v3830, 0
      %v3923 = vsel %vm316, %v3831, 0
      %v3926 = vsel %vm316, %v3832, 0
      %v3929 = vsel %vm316, %v3833, 0
      %v3932 = vsel %vm316, %v3834, 0
      %v3935 = vsel %vm316, %v3835, 0
      %v3938 = vsel %vm316, %v3836, 0
      %v3941 = vsel %vm316, %v3837, 0
      %v3944 = vsel %vm316, %v3838, 0
      %v3947 = vsel %vm316, %v3839, 0
      %v3950 = vsel %vm316, %v3840, 0
      %v3953 = vsel %vm316, %v3841, 0
      %v3956 = vsel %vm316, %v3842, 0
      %v3959 = vsel %vm316, %v3843, 0
      %v3962 = vsel %vm316, %v3844, 0
      %v3965 = vsel %vm316, %v3845, 0
      %v3968 = vsel %vm316, %v3846, 0
      %v3971 = vsel %vm316, %v3847, 0
      %v3974 = vsel %vm316, %v3848, 0
      %v3977 = vsel %vm316, %v3849, 0
      %v3980 = vsel %vm316, %v3850, 0
      %v3983 = vsel %vm316, %v3851, 0
      %v3986 = vsel %vm316, %v3852, 0
      %v3989 = vsel %vm316, %v3853, 0
      %v3992 = vsel %vm316, %v3854, 0
      %v3995 = vsel %vm316, %v3855, 0
      %v3998 = vsel %vm316, %v3856, 0
      %v4001 = vsel %vm316, %v3857, 0
      %v4004 = vsel %vm316, %v3858, 0
      %v4007 = vsel %vm316, %v3859, 0
      %4009 = vmatpush.msra.mxu0 0.0
      %4010 = vmatpush.msra.mxu0 0.0
      %4011 = vmatpush.msra.mxu0 %v3887
      %4012 = vmatpush.msra.mxu0 %v3885
      %4013 = vmatpush.msra.mxu0 %v3883
      %4014 = vmatpush.msra.mxu0 %v3881
      %4015 = vmatpush.msra.mxu0 %v3879
      %4016 = vmatpush.msra.mxu0 %v3877
      %4017 = vmatpush.msra.mxu0 %v3875
      %4018 = vmatpush.msra.mxu0 %v3873
      %4019 = vmatpush.msra.mxu0 %v3871
      %4020 = vmatpush.msra.mxu0 %v3869
      %4021 = vmatpush.msra.mxu0 %v3867
      %4022 = vmatpush.msra.mxu0 %v3865
      %4023 = vmatpush.msra.mxu0 %v3863
      %4024 = vmatpush.msra.mxu0 %v3861
      %4025 = vmatmul.f32.gmra.mxu0 %v3890
      %v4026 = vpop.f32.mrf.mxu0
      %v4027 = vadd.f32 0.0, %v4026
      %4028 = vmatmul.f32.gmra.mxu0 %v3893
      %v4029 = vpop.f32.mrf.mxu0
      %v4030 = vadd.f32 0.0, %v4029
      %4031 = vmatmul.f32.gmra.mxu0 %v3896
      %v4032 = vpop.f32.mrf.mxu0
      %v4033 = vadd.f32 0.0, %v4032
      %4034 = vmatmul.f32.gmra.mxu0 %v3899
      %v4035 = vpop.f32.mrf.mxu0
      %v4036 = vadd.f32 0.0, %v4035
      %4037 = vmatmul.f32.gmra.mxu0 %v3902
      %v4038 = vpop.f32.mrf.mxu0
      %v4039 = vadd.f32 0.0, %v4038
      %4040 = vmatmul.f32.gmra.mxu0 %v3905
      %v4041 = vpop.f32.mrf.mxu0
      %v4042 = vadd.f32 0.0, %v4041
      %4043 = vmatmul.f32.gmra.mxu0 %v3908
      %v4044 = vpop.f32.mrf.mxu0
      %v4045 = vadd.f32 0.0, %v4044
      %4046 = vmatmul.f32.gmra.mxu0 %v3911
      %v4047 = vpop.f32.mrf.mxu0
      %v4048 = vadd.f32 0.0, %v4047
      %4049 = vmatmul.f32.gmra.mxu0 %v3914
      %v4050 = vpop.f32.mrf.mxu0
      %v4051 = vadd.f32 0.0, %v4050
      %4052 = vmatmul.f32.gmra.mxu0 %v3917
      %v4053 = vpop.f32.mrf.mxu0
      %v4054 = vadd.f32 0.0, %v4053
      %4055 = vmatmul.f32.gmra.mxu0 %v3920
      %v4056 = vpop.f32.mrf.mxu0
      %v4057 = vadd.f32 0.0, %v4056
      %4058 = vmatmul.f32.gmra.mxu0 %v3923
      %v4059 = vpop.f32.mrf.mxu0
      %v4060 = vadd.f32 0.0, %v4059
      %4061 = vmatmul.f32.gmra.mxu0 %v3926
      %v4062 = vpop.f32.mrf.mxu0
      %v4063 = vadd.f32 0.0, %v4062
      %4064 = vmatmul.f32.gmra.mxu0 %v3929
      %v4065 = vpop.f32.mrf.mxu0
      %v4066 = vadd.f32 0.0, %v4065
      %4067 = vmatmul.f32.gmra.mxu0 %v3932
      %v4068 = vpop.f32.mrf.mxu0
      %v4069 = vadd.f32 0.0, %v4068
      %4070 = vmatmul.f32.gmra.mxu0 %v3935
      %v4071 = vpop.f32.mrf.mxu0
      %v4072 = vadd.f32 0.0, %v4071
      %4073 = vmatmul.f32.gmra.mxu0 %v3938
      %v4074 = vpop.f32.mrf.mxu0
      %v4075 = vadd.f32 0.0, %v4074
      %4076 = vmatmul.f32.gmra.mxu0 %v3941
      %v4077 = vpop.f32.mrf.mxu0
      %v4078 = vadd.f32 0.0, %v4077
      %4079 = vmatmul.f32.gmra.mxu0 %v3944
      %v4080 = vpop.f32.mrf.mxu0
      %v4081 = vadd.f32 0.0, %v4080
      %4082 = vmatmul.f32.gmra.mxu0 %v3947
      %v4083 = vpop.f32.mrf.mxu0
      %v4084 = vadd.f32 0.0, %v4083
      %4085 = vmatmul.f32.gmra.mxu0 %v3950
      %v4086 = vpop.f32.mrf.mxu0
      %v4087 = vadd.f32 0.0, %v4086
      %4088 = vmatmul.f32.gmra.mxu0 %v3953
      %v4089 = vpop.f32.mrf.mxu0
      %v4090 = vadd.f32 0.0, %v4089
      %4091 = vmatmul.f32.gmra.mxu0 %v3956
      %v4092 = vpop.f32.mrf.mxu0
      %v4093 = vadd.f32 0.0, %v4092
      %4094 = vmatmul.f32.gmra.mxu0 %v3959
      %v4095 = vpop.f32.mrf.mxu0
      %v4096 = vadd.f32 0.0, %v4095
      %4097 = vmatmul.f32.gmra.mxu0 %v3962
      %v4098 = vpop.f32.mrf.mxu0
      %v4099 = vadd.f32 0.0, %v4098
      %4100 = vmatmul.f32.gmra.mxu0 %v3965
      %v4101 = vpop.f32.mrf.mxu0
      %v4102 = vadd.f32 0.0, %v4101
      %4103 = vmatmul.f32.gmra.mxu0 %v3968
      %v4104 = vpop.f32.mrf.mxu0
      %v4105 = vadd.f32 0.0, %v4104
      %4106 = vmatmul.f32.gmra.mxu0 %v3971
      %v4107 = vpop.f32.mrf.mxu0
      %v4108 = vadd.f32 0.0, %v4107
      %4109 = vmatmul.f32.gmra.mxu0 %v3974
      %v4110 = vpop.f32.mrf.mxu0
      %v4111 = vadd.f32 0.0, %v4110
      %4112 = vmatmul.f32.gmra.mxu0 %v3977
      %v4113 = vpop.f32.mrf.mxu0
      %v4114 = vadd.f32 0.0, %v4113
      %4115 = vmatmul.f32.gmra.mxu0 %v3980
      %v4116 = vpop.f32.mrf.mxu0
      %v4117 = vadd.f32 0.0, %v4116
      %4118 = vmatmul.f32.gmra.mxu0 %v3983
      %v4119 = vpop.f32.mrf.mxu0
      %v4120 = vadd.f32 0.0, %v4119
      %4121 = vmatmul.f32.gmra.mxu0 %v3986
      %v4122 = vpop.f32.mrf.mxu0
      %v4123 = vadd.f32 0.0, %v4122
      %4124 = vmatmul.f32.gmra.mxu0 %v3989
      %v4125 = vpop.f32.mrf.mxu0
      %v4126 = vadd.f32 0.0, %v4125
      %4127 = vmatmul.f32.gmra.mxu0 %v3992
      %v4128 = vpop.f32.mrf.mxu0
      %v4129 = vadd.f32 0.0, %v4128
      %4130 = vmatmul.f32.gmra.mxu0 %v3995
      %v4131 = vpop.f32.mrf.mxu0
      %v4132 = vadd.f32 0.0, %v4131
      %4133 = vmatmul.f32.gmra.mxu0 %v3998
      %v4134 = vpop.f32.mrf.mxu0
      %v4135 = vadd.f32 0.0, %v4134
      %4136 = vmatmul.f32.gmra.mxu0 %v4001
      %v4137 = vpop.f32.mrf.mxu0
      %v4138 = vadd.f32 0.0, %v4137
      %4139 = vmatmul.f32.gmra.mxu0 %v4004
      %v4140 = vpop.f32.mrf.mxu0
      %v4141 = vadd.f32 0.0, %v4140
      %4142 = vmatmul.f32.gmra.mxu0 %v4007
      %v4143 = vpop.f32.mrf.mxu0
      %v4144 = vadd.f32 0.0, %v4143
      %4145 = vdwg.mxu0
      %4146 = vmatpush.msra.mxu0 0.0
      %4147 = vmatpush.msra.mxu0 0.0
      %4148 = vmatpush.msra.mxu0 %v3888
      %4149 = vmatpush.msra.mxu0 %v3886
      %4150 = vmatpush.msra.mxu0 %v3884
      %4151 = vmatpush.msra.mxu0 %v3882
      %4152 = vmatpush.msra.mxu0 %v3880
      %4153 = vmatpush.msra.mxu0 %v3878
      %4154 = vmatpush.msra.mxu0 %v3876
      %4155 = vmatpush.msra.mxu0 %v3874
      %4156 = vmatpush.msra.mxu0 %v3872
      %4157 = vmatpush.msra.mxu0 %v3870
      %4158 = vmatpush.msra.mxu0 %v3868
      %4159 = vmatpush.msra.mxu0 %v3866
      %4160 = vmatpush.msra.mxu0 %v3864
      %4161 = vmatpush.msra.mxu0 %v3862
      %4162 = vmatmul.f32.gmra.mxu0 %v3890
      %v4163 = vpop.f32.mrf.mxu0
      %v4164 = vadd.f32 0.0, %v4163
      %4165 = vmatmul.f32.gmra.mxu0 %v3893
      %v4166 = vpop.f32.mrf.mxu0
      %v4167 = vadd.f32 0.0, %v4166
      %4168 = vmatmul.f32.gmra.mxu0 %v3896
      %v4169 = vpop.f32.mrf.mxu0
      %v4170 = vadd.f32 0.0, %v4169
      %4171 = vmatmul.f32.gmra.mxu0 %v3899
      %v4172 = vpop.f32.mrf.mxu0
      %v4173 = vadd.f32 0.0, %v4172
      %4174 = vmatmul.f32.gmra.mxu0 %v3902
      %v4175 = vpop.f32.mrf.mxu0
      %v4176 = vadd.f32 0.0, %v4175
      %4177 = vmatmul.f32.gmra.mxu0 %v3905
      %v4178 = vpop.f32.mrf.mxu0
      %v4179 = vadd.f32 0.0, %v4178
      %4180 = vmatmul.f32.gmra.mxu0 %v3908
      %v4181 = vpop.f32.mrf.mxu0
      %v4182 = vadd.f32 0.0, %v4181
      %4183 = vmatmul.f32.gmra.mxu0 %v3911
      %v4184 = vpop.f32.mrf.mxu0
      %v4185 = vadd.f32 0.0, %v4184
      %4186 = vmatmul.f32.gmra.mxu0 %v3914
      %v4187 = vpop.f32.mrf.mxu0
      %v4188 = vadd.f32 0.0, %v4187
      %4189 = vmatmul.f32.gmra.mxu0 %v3917
      %v4190 = vpop.f32.mrf.mxu0
      %v4191 = vadd.f32 0.0, %v4190
      %4192 = vmatmul.f32.gmra.mxu0 %v3920
      %v4193 = vpop.f32.mrf.mxu0
      %v4194 = vadd.f32 0.0, %v4193
      %4195 = vmatmul.f32.gmra.mxu0 %v3923
      %v4196 = vpop.f32.mrf.mxu0
      %v4197 = vadd.f32 0.0, %v4196
      %4198 = vmatmul.f32.gmra.mxu0 %v3926
      %v4199 = vpop.f32.mrf.mxu0
      %v4200 = vadd.f32 0.0, %v4199
      %4201 = vmatmul.f32.gmra.mxu0 %v3929
      %v4202 = vpop.f32.mrf.mxu0
      %v4203 = vadd.f32 0.0, %v4202
      %4204 = vmatmul.f32.gmra.mxu0 %v3932
      %v4205 = vpop.f32.mrf.mxu0
      %v4206 = vadd.f32 0.0, %v4205
      %4207 = vmatmul.f32.gmra.mxu0 %v3935
      %v4208 = vpop.f32.mrf.mxu0
      %v4209 = vadd.f32 0.0, %v4208
      %4210 = vmatmul.f32.gmra.mxu0 %v3938
      %v4211 = vpop.f32.mrf.mxu0
      %v4212 = vadd.f32 0.0, %v4211
      %4213 = vmatmul.f32.gmra.mxu0 %v3941
      %v4214 = vpop.f32.mrf.mxu0
      %v4215 = vadd.f32 0.0, %v4214
      %4216 = vmatmul.f32.gmra.mxu0 %v3944
      %v4217 = vpop.f32.mrf.mxu0
      %v4218 = vadd.f32 0.0, %v4217
      %4219 = vmatmul.f32.gmra.mxu0 %v3947
      %v4220 = vpop.f32.mrf.mxu0
      %v4221 = vadd.f32 0.0, %v4220
      %4222 = vmatmul.f32.gmra.mxu0 %v3950
      %v4223 = vpop.f32.mrf.mxu0
      %v4224 = vadd.f32 0.0, %v4223
      %4225 = vmatmul.f32.gmra.mxu0 %v3953
      %v4226 = vpop.f32.mrf.mxu0
      %v4227 = vadd.f32 0.0, %v4226
      %4228 = vmatmul.f32.gmra.mxu0 %v3956
      %v4229 = vpop.f32.mrf.mxu0
      %v4230 = vadd.f32 0.0, %v4229
      %4231 = vmatmul.f32.gmra.mxu0 %v3959
      %v4232 = vpop.f32.mrf.mxu0
      %v4233 = vadd.f32 0.0, %v4232
      %4234 = vmatmul.f32.gmra.mxu0 %v3962
      %v4235 = vpop.f32.mrf.mxu0
      %v4236 = vadd.f32 0.0, %v4235
      %4237 = vmatmul.f32.gmra.mxu0 %v3965
      %v4238 = vpop.f32.mrf.mxu0
      %v4239 = vadd.f32 0.0, %v4238
      %4240 = vmatmul.f32.gmra.mxu0 %v3968
      %v4241 = vpop.f32.mrf.mxu0
      %v4242 = vadd.f32 0.0, %v4241
      %4243 = vmatmul.f32.gmra.mxu0 %v3971
      %v4244 = vpop.f32.mrf.mxu0
      %v4245 = vadd.f32 0.0, %v4244
      %4246 = vmatmul.f32.gmra.mxu0 %v3974
      %v4247 = vpop.f32.mrf.mxu0
      %v4248 = vadd.f32 0.0, %v4247
      %4249 = vmatmul.f32.gmra.mxu0 %v3977
      %v4250 = vpop.f32.mrf.mxu0
      %v4251 = vadd.f32 0.0, %v4250
      %4252 = vmatmul.f32.gmra.mxu0 %v3980
      %v4253 = vpop.f32.mrf.mxu0
      %v4254 = vadd.f32 0.0, %v4253
      %4255 = vmatmul.f32.gmra.mxu0 %v3983
      %v4256 = vpop.f32.mrf.mxu0
      %v4257 = vadd.f32 0.0, %v4256
      %4258 = vmatmul.f32.gmra.mxu0 %v3986
      %v4259 = vpop.f32.mrf.mxu0
      %v4260 = vadd.f32 0.0, %v4259
      %4261 = vmatmul.f32.gmra.mxu0 %v3989
      %v4262 = vpop.f32.mrf.mxu0
      %v4263 = vadd.f32 0.0, %v4262
      %4264 = vmatmul.f32.gmra.mxu0 %v3992
      %v4265 = vpop.f32.mrf.mxu0
      %v4266 = vadd.f32 0.0, %v4265
      %4267 = vmatmul.f32.gmra.mxu0 %v3995
      %v4268 = vpop.f32.mrf.mxu0
      %v4269 = vadd.f32 0.0, %v4268
      %4270 = vmatmul.f32.gmra.mxu0 %v3998
      %v4271 = vpop.f32.mrf.mxu0
      %v4272 = vadd.f32 0.0, %v4271
      %4273 = vmatmul.f32.gmra.mxu0 %v4001
      %v4274 = vpop.f32.mrf.mxu0
      %v4275 = vadd.f32 0.0, %v4274
      %4276 = vmatmul.f32.gmra.mxu0 %v4004
      %v4277 = vpop.f32.mrf.mxu0
      %v4278 = vadd.f32 0.0, %v4277
      %4279 = vmatmul.f32.gmra.mxu0 %v4007
      %v4280 = vpop.f32.mrf.mxu0
      %v4281 = vadd.f32 0.0, %v4280
      %4282 = vdwg.mxu0
      %v4283 = vadd.f32 %v3740, %v4027
      %v4284 = vadd.f32 %v3741, %v4164
      %v4285 = vadd.f32 %v3742, %v4030
      %v4286 = vadd.f32 %v3743, %v4167
      %v4287 = vadd.f32 %v3744, %v4033
      %v4288 = vadd.f32 %v3745, %v4170
      %v4289 = vadd.f32 %v3746, %v4036
      %v4290 = vadd.f32 %v3747, %v4173
      %v4291 = vadd.f32 %v3748, %v4039
      %v4292 = vadd.f32 %v3749, %v4176
      %v4293 = vadd.f32 %v3750, %v4042
      %v4294 = vadd.f32 %v3751, %v4179
      %v4295 = vadd.f32 %v3752, %v4045
      %v4296 = vadd.f32 %v3753, %v4182
      %v4297 = vadd.f32 %v3754, %v4048
      %v4298 = vadd.f32 %v3755, %v4185
      %v4299 = vadd.f32 %v3756, %v4051
      %v4300 = vadd.f32 %v3757, %v4188
      %v4301 = vadd.f32 %v3758, %v4054
      %v4302 = vadd.f32 %v3759, %v4191
      %v4303 = vadd.f32 %v3760, %v4057
      %v4304 = vadd.f32 %v3761, %v4194
      %v4305 = vadd.f32 %v3762, %v4060
      %v4306 = vadd.f32 %v3763, %v4197
      %v4307 = vadd.f32 %v3764, %v4063
      %v4308 = vadd.f32 %v3765, %v4200
      %v4309 = vadd.f32 %v3766, %v4066
      %v4310 = vadd.f32 %v3767, %v4203
      %v4311 = vadd.f32 %v3768, %v4069
      %v4312 = vadd.f32 %v3769, %v4206
      %v4313 = vadd.f32 %v3770, %v4072
      %v4314 = vadd.f32 %v3771, %v4209
      %v4315 = vadd.f32 %v3772, %v4075
      %v4316 = vadd.f32 %v3773, %v4212
      %v4317 = vadd.f32 %v3774, %v4078
      %v4318 = vadd.f32 %v3775, %v4215
      %v4319 = vadd.f32 %v3776, %v4081
      %v4320 = vadd.f32 %v3777, %v4218
      %v4321 = vadd.f32 %v3778, %v4084
      %v4322 = vadd.f32 %v3779, %v4221
      %v4323 = vadd.f32 %v3780, %v4087
      %v4324 = vadd.f32 %v3781, %v4224
      %v4325 = vadd.f32 %v3782, %v4090
      %v4326 = vadd.f32 %v3783, %v4227
      %v4327 = vadd.f32 %v3784, %v4093
      %v4328 = vadd.f32 %v3785, %v4230
      %v4329 = vadd.f32 %v3786, %v4096
      %v4330 = vadd.f32 %v3787, %v4233
      %v4331 = vadd.f32 %v3788, %v4099
      %v4332 = vadd.f32 %v3789, %v4236
      %v4333 = vadd.f32 %v3790, %v4102
      %v4334 = vadd.f32 %v3791, %v4239
      %v4335 = vadd.f32 %v3792, %v4105
      %v4336 = vadd.f32 %v3793, %v4242
      %v4337 = vadd.f32 %v3794, %v4108
      %v4338 = vadd.f32 %v3795, %v4245
      %v4339 = vadd.f32 %v3796, %v4111
      %v4340 = vadd.f32 %v3797, %v4248
      %v4341 = vadd.f32 %v3798, %v4114
      %v4342 = vadd.f32 %v3799, %v4251
      %v4343 = vadd.f32 %v3800, %v4117
      %v4344 = vadd.f32 %v3801, %v4254
      %v4345 = vadd.f32 %v3802, %v4120
      %v4346 = vadd.f32 %v3803, %v4257
      %v4347 = vadd.f32 %v3804, %v4123
      %v4348 = vadd.f32 %v3805, %v4260
      %v4349 = vadd.f32 %v3806, %v4126
      %v4350 = vadd.f32 %v3807, %v4263
      %v4351 = vadd.f32 %v3808, %v4129
      %v4352 = vadd.f32 %v3809, %v4266
      %v4353 = vadd.f32 %v3810, %v4132
      %v4354 = vadd.f32 %v3811, %v4269
      %v4355 = vadd.f32 %v3812, %v4135
      %v4356 = vadd.f32 %v3813, %v4272
      %v4357 = vadd.f32 %v3814, %v4138
      %v4358 = vadd.f32 %v3815, %v4275
      %v4359 = vadd.f32 %v3816, %v4141
      %v4360 = vadd.f32 %v3817, %v4278
      %v4361 = vadd.f32 %v3818, %v4144
      %v4362 = vadd.f32 %v3819, %v4281
      %v4363 = vld [vmem:[%s170 + $0x16] sm:$0xff]
      %v4364 = vld [vmem:[%s170 + $0x1e] sm:$0xff]
      %v4365 = vld [vmem:[%s170 + $0x26] sm:$0xff]
      %v4366 = vld [vmem:[%s170 + $0x2e] sm:$0xff]
      %v4367 = vld [vmem:[%s170 + $0x36] sm:$0xff]
      %v4368 = vld [vmem:[%s170 + $0x3e] sm:$0xff]
      %v4369 = vld [vmem:[%s170 + $0x46] sm:$0xff]
      %v4370 = vld [vmem:[%s170 + $0x4e] sm:$0xff]
      %v4371 = vld [vmem:[%s170 + $0x56] sm:$0xff]
      %v4372 = vld [vmem:[%s170 + $0x5e] sm:$0xff]
      %v4373 = vld [vmem:[%s170 + $0x7e] sm:$0xff]
      %v4374 = vld [vmem:[%s170 + $0x86] sm:$0xff]
      %v4375 = vld [vmem:[%s170 + $0x8e] sm:$0xff]
      %v4376 = vld [vmem:[%s170 + $0x96] sm:$0xff]
      %v4377 = vld [vmem:[%s170 + $0x9e] sm:$0xff]
      %v4378 = vld [vmem:[%s170 + $0xa6] sm:$0xff]
      %v4379 = vld [vmem:[%s170 + $0xae] sm:$0xff]
      %v4380 = vld [vmem:[%s170 + $0xb6] sm:$0xff]
      %v4381 = vld [vmem:[%s170 + $0xbe] sm:$0xff]
      %v4382 = vld [vmem:[%s170 + $0xc6] sm:$0xff]
      %v4383 = vld [vmem:[%s170 + $0xe6] sm:$0xff]
      %v4384 = vld [vmem:[%s170 + $0xee] sm:$0xff]
      %v4385 = vld [vmem:[%s170 + $0xf6] sm:$0xff]
      %v4386 = vld [vmem:[%s170 + $0xfe] sm:$0xff]
      %v4387 = vld [vmem:[%s170 + $0x106] sm:$0xff]
      %v4388 = vld [vmem:[%s170 + $0x10e] sm:$0xff]
      %v4389 = vld [vmem:[%s170 + $0x116] sm:$0xff]
      %v4390 = vld [vmem:[%s170 + $0x11e] sm:$0xff]
      %v4391 = vld [vmem:[%s170 + $0x126] sm:$0xff]
      %v4392 = vld [vmem:[%s170 + $0x12e] sm:$0xff]
      %v4393 = vld [vmem:[%s170 + $0x14e] sm:$0xff]
      %v4394 = vld [vmem:[%s170 + $0x156] sm:$0xff]
      %v4395 = vld [vmem:[%s170 + $0x15e] sm:$0xff]
      %v4396 = vld [vmem:[%s170 + $0x166] sm:$0xff]
      %v4397 = vld [vmem:[%s170 + $0x16e] sm:$0xff]
      %v4398 = vld [vmem:[%s170 + $0x176] sm:$0xff]
      %v4399 = vld [vmem:[%s170 + $0x17e] sm:$0xff]
      %v4400 = vld [vmem:[%s170 + $0x186] sm:$0xff]
      %v4401 = vld [vmem:[%s170 + $0x18e] sm:$0xff]
      %v4402 = vld [vmem:[%s170 + $0x196] sm:$0xff]
      %s4403 = scalar_lea.vmem %s1, 1792
      %v4404 = vld [vmem:[%s4403] sm:$0xff]
      %v4405 = vld [vmem:[%s4403 + $0x8] sm:$0xff]
      %v4406 = vld [vmem:[%s4403 + $0x10] sm:$0xff]
      %v4407 = vld [vmem:[%s4403 + $0x18] sm:$0xff]
      %v4408 = vld [vmem:[%s4403 + $0x20] sm:$0xff]
      %v4409 = vld [vmem:[%s4403 + $0x28] sm:$0xff]
      %v4410 = vld [vmem:[%s4403 + $0x30] sm:$0xff]
      %v4411 = vld [vmem:[%s4403 + $0x38] sm:$0xff]
      %v4412 = vld [vmem:[%s4403 + $0x40] sm:$0xff]
      %v4413 = vld [vmem:[%s4403 + $0x48] sm:$0xff]
      %v4414 = vld [vmem:[%s4403 + $0x50] sm:$0xff]
      %v4415 = vld [vmem:[%s4403 + $0x58] sm:$0xff]
      %v4416 = vld [vmem:[%s4403 + $0x60] sm:$0xff]
      %v4417 = vld [vmem:[%s4403 + $0x68] sm:$0xff]
      %v4418 = vld [vmem:[%s4403 + $0x70] sm:$0xff]
      %v4419 = vld [vmem:[%s4403 + $0x78] sm:$0xff]
      %v4420 = vld [vmem:[%s4403 + $0x80] sm:$0xff]
      %v4421 = vld [vmem:[%s4403 + $0x88] sm:$0xff]
      %v4422 = vld [vmem:[%s4403 + $0x90] sm:$0xff]
      %v4423 = vld [vmem:[%s4403 + $0x98] sm:$0xff]
      %v4424 = vld [vmem:[%s4403 + $0xa0] sm:$0xff]
      %v4425 = vld [vmem:[%s4403 + $0xa8] sm:$0xff]
      %v4426 = vld [vmem:[%s4403 + $0xb0] sm:$0xff]
      %v4427 = vld [vmem:[%s4403 + $0xb8] sm:$0xff]
      %v4428 = vld [vmem:[%s4403 + $0xc0] sm:$0xff]
      %v4429 = vld [vmem:[%s4403 + $0xc8] sm:$0xff]
      %v4430 = vld [vmem:[%s4403 + $0xd0] sm:$0xff]
      %v4431 = vld [vmem:[%s4403 + $0xd8] sm:$0xff]
      %v4433 = vsel %vm316, %v4363, 0
      %v4436 = vsel %vm316, %v4364, 0
      %v4439 = vsel %vm316, %v4365, 0
      %v4442 = vsel %vm316, %v4366, 0
      %v4445 = vsel %vm316, %v4367, 0
      %v4448 = vsel %vm316, %v4368, 0
      %v4451 = vsel %vm316, %v4369, 0
      %v4454 = vsel %vm316, %v4370, 0
      %v4457 = vsel %vm316, %v4371, 0
      %v4460 = vsel %vm316, %v4372, 0
      %v4463 = vsel %vm316, %v4373, 0
      %v4466 = vsel %vm316, %v4374, 0
      %v4469 = vsel %vm316, %v4375, 0
      %v4472 = vsel %vm316, %v4376, 0
      %v4475 = vsel %vm316, %v4377, 0
      %v4478 = vsel %vm316, %v4378, 0
      %v4481 = vsel %vm316, %v4379, 0
      %v4484 = vsel %vm316, %v4380, 0
      %v4487 = vsel %vm316, %v4381, 0
      %v4490 = vsel %vm316, %v4382, 0
      %v4493 = vsel %vm316, %v4383, 0
      %v4496 = vsel %vm316, %v4384, 0
      %v4499 = vsel %vm316, %v4385, 0
      %v4502 = vsel %vm316, %v4386, 0
      %v4505 = vsel %vm316, %v4387, 0
      %v4508 = vsel %vm316, %v4388, 0
      %v4511 = vsel %vm316, %v4389, 0
      %v4514 = vsel %vm316, %v4390, 0
      %v4517 = vsel %vm316, %v4391, 0
      %v4520 = vsel %vm316, %v4392, 0
      %v4523 = vsel %vm316, %v4393, 0
      %v4526 = vsel %vm316, %v4394, 0
      %v4529 = vsel %vm316, %v4395, 0
      %v4532 = vsel %vm316, %v4396, 0
      %v4535 = vsel %vm316, %v4397, 0
      %v4538 = vsel %vm316, %v4398, 0
      %v4541 = vsel %vm316, %v4399, 0
      %v4544 = vsel %vm316, %v4400, 0
      %v4547 = vsel %vm316, %v4401, 0
      %v4550 = vsel %vm316, %v4402, 0
      %4552 = vmatpush.msra.mxu0 0.0
      %4553 = vmatpush.msra.mxu0 0.0
      %4554 = vmatpush.msra.mxu0 %v4430
      %4555 = vmatpush.msra.mxu0 %v4428
      %4556 = vmatpush.msra.mxu0 %v4426
      %4557 = vmatpush.msra.mxu0 %v4424
      %4558 = vmatpush.msra.mxu0 %v4422
      %4559 = vmatpush.msra.mxu0 %v4420
      %4560 = vmatpush.msra.mxu0 %v4418
      %4561 = vmatpush.msra.mxu0 %v4416
      %4562 = vmatpush.msra.mxu0 %v4414
      %4563 = vmatpush.msra.mxu0 %v4412
      %4564 = vmatpush.msra.mxu0 %v4410
      %4565 = vmatpush.msra.mxu0 %v4408
      %4566 = vmatpush.msra.mxu0 %v4406
      %4567 = vmatpush.msra.mxu0 %v4404
      %4568 = vmatmul.f32.gmra.mxu0 %v4433
      %v4569 = vpop.f32.mrf.mxu0
      %v4570 = vadd.f32 0.0, %v4569
      %4571 = vmatmul.f32.gmra.mxu0 %v4436
      %v4572 = vpop.f32.mrf.mxu0
      %v4573 = vadd.f32 0.0, %v4572
      %4574 = vmatmul.f32.gmra.mxu0 %v4439
      %v4575 = vpop.f32.mrf.mxu0
      %v4576 = vadd.f32 0.0, %v4575
      %4577 = vmatmul.f32.gmra.mxu0 %v4442
      %v4578 = vpop.f32.mrf.mxu0
      %v4579 = vadd.f32 0.0, %v4578
      %4580 = vmatmul.f32.gmra.mxu0 %v4445
      %v4581 = vpop.f32.mrf.mxu0
      %v4582 = vadd.f32 0.0, %v4581
      %4583 = vmatmul.f32.gmra.mxu0 %v4448
      %v4584 = vpop.f32.mrf.mxu0
      %v4585 = vadd.f32 0.0, %v4584
      %4586 = vmatmul.f32.gmra.mxu0 %v4451
      %v4587 = vpop.f32.mrf.mxu0
      %v4588 = vadd.f32 0.0, %v4587
      %4589 = vmatmul.f32.gmra.mxu0 %v4454
      %v4590 = vpop.f32.mrf.mxu0
      %v4591 = vadd.f32 0.0, %v4590
      %4592 = vmatmul.f32.gmra.mxu0 %v4457
      %v4593 = vpop.f32.mrf.mxu0
      %v4594 = vadd.f32 0.0, %v4593
      %4595 = vmatmul.f32.gmra.mxu0 %v4460
      %v4596 = vpop.f32.mrf.mxu0
      %v4597 = vadd.f32 0.0, %v4596
      %4598 = vmatmul.f32.gmra.mxu0 %v4463
      %v4599 = vpop.f32.mrf.mxu0
      %v4600 = vadd.f32 0.0, %v4599
      %4601 = vmatmul.f32.gmra.mxu0 %v4466
      %v4602 = vpop.f32.mrf.mxu0
      %v4603 = vadd.f32 0.0, %v4602
      %4604 = vmatmul.f32.gmra.mxu0 %v4469
      %v4605 = vpop.f32.mrf.mxu0
      %v4606 = vadd.f32 0.0, %v4605
      %4607 = vmatmul.f32.gmra.mxu0 %v4472
      %v4608 = vpop.f32.mrf.mxu0
      %v4609 = vadd.f32 0.0, %v4608
      %4610 = vmatmul.f32.gmra.mxu0 %v4475
      %v4611 = vpop.f32.mrf.mxu0
      %v4612 = vadd.f32 0.0, %v4611
      %4613 = vmatmul.f32.gmra.mxu0 %v4478
      %v4614 = vpop.f32.mrf.mxu0
      %v4615 = vadd.f32 0.0, %v4614
      %4616 = vmatmul.f32.gmra.mxu0 %v4481
      %v4617 = vpop.f32.mrf.mxu0
      %v4618 = vadd.f32 0.0, %v4617
      %4619 = vmatmul.f32.gmra.mxu0 %v4484
      %v4620 = vpop.f32.mrf.mxu0
      %v4621 = vadd.f32 0.0, %v4620
      %4622 = vmatmul.f32.gmra.mxu0 %v4487
      %v4623 = vpop.f32.mrf.mxu0
      %v4624 = vadd.f32 0.0, %v4623
      %4625 = vmatmul.f32.gmra.mxu0 %v4490
      %v4626 = vpop.f32.mrf.mxu0
      %v4627 = vadd.f32 0.0, %v4626
      %4628 = vmatmul.f32.gmra.mxu0 %v4493
      %v4629 = vpop.f32.mrf.mxu0
      %v4630 = vadd.f32 0.0, %v4629
      %4631 = vmatmul.f32.gmra.mxu0 %v4496
      %v4632 = vpop.f32.mrf.mxu0
      %v4633 = vadd.f32 0.0, %v4632
      %4634 = vmatmul.f32.gmra.mxu0 %v4499
      %v4635 = vpop.f32.mrf.mxu0
      %v4636 = vadd.f32 0.0, %v4635
      %4637 = vmatmul.f32.gmra.mxu0 %v4502
      %v4638 = vpop.f32.mrf.mxu0
      %v4639 = vadd.f32 0.0, %v4638
      %4640 = vmatmul.f32.gmra.mxu0 %v4505
      %v4641 = vpop.f32.mrf.mxu0
      %v4642 = vadd.f32 0.0, %v4641
      %4643 = vmatmul.f32.gmra.mxu0 %v4508
      %v4644 = vpop.f32.mrf.mxu0
      %v4645 = vadd.f32 0.0, %v4644
      %4646 = vmatmul.f32.gmra.mxu0 %v4511
      %v4647 = vpop.f32.mrf.mxu0
      %v4648 = vadd.f32 0.0, %v4647
      %4649 = vmatmul.f32.gmra.mxu0 %v4514
      %v4650 = vpop.f32.mrf.mxu0
      %v4651 = vadd.f32 0.0, %v4650
      %4652 = vmatmul.f32.gmra.mxu0 %v4517
      %v4653 = vpop.f32.mrf.mxu0
      %v4654 = vadd.f32 0.0, %v4653
      %4655 = vmatmul.f32.gmra.mxu0 %v4520
      %v4656 = vpop.f32.mrf.mxu0
      %v4657 = vadd.f32 0.0, %v4656
      %4658 = vmatmul.f32.gmra.mxu0 %v4523
      %v4659 = vpop.f32.mrf.mxu0
      %v4660 = vadd.f32 0.0, %v4659
      %4661 = vmatmul.f32.gmra.mxu0 %v4526
      %v4662 = vpop.f32.mrf.mxu0
      %v4663 = vadd.f32 0.0, %v4662
      %4664 = vmatmul.f32.gmra.mxu0 %v4529
      %v4665 = vpop.f32.mrf.mxu0
      %v4666 = vadd.f32 0.0, %v4665
      %4667 = vmatmul.f32.gmra.mxu0 %v4532
      %v4668 = vpop.f32.mrf.mxu0
      %v4669 = vadd.f32 0.0, %v4668
      %4670 = vmatmul.f32.gmra.mxu0 %v4535
      %v4671 = vpop.f32.mrf.mxu0
      %v4672 = vadd.f32 0.0, %v4671
      %4673 = vmatmul.f32.gmra.mxu0 %v4538
      %v4674 = vpop.f32.mrf.mxu0
      %v4675 = vadd.f32 0.0, %v4674
      %4676 = vmatmul.f32.gmra.mxu0 %v4541
      %v4677 = vpop.f32.mrf.mxu0
      %v4678 = vadd.f32 0.0, %v4677
      %4679 = vmatmul.f32.gmra.mxu0 %v4544
      %v4680 = vpop.f32.mrf.mxu0
      %v4681 = vadd.f32 0.0, %v4680
      %4682 = vmatmul.f32.gmra.mxu0 %v4547
      %v4683 = vpop.f32.mrf.mxu0
      %v4684 = vadd.f32 0.0, %v4683
      %4685 = vmatmul.f32.gmra.mxu0 %v4550
      %v4686 = vpop.f32.mrf.mxu0
      %v4687 = vadd.f32 0.0, %v4686
      %4688 = vdwg.mxu0
      %4689 = vmatpush.msra.mxu0 0.0
      %4690 = vmatpush.msra.mxu0 0.0
      %4691 = vmatpush.msra.mxu0 %v4431
      %4692 = vmatpush.msra.mxu0 %v4429
      %4693 = vmatpush.msra.mxu0 %v4427
      %4694 = vmatpush.msra.mxu0 %v4425
      %4695 = vmatpush.msra.mxu0 %v4423
      %4696 = vmatpush.msra.mxu0 %v4421
      %4697 = vmatpush.msra.mxu0 %v4419
      %4698 = vmatpush.msra.mxu0 %v4417
      %4699 = vmatpush.msra.mxu0 %v4415
      %4700 = vmatpush.msra.mxu0 %v4413
      %4701 = vmatpush.msra.mxu0 %v4411
      %4702 = vmatpush.msra.mxu0 %v4409
      %4703 = vmatpush.msra.mxu0 %v4407
      %4704 = vmatpush.msra.mxu0 %v4405
      %4705 = vmatmul.f32.gmra.mxu0 %v4433
      %v4706 = vpop.f32.mrf.mxu0
      %v4707 = vadd.f32 0.0, %v4706
      %4708 = vmatmul.f32.gmra.mxu0 %v4436
      %v4709 = vpop.f32.mrf.mxu0
      %v4710 = vadd.f32 0.0, %v4709
      %4711 = vmatmul.f32.gmra.mxu0 %v4439
      %v4712 = vpop.f32.mrf.mxu0
      %v4713 = vadd.f32 0.0, %v4712
      %4714 = vmatmul.f32.gmra.mxu0 %v4442
      %v4715 = vpop.f32.mrf.mxu0
      %v4716 = vadd.f32 0.0, %v4715
      %4717 = vmatmul.f32.gmra.mxu0 %v4445
      %v4718 = vpop.f32.mrf.mxu0
      %v4719 = vadd.f32 0.0, %v4718
      %4720 = vmatmul.f32.gmra.mxu0 %v4448
      %v4721 = vpop.f32.mrf.mxu0
      %v4722 = vadd.f32 0.0, %v4721
      %4723 = vmatmul.f32.gmra.mxu0 %v4451
      %v4724 = vpop.f32.mrf.mxu0
      %v4725 = vadd.f32 0.0, %v4724
      %4726 = vmatmul.f32.gmra.mxu0 %v4454
      %v4727 = vpop.f32.mrf.mxu0
      %v4728 = vadd.f32 0.0, %v4727
      %4729 = vmatmul.f32.gmra.mxu0 %v4457
      %v4730 = vpop.f32.mrf.mxu0
      %v4731 = vadd.f32 0.0, %v4730
      %4732 = vmatmul.f32.gmra.mxu0 %v4460
      %v4733 = vpop.f32.mrf.mxu0
      %v4734 = vadd.f32 0.0, %v4733
      %4735 = vmatmul.f32.gmra.mxu0 %v4463
      %v4736 = vpop.f32.mrf.mxu0
      %v4737 = vadd.f32 0.0, %v4736
      %4738 = vmatmul.f32.gmra.mxu0 %v4466
      %v4739 = vpop.f32.mrf.mxu0
      %v4740 = vadd.f32 0.0, %v4739
      %4741 = vmatmul.f32.gmra.mxu0 %v4469
      %v4742 = vpop.f32.mrf.mxu0
      %v4743 = vadd.f32 0.0, %v4742
      %4744 = vmatmul.f32.gmra.mxu0 %v4472
      %v4745 = vpop.f32.mrf.mxu0
      %v4746 = vadd.f32 0.0, %v4745
      %4747 = vmatmul.f32.gmra.mxu0 %v4475
      %v4748 = vpop.f32.mrf.mxu0
      %v4749 = vadd.f32 0.0, %v4748
      %4750 = vmatmul.f32.gmra.mxu0 %v4478
      %v4751 = vpop.f32.mrf.mxu0
      %v4752 = vadd.f32 0.0, %v4751
      %4753 = vmatmul.f32.gmra.mxu0 %v4481
      %v4754 = vpop.f32.mrf.mxu0
      %v4755 = vadd.f32 0.0, %v4754
      %4756 = vmatmul.f32.gmra.mxu0 %v4484
      %v4757 = vpop.f32.mrf.mxu0
      %v4758 = vadd.f32 0.0, %v4757
      %4759 = vmatmul.f32.gmra.mxu0 %v4487
      %v4760 = vpop.f32.mrf.mxu0
      %v4761 = vadd.f32 0.0, %v4760
      %4762 = vmatmul.f32.gmra.mxu0 %v4490
      %v4763 = vpop.f32.mrf.mxu0
      %v4764 = vadd.f32 0.0, %v4763
      %4765 = vmatmul.f32.gmra.mxu0 %v4493
      %v4766 = vpop.f32.mrf.mxu0
      %v4767 = vadd.f32 0.0, %v4766
      %4768 = vmatmul.f32.gmra.mxu0 %v4496
      %v4769 = vpop.f32.mrf.mxu0
      %v4770 = vadd.f32 0.0, %v4769
      %4771 = vmatmul.f32.gmra.mxu0 %v4499
      %v4772 = vpop.f32.mrf.mxu0
      %v4773 = vadd.f32 0.0, %v4772
      %4774 = vmatmul.f32.gmra.mxu0 %v4502
      %v4775 = vpop.f32.mrf.mxu0
      %v4776 = vadd.f32 0.0, %v4775
      %4777 = vmatmul.f32.gmra.mxu0 %v4505
      %v4778 = vpop.f32.mrf.mxu0
      %v4779 = vadd.f32 0.0, %v4778
      %4780 = vmatmul.f32.gmra.mxu0 %v4508
      %v4781 = vpop.f32.mrf.mxu0
      %v4782 = vadd.f32 0.0, %v4781
      %4783 = vmatmul.f32.gmra.mxu0 %v4511
      %v4784 = vpop.f32.mrf.mxu0
      %v4785 = vadd.f32 0.0, %v4784
      %4786 = vmatmul.f32.gmra.mxu0 %v4514
      %v4787 = vpop.f32.mrf.mxu0
      %v4788 = vadd.f32 0.0, %v4787
      %4789 = vmatmul.f32.gmra.mxu0 %v4517
      %v4790 = vpop.f32.mrf.mxu0
      %v4791 = vadd.f32 0.0, %v4790
      %4792 = vmatmul.f32.gmra.mxu0 %v4520
      %v4793 = vpop.f32.mrf.mxu0
      %v4794 = vadd.f32 0.0, %v4793
      %4795 = vmatmul.f32.gmra.mxu0 %v4523
      %v4796 = vpop.f32.mrf.mxu0
      %v4797 = vadd.f32 0.0, %v4796
      %4798 = vmatmul.f32.gmra.mxu0 %v4526
      %v4799 = vpop.f32.mrf.mxu0
      %v4800 = vadd.f32 0.0, %v4799
      %4801 = vmatmul.f32.gmra.mxu0 %v4529
      %v4802 = vpop.f32.mrf.mxu0
      %v4803 = vadd.f32 0.0, %v4802
      %4804 = vmatmul.f32.gmra.mxu0 %v4532
      %v4805 = vpop.f32.mrf.mxu0
      %v4806 = vadd.f32 0.0, %v4805
      %4807 = vmatmul.f32.gmra.mxu0 %v4535
      %v4808 = vpop.f32.mrf.mxu0
      %v4809 = vadd.f32 0.0, %v4808
      %4810 = vmatmul.f32.gmra.mxu0 %v4538
      %v4811 = vpop.f32.mrf.mxu0
      %v4812 = vadd.f32 0.0, %v4811
      %4813 = vmatmul.f32.gmra.mxu0 %v4541
      %v4814 = vpop.f32.mrf.mxu0
      %v4815 = vadd.f32 0.0, %v4814
      %4816 = vmatmul.f32.gmra.mxu0 %v4544
      %v4817 = vpop.f32.mrf.mxu0
      %v4818 = vadd.f32 0.0, %v4817
      %4819 = vmatmul.f32.gmra.mxu0 %v4547
      %v4820 = vpop.f32.mrf.mxu0
      %v4821 = vadd.f32 0.0, %v4820
      %4822 = vmatmul.f32.gmra.mxu0 %v4550
      %v4823 = vpop.f32.mrf.mxu0
      %v4824 = vadd.f32 0.0, %v4823
      %4825 = vdwg.mxu0
      %v4826 = vadd.f32 %v4283, %v4570
      %v4827 = vadd.f32 %v4284, %v4707
      %v4828 = vadd.f32 %v4285, %v4573
      %v4829 = vadd.f32 %v4286, %v4710
      %v4830 = vadd.f32 %v4287, %v4576
      %v4831 = vadd.f32 %v4288, %v4713
      %v4832 = vadd.f32 %v4289, %v4579
      %v4833 = vadd.f32 %v4290, %v4716
      %v4834 = vadd.f32 %v4291, %v4582
      %v4835 = vadd.f32 %v4292, %v4719
      %v4836 = vadd.f32 %v4293, %v4585
      %v4837 = vadd.f32 %v4294, %v4722
      %v4838 = vadd.f32 %v4295, %v4588
      %v4839 = vadd.f32 %v4296, %v4725
      %v4840 = vadd.f32 %v4297, %v4591
      %v4841 = vadd.f32 %v4298, %v4728
      %v4842 = vadd.f32 %v4299, %v4594
      %v4843 = vadd.f32 %v4300, %v4731
      %v4844 = vadd.f32 %v4301, %v4597
      %v4845 = vadd.f32 %v4302, %v4734
      %v4846 = vadd.f32 %v4303, %v4600
      %v4847 = vadd.f32 %v4304, %v4737
      %v4848 = vadd.f32 %v4305, %v4603
      %v4849 = vadd.f32 %v4306, %v4740
      %v4850 = vadd.f32 %v4307, %v4606
      %v4851 = vadd.f32 %v4308, %v4743
      %v4852 = vadd.f32 %v4309, %v4609
      %v4853 = vadd.f32 %v4310, %v4746
      %v4854 = vadd.f32 %v4311, %v4612
      %v4855 = vadd.f32 %v4312, %v4749
      %v4856 = vadd.f32 %v4313, %v4615
      %v4857 = vadd.f32 %v4314, %v4752
      %v4858 = vadd.f32 %v4315, %v4618
      %v4859 = vadd.f32 %v4316, %v4755
      %v4860 = vadd.f32 %v4317, %v4621
      %v4861 = vadd.f32 %v4318, %v4758
      %v4862 = vadd.f32 %v4319, %v4624
      %v4863 = vadd.f32 %v4320, %v4761
      %v4864 = vadd.f32 %v4321, %v4627
      %v4865 = vadd.f32 %v4322, %v4764
      %v4866 = vadd.f32 %v4323, %v4630
      %v4867 = vadd.f32 %v4324, %v4767
      %v4868 = vadd.f32 %v4325, %v4633
      %v4869 = vadd.f32 %v4326, %v4770
      %v4870 = vadd.f32 %v4327, %v4636
      %v4871 = vadd.f32 %v4328, %v4773
      %v4872 = vadd.f32 %v4329, %v4639
      %v4873 = vadd.f32 %v4330, %v4776
      %v4874 = vadd.f32 %v4331, %v4642
      %v4875 = vadd.f32 %v4332, %v4779
      %v4876 = vadd.f32 %v4333, %v4645
      %v4877 = vadd.f32 %v4334, %v4782
      %v4878 = vadd.f32 %v4335, %v4648
      %v4879 = vadd.f32 %v4336, %v4785
      %v4880 = vadd.f32 %v4337, %v4651
      %v4881 = vadd.f32 %v4338, %v4788
      %v4882 = vadd.f32 %v4339, %v4654
      %v4883 = vadd.f32 %v4340, %v4791
      %v4884 = vadd.f32 %v4341, %v4657
      %v4885 = vadd.f32 %v4342, %v4794
      %v4886 = vadd.f32 %v4343, %v4660
      %v4887 = vadd.f32 %v4344, %v4797
      %v4888 = vadd.f32 %v4345, %v4663
      %v4889 = vadd.f32 %v4346, %v4800
      %v4890 = vadd.f32 %v4347, %v4666
      %v4891 = vadd.f32 %v4348, %v4803
      %v4892 = vadd.f32 %v4349, %v4669
      %v4893 = vadd.f32 %v4350, %v4806
      %v4894 = vadd.f32 %v4351, %v4672
      %v4895 = vadd.f32 %v4352, %v4809
      %v4896 = vadd.f32 %v4353, %v4675
      %v4897 = vadd.f32 %v4354, %v4812
      %v4898 = vadd.f32 %v4355, %v4678
      %v4899 = vadd.f32 %v4356, %v4815
      %v4900 = vadd.f32 %v4357, %v4681
      %v4901 = vadd.f32 %v4358, %v4818
      %v4902 = vadd.f32 %v4359, %v4684
      %v4903 = vadd.f32 %v4360, %v4821
      %v4904 = vadd.f32 %v4361, %v4687
      %v4905 = vadd.f32 %v4362, %v4824
      %v4906 = vld [vmem:[%s2] sm:$0x3]
      %v4908 = vperm.slane %v4906, 0
      %v4909 = vperm.slane %v4906, 1
      %v4912 = vadd.f32 %v4826, %v4908
      %v4913 = vadd.f32 %v4827, %v4909
      %v4914 = vadd.f32 %v4828, %v4908
      %v4915 = vadd.f32 %v4829, %v4909
      %v4916 = vadd.f32 %v4830, %v4908
      %v4917 = vadd.f32 %v4831, %v4909
      %v4918 = vadd.f32 %v4832, %v4908
      %v4919 = vadd.f32 %v4833, %v4909
      %v4920 = vadd.f32 %v4834, %v4908
      %v4921 = vadd.f32 %v4835, %v4909
      %v4922 = vadd.f32 %v4836, %v4908
      %v4923 = vadd.f32 %v4837, %v4909
      %v4924 = vadd.f32 %v4838, %v4908
      %v4925 = vadd.f32 %v4839, %v4909
      %v4926 = vadd.f32 %v4840, %v4908
      %v4927 = vadd.f32 %v4841, %v4909
      %v4928 = vadd.f32 %v4842, %v4908
      %v4929 = vadd.f32 %v4843, %v4909
      %v4930 = vadd.f32 %v4844, %v4908
      %v4931 = vadd.f32 %v4845, %v4909
      %v4932 = vadd.f32 %v4846, %v4908
      %v4933 = vadd.f32 %v4847, %v4909
      %v4934 = vadd.f32 %v4848, %v4908
      %v4935 = vadd.f32 %v4849, %v4909
      %v4936 = vadd.f32 %v4850, %v4908
      %v4937 = vadd.f32 %v4851, %v4909
      %v4938 = vadd.f32 %v4852, %v4908
      %v4939 = vadd.f32 %v4853, %v4909
      %v4940 = vadd.f32 %v4854, %v4908
      %v4941 = vadd.f32 %v4855, %v4909
      %v4942 = vadd.f32 %v4856, %v4908
      %v4943 = vadd.f32 %v4857, %v4909
      %v4944 = vadd.f32 %v4858, %v4908
      %v4945 = vadd.f32 %v4859, %v4909
      %v4946 = vadd.f32 %v4860, %v4908
      %v4947 = vadd.f32 %v4861, %v4909
      %v4948 = vadd.f32 %v4862, %v4908
      %v4949 = vadd.f32 %v4863, %v4909
      %v4950 = vadd.f32 %v4864, %v4908
      %v4951 = vadd.f32 %v4865, %v4909
      %v4952 = vadd.f32 %v4866, %v4908
      %v4953 = vadd.f32 %v4867, %v4909
      %v4954 = vadd.f32 %v4868, %v4908
      %v4955 = vadd.f32 %v4869, %v4909
      %v4956 = vadd.f32 %v4870, %v4908
      %v4957 = vadd.f32 %v4871, %v4909
      %v4958 = vadd.f32 %v4872, %v4908
      %v4959 = vadd.f32 %v4873, %v4909
      %v4960 = vadd.f32 %v4874, %v4908
      %v4961 = vadd.f32 %v4875, %v4909
      %v4962 = vadd.f32 %v4876, %v4908
      %v4963 = vadd.f32 %v4877, %v4909
      %v4964 = vadd.f32 %v4878, %v4908
      %v4965 = vadd.f32 %v4879, %v4909
      %v4966 = vadd.f32 %v4880, %v4908
      %v4967 = vadd.f32 %v4881, %v4909
      %v4968 = vadd.f32 %v4882, %v4908
      %v4969 = vadd.f32 %v4883, %v4909
      %v4970 = vadd.f32 %v4884, %v4908
      %v4971 = vadd.f32 %v4885, %v4909
      %v4972 = vadd.f32 %v4886, %v4908
      %v4973 = vadd.f32 %v4887, %v4909
      %v4974 = vadd.f32 %v4888, %v4908
      %v4975 = vadd.f32 %v4889, %v4909
      %v4976 = vadd.f32 %v4890, %v4908
      %v4977 = vadd.f32 %v4891, %v4909
      %v4978 = vadd.f32 %v4892, %v4908
      %v4979 = vadd.f32 %v4893, %v4909
      %v4980 = vadd.f32 %v4894, %v4908
      %v4981 = vadd.f32 %v4895, %v4909
      %v4982 = vadd.f32 %v4896, %v4908
      %v4983 = vadd.f32 %v4897, %v4909
      %v4984 = vadd.f32 %v4898, %v4908
      %v4985 = vadd.f32 %v4899, %v4909
      %v4986 = vadd.f32 %v4900, %v4908
      %v4987 = vadd.f32 %v4901, %v4909
      %v4988 = vadd.f32 %v4902, %v4908
      %v4989 = vadd.f32 %v4903, %v4909
      %v4990 = vadd.f32 %v4904, %v4908
      %v4991 = vadd.f32 %v4905, %v4909
      %v4992 = vmax.f32 %v4912, 0.0
      %v4993 = vmax.f32 %v4913, 0.0
      %v4994 = vmax.f32 %v4914, 0.0
      %v4995 = vmax.f32 %v4915, 0.0
      %v4996 = vmax.f32 %v4916, 0.0
      %v4997 = vmax.f32 %v4917, 0.0
      %v4998 = vmax.f32 %v4918, 0.0
      %v4999 = vmax.f32 %v4919, 0.0
      %v5000 = vmax.f32 %v4920, 0.0
      %v5001 = vmax.f32 %v4921, 0.0
      %v5002 = vmax.f32 %v4922, 0.0
      %v5003 = vmax.f32 %v4923, 0.0
      %v5004 = vmax.f32 %v4924, 0.0
      %v5005 = vmax.f32 %v4925, 0.0
      %v5006 = vmax.f32 %v4926, 0.0
      %v5007 = vmax.f32 %v4927, 0.0
      %v5008 = vmax.f32 %v4928, 0.0
      %v5009 = vmax.f32 %v4929, 0.0
      %v5010 = vmax.f32 %v4930, 0.0
      %v5011 = vmax.f32 %v4931, 0.0
      %v5012 = vmax.f32 %v4932, 0.0
      %v5013 = vmax.f32 %v4933, 0.0
      %v5014 = vmax.f32 %v4934, 0.0
      %v5015 = vmax.f32 %v4935, 0.0
      %v5016 = vmax.f32 %v4936, 0.0
      %v5017 = vmax.f32 %v4937, 0.0
      %v5018 = vmax.f32 %v4938, 0.0
      %v5019 = vmax.f32 %v4939, 0.0
      %v5020 = vmax.f32 %v4940, 0.0
      %v5021 = vmax.f32 %v4941, 0.0
      %v5022 = vmax.f32 %v4942, 0.0
      %v5023 = vmax.f32 %v4943, 0.0
      %v5024 = vmax.f32 %v4944, 0.0
      %v5025 = vmax.f32 %v4945, 0.0
      %v5026 = vmax.f32 %v4946, 0.0
      %v5027 = vmax.f32 %v4947, 0.0
      %v5028 = vmax.f32 %v4948, 0.0
      %v5029 = vmax.f32 %v4949, 0.0
      %v5030 = vmax.f32 %v4950, 0.0
      %v5031 = vmax.f32 %v4951, 0.0
      %v5032 = vmax.f32 %v4952, 0.0
      %v5033 = vmax.f32 %v4953, 0.0
      %v5034 = vmax.f32 %v4954, 0.0
      %v5035 = vmax.f32 %v4955, 0.0
      %v5036 = vmax.f32 %v4956, 0.0
      %v5037 = vmax.f32 %v4957, 0.0
      %v5038 = vmax.f32 %v4958, 0.0
      %v5039 = vmax.f32 %v4959, 0.0
      %v5040 = vmax.f32 %v4960, 0.0
      %v5041 = vmax.f32 %v4961, 0.0
      %v5042 = vmax.f32 %v4962, 0.0
      %v5043 = vmax.f32 %v4963, 0.0
      %v5044 = vmax.f32 %v4964, 0.0
      %v5045 = vmax.f32 %v4965, 0.0
      %v5046 = vmax.f32 %v4966, 0.0
      %v5047 = vmax.f32 %v4967, 0.0
      %v5048 = vmax.f32 %v4968, 0.0
      %v5049 = vmax.f32 %v4969, 0.0
      %v5050 = vmax.f32 %v4970, 0.0
      %v5051 = vmax.f32 %v4971, 0.0
      %v5052 = vmax.f32 %v4972, 0.0
      %v5053 = vmax.f32 %v4973, 0.0
      %v5054 = vmax.f32 %v4974, 0.0
      %v5055 = vmax.f32 %v4975, 0.0
      %v5056 = vmax.f32 %v4976, 0.0
      %v5057 = vmax.f32 %v4977, 0.0
      %v5058 = vmax.f32 %v4978, 0.0
      %v5059 = vmax.f32 %v4979, 0.0
      %v5060 = vmax.f32 %v4980, 0.0
      %v5061 = vmax.f32 %v4981, 0.0
      %v5062 = vmax.f32 %v4982, 0.0
      %v5063 = vmax.f32 %v4983, 0.0
      %v5064 = vmax.f32 %v4984, 0.0
      %v5065 = vmax.f32 %v4985, 0.0
      %v5066 = vmax.f32 %v4986, 0.0
      %v5067 = vmax.f32 %v4987, 0.0
      %v5068 = vmax.f32 %v4988, 0.0
      %v5069 = vmax.f32 %v4989, 0.0
      %v5070 = vmax.f32 %v4990, 0.0
      %v5071 = vmax.f32 %v4991, 0.0
      %5072 = vst [vmem:[%s177] sm:$0xff] %v4992
      %vm5073 = vcmask 261120
      %5074 = vst.msk [vmem:[%s177 + $0x8] sm:$0xff] %vm5073, %v4993
      %5075 = vst [vmem:[%s177 + $0x10] sm:$0xff] %v4994
      %5076 = vst.msk [vmem:[%s177 + $0x18] sm:$0xff] %vm5073, %v4995
      %5077 = vst [vmem:[%s177 + $0x20] sm:$0xff] %v4996
      %5078 = vst.msk [vmem:[%s177 + $0x28] sm:$0xff] %vm5073, %v4997
      %5079 = vst [vmem:[%s177 + $0x30] sm:$0xff] %v4998
      %5080 = vst.msk [vmem:[%s177 + $0x38] sm:$0xff] %vm5073, %v4999
      %5081 = vst [vmem:[%s177 + $0x40] sm:$0xff] %v5000
      %5082 = vst.msk [vmem:[%s177 + $0x48] sm:$0xff] %vm5073, %v5001
      %5083 = vst [vmem:[%s177 + $0x50] sm:$0xff] %v5002
      %5084 = vst.msk [vmem:[%s177 + $0x58] sm:$0xff] %vm5073, %v5003
      %5085 = vst [vmem:[%s177 + $0x60] sm:$0xff] %v5004
      %5086 = vst.msk [vmem:[%s177 + $0x68] sm:$0xff] %vm5073, %v5005
      %5087 = vst [vmem:[%s177 + $0x70] sm:$0xff] %v5006
      %5088 = vst.msk [vmem:[%s177 + $0x78] sm:$0xff] %vm5073, %v5007
      %5089 = vst [vmem:[%s177 + $0x80] sm:$0xff] %v5008
      %5090 = vst.msk [vmem:[%s177 + $0x88] sm:$0xff] %vm5073, %v5009
      %5091 = vst [vmem:[%s177 + $0x90] sm:$0xff] %v5010
      %5092 = vst.msk [vmem:[%s177 + $0x98] sm:$0xff] %vm5073, %v5011
      %5093 = vst [vmem:[%s177 + $0xa0] sm:$0xff] %v5012
      %5094 = vst.msk [vmem:[%s177 + $0xa8] sm:$0xff] %vm5073, %v5013
      %5095 = vst [vmem:[%s177 + $0xb0] sm:$0xff] %v5014
      %5096 = vst.msk [vmem:[%s177 + $0xb8] sm:$0xff] %vm5073, %v5015
      %5097 = vst [vmem:[%s177 + $0xc0] sm:$0xff] %v5016
      %5098 = vst.msk [vmem:[%s177 + $0xc8] sm:$0xff] %vm5073, %v5017
      %5099 = vst [vmem:[%s177 + $0xd0] sm:$0xff] %v5018
      %5100 = vst.msk [vmem:[%s177 + $0xd8] sm:$0xff] %vm5073, %v5019
      %5101 = vst [vmem:[%s177 + $0xe0] sm:$0xff] %v5020
      %5102 = vst.msk [vmem:[%s177 + $0xe8] sm:$0xff] %vm5073, %v5021
      %5103 = vst [vmem:[%s177 + $0xf0] sm:$0xff] %v5022
      %5104 = vst.msk [vmem:[%s177 + $0xf8] sm:$0xff] %vm5073, %v5023
      %5105 = vst [vmem:[%s177 + $0x100] sm:$0xff] %v5024
      %5106 = vst.msk [vmem:[%s177 + $0x108] sm:$0xff] %vm5073, %v5025
      %5107 = vst [vmem:[%s177 + $0x110] sm:$0xff] %v5026
      %5108 = vst.msk [vmem:[%s177 + $0x118] sm:$0xff] %vm5073, %v5027
      %5109 = vst [vmem:[%s177 + $0x120] sm:$0xff] %v5028
      %5110 = vst.msk [vmem:[%s177 + $0x128] sm:$0xff] %vm5073, %v5029
      %5111 = vst [vmem:[%s177 + $0x130] sm:$0xff] %v5030
      %5112 = vst.msk [vmem:[%s177 + $0x138] sm:$0xff] %vm5073, %v5031
      %5113 = vst [vmem:[%s177 + $0x140] sm:$0xff] %v5032
      %5114 = vst.msk [vmem:[%s177 + $0x148] sm:$0xff] %vm5073, %v5033
      %5115 = vst [vmem:[%s177 + $0x150] sm:$0xff] %v5034
      %5116 = vst.msk [vmem:[%s177 + $0x158] sm:$0xff] %vm5073, %v5035
      %5117 = vst [vmem:[%s177 + $0x160] sm:$0xff] %v5036
      %5118 = vst.msk [vmem:[%s177 + $0x168] sm:$0xff] %vm5073, %v5037
      %5119 = vst [vmem:[%s177 + $0x170] sm:$0xff] %v5038
      %5120 = vst.msk [vmem:[%s177 + $0x178] sm:$0xff] %vm5073, %v5039
      %5121 = vst [vmem:[%s177 + $0x180] sm:$0xff] %v5040
      %5122 = vst.msk [vmem:[%s177 + $0x188] sm:$0xff] %vm5073, %v5041
      %5123 = vst [vmem:[%s177 + $0x190] sm:$0xff] %v5042
      %5124 = vst.msk [vmem:[%s177 + $0x198] sm:$0xff] %vm5073, %v5043
      %5125 = vst [vmem:[%s177 + $0x1a0] sm:$0xff] %v5044
      %5126 = vst.msk [vmem:[%s177 + $0x1a8] sm:$0xff] %vm5073, %v5045
      %5127 = vst [vmem:[%s177 + $0x1b0] sm:$0xff] %v5046
      %5128 = vst.msk [vmem:[%s177 + $0x1b8] sm:$0xff] %vm5073, %v5047
      %5129 = vst [vmem:[%s177 + $0x1c0] sm:$0xff] %v5048
      %5130 = vst.msk [vmem:[%s177 + $0x1c8] sm:$0xff] %vm5073, %v5049
      %5131 = vst [vmem:[%s177 + $0x1d0] sm:$0xff] %v5050
      %5132 = vst.msk [vmem:[%s177 + $0x1d8] sm:$0xff] %vm5073, %v5051
      %5133 = vst [vmem:[%s177 + $0x1e0] sm:$0xff] %v5052
      %5134 = vst.msk [vmem:[%s177 + $0x1e8] sm:$0xff] %vm5073, %v5053
      %5135 = vst [vmem:[%s177 + $0x1f0] sm:$0xff] %v5054
      %5136 = vst.msk [vmem:[%s177 + $0x1f8] sm:$0xff] %vm5073, %v5055
      %5137 = vst [vmem:[%s177 + $0x200] sm:$0xff] %v5056
      %5138 = vst.msk [vmem:[%s177 + $0x208] sm:$0xff] %vm5073, %v5057
      %5139 = vst [vmem:[%s177 + $0x210] sm:$0xff] %v5058
      %5140 = vst.msk [vmem:[%s177 + $0x218] sm:$0xff] %vm5073, %v5059
      %5141 = vst [vmem:[%s177 + $0x220] sm:$0xff] %v5060
      %5142 = vst.msk [vmem:[%s177 + $0x228] sm:$0xff] %vm5073, %v5061
      %5143 = vst [vmem:[%s177 + $0x230] sm:$0xff] %v5062
      %5144 = vst.msk [vmem:[%s177 + $0x238] sm:$0xff] %vm5073, %v5063
      %5145 = vst [vmem:[%s177 + $0x240] sm:$0xff] %v5064
      %5146 = vst.msk [vmem:[%s177 + $0x248] sm:$0xff] %vm5073, %v5065
      %5147 = vst [vmem:[%s177 + $0x250] sm:$0xff] %v5066
      %5148 = vst.msk [vmem:[%s177 + $0x258] sm:$0xff] %vm5073, %v5067
      %5149 = vst [vmem:[%s177 + $0x260] sm:$0xff] %v5068
      %5150 = vst.msk [vmem:[%s177 + $0x268] sm:$0xff] %vm5073, %v5069
      %5151 = vst [vmem:[%s177 + $0x270] sm:$0xff] %v5070
      %5152 = vst.msk [vmem:[%s177 + $0x278] sm:$0xff] %vm5073, %v5071
      %s5153 = smul.u32 4, %s14
      %p5154 = scmp.lt.s32.totalorder %s5153, 7
      %s5155 = scalar_select %p5154, %s5153, 7
      %s5156 = smul.addr %s5155, 20
      %s5157 = smul.addr %s5156, 8
      %s5158 = scalar_lea.vmem %s3, %s5157
      // Predicated region
      $region33: #{mixed_3b_forward.4} parent=31 // pred_check
        %p5159 = pneg %p100
      $region34: #{mixed_3b_forward.4} parent=31 // pred_check_branch
        %5161 = sbr.rel (%p5159) target = $region36
      $region35: #{mixed_3b_forward.4} parent=31 // pred_region
        %s5162 = smul.u32 4, %s14
      $region36: #{mixed_3b_forward.4} parent=31 // pred_fallthru
        _
    $region32: #{mixed_3b_forward.4} parent=5 // pred_fallthru
      _
    %p5163 = scmp.le.s32.totalorder 2, %s9
    // Predicated region
    $region37: #{mixed_3b_forward.4} parent=5 // pred_check
      %p5164 = pneg %p5163
    $region38: #{mixed_3b_forward.4} parent=5 // pred_check_branch
      %5166 = sbr.rel (%p5164) target = $region40
    $region39: #{mixed_3b_forward.4} parent=5 // pred_region
      %s5167 = ssub.s32 %s9, 2
      // Predicated region
      $region41: #{mixed_3b_forward.4} parent=39 // pred_check
        %p5168 = pneg %p106
      $region42: #{mixed_3b_forward.4} parent=39 // pred_check_branch
        %5170 = sbr.rel (%p5168) target = $region44
      $region43: #{mixed_3b_forward.4} parent=39 // pred_region
        %s5171 = smul.u32 4, %s15
        %p5172 = scmp.lt.s32.totalorder %s5171, 7
        %s5173 = scalar_select %p5172, %s5171, 7
        %s5174 = smul.addr %s5173, 20
        %s5175 = smul.addr %s5174, 8
        %s5176 = scalar_lea.vmem %s3, %s5175
      $region44: #{mixed_3b_forward.4} parent=39 // pred_fallthru
        _
    $region40: #{mixed_3b_forward.4} parent=5 // pred_fallthru
      _
  $region6: #{mixed_3b_forward.4} parent=0 // loop_footer
    %s13 = sadd.s32 1, %s9
  $region7: #{mixed_3b_forward.4} parent=0 // loop_footer_branch
    %8 = sbr.rel target = $region3
  $region8: #{mixed_3b_forward.4} parent=0 // loop_exit
    _

// kernel: mixed_3b_forward.5
$region0: #{mixed_3b_forward.5}
  #allocation0 [shape = 'u32[]', space=smem, size = 0x4, offset = 0x4, fixed_abs, tag = 'smem constant byte address 0x4 - core index']
  #allocation1 [shape = 'u32[72,128]{1,0:T(1,128)}', space=vmem, size = 0x9000, scoped, tag = 'internal scratch']
  %s0 = inlined_call_operand.vmem [shape: f32[2,6,80,160], index: 0, kind: input, shape index: {}]
  %s1 = inlined_call_operand.vmem [shape: f32[3,160,160], index: 1, kind: input, shape index: {}]
  %s2 = inlined_call_operand.vmem [shape: f32[1,160], index: 2, kind: input, shape index: {}]
  %s3 = inlined_call_operand.vmem [shape: f32[2,4,80,160], index: 3, kind: output, shape index: {}]
  %s4 = sld [smem:[#allocation0]]
  $region45: #{mixed_3b_forward.5} parent=0
    _
  %s6 = ssub.s32 1, %s4
  %s7 = scalar_select 0, %s6, %s4
  loop: start=0, step=1, limit=4
  $region2: #{mixed_3b_forward.5} parent=0 // loop_pre_header
    _
  $region3: #{mixed_3b_forward.5} parent=0 // loop_header
    %s9 = sphi 0, %s13
    %p10 = scmp.ge.s32.totalorder %s9, 4
    %s16 = sphi 0, %s28
    %s17 = sphi 0, %s24
    %s18 = sphi 0, %s16
    %s19 = sphi 0, %s17
    %s20 = sphi 0, %s18
    %s21 = sphi 0, %s19
    %s33 = sphi 0, %s35
    %s36 = sphi 0, %s33
    %s37 = sphi 0, %s36
    %s53 = sphi 0, %s37
    %s57 = sphi 0, %s57
    %s59 = sphi 0, %s57
    %s60 = sphi 0, %s59
    %s74 = sphi 0, %s60
    %s78 = sphi 0, %s78
    %s80 = sphi 0, %s78
    %s81 = sphi 0, %s80
    %s95 = sphi 0, %s81
    %s103 = sphi 0, %s105
    %s106 = sphi 0, %s103
    %s107 = sphi 0, %s106
    %s123 = sphi 0, %s107
  $region4: #{mixed_3b_forward.5} parent=0 // loop_header_branch
    %12 = sbr.rel (%p10) target = $region8
  $region5: #{mixed_3b_forward.5} parent=0 // loop_body
    %s14 = ssub.s32 %s9, 1
    %s15 = ssub.s32 %s9, 2
    %s22 = sadd.s32 1, %s17
    %p23 = scmp.ge.s32.totalorder %s22, 1
    %s24 = scalar_select %p23, 0, %s22
    %s25 = sadd.s32 1, %s16
    %s26 = scalar_select %p23, %s25, %s16
    %p27 = scmp.ge.s32.totalorder %s26, 2
    %s28 = scalar_select %p27, 0, %s26
    %s29 = ssub.s32 %s16, %s28
    %s30 = ssub.s32 %s17, %s24
    %s31 = sor.u32 %s29, %s30
    %p32 = scmp.eq.s32.totalorder %s31, 0
    %s34 = sadd.s32 %s33, 1
    %s35 = scalar_select %p32, %s33, %s34
    %p38 = pneg %p32
    %p39 = scmp.eq.s32.totalorder %s9, 1
    %p40 = por %p38, %p39
    %p41 = scmp.ne.s32.totalorder %s33, %s36
    %p42 = scmp.eq.s32.totalorder %s9, 0
    %p43 = por %p41, %p42
    %p44 = scmp.ne.s32.totalorder %s33, %s36
    %p45 = scmp.eq.s32.totalorder %s14, 1
    %p46 = por %p44, %p45
    %p47 = scmp.ne.s32.totalorder %s36, %s37
    %p48 = scmp.eq.s32.totalorder %s14, 0
    %p49 = por %p47, %p48
    %p50 = scmp.ne.s32.totalorder %s36, %s37
    %p51 = scmp.eq.s32.totalorder %s15, 1
    %p52 = por %p50, %p51
    %p54 = scmp.ne.s32.totalorder %s37, %s53
    %p55 = scmp.eq.s32.totalorder %s15, 0
    %p56 = por %p54, %p55
    %s58 = sadd.s32 %s57, 1
    %p61 = scmp.eq.s32.totalorder %s9, 1
    %p62 = scmp.ne.s32.totalorder %s57, %s59
    %p63 = scmp.eq.s32.totalorder %s9, 0
    %p64 = por %p62, %p63
    %p65 = scmp.ne.s32.totalorder %s57, %s59
    %p66 = scmp.eq.s32.totalorder %s14, 1
    %p67 = por %p65, %p66
    %p68 = scmp.ne.s32.totalorder %s59, %s60
    %p69 = scmp.eq.s32.totalorder %s14, 0
    %p70 = por %p68, %p69
    %p71 = scmp.ne.s32.totalorder %s59, %s60
    %p72 = scmp.eq.s32.totalorder %s15, 1
    %p73 = por %p71, %p72
    %p75 = scmp.ne.s32.totalorder %s60, %s74
    %p76 = scmp.eq.s32.totalorder %s15, 0
    %p77 = por %p75, %p76
    %s79 = sadd.s32 %s78, 1
    %p82 = scmp.eq.s32.totalorder %s9, 1
    %p83 = scmp.ne.s32.totalorder %s78, %s80
    %p84 = scmp.eq.s32.totalorder %s9, 0
    %p85 = por %p83, %p84
    %p86 = scmp.ne.s32.totalorder %s78, %s80
    %p87 = scmp.eq.s32.totalorder %s14, 1
    %p88 = por %p86, %p87
    %p89 = scmp.ne.s32.totalorder %s80, %s81
    %p90 = scmp.eq.s32.totalorder %s14, 0
    %p91 = por %p89, %p90
    %p92 = scmp.ne.s32.totalorder %s80, %s81
    %p93 = scmp.eq.s32.totalorder %s15, 1
    %p94 = por %p92, %p93
    %p96 = scmp.ne.s32.totalorder %s81, %s95
    %p97 = scmp.eq.s32.totalorder %s15, 0
    %p98 = por %p96, %p97
    %s99 = ssub.s32 %s16, %s28
    %s100 = ssub.s32 %s17, %s24
    %s101 = sor.u32 %s99, %s100
    %p102 = scmp.eq.s32.totalorder %s101, 0
    %s104 = sadd.s32 %s103, 1
    %s105 = scalar_select %p102, %s103, %s104
    %p108 = pneg %p102
    %p109 = scmp.eq.s32.totalorder %s9, 1
    %p110 = por %p108, %p109
    %p111 = scmp.ne.s32.totalorder %s103, %s106
    %p112 = scmp.eq.s32.totalorder %s9, 0
    %p113 = por %p111, %p112
    %p114 = scmp.ne.s32.totalorder %s103, %s106
    %p115 = scmp.eq.s32.totalorder %s14, 1
    %p116 = por %p114, %p115
    %p117 = scmp.ne.s32.totalorder %s106, %s107
    %p118 = scmp.eq.s32.totalorder %s14, 0
    %p119 = por %p117, %p118
    %p120 = scmp.ne.s32.totalorder %s106, %s107
    %p121 = scmp.eq.s32.totalorder %s15, 1
    %p122 = por %p120, %p121
    %p124 = scmp.ne.s32.totalorder %s107, %s123
    %p125 = scmp.eq.s32.totalorder %s15, 0
    %p126 = por %p124, %p125
    %p127 = scmp.le.s32.totalorder 1, %s9
    %p128 = scmp.lt.s32.totalorder %s9, 3
    %p129 = pnand %p127, %p128
    %p130 = pneg %p129
    // Predicated region
    $region9: #{mixed_3b_forward.5} parent=5 // pred_check
      _
    $region10: #{mixed_3b_forward.5} parent=5 // pred_check_branch
      %132 = sbr.rel (%p129) target = $region12
    $region11: #{mixed_3b_forward.5} parent=5 // pred_region
      %s133 = ssub.s32 %s9, 1
      // Predicated region
      $region13: #{mixed_3b_forward.5} parent=11 // pred_check
        %p134 = pneg %p70
      $region14: #{mixed_3b_forward.5} parent=11 // pred_check_branch
        %136 = sbr.rel (%p134) target = $region16
      $region15: #{mixed_3b_forward.5} parent=11 // pred_region
        _
      $region16: #{mixed_3b_forward.5} parent=11 // pred_fallthru
        _
      // Predicated region
      $region17: #{mixed_3b_forward.5} parent=11 // pred_check
        %p137 = pneg %p91
      $region18: #{mixed_3b_forward.5} parent=11 // pred_check_branch
        %139 = sbr.rel (%p137) target = $region20
      $region19: #{mixed_3b_forward.5} parent=11 // pred_region
        _
      $region20: #{mixed_3b_forward.5} parent=11 // pred_fallthru
        _
    $region12: #{mixed_3b_forward.5} parent=5 // pred_fallthru
      _
    %p140 = scmp.lt.s32.totalorder %s9, 2
    // Predicated region
    $region21: #{mixed_3b_forward.5} parent=5 // pred_check
      %p141 = pneg %p140
    $region22: #{mixed_3b_forward.5} parent=5 // pred_check_branch
      %143 = sbr.rel (%p141) target = $region24
    $region23: #{mixed_3b_forward.5} parent=5 // pred_region
      // Predicated region
      $region25: #{mixed_3b_forward.5} parent=23 // pred_check
        %p144 = pneg %p43
      $region26: #{mixed_3b_forward.5} parent=23 // pred_check_branch
        %146 = sbr.rel (%p144) target = $region28
      $region27: #{mixed_3b_forward.5} parent=23 // pred_region
        %s147 = smul.u32 10, %s17
        %p148 = scmp.lt.s32.totalorder %s16, 1
        %s149 = scalar_select %p148, %s16, 1
        %p150 = scmp.lt.s32.totalorder %s147, 9
        %s151 = scalar_select %p150, %s147, 9
        %s152 = smul.addr %s151, 2
        %s153 = smul.addr %s149, 120
        %s154 = sadd.s32 %s152, %s153
        %s155 = smul.addr %s154, 8
        %s156 = scalar_lea.vmem %s0, %s155
        %s157 = smul.u32 10, %s17
      $region28: #{mixed_3b_forward.5} parent=23 // pred_fallthru
        _
    $region24: #{mixed_3b_forward.5} parent=5 // pred_fallthru
      _
    %p158 = scmp.le.s32.totalorder 1, %s9
    %p159 = scmp.lt.s32.totalorder %s9, 3
    %p160 = pnand %p158, %p159
    %p161 = pneg %p160
    // Predicated region
    $region29: #{mixed_3b_forward.5} parent=5 // pred_check
      _
    $region30: #{mixed_3b_forward.5} parent=5 // pred_check_branch
      %163 = sbr.rel (%p160) target = $region32
    $region31: #{mixed_3b_forward.5} parent=5 // pred_region
      %s164 = ssub.s32 %s9, 1
      %s165 = smul.u32 10, %s19
      %p166 = scmp.lt.s32.totalorder %s18, 1
      %s167 = scalar_select %p166, %s18, 1
      %p168 = scmp.lt.s32.totalorder %s165, 9
      %s169 = scalar_select %p168, %s165, 9
      %s170 = smul.addr %s169, 2
      %s171 = smul.addr %s167, 120
      %s172 = sadd.s32 %s170, %s171
      %s173 = smul.addr %s172, 8
      %s174 = scalar_lea.vmem %s0, %s173
      %p175 = pneg %p49
      %p176 = pneg %p46
      %p177 = pneg %p70
      %p178 = pneg %p67
      %p179 = pneg %p91
      %p180 = pneg %p88
      %p181 = pneg %p119
      %p182 = pneg %p116
      %s183 = smul.u32 10, %s19
      %p184 = scmp.lt.s32.totalorder %s18, 1
      %s185 = scalar_select %p184, %s18, 1
      %p186 = scmp.lt.s32.totalorder %s183, 9
      %s187 = scalar_select %p186, %s183, 9
      %s188 = smul.addr %s187, 2
      %s189 = smul.addr %s185, 80
      %s190 = sadd.s32 %s188, %s189
      %s191 = smul.addr %s190, 8
      %s192 = scalar_lea.vmem %s3, %s191
      %s193 = smul.u32 10, %s19
      %p194 = scmp.lt.s32.totalorder %s18, 1
      %s195 = scalar_select %p194, %s18, 1
      %p196 = scmp.lt.s32.totalorder %s193, 9
      %s197 = scalar_select %p196, %s193, 9
      %s198 = smul.addr %s197, 2
      %s199 = smul.addr %s195, 120
      %s200 = sadd.s32 %s198, %s199
      %s201 = smul.addr %s200, 8
      %s202 = scalar_lea.vmem %s0, %s201
      %s203 = smul.u32 10, %s19
      %s204 = smul.u32 10, %s19
      %p205 = scmp.lt.s32.totalorder %s18, 1
      %s206 = scalar_select %p205, %s18, 1
      %p207 = scmp.lt.s32.totalorder %s204, 9
      %s208 = scalar_select %p207, %s204, 9
      %s209 = smul.addr %s208, 2
      %s210 = smul.addr %s206, 80
      %s211 = sadd.s32 %s209, %s210
      %s212 = smul.addr %s211, 8
      %s213 = scalar_lea.vmem %s3, %s212
      %s214 = smul.u32 10, %s19
      %v215 = vld [vmem:[%s202] sm:$0xff]
      %v216 = vld [vmem:[%s202 + $0x8] sm:$0xff]
      %v217 = vld [vmem:[%s202 + $0x10] sm:$0xff]
      %v218 = vld [vmem:[%s202 + $0x18] sm:$0xff]
      %v219 = vld [vmem:[%s202 + $0x20] sm:$0xff]
      %v220 = vld [vmem:[%s202 + $0x28] sm:$0xff]
      %v221 = vld [vmem:[%s202 + $0x30] sm:$0xff]
      %v222 = vld [vmem:[%s202 + $0x38] sm:$0xff]
      %v223 = vld [vmem:[%s202 + $0x40] sm:$0xff]
      %v224 = vld [vmem:[%s202 + $0x48] sm:$0xff]
      %v225 = vld [vmem:[%s202 + $0x50] sm:$0xff]
      %v226 = vld [vmem:[%s202 + $0x58] sm:$0xff]
      %v227 = vld [vmem:[%s202 + $0x60] sm:$0xff]
      %v228 = vld [vmem:[%s202 + $0x68] sm:$0xff]
      %v229 = vld [vmem:[%s202 + $0x70] sm:$0xff]
      %v230 = vld [vmem:[%s202 + $0x78] sm:$0xff]
      %v231 = vld [vmem:[%s202 + $0x80] sm:$0xff]
      %v232 = vld [vmem:[%s202 + $0x88] sm:$0xff]
      %v233 = vld [vmem:[%s202 + $0x90] sm:$0xff]
      %v234 = vld [vmem:[%s202 + $0x98] sm:$0xff]
      %v235 = vld [vmem:[%s202 + $0xa0] sm:$0xff]
      %v236 = vld [vmem:[%s202 + $0xa8] sm:$0xff]
      %v237 = vld [vmem:[%s202 + $0xb0] sm:$0xff]
      %v238 = vld [vmem:[%s202 + $0xb8] sm:$0xff]
      %v239 = vld [vmem:[%s202 + $0xc0] sm:$0xff]
      %v240 = vld [vmem:[%s202 + $0xc8] sm:$0xff]
      %v241 = vld [vmem:[%s202 + $0xd0] sm:$0xff]
      %v242 = vld [vmem:[%s202 + $0xd8] sm:$0xff]
      %v243 = vld [vmem:[%s202 + $0xe0] sm:$0xff]
      %v244 = vld [vmem:[%s202 + $0xe8] sm:$0xff]
      %v245 = vld [vmem:[%s202 + $0xf0] sm:$0xff]
      %v246 = vld [vmem:[%s202 + $0xf8] sm:$0xff]
      %v247 = vld [vmem:[%s202 + $0x100] sm:$0xff]
      %v248 = vld [vmem:[%s202 + $0x108] sm:$0xff]
      %v249 = vld [vmem:[%s202 + $0x110] sm:$0xff]
      %v250 = vld [vmem:[%s202 + $0x118] sm:$0xff]
      %v251 = vld [vmem:[%s202 + $0x120] sm:$0xff]
      %v252 = vld [vmem:[%s202 + $0x128] sm:$0xff]
      %v253 = vld [vmem:[%s202 + $0x130] sm:$0xff]
      %v254 = vld [vmem:[%s202 + $0x138] sm:$0xff]
      %v255 = vld [vmem:[%s202 + $0x140] sm:$0xff]
      %v256 = vld [vmem:[%s202 + $0x148] sm:$0xff]
      %v257 = vld [vmem:[%s202 + $0x150] sm:$0xff]
      %v258 = vld [vmem:[%s202 + $0x158] sm:$0xff]
      %v259 = vld [vmem:[%s202 + $0x160] sm:$0xff]
      %v260 = vld [vmem:[%s202 + $0x168] sm:$0xff]
      %v261 = vld [vmem:[%s202 + $0x170] sm:$0xff]
      %v262 = vld [vmem:[%s202 + $0x178] sm:$0xff]
      %v263 = vld [vmem:[%s202 + $0x180] sm:$0xff]
      %v264 = vld [vmem:[%s202 + $0x188] sm:$0xff]
      %v265 = vld [vmem:[%s202 + $0x190] sm:$0xff]
      %v266 = vld [vmem:[%s202 + $0x198] sm:$0xff]
      %v267 = vld [vmem:[%s202 + $0x1a0] sm:$0xff]
      %v268 = vld [vmem:[%s202 + $0x1a8] sm:$0xff]
      %v269 = vld [vmem:[%s202 + $0x1b0] sm:$0xff]
      %v270 = vld [vmem:[%s202 + $0x1b8] sm:$0xff]
      %v271 = vld [vmem:[%s202 + $0x1c0] sm:$0xff]
      %v272 = vld [vmem:[%s202 + $0x1c8] sm:$0xff]
      %v273 = vld [vmem:[%s202 + $0x1d0] sm:$0xff]
      %v274 = vld [vmem:[%s202 + $0x1d8] sm:$0xff]
      %v275 = vld [vmem:[%s202 + $0x1e0] sm:$0xff]
      %v276 = vld [vmem:[%s202 + $0x1e8] sm:$0xff]
      %v277 = vld [vmem:[%s202 + $0x1f0] sm:$0xff]
      %v278 = vld [vmem:[%s202 + $0x1f8] sm:$0xff]
      %v279 = vld [vmem:[%s202 + $0x200] sm:$0xff]
      %v280 = vld [vmem:[%s202 + $0x208] sm:$0xff]
      %v281 = vld [vmem:[%s202 + $0x210] sm:$0xff]
      %v282 = vld [vmem:[%s202 + $0x218] sm:$0xff]
      %v283 = vld [vmem:[%s202 + $0x220] sm:$0xff]
      %v284 = vld [vmem:[%s202 + $0x228] sm:$0xff]
      %v285 = vld [vmem:[%s202 + $0x230] sm:$0xff]
      %v286 = vld [vmem:[%s202 + $0x238] sm:$0xff]
      %v287 = vld [vmem:[%s202 + $0x240] sm:$0xff]
      %v288 = vld [vmem:[%s202 + $0x248] sm:$0xff]
      %v289 = vld [vmem:[%s202 + $0x250] sm:$0xff]
      %v290 = vld [vmem:[%s202 + $0x258] sm:$0xff]
      %v291 = vld [vmem:[%s202 + $0x260] sm:$0xff]
      %v292 = vld [vmem:[%s202 + $0x268] sm:$0xff]
      %v293 = vld [vmem:[%s202 + $0x270] sm:$0xff]
      %v294 = vld [vmem:[%s202 + $0x278] sm:$0xff]
      %v295 = vld [vmem:[%s1] sm:$0xff]
      %v296 = vld [vmem:[%s1 + $0x8] sm:$0xff]
      %v297 = vld [vmem:[%s1 + $0x10] sm:$0xff]
      %v298 = vld [vmem:[%s1 + $0x18] sm:$0xff]
      %v299 = vld [vmem:[%s1 + $0x20] sm:$0xff]
      %v300 = vld [vmem:[%s1 + $0x28] sm:$0xff]
      %v301 = vld [vmem:[%s1 + $0x30] sm:$0xff]
      %v302 = vld [vmem:[%s1 + $0x38] sm:$0xff]
      %v303 = vld [vmem:[%s1 + $0x40] sm:$0xff]
      %v304 = vld [vmem:[%s1 + $0x48] sm:$0xff]
      %v305 = vld [vmem:[%s1 + $0x50] sm:$0xff]
      %v306 = vld [vmem:[%s1 + $0x58] sm:$0xff]
      %v307 = vld [vmem:[%s1 + $0x60] sm:$0xff]
      %v308 = vld [vmem:[%s1 + $0x68] sm:$0xff]
      %v309 = vld [vmem:[%s1 + $0x70] sm:$0xff]
      %v310 = vld [vmem:[%s1 + $0x78] sm:$0xff]
      %v311 = vld [vmem:[%s1 + $0x80] sm:$0xff]
      %v312 = vld [vmem:[%s1 + $0x88] sm:$0xff]
      %v313 = vld [vmem:[%s1 + $0x90] sm:$0xff]
      %v314 = vld [vmem:[%s1 + $0x98] sm:$0xff]
      %v315 = vld [vmem:[%s1 + $0xa0] sm:$0xff]
      %v316 = vld [vmem:[%s1 + $0xa8] sm:$0xff]
      %v317 = vld [vmem:[%s1 + $0xb0] sm:$0xff]
      %v318 = vld [vmem:[%s1 + $0xb8] sm:$0xff]
      %v319 = vld [vmem:[%s1 + $0xc0] sm:$0xff]
      %v320 = vld [vmem:[%s1 + $0xc8] sm:$0xff]
      %v321 = vld [vmem:[%s1 + $0xd0] sm:$0xff]
      %v322 = vld [vmem:[%s1 + $0xd8] sm:$0xff]
      %v323 = vld [vmem:[%s1 + $0xe0] sm:$0xff]
      %v324 = vld [vmem:[%s1 + $0xe8] sm:$0xff]
      %v325 = vld [vmem:[%s1 + $0xf0] sm:$0xff]
      %v326 = vld [vmem:[%s1 + $0xf8] sm:$0xff]
      %v327 = vld [vmem:[%s1 + $0x100] sm:$0xff]
      %v328 = vld [vmem:[%s1 + $0x108] sm:$0xff]
      %v329 = vld [vmem:[%s1 + $0x110] sm:$0xff]
      %v330 = vld [vmem:[%s1 + $0x118] sm:$0xff]
      %v331 = vld [vmem:[%s1 + $0x120] sm:$0xff]
      %v332 = vld [vmem:[%s1 + $0x128] sm:$0xff]
      %v333 = vld [vmem:[%s1 + $0x130] sm:$0xff]
      %v334 = vld [vmem:[%s1 + $0x138] sm:$0xff]
      %s335 = scalar_lea.vmem %s202, 160
      %v336 = vld [vmem:[%s335] sm:$0xff]
      %v337 = vld [vmem:[%s335 + $0x8] sm:$0xff]
      %v338 = vld [vmem:[%s335 + $0x10] sm:$0xff]
      %v339 = vld [vmem:[%s335 + $0x18] sm:$0xff]
      %v340 = vld [vmem:[%s335 + $0x20] sm:$0xff]
      %v341 = vld [vmem:[%s335 + $0x28] sm:$0xff]
      %v342 = vld [vmem:[%s335 + $0x30] sm:$0xff]
      %v343 = vld [vmem:[%s335 + $0x38] sm:$0xff]
      %v344 = vld [vmem:[%s335 + $0x40] sm:$0xff]
      %v345 = vld [vmem:[%s335 + $0x48] sm:$0xff]
      %v346 = vld [vmem:[%s335 + $0x50] sm:$0xff]
      %v347 = vld [vmem:[%s335 + $0x58] sm:$0xff]
      %v348 = vld [vmem:[%s335 + $0x60] sm:$0xff]
      %v349 = vld [vmem:[%s335 + $0x68] sm:$0xff]
      %v350 = vld [vmem:[%s335 + $0x70] sm:$0xff]
      %v351 = vld [vmem:[%s335 + $0x78] sm:$0xff]
      %v352 = vld [vmem:[%s335 + $0x80] sm:$0xff]
      %v353 = vld [vmem:[%s335 + $0x88] sm:$0xff]
      %v354 = vld [vmem:[%s335 + $0x90] sm:$0xff]
      %v355 = vld [vmem:[%s335 + $0x98] sm:$0xff]
      %v356 = vld [vmem:[%s335 + $0xa0] sm:$0xff]
      %v357 = vld [vmem:[%s335 + $0xa8] sm:$0xff]
      %v358 = vld [vmem:[%s335 + $0xb0] sm:$0xff]
      %v359 = vld [vmem:[%s335 + $0xb8] sm:$0xff]
      %v360 = vld [vmem:[%s335 + $0xc0] sm:$0xff]
      %v361 = vld [vmem:[%s335 + $0xc8] sm:$0xff]
      %v362 = vld [vmem:[%s335 + $0xd0] sm:$0xff]
      %v363 = vld [vmem:[%s335 + $0xd8] sm:$0xff]
      %v364 = vld [vmem:[%s335 + $0xe0] sm:$0xff]
      %v365 = vld [vmem:[%s335 + $0xe8] sm:$0xff]
      %v366 = vld [vmem:[%s335 + $0xf0] sm:$0xff]
      %v367 = vld [vmem:[%s335 + $0xf8] sm:$0xff]
      %v368 = vld [vmem:[%s335 + $0x100] sm:$0xff]
      %v369 = vld [vmem:[%s335 + $0x108] sm:$0xff]
      %v370 = vld [vmem:[%s335 + $0x110] sm:$0xff]
      %v371 = vld [vmem:[%s335 + $0x118] sm:$0xff]
      %v372 = vld [vmem:[%s335 + $0x120] sm:$0xff]
      %v373 = vld [vmem:[%s335 + $0x128] sm:$0xff]
      %v374 = vld [vmem:[%s335 + $0x130] sm:$0xff]
      %v375 = vld [vmem:[%s335 + $0x138] sm:$0xff]
      %v376 = vld [vmem:[%s335 + $0x140] sm:$0xff]
      %v377 = vld [vmem:[%s335 + $0x148] sm:$0xff]
      %v378 = vld [vmem:[%s335 + $0x150] sm:$0xff]
      %v379 = vld [vmem:[%s335 + $0x158] sm:$0xff]
      %v380 = vld [vmem:[%s335 + $0x160] sm:$0xff]
      %v381 = vld [vmem:[%s335 + $0x168] sm:$0xff]
      %v382 = vld [vmem:[%s335 + $0x170] sm:$0xff]
      %v383 = vld [vmem:[%s335 + $0x178] sm:$0xff]
      %v384 = vld [vmem:[%s335 + $0x180] sm:$0xff]
      %v385 = vld [vmem:[%s335 + $0x188] sm:$0xff]
      %v386 = vld [vmem:[%s335 + $0x190] sm:$0xff]
      %v387 = vld [vmem:[%s335 + $0x198] sm:$0xff]
      %v388 = vld [vmem:[%s335 + $0x1a0] sm:$0xff]
      %v389 = vld [vmem:[%s335 + $0x1a8] sm:$0xff]
      %v390 = vld [vmem:[%s335 + $0x1b0] sm:$0xff]
      %v391 = vld [vmem:[%s335 + $0x1b8] sm:$0xff]
      %v392 = vld [vmem:[%s335 + $0x1c0] sm:$0xff]
      %v393 = vld [vmem:[%s335 + $0x1c8] sm:$0xff]
      %v394 = vld [vmem:[%s335 + $0x1d0] sm:$0xff]
      %v395 = vld [vmem:[%s335 + $0x1d8] sm:$0xff]
      %v396 = vld [vmem:[%s335 + $0x1e0] sm:$0xff]
      %v397 = vld [vmem:[%s335 + $0x1e8] sm:$0xff]
      %v398 = vld [vmem:[%s335 + $0x1f0] sm:$0xff]
      %v399 = vld [vmem:[%s335 + $0x1f8] sm:$0xff]
      %v400 = vld [vmem:[%s335 + $0x200] sm:$0xff]
      %v401 = vld [vmem:[%s335 + $0x208] sm:$0xff]
      %v402 = vld [vmem:[%s335 + $0x210] sm:$0xff]
      %v403 = vld [vmem:[%s335 + $0x218] sm:$0xff]
      %v404 = vld [vmem:[%s335 + $0x220] sm:$0xff]
      %v405 = vld [vmem:[%s335 + $0x228] sm:$0xff]
      %v406 = vld [vmem:[%s335 + $0x230] sm:$0xff]
      %v407 = vld [vmem:[%s335 + $0x238] sm:$0xff]
      %v408 = vld [vmem:[%s335 + $0x240] sm:$0xff]
      %v409 = vld [vmem:[%s335 + $0x248] sm:$0xff]
      %v410 = vld [vmem:[%s335 + $0x250] sm:$0xff]
      %v411 = vld [vmem:[%s335 + $0x258] sm:$0xff]
      %v412 = vld [vmem:[%s335 + $0x260] sm:$0xff]
      %v413 = vld [vmem:[%s335 + $0x268] sm:$0xff]
      %v414 = vld [vmem:[%s335 + $0x270] sm:$0xff]
      %v415 = vld [vmem:[%s335 + $0x278] sm:$0xff]
      %s416 = scalar_lea.vmem %s1, 320
      %v417 = vld [vmem:[%s416] sm:$0xff]
      %v418 = vld [vmem:[%s416 + $0x8] sm:$0xff]
      %v419 = vld [vmem:[%s416 + $0x10] sm:$0xff]
      %v420 = vld [vmem:[%s416 + $0x18] sm:$0xff]
      %v421 = vld [vmem:[%s416 + $0x20] sm:$0xff]
      %v422 = vld [vmem:[%s416 + $0x28] sm:$0xff]
      %v423 = vld [vmem:[%s416 + $0x30] sm:$0xff]
      %v424 = vld [vmem:[%s416 + $0x38] sm:$0xff]
      %v425 = vld [vmem:[%s416 + $0x40] sm:$0xff]
      %v426 = vld [vmem:[%s416 + $0x48] sm:$0xff]
      %v427 = vld [vmem:[%s416 + $0x50] sm:$0xff]
      %v428 = vld [vmem:[%s416 + $0x58] sm:$0xff]
      %v429 = vld [vmem:[%s416 + $0x60] sm:$0xff]
      %v430 = vld [vmem:[%s416 + $0x68] sm:$0xff]
      %v431 = vld [vmem:[%s416 + $0x70] sm:$0xff]
      %v432 = vld [vmem:[%s416 + $0x78] sm:$0xff]
      %v433 = vld [vmem:[%s416 + $0x80] sm:$0xff]
      %v434 = vld [vmem:[%s416 + $0x88] sm:$0xff]
      %v435 = vld [vmem:[%s416 + $0x90] sm:$0xff]
      %v436 = vld [vmem:[%s416 + $0x98] sm:$0xff]
      %v437 = vld [vmem:[%s416 + $0xa0] sm:$0xff]
      %v438 = vld [vmem:[%s416 + $0xa8] sm:$0xff]
      %v439 = vld [vmem:[%s416 + $0xb0] sm:$0xff]
      %v440 = vld [vmem:[%s416 + $0xb8] sm:$0xff]
      %v441 = vld [vmem:[%s416 + $0xc0] sm:$0xff]
      %v442 = vld [vmem:[%s416 + $0xc8] sm:$0xff]
      %v443 = vld [vmem:[%s416 + $0xd0] sm:$0xff]
      %v444 = vld [vmem:[%s416 + $0xd8] sm:$0xff]
      %v445 = vld [vmem:[%s416 + $0xe0] sm:$0xff]
      %v446 = vld [vmem:[%s416 + $0xe8] sm:$0xff]
      %v447 = vld [vmem:[%s416 + $0xf0] sm:$0xff]
      %v448 = vld [vmem:[%s416 + $0xf8] sm:$0xff]
      %v449 = vld [vmem:[%s416 + $0x100] sm:$0xff]
      %v450 = vld [vmem:[%s416 + $0x108] sm:$0xff]
      %v451 = vld [vmem:[%s416 + $0x110] sm:$0xff]
      %v452 = vld [vmem:[%s416 + $0x118] sm:$0xff]
      %v453 = vld [vmem:[%s416 + $0x120] sm:$0xff]
      %v454 = vld [vmem:[%s416 + $0x128] sm:$0xff]
      %v455 = vld [vmem:[%s416 + $0x130] sm:$0xff]
      %v456 = vld [vmem:[%s416 + $0x138] sm:$0xff]
      %vm457 = vcmask 261120
      %v459 = vsel %vm457, %v337, 0
      %v462 = vsel %vm457, %v339, 0
      %v465 = vsel %vm457, %v341, 0
      %v468 = vsel %vm457, %v343, 0
      %v471 = vsel %vm457, %v345, 0
      %v474 = vsel %vm457, %v347, 0
      %v477 = vsel %vm457, %v349, 0
      %v480 = vsel %vm457, %v351, 0
      %v483 = vsel %vm457, %v353, 0
      %v486 = vsel %vm457, %v355, 0
      %v489 = vsel %vm457, %v357, 0
      %v492 = vsel %vm457, %v359, 0
      %v495 = vsel %vm457, %v361, 0
      %v498 = vsel %vm457, %v363, 0
      %v501 = vsel %vm457, %v365, 0
      %v504 = vsel %vm457, %v367, 0
      %v507 = vsel %vm457, %v369, 0
      %v510 = vsel %vm457, %v371, 0
      %v513 = vsel %vm457, %v373, 0
      %v516 = vsel %vm457, %v375, 0
      %v519 = vsel %vm457, %v377, 0
      %v522 = vsel %vm457, %v379, 0
      %v525 = vsel %vm457, %v381, 0
      %v528 = vsel %vm457, %v383, 0
      %v531 = vsel %vm457, %v385, 0
      %v534 = vsel %vm457, %v387, 0
      %v537 = vsel %vm457, %v389, 0
      %v540 = vsel %vm457, %v391, 0
      %v543 = vsel %vm457, %v393, 0
      %v546 = vsel %vm457, %v395, 0
      %v549 = vsel %vm457, %v397, 0
      %v552 = vsel %vm457, %v399, 0
      %v555 = vsel %vm457, %v401, 0
      %v558 = vsel %vm457, %v403, 0
      %v561 = vsel %vm457, %v405, 0
      %v564 = vsel %vm457, %v407, 0
      %v567 = vsel %vm457, %v409, 0
      %v570 = vsel %vm457, %v411, 0
      %v573 = vsel %vm457, %v413, 0
      %v576 = vsel %vm457, %v415, 0
      %578 = vmatpush.msra.mxu0 %v447
      %579 = vmatpush.msra.mxu0 %v445
      %580 = vmatpush.msra.mxu0 %v443
      %581 = vmatpush.msra.mxu0 %v441
      %582 = vmatpush.msra.mxu0 %v439
      %583 = vmatpush.msra.mxu0 %v437
      %584 = vmatpush.msra.mxu0 %v435
      %585 = vmatpush.msra.mxu0 %v433
      %586 = vmatpush.msra.mxu0 %v431
      %587 = vmatpush.msra.mxu0 %v429
      %588 = vmatpush.msra.mxu0 %v427
      %589 = vmatpush.msra.mxu0 %v425
      %590 = vmatpush.msra.mxu0 %v423
      %591 = vmatpush.msra.mxu0 %v421
      %592 = vmatpush.msra.mxu0 %v419
      %593 = vmatpush.msra.mxu0 %v417
      %594 = vmatmul.f32.gmra.mxu0 %v336
      %v595 = vpop.f32.mrf.mxu0
      %v596 = vadd.f32 0.0, %v595
      %597 = vmatmul.f32.gmra.mxu0 %v338
      %v598 = vpop.f32.mrf.mxu0
      %v599 = vadd.f32 0.0, %v598
      %600 = vmatmul.f32.gmra.mxu0 %v340
      %v601 = vpop.f32.mrf.mxu0
      %v602 = vadd.f32 0.0, %v601
      %603 = vmatmul.f32.gmra.mxu0 %v342
      %v604 = vpop.f32.mrf.mxu0
      %v605 = vadd.f32 0.0, %v604
      %606 = vmatmul.f32.gmra.mxu0 %v344
      %v607 = vpop.f32.mrf.mxu0
      %v608 = vadd.f32 0.0, %v607
      %609 = vmatmul.f32.gmra.mxu0 %v346
      %v610 = vpop.f32.mrf.mxu0
      %v611 = vadd.f32 0.0, %v610
      %612 = vmatmul.f32.gmra.mxu0 %v348
      %v613 = vpop.f32.mrf.mxu0
      %v614 = vadd.f32 0.0, %v613
      %615 = vmatmul.f32.gmra.mxu0 %v350
      %v616 = vpop.f32.mrf.mxu0
      %v617 = vadd.f32 0.0, %v616
      %618 = vmatmul.f32.gmra.mxu0 %v352
      %v619 = vpop.f32.mrf.mxu0
      %v620 = vadd.f32 0.0, %v619
      %621 = vmatmul.f32.gmra.mxu0 %v354
      %v622 = vpop.f32.mrf.mxu0
      %v623 = vadd.f32 0.0, %v622
      %624 = vmatmul.f32.gmra.mxu0 %v356
      %v625 = vpop.f32.mrf.mxu0
      %v626 = vadd.f32 0.0, %v625
      %627 = vmatmul.f32.gmra.mxu0 %v358
      %v628 = vpop.f32.mrf.mxu0
      %v629 = vadd.f32 0.0, %v628
      %630 = vmatmul.f32.gmra.mxu0 %v360
      %v631 = vpop.f32.mrf.mxu0
      %v632 = vadd.f32 0.0, %v631
      %633 = vmatmul.f32.gmra.mxu0 %v362
      %v634 = vpop.f32.mrf.mxu0
      %v635 = vadd.f32 0.0, %v634
      %636 = vmatmul.f32.gmra.mxu0 %v364
      %v637 = vpop.f32.mrf.mxu0
      %v638 = vadd.f32 0.0, %v637
      %639 = vmatmul.f32.gmra.mxu0 %v366
      %v640 = vpop.f32.mrf.mxu0
      %v641 = vadd.f32 0.0, %v640
      %642 = vmatmul.f32.gmra.mxu0 %v368
      %v643 = vpop.f32.mrf.mxu0
      %v644 = vadd.f32 0.0, %v643
      %645 = vmatmul.f32.gmra.mxu0 %v370
      %v646 = vpop.f32.mrf.mxu0
      %v647 = vadd.f32 0.0, %v646
      %648 = vmatmul.f32.gmra.mxu0 %v372
      %v649 = vpop.f32.mrf.mxu0
      %v650 = vadd.f32 0.0, %v649
      %651 = vmatmul.f32.gmra.mxu0 %v374
      %v652 = vpop.f32.mrf.mxu0
      %v653 = vadd.f32 0.0, %v652
      %654 = vmatmul.f32.gmra.mxu0 %v376
      %v655 = vpop.f32.mrf.mxu0
      %v656 = vadd.f32 0.0, %v655
      %657 = vmatmul.f32.gmra.mxu0 %v378
      %v658 = vpop.f32.mrf.mxu0
      %v659 = vadd.f32 0.0, %v658
      %660 = vmatmul.f32.gmra.mxu0 %v380
      %v661 = vpop.f32.mrf.mxu0
      %v662 = vadd.f32 0.0, %v661
      %663 = vmatmul.f32.gmra.mxu0 %v382
      %v664 = vpop.f32.mrf.mxu0
      %v665 = vadd.f32 0.0, %v664
      %666 = vmatmul.f32.gmra.mxu0 %v384
      %v667 = vpop.f32.mrf.mxu0
      %v668 = vadd.f32 0.0, %v667
      %669 = vmatmul.f32.gmra.mxu0 %v386
      %v670 = vpop.f32.mrf.mxu0
      %v671 = vadd.f32 0.0, %v670
      %672 = vmatmul.f32.gmra.mxu0 %v388
      %v673 = vpop.f32.mrf.mxu0
      %v674 = vadd.f32 0.0, %v673
      %675 = vmatmul.f32.gmra.mxu0 %v390
      %v676 = vpop.f32.mrf.mxu0
      %v677 = vadd.f32 0.0, %v676
      %678 = vmatmul.f32.gmra.mxu0 %v392
      %v679 = vpop.f32.mrf.mxu0
      %v680 = vadd.f32 0.0, %v679
      %681 = vmatmul.f32.gmra.mxu0 %v394
      %v682 = vpop.f32.mrf.mxu0
      %v683 = vadd.f32 0.0, %v682
      %684 = vmatmul.f32.gmra.mxu0 %v396
      %v685 = vpop.f32.mrf.mxu0
      %v686 = vadd.f32 0.0, %v685
      %687 = vmatmul.f32.gmra.mxu0 %v398
      %v688 = vpop.f32.mrf.mxu0
      %v689 = vadd.f32 0.0, %v688
      %690 = vmatmul.f32.gmra.mxu0 %v400
      %v691 = vpop.f32.mrf.mxu0
      %v692 = vadd.f32 0.0, %v691
      %693 = vmatmul.f32.gmra.mxu0 %v402
      %v694 = vpop.f32.mrf.mxu0
      %v695 = vadd.f32 0.0, %v694
      %696 = vmatmul.f32.gmra.mxu0 %v404
      %v697 = vpop.f32.mrf.mxu0
      %v698 = vadd.f32 0.0, %v697
      %699 = vmatmul.f32.gmra.mxu0 %v406
      %v700 = vpop.f32.mrf.mxu0
      %v701 = vadd.f32 0.0, %v700
      %702 = vmatmul.f32.gmra.mxu0 %v408
      %v703 = vpop.f32.mrf.mxu0
      %v704 = vadd.f32 0.0, %v703
      %705 = vmatmul.f32.gmra.mxu0 %v410
      %v706 = vpop.f32.mrf.mxu0
      %v707 = vadd.f32 0.0, %v706
      %708 = vmatmul.f32.gmra.mxu0 %v412
      %v709 = vpop.f32.mrf.mxu0
      %v710 = vadd.f32 0.0, %v709
      %711 = vmatmul.f32.gmra.mxu0 %v414
      %v712 = vpop.f32.mrf.mxu0
      %v713 = vadd.f32 0.0, %v712
      %714 = vdwg.mxu0
      %715 = vmatpush.msra.mxu0 0.0
      %716 = vmatpush.msra.mxu0 0.0
      %717 = vmatpush.msra.mxu0 0.0
      %718 = vmatpush.msra.mxu0 0.0
      %719 = vmatpush.msra.mxu0 0.0
      %720 = vmatpush.msra.mxu0 0.0
      %721 = vmatpush.msra.mxu0 0.0
      %722 = vmatpush.msra.mxu0 0.0
      %723 = vmatpush.msra.mxu0 0.0
      %724 = vmatpush.msra.mxu0 0.0
      %725 = vmatpush.msra.mxu0 0.0
      %726 = vmatpush.msra.mxu0 0.0
      %727 = vmatpush.msra.mxu0 %v455
      %728 = vmatpush.msra.mxu0 %v453
      %729 = vmatpush.msra.mxu0 %v451
      %730 = vmatpush.msra.mxu0 %v449
      %731 = vmatmul.f32.gmra.mxu0 %v459
      %v732 = vpop.f32.mrf.mxu0
      %v733 = vadd.f32 %v596, %v732
      %734 = vmatmul.f32.gmra.mxu0 %v462
      %v735 = vpop.f32.mrf.mxu0
      %v736 = vadd.f32 %v599, %v735
      %737 = vmatmul.f32.gmra.mxu0 %v465
      %v738 = vpop.f32.mrf.mxu0
      %v739 = vadd.f32 %v602, %v738
      %740 = vmatmul.f32.gmra.mxu0 %v468
      %v741 = vpop.f32.mrf.mxu0
      %v742 = vadd.f32 %v605, %v741
      %743 = vmatmul.f32.gmra.mxu0 %v471
      %v744 = vpop.f32.mrf.mxu0
      %v745 = vadd.f32 %v608, %v744
      %746 = vmatmul.f32.gmra.mxu0 %v474
      %v747 = vpop.f32.mrf.mxu0
      %v748 = vadd.f32 %v611, %v747
      %749 = vmatmul.f32.gmra.mxu0 %v477
      %v750 = vpop.f32.mrf.mxu0
      %v751 = vadd.f32 %v614, %v750
      %752 = vmatmul.f32.gmra.mxu0 %v480
      %v753 = vpop.f32.mrf.mxu0
      %v754 = vadd.f32 %v617, %v753
      %755 = vmatmul.f32.gmra.mxu0 %v483
      %v756 = vpop.f32.mrf.mxu0
      %v757 = vadd.f32 %v620, %v756
      %758 = vmatmul.f32.gmra.mxu0 %v486
      %v759 = vpop.f32.mrf.mxu0
      %v760 = vadd.f32 %v623, %v759
      %761 = vmatmul.f32.gmra.mxu0 %v489
      %v762 = vpop.f32.mrf.mxu0
      %v763 = vadd.f32 %v626, %v762
      %764 = vmatmul.f32.gmra.mxu0 %v492
      %v765 = vpop.f32.mrf.mxu0
      %v766 = vadd.f32 %v629, %v765
      %767 = vmatmul.f32.gmra.mxu0 %v495
      %v768 = vpop.f32.mrf.mxu0
      %v769 = vadd.f32 %v632, %v768
      %770 = vmatmul.f32.gmra.mxu0 %v498
      %v771 = vpop.f32.mrf.mxu0
      %v772 = vadd.f32 %v635, %v771
      %773 = vmatmul.f32.gmra.mxu0 %v501
      %v774 = vpop.f32.mrf.mxu0
      %v775 = vadd.f32 %v638, %v774
      %776 = vmatmul.f32.gmra.mxu0 %v504
      %v777 = vpop.f32.mrf.mxu0
      %v778 = vadd.f32 %v641, %v777
      %779 = vmatmul.f32.gmra.mxu0 %v507
      %v780 = vpop.f32.mrf.mxu0
      %v781 = vadd.f32 %v644, %v780
      %782 = vmatmul.f32.gmra.mxu0 %v510
      %v783 = vpop.f32.mrf.mxu0
      %v784 = vadd.f32 %v647, %v783
      %785 = vmatmul.f32.gmra.mxu0 %v513
      %v786 = vpop.f32.mrf.mxu0
      %v787 = vadd.f32 %v650, %v786
      %788 = vmatmul.f32.gmra.mxu0 %v516
      %v789 = vpop.f32.mrf.mxu0
      %v790 = vadd.f32 %v653, %v789
      %791 = vmatmul.f32.gmra.mxu0 %v519
      %v792 = vpop.f32.mrf.mxu0
      %v793 = vadd.f32 %v656, %v792
      %794 = vmatmul.f32.gmra.mxu0 %v522
      %v795 = vpop.f32.mrf.mxu0
      %v796 = vadd.f32 %v659, %v795
      %797 = vmatmul.f32.gmra.mxu0 %v525
      %v798 = vpop.f32.mrf.mxu0
      %v799 = vadd.f32 %v662, %v798
      %800 = vmatmul.f32.gmra.mxu0 %v528
      %v801 = vpop.f32.mrf.mxu0
      %v802 = vadd.f32 %v665, %v801
      %803 = vmatmul.f32.gmra.mxu0 %v531
      %v804 = vpop.f32.mrf.mxu0
      %v805 = vadd.f32 %v668, %v804
      %806 = vmatmul.f32.gmra.mxu0 %v534
      %v807 = vpop.f32.mrf.mxu0
      %v808 = vadd.f32 %v671, %v807
      %809 = vmatmul.f32.gmra.mxu0 %v537
      %v810 = vpop.f32.mrf.mxu0
      %v811 = vadd.f32 %v674, %v810
      %812 = vmatmul.f32.gmra.mxu0 %v540
      %v813 = vpop.f32.mrf.mxu0
      %v814 = vadd.f32 %v677, %v813
      %815 = vmatmul.f32.gmra.mxu0 %v543
      %v816 = vpop.f32.mrf.mxu0
      %v817 = vadd.f32 %v680, %v816
      %818 = vmatmul.f32.gmra.mxu0 %v546
      %v819 = vpop.f32.mrf.mxu0
      %v820 = vadd.f32 %v683, %v819
      %821 = vmatmul.f32.gmra.mxu0 %v549
      %v822 = vpop.f32.mrf.mxu0
      %v823 = vadd.f32 %v686, %v822
      %824 = vmatmul.f32.gmra.mxu0 %v552
      %v825 = vpop.f32.mrf.mxu0
      %v826 = vadd.f32 %v689, %v825
      %827 = vmatmul.f32.gmra.mxu0 %v555
      %v828 = vpop.f32.mrf.mxu0
      %v829 = vadd.f32 %v692, %v828
      %830 = vmatmul.f32.gmra.mxu0 %v558
      %v831 = vpop.f32.mrf.mxu0
      %v832 = vadd.f32 %v695, %v831
      %833 = vmatmul.f32.gmra.mxu0 %v561
      %v834 = vpop.f32.mrf.mxu0
      %v835 = vadd.f32 %v698, %v834
      %836 = vmatmul.f32.gmra.mxu0 %v564
      %v837 = vpop.f32.mrf.mxu0
      %v838 = vadd.f32 %v701, %v837
      %839 = vmatmul.f32.gmra.mxu0 %v567
      %v840 = vpop.f32.mrf.mxu0
      %v841 = vadd.f32 %v704, %v840
      %842 = vmatmul.f32.gmra.mxu0 %v570
      %v843 = vpop.f32.mrf.mxu0
      %v844 = vadd.f32 %v707, %v843
      %845 = vmatmul.f32.gmra.mxu0 %v573
      %v846 = vpop.f32.mrf.mxu0
      %v847 = vadd.f32 %v710, %v846
      %848 = vmatmul.f32.gmra.mxu0 %v576
      %v849 = vpop.f32.mrf.mxu0
      %v850 = vadd.f32 %v713, %v849
      %851 = vdwg.mxu0
      %852 = vmatpush.msra.mxu0 %v448
      %853 = vmatpush.msra.mxu0 %v446
      %854 = vmatpush.msra.mxu0 %v444
      %855 = vmatpush.msra.mxu0 %v442
      %856 = vmatpush.msra.mxu0 %v440
      %857 = vmatpush.msra.mxu0 %v438
      %858 = vmatpush.msra.mxu0 %v436
      %859 = vmatpush.msra.mxu0 %v434
      %860 = vmatpush.msra.mxu0 %v432
      %861 = vmatpush.msra.mxu0 %v430
      %862 = vmatpush.msra.mxu0 %v428
      %863 = vmatpush.msra.mxu0 %v426
      %864 = vmatpush.msra.mxu0 %v424
      %865 = vmatpush.msra.mxu0 %v422
      %866 = vmatpush.msra.mxu0 %v420
      %867 = vmatpush.msra.mxu0 %v418
      %868 = vmatmul.f32.gmra.mxu0 %v336
      %v869 = vpop.f32.mrf.mxu0
      %v870 = vadd.f32 0.0, %v869
      %871 = vmatmul.f32.gmra.mxu0 %v338
      %v872 = vpop.f32.mrf.mxu0
      %v873 = vadd.f32 0.0, %v872
      %874 = vmatmul.f32.gmra.mxu0 %v340
      %v875 = vpop.f32.mrf.mxu0
      %v876 = vadd.f32 0.0, %v875
      %877 = vmatmul.f32.gmra.mxu0 %v342
      %v878 = vpop.f32.mrf.mxu0
      %v879 = vadd.f32 0.0, %v878
      %880 = vmatmul.f32.gmra.mxu0 %v344
      %v881 = vpop.f32.mrf.mxu0
      %v882 = vadd.f32 0.0, %v881
      %883 = vmatmul.f32.gmra.mxu0 %v346
      %v884 = vpop.f32.mrf.mxu0
      %v885 = vadd.f32 0.0, %v884
      %886 = vmatmul.f32.gmra.mxu0 %v348
      %v887 = vpop.f32.mrf.mxu0
      %v888 = vadd.f32 0.0, %v887
      %889 = vmatmul.f32.gmra.mxu0 %v350
      %v890 = vpop.f32.mrf.mxu0
      %v891 = vadd.f32 0.0, %v890
      %892 = vmatmul.f32.gmra.mxu0 %v352
      %v893 = vpop.f32.mrf.mxu0
      %v894 = vadd.f32 0.0, %v893
      %895 = vmatmul.f32.gmra.mxu0 %v354
      %v896 = vpop.f32.mrf.mxu0
      %v897 = vadd.f32 0.0, %v896
      %898 = vmatmul.f32.gmra.mxu0 %v356
      %v899 = vpop.f32.mrf.mxu0
      %v900 = vadd.f32 0.0, %v899
      %901 = vmatmul.f32.gmra.mxu0 %v358
      %v902 = vpop.f32.mrf.mxu0
      %v903 = vadd.f32 0.0, %v902
      %904 = vmatmul.f32.gmra.mxu0 %v360
      %v905 = vpop.f32.mrf.mxu0
      %v906 = vadd.f32 0.0, %v905
      %907 = vmatmul.f32.gmra.mxu0 %v362
      %v908 = vpop.f32.mrf.mxu0
      %v909 = vadd.f32 0.0, %v908
      %910 = vmatmul.f32.gmra.mxu0 %v364
      %v911 = vpop.f32.mrf.mxu0
      %v912 = vadd.f32 0.0, %v911
      %913 = vmatmul.f32.gmra.mxu0 %v366
      %v914 = vpop.f32.mrf.mxu0
      %v915 = vadd.f32 0.0, %v914
      %916 = vmatmul.f32.gmra.mxu0 %v368
      %v917 = vpop.f32.mrf.mxu0
      %v918 = vadd.f32 0.0, %v917
      %919 = vmatmul.f32.gmra.mxu0 %v370
      %v920 = vpop.f32.mrf.mxu0
      %v921 = vadd.f32 0.0, %v920
      %922 = vmatmul.f32.gmra.mxu0 %v372
      %v923 = vpop.f32.mrf.mxu0
      %v924 = vadd.f32 0.0, %v923
      %925 = vmatmul.f32.gmra.mxu0 %v374
      %v926 = vpop.f32.mrf.mxu0
      %v927 = vadd.f32 0.0, %v926
      %928 = vmatmul.f32.gmra.mxu0 %v376
      %v929 = vpop.f32.mrf.mxu0
      %v930 = vadd.f32 0.0, %v929
      %931 = vmatmul.f32.gmra.mxu0 %v378
      %v932 = vpop.f32.mrf.mxu0
      %v933 = vadd.f32 0.0, %v932
      %934 = vmatmul.f32.gmra.mxu0 %v380
      %v935 = vpop.f32.mrf.mxu0
      %v936 = vadd.f32 0.0, %v935
      %937 = vmatmul.f32.gmra.mxu0 %v382
      %v938 = vpop.f32.mrf.mxu0
      %v939 = vadd.f32 0.0, %v938
      %940 = vmatmul.f32.gmra.mxu0 %v384
      %v941 = vpop.f32.mrf.mxu0
      %v942 = vadd.f32 0.0, %v941
      %943 = vmatmul.f32.gmra.mxu0 %v386
      %v944 = vpop.f32.mrf.mxu0
      %v945 = vadd.f32 0.0, %v944
      %946 = vmatmul.f32.gmra.mxu0 %v388
      %v947 = vpop.f32.mrf.mxu0
      %v948 = vadd.f32 0.0, %v947
      %949 = vmatmul.f32.gmra.mxu0 %v390
      %v950 = vpop.f32.mrf.mxu0
      %v951 = vadd.f32 0.0, %v950
      %952 = vmatmul.f32.gmra.mxu0 %v392
      %v953 = vpop.f32.mrf.mxu0
      %v954 = vadd.f32 0.0, %v953
      %955 = vmatmul.f32.gmra.mxu0 %v394
      %v956 = vpop.f32.mrf.mxu0
      %v957 = vadd.f32 0.0, %v956
      %958 = vmatmul.f32.gmra.mxu0 %v396
      %v959 = vpop.f32.mrf.mxu0
      %v960 = vadd.f32 0.0, %v959
      %961 = vmatmul.f32.gmra.mxu0 %v398
      %v962 = vpop.f32.mrf.mxu0
      %v963 = vadd.f32 0.0, %v962
      %964 = vmatmul.f32.gmra.mxu0 %v400
      %v965 = vpop.f32.mrf.mxu0
      %v966 = vadd.f32 0.0, %v965
      %967 = vmatmul.f32.gmra.mxu0 %v402
      %v968 = vpop.f32.mrf.mxu0
      %v969 = vadd.f32 0.0, %v968
      %970 = vmatmul.f32.gmra.mxu0 %v404
      %v971 = vpop.f32.mrf.mxu0
      %v972 = vadd.f32 0.0, %v971
      %973 = vmatmul.f32.gmra.mxu0 %v406
      %v974 = vpop.f32.mrf.mxu0
      %v975 = vadd.f32 0.0, %v974
      %976 = vmatmul.f32.gmra.mxu0 %v408
      %v977 = vpop.f32.mrf.mxu0
      %v978 = vadd.f32 0.0, %v977
      %979 = vmatmul.f32.gmra.mxu0 %v410
      %v980 = vpop.f32.mrf.mxu0
      %v981 = vadd.f32 0.0, %v980
      %982 = vmatmul.f32.gmra.mxu0 %v412
      %v983 = vpop.f32.mrf.mxu0
      %v984 = vadd.f32 0.0, %v983
      %985 = vmatmul.f32.gmra.mxu0 %v414
      %v986 = vpop.f32.mrf.mxu0
      %v987 = vadd.f32 0.0, %v986
      %988 = vdwg.mxu0
      %989 = vmatpush.msra.mxu0 0.0
      %990 = vmatpush.msra.mxu0 0.0
      %991 = vmatpush.msra.mxu0 0.0
      %992 = vmatpush.msra.mxu0 0.0
      %993 = vmatpush.msra.mxu0 0.0
      %994 = vmatpush.msra.mxu0 0.0
      %995 = vmatpush.msra.mxu0 0.0
      %996 = vmatpush.msra.mxu0 0.0
      %997 = vmatpush.msra.mxu0 0.0
      %998 = vmatpush.msra.mxu0 0.0
      %999 = vmatpush.msra.mxu0 0.0
      %1000 = vmatpush.msra.mxu0 0.0
      %1001 = vmatpush.msra.mxu0 %v456
      %1002 = vmatpush.msra.mxu0 %v454
      %1003 = vmatpush.msra.mxu0 %v452
      %1004 = vmatpush.msra.mxu0 %v450
      %1005 = vmatmul.f32.gmra.mxu0 %v459
      %v1006 = vpop.f32.mrf.mxu0
      %v1007 = vadd.f32 %v870, %v1006
      %1008 = vmatmul.f32.gmra.mxu0 %v462
      %v1009 = vpop.f32.mrf.mxu0
      %v1010 = vadd.f32 %v873, %v1009
      %1011 = vmatmul.f32.gmra.mxu0 %v465
      %v1012 = vpop.f32.mrf.mxu0
      %v1013 = vadd.f32 %v876, %v1012
      %1014 = vmatmul.f32.gmra.mxu0 %v468
      %v1015 = vpop.f32.mrf.mxu0
      %v1016 = vadd.f32 %v879, %v1015
      %1017 = vmatmul.f32.gmra.mxu0 %v471
      %v1018 = vpop.f32.mrf.mxu0
      %v1019 = vadd.f32 %v882, %v1018
      %1020 = vmatmul.f32.gmra.mxu0 %v474
      %v1021 = vpop.f32.mrf.mxu0
      %v1022 = vadd.f32 %v885, %v1021
      %1023 = vmatmul.f32.gmra.mxu0 %v477
      %v1024 = vpop.f32.mrf.mxu0
      %v1025 = vadd.f32 %v888, %v1024
      %1026 = vmatmul.f32.gmra.mxu0 %v480
      %v1027 = vpop.f32.mrf.mxu0
      %v1028 = vadd.f32 %v891, %v1027
      %1029 = vmatmul.f32.gmra.mxu0 %v483
      %v1030 = vpop.f32.mrf.mxu0
      %v1031 = vadd.f32 %v894, %v1030
      %1032 = vmatmul.f32.gmra.mxu0 %v486
      %v1033 = vpop.f32.mrf.mxu0
      %v1034 = vadd.f32 %v897, %v1033
      %1035 = vmatmul.f32.gmra.mxu0 %v489
      %v1036 = vpop.f32.mrf.mxu0
      %v1037 = vadd.f32 %v900, %v1036
      %1038 = vmatmul.f32.gmra.mxu0 %v492
      %v1039 = vpop.f32.mrf.mxu0
      %v1040 = vadd.f32 %v903, %v1039
      %1041 = vmatmul.f32.gmra.mxu0 %v495
      %v1042 = vpop.f32.mrf.mxu0
      %v1043 = vadd.f32 %v906, %v1042
      %1044 = vmatmul.f32.gmra.mxu0 %v498
      %v1045 = vpop.f32.mrf.mxu0
      %v1046 = vadd.f32 %v909, %v1045
      %1047 = vmatmul.f32.gmra.mxu0 %v501
      %v1048 = vpop.f32.mrf.mxu0
      %v1049 = vadd.f32 %v912, %v1048
      %1050 = vmatmul.f32.gmra.mxu0 %v504
      %v1051 = vpop.f32.mrf.mxu0
      %v1052 = vadd.f32 %v915, %v1051
      %1053 = vmatmul.f32.gmra.mxu0 %v507
      %v1054 = vpop.f32.mrf.mxu0
      %v1055 = vadd.f32 %v918, %v1054
      %1056 = vmatmul.f32.gmra.mxu0 %v510
      %v1057 = vpop.f32.mrf.mxu0
      %v1058 = vadd.f32 %v921, %v1057
      %1059 = vmatmul.f32.gmra.mxu0 %v513
      %v1060 = vpop.f32.mrf.mxu0
      %v1061 = vadd.f32 %v924, %v1060
      %1062 = vmatmul.f32.gmra.mxu0 %v516
      %v1063 = vpop.f32.mrf.mxu0
      %v1064 = vadd.f32 %v927, %v1063
      %1065 = vmatmul.f32.gmra.mxu0 %v519
      %v1066 = vpop.f32.mrf.mxu0
      %v1067 = vadd.f32 %v930, %v1066
      %1068 = vmatmul.f32.gmra.mxu0 %v522
      %v1069 = vpop.f32.mrf.mxu0
      %v1070 = vadd.f32 %v933, %v1069
      %1071 = vmatmul.f32.gmra.mxu0 %v525
      %v1072 = vpop.f32.mrf.mxu0
      %v1073 = vadd.f32 %v936, %v1072
      %1074 = vmatmul.f32.gmra.mxu0 %v528
      %v1075 = vpop.f32.mrf.mxu0
      %v1076 = vadd.f32 %v939, %v1075
      %1077 = vmatmul.f32.gmra.mxu0 %v531
      %v1078 = vpop.f32.mrf.mxu0
      %v1079 = vadd.f32 %v942, %v1078
      %1080 = vmatmul.f32.gmra.mxu0 %v534
      %v1081 = vpop.f32.mrf.mxu0
      %v1082 = vadd.f32 %v945, %v1081
      %1083 = vmatmul.f32.gmra.mxu0 %v537
      %v1084 = vpop.f32.mrf.mxu0
      %v1085 = vadd.f32 %v948, %v1084
      %1086 = vmatmul.f32.gmra.mxu0 %v540
      %v1087 = vpop.f32.mrf.mxu0
      %v1088 = vadd.f32 %v951, %v1087
      %1089 = vmatmul.f32.gmra.mxu0 %v543
      %v1090 = vpop.f32.mrf.mxu0
      %v1091 = vadd.f32 %v954, %v1090
      %1092 = vmatmul.f32.gmra.mxu0 %v546
      %v1093 = vpop.f32.mrf.mxu0
      %v1094 = vadd.f32 %v957, %v1093
      %1095 = vmatmul.f32.gmra.mxu0 %v549
      %v1096 = vpop.f32.mrf.mxu0
      %v1097 = vadd.f32 %v960, %v1096
      %1098 = vmatmul.f32.gmra.mxu0 %v552
      %v1099 = vpop.f32.mrf.mxu0
      %v1100 = vadd.f32 %v963, %v1099
      %1101 = vmatmul.f32.gmra.mxu0 %v555
      %v1102 = vpop.f32.mrf.mxu0
      %v1103 = vadd.f32 %v966, %v1102
      %1104 = vmatmul.f32.gmra.mxu0 %v558
      %v1105 = vpop.f32.mrf.mxu0
      %v1106 = vadd.f32 %v969, %v1105
      %1107 = vmatmul.f32.gmra.mxu0 %v561
      %v1108 = vpop.f32.mrf.mxu0
      %v1109 = vadd.f32 %v972, %v1108
      %1110 = vmatmul.f32.gmra.mxu0 %v564
      %v1111 = vpop.f32.mrf.mxu0
      %v1112 = vadd.f32 %v975, %v1111
      %1113 = vmatmul.f32.gmra.mxu0 %v567
      %v1114 = vpop.f32.mrf.mxu0
      %v1115 = vadd.f32 %v978, %v1114
      %1116 = vmatmul.f32.gmra.mxu0 %v570
      %v1117 = vpop.f32.mrf.mxu0
      %v1118 = vadd.f32 %v981, %v1117
      %1119 = vmatmul.f32.gmra.mxu0 %v573
      %v1120 = vpop.f32.mrf.mxu0
      %v1121 = vadd.f32 %v984, %v1120
      %1122 = vmatmul.f32.gmra.mxu0 %v576
      %v1123 = vpop.f32.mrf.mxu0
      %v1124 = vadd.f32 %v987, %v1123
      %1125 = vdwg.mxu0
      %v1127 = vsel %vm457, %v216, 0
      %v1130 = vsel %vm457, %v218, 0
      %v1133 = vsel %vm457, %v220, 0
      %v1136 = vsel %vm457, %v222, 0
      %v1139 = vsel %vm457, %v224, 0
      %v1142 = vsel %vm457, %v226, 0
      %v1145 = vsel %vm457, %v228, 0
      %v1148 = vsel %vm457, %v230, 0
      %v1151 = vsel %vm457, %v232, 0
      %v1154 = vsel %vm457, %v234, 0
      %v1157 = vsel %vm457, %v236, 0
      %v1160 = vsel %vm457, %v238, 0
      %v1163 = vsel %vm457, %v240, 0
      %v1166 = vsel %vm457, %v242, 0
      %v1169 = vsel %vm457, %v244, 0
      %v1172 = vsel %vm457, %v246, 0
      %v1175 = vsel %vm457, %v248, 0
      %v1178 = vsel %vm457, %v250, 0
      %v1181 = vsel %vm457, %v252, 0
      %v1184 = vsel %vm457, %v254, 0
      %v1187 = vsel %vm457, %v256, 0
      %v1190 = vsel %vm457, %v258, 0
      %v1193 = vsel %vm457, %v260, 0
      %v1196 = vsel %vm457, %v262, 0
      %v1199 = vsel %vm457, %v264, 0
      %v1202 = vsel %vm457, %v266, 0
      %v1205 = vsel %vm457, %v268, 0
      %v1208 = vsel %vm457, %v270, 0
      %v1211 = vsel %vm457, %v272, 0
      %v1214 = vsel %vm457, %v274, 0
      %v1217 = vsel %vm457, %v276, 0
      %v1220 = vsel %vm457, %v278, 0
      %v1223 = vsel %vm457, %v280, 0
      %v1226 = vsel %vm457, %v282, 0
      %v1229 = vsel %vm457, %v284, 0
      %v1232 = vsel %vm457, %v286, 0
      %v1235 = vsel %vm457, %v288, 0
      %v1238 = vsel %vm457, %v290, 0
      %v1241 = vsel %vm457, %v292, 0
      %v1244 = vsel %vm457, %v294, 0
      %1246 = vmatpush.msra.mxu0 %v325
      %1247 = vmatpush.msra.mxu0 %v323
      %1248 = vmatpush.msra.mxu0 %v321
      %1249 = vmatpush.msra.mxu0 %v319
      %1250 = vmatpush.msra.mxu0 %v317
      %1251 = vmatpush.msra.mxu0 %v315
      %1252 = vmatpush.msra.mxu0 %v313
      %1253 = vmatpush.msra.mxu0 %v311
      %1254 = vmatpush.msra.mxu0 %v309
      %1255 = vmatpush.msra.mxu0 %v307
      %1256 = vmatpush.msra.mxu0 %v305
      %1257 = vmatpush.msra.mxu0 %v303
      %1258 = vmatpush.msra.mxu0 %v301
      %1259 = vmatpush.msra.mxu0 %v299
      %1260 = vmatpush.msra.mxu0 %v297
      %1261 = vmatpush.msra.mxu0 %v295
      %1262 = vmatmul.f32.gmra.mxu0 %v215
      %v1263 = vpop.f32.mrf.mxu0
      %v1264 = vadd.f32 %v733, %v1263
      %1265 = vmatmul.f32.gmra.mxu0 %v217
      %v1266 = vpop.f32.mrf.mxu0
      %v1267 = vadd.f32 %v736, %v1266
      %1268 = vmatmul.f32.gmra.mxu0 %v219
      %v1269 = vpop.f32.mrf.mxu0
      %v1270 = vadd.f32 %v739, %v1269
      %1271 = vmatmul.f32.gmra.mxu0 %v221
      %v1272 = vpop.f32.mrf.mxu0
      %v1273 = vadd.f32 %v742, %v1272
      %1274 = vmatmul.f32.gmra.mxu0 %v223
      %v1275 = vpop.f32.mrf.mxu0
      %v1276 = vadd.f32 %v745, %v1275
      %1277 = vmatmul.f32.gmra.mxu0 %v225
      %v1278 = vpop.f32.mrf.mxu0
      %v1279 = vadd.f32 %v748, %v1278
      %1280 = vmatmul.f32.gmra.mxu0 %v227
      %v1281 = vpop.f32.mrf.mxu0
      %v1282 = vadd.f32 %v751, %v1281
      %1283 = vmatmul.f32.gmra.mxu0 %v229
      %v1284 = vpop.f32.mrf.mxu0
      %v1285 = vadd.f32 %v754, %v1284
      %1286 = vmatmul.f32.gmra.mxu0 %v231
      %v1287 = vpop.f32.mrf.mxu0
      %v1288 = vadd.f32 %v757, %v1287
      %1289 = vmatmul.f32.gmra.mxu0 %v233
      %v1290 = vpop.f32.mrf.mxu0
      %v1291 = vadd.f32 %v760, %v1290
      %1292 = vmatmul.f32.gmra.mxu0 %v235
      %v1293 = vpop.f32.mrf.mxu0
      %v1294 = vadd.f32 %v763, %v1293
      %1295 = vmatmul.f32.gmra.mxu0 %v237
      %v1296 = vpop.f32.mrf.mxu0
      %v1297 = vadd.f32 %v766, %v1296
      %1298 = vmatmul.f32.gmra.mxu0 %v239
      %v1299 = vpop.f32.mrf.mxu0
      %v1300 = vadd.f32 %v769, %v1299
      %1301 = vmatmul.f32.gmra.mxu0 %v241
      %v1302 = vpop.f32.mrf.mxu0
      %v1303 = vadd.f32 %v772, %v1302
      %1304 = vmatmul.f32.gmra.mxu0 %v243
      %v1305 = vpop.f32.mrf.mxu0
      %v1306 = vadd.f32 %v775, %v1305
      %1307 = vmatmul.f32.gmra.mxu0 %v245
      %v1308 = vpop.f32.mrf.mxu0
      %v1309 = vadd.f32 %v778, %v1308
      %1310 = vmatmul.f32.gmra.mxu0 %v247
      %v1311 = vpop.f32.mrf.mxu0
      %v1312 = vadd.f32 %v781, %v1311
      %1313 = vmatmul.f32.gmra.mxu0 %v249
      %v1314 = vpop.f32.mrf.mxu0
      %v1315 = vadd.f32 %v784, %v1314
      %1316 = vmatmul.f32.gmra.mxu0 %v251
      %v1317 = vpop.f32.mrf.mxu0
      %v1318 = vadd.f32 %v787, %v1317
      %1319 = vmatmul.f32.gmra.mxu0 %v253
      %v1320 = vpop.f32.mrf.mxu0
      %v1321 = vadd.f32 %v790, %v1320
      %1322 = vmatmul.f32.gmra.mxu0 %v255
      %v1323 = vpop.f32.mrf.mxu0
      %v1324 = vadd.f32 %v793, %v1323
      %1325 = vmatmul.f32.gmra.mxu0 %v257
      %v1326 = vpop.f32.mrf.mxu0
      %v1327 = vadd.f32 %v796, %v1326
      %1328 = vmatmul.f32.gmra.mxu0 %v259
      %v1329 = vpop.f32.mrf.mxu0
      %v1330 = vadd.f32 %v799, %v1329
      %1331 = vmatmul.f32.gmra.mxu0 %v261
      %v1332 = vpop.f32.mrf.mxu0
      %v1333 = vadd.f32 %v802, %v1332
      %1334 = vmatmul.f32.gmra.mxu0 %v263
      %v1335 = vpop.f32.mrf.mxu0
      %v1336 = vadd.f32 %v805, %v1335
      %1337 = vmatmul.f32.gmra.mxu0 %v265
      %v1338 = vpop.f32.mrf.mxu0
      %v1339 = vadd.f32 %v808, %v1338
      %1340 = vmatmul.f32.gmra.mxu0 %v267
      %v1341 = vpop.f32.mrf.mxu0
      %v1342 = vadd.f32 %v811, %v1341
      %1343 = vmatmul.f32.gmra.mxu0 %v269
      %v1344 = vpop.f32.mrf.mxu0
      %v1345 = vadd.f32 %v814, %v1344
      %1346 = vmatmul.f32.gmra.mxu0 %v271
      %v1347 = vpop.f32.mrf.mxu0
      %v1348 = vadd.f32 %v817, %v1347
      %1349 = vmatmul.f32.gmra.mxu0 %v273
      %v1350 = vpop.f32.mrf.mxu0
      %v1351 = vadd.f32 %v820, %v1350
      %1352 = vmatmul.f32.gmra.mxu0 %v275
      %v1353 = vpop.f32.mrf.mxu0
      %v1354 = vadd.f32 %v823, %v1353
      %1355 = vmatmul.f32.gmra.mxu0 %v277
      %v1356 = vpop.f32.mrf.mxu0
      %v1357 = vadd.f32 %v826, %v1356
      %1358 = vmatmul.f32.gmra.mxu0 %v279
      %v1359 = vpop.f32.mrf.mxu0
      %v1360 = vadd.f32 %v829, %v1359
      %1361 = vmatmul.f32.gmra.mxu0 %v281
      %v1362 = vpop.f32.mrf.mxu0
      %v1363 = vadd.f32 %v832, %v1362
      %1364 = vmatmul.f32.gmra.mxu0 %v283
      %v1365 = vpop.f32.mrf.mxu0
      %v1366 = vadd.f32 %v835, %v1365
      %1367 = vmatmul.f32.gmra.mxu0 %v285
      %v1368 = vpop.f32.mrf.mxu0
      %v1369 = vadd.f32 %v838, %v1368
      %1370 = vmatmul.f32.gmra.mxu0 %v287
      %v1371 = vpop.f32.mrf.mxu0
      %v1372 = vadd.f32 %v841, %v1371
      %1373 = vmatmul.f32.gmra.mxu0 %v289
      %v1374 = vpop.f32.mrf.mxu0
      %v1375 = vadd.f32 %v844, %v1374
      %1376 = vmatmul.f32.gmra.mxu0 %v291
      %v1377 = vpop.f32.mrf.mxu0
      %v1378 = vadd.f32 %v847, %v1377
      %1379 = vmatmul.f32.gmra.mxu0 %v293
      %v1380 = vpop.f32.mrf.mxu0
      %v1381 = vadd.f32 %v850, %v1380
      %1382 = vdwg.mxu0
      %1383 = vmatpush.msra.mxu0 0.0
      %1384 = vmatpush.msra.mxu0 0.0
      %1385 = vmatpush.msra.mxu0 0.0
      %1386 = vmatpush.msra.mxu0 0.0
      %1387 = vmatpush.msra.mxu0 0.0
      %1388 = vmatpush.msra.mxu0 0.0
      %1389 = vmatpush.msra.mxu0 0.0
      %1390 = vmatpush.msra.mxu0 0.0
      %1391 = vmatpush.msra.mxu0 0.0
      %1392 = vmatpush.msra.mxu0 0.0
      %1393 = vmatpush.msra.mxu0 0.0
      %1394 = vmatpush.msra.mxu0 0.0
      %1395 = vmatpush.msra.mxu0 %v333
      %1396 = vmatpush.msra.mxu0 %v331
      %1397 = vmatpush.msra.mxu0 %v329
      %1398 = vmatpush.msra.mxu0 %v327
      %1399 = vmatmul.f32.gmra.mxu0 %v1127
      %v1400 = vpop.f32.mrf.mxu0
      %v1401 = vadd.f32 %v1264, %v1400
      %1402 = vmatmul.f32.gmra.mxu0 %v1130
      %v1403 = vpop.f32.mrf.mxu0
      %v1404 = vadd.f32 %v1267, %v1403
      %1405 = vmatmul.f32.gmra.mxu0 %v1133
      %v1406 = vpop.f32.mrf.mxu0
      %v1407 = vadd.f32 %v1270, %v1406
      %1408 = vmatmul.f32.gmra.mxu0 %v1136
      %v1409 = vpop.f32.mrf.mxu0
      %v1410 = vadd.f32 %v1273, %v1409
      %1411 = vmatmul.f32.gmra.mxu0 %v1139
      %v1412 = vpop.f32.mrf.mxu0
      %v1413 = vadd.f32 %v1276, %v1412
      %1414 = vmatmul.f32.gmra.mxu0 %v1142
      %v1415 = vpop.f32.mrf.mxu0
      %v1416 = vadd.f32 %v1279, %v1415
      %1417 = vmatmul.f32.gmra.mxu0 %v1145
      %v1418 = vpop.f32.mrf.mxu0
      %v1419 = vadd.f32 %v1282, %v1418
      %1420 = vmatmul.f32.gmra.mxu0 %v1148
      %v1421 = vpop.f32.mrf.mxu0
      %v1422 = vadd.f32 %v1285, %v1421
      %1423 = vmatmul.f32.gmra.mxu0 %v1151
      %v1424 = vpop.f32.mrf.mxu0
      %v1425 = vadd.f32 %v1288, %v1424
      %1426 = vmatmul.f32.gmra.mxu0 %v1154
      %v1427 = vpop.f32.mrf.mxu0
      %v1428 = vadd.f32 %v1291, %v1427
      %1429 = vmatmul.f32.gmra.mxu0 %v1157
      %v1430 = vpop.f32.mrf.mxu0
      %v1431 = vadd.f32 %v1294, %v1430
      %1432 = vmatmul.f32.gmra.mxu0 %v1160
      %v1433 = vpop.f32.mrf.mxu0
      %v1434 = vadd.f32 %v1297, %v1433
      %1435 = vmatmul.f32.gmra.mxu0 %v1163
      %v1436 = vpop.f32.mrf.mxu0
      %v1437 = vadd.f32 %v1300, %v1436
      %1438 = vmatmul.f32.gmra.mxu0 %v1166
      %v1439 = vpop.f32.mrf.mxu0
      %v1440 = vadd.f32 %v1303, %v1439
      %1441 = vmatmul.f32.gmra.mxu0 %v1169
      %v1442 = vpop.f32.mrf.mxu0
      %v1443 = vadd.f32 %v1306, %v1442
      %1444 = vmatmul.f32.gmra.mxu0 %v1172
      %v1445 = vpop.f32.mrf.mxu0
      %v1446 = vadd.f32 %v1309, %v1445
      %1447 = vmatmul.f32.gmra.mxu0 %v1175
      %v1448 = vpop.f32.mrf.mxu0
      %v1449 = vadd.f32 %v1312, %v1448
      %1450 = vmatmul.f32.gmra.mxu0 %v1178
      %v1451 = vpop.f32.mrf.mxu0
      %v1452 = vadd.f32 %v1315, %v1451
      %1453 = vmatmul.f32.gmra.mxu0 %v1181
      %v1454 = vpop.f32.mrf.mxu0
      %v1455 = vadd.f32 %v1318, %v1454
      %1456 = vmatmul.f32.gmra.mxu0 %v1184
      %v1457 = vpop.f32.mrf.mxu0
      %v1458 = vadd.f32 %v1321, %v1457
      %1459 = vmatmul.f32.gmra.mxu0 %v1187
      %v1460 = vpop.f32.mrf.mxu0
      %v1461 = vadd.f32 %v1324, %v1460
      %1462 = vmatmul.f32.gmra.mxu0 %v1190
      %v1463 = vpop.f32.mrf.mxu0
      %v1464 = vadd.f32 %v1327, %v1463
      %1465 = vmatmul.f32.gmra.mxu0 %v1193
      %v1466 = vpop.f32.mrf.mxu0
      %v1467 = vadd.f32 %v1330, %v1466
      %1468 = vmatmul.f32.gmra.mxu0 %v1196
      %v1469 = vpop.f32.mrf.mxu0
      %v1470 = vadd.f32 %v1333, %v1469
      %1471 = vmatmul.f32.gmra.mxu0 %v1199
      %v1472 = vpop.f32.mrf.mxu0
      %v1473 = vadd.f32 %v1336, %v1472
      %1474 = vmatmul.f32.gmra.mxu0 %v1202
      %v1475 = vpop.f32.mrf.mxu0
      %v1476 = vadd.f32 %v1339, %v1475
      %1477 = vmatmul.f32.gmra.mxu0 %v1205
      %v1478 = vpop.f32.mrf.mxu0
      %v1479 = vadd.f32 %v1342, %v1478
      %1480 = vmatmul.f32.gmra.mxu0 %v1208
      %v1481 = vpop.f32.mrf.mxu0
      %v1482 = vadd.f32 %v1345, %v1481
      %1483 = vmatmul.f32.gmra.mxu0 %v1211
      %v1484 = vpop.f32.mrf.mxu0
      %v1485 = vadd.f32 %v1348, %v1484
      %1486 = vmatmul.f32.gmra.mxu0 %v1214
      %v1487 = vpop.f32.mrf.mxu0
      %v1488 = vadd.f32 %v1351, %v1487
      %1489 = vmatmul.f32.gmra.mxu0 %v1217
      %v1490 = vpop.f32.mrf.mxu0
      %v1491 = vadd.f32 %v1354, %v1490
      %1492 = vmatmul.f32.gmra.mxu0 %v1220
      %v1493 = vpop.f32.mrf.mxu0
      %v1494 = vadd.f32 %v1357, %v1493
      %1495 = vmatmul.f32.gmra.mxu0 %v1223
      %v1496 = vpop.f32.mrf.mxu0
      %v1497 = vadd.f32 %v1360, %v1496
      %1498 = vmatmul.f32.gmra.mxu0 %v1226
      %v1499 = vpop.f32.mrf.mxu0
      %v1500 = vadd.f32 %v1363, %v1499
      %1501 = vmatmul.f32.gmra.mxu0 %v1229
      %v1502 = vpop.f32.mrf.mxu0
      %v1503 = vadd.f32 %v1366, %v1502
      %1504 = vmatmul.f32.gmra.mxu0 %v1232
      %v1505 = vpop.f32.mrf.mxu0
      %v1506 = vadd.f32 %v1369, %v1505
      %1507 = vmatmul.f32.gmra.mxu0 %v1235
      %v1508 = vpop.f32.mrf.mxu0
      %v1509 = vadd.f32 %v1372, %v1508
      %1510 = vmatmul.f32.gmra.mxu0 %v1238
      %v1511 = vpop.f32.mrf.mxu0
      %v1512 = vadd.f32 %v1375, %v1511
      %1513 = vmatmul.f32.gmra.mxu0 %v1241
      %v1514 = vpop.f32.mrf.mxu0
      %v1515 = vadd.f32 %v1378, %v1514
      %1516 = vmatmul.f32.gmra.mxu0 %v1244
      %v1517 = vpop.f32.mrf.mxu0
      %v1518 = vadd.f32 %v1381, %v1517
      %1519 = vdwg.mxu0
      %1520 = vmatpush.msra.mxu0 %v326
      %1521 = vmatpush.msra.mxu0 %v324
      %1522 = vmatpush.msra.mxu0 %v322
      %1523 = vmatpush.msra.mxu0 %v320
      %1524 = vmatpush.msra.mxu0 %v318
      %1525 = vmatpush.msra.mxu0 %v316
      %1526 = vmatpush.msra.mxu0 %v314
      %1527 = vmatpush.msra.mxu0 %v312
      %1528 = vmatpush.msra.mxu0 %v310
      %1529 = vmatpush.msra.mxu0 %v308
      %1530 = vmatpush.msra.mxu0 %v306
      %1531 = vmatpush.msra.mxu0 %v304
      %1532 = vmatpush.msra.mxu0 %v302
      %1533 = vmatpush.msra.mxu0 %v300
      %1534 = vmatpush.msra.mxu0 %v298
      %1535 = vmatpush.msra.mxu0 %v296
      %1536 = vmatmul.f32.gmra.mxu0 %v215
      %v1537 = vpop.f32.mrf.mxu0
      %v1538 = vadd.f32 %v1007, %v1537
      %1539 = vmatmul.f32.gmra.mxu0 %v217
      %v1540 = vpop.f32.mrf.mxu0
      %v1541 = vadd.f32 %v1010, %v1540
      %1542 = vmatmul.f32.gmra.mxu0 %v219
      %v1543 = vpop.f32.mrf.mxu0
      %v1544 = vadd.f32 %v1013, %v1543
      %1545 = vmatmul.f32.gmra.mxu0 %v221
      %v1546 = vpop.f32.mrf.mxu0
      %v1547 = vadd.f32 %v1016, %v1546
      %1548 = vmatmul.f32.gmra.mxu0 %v223
      %v1549 = vpop.f32.mrf.mxu0
      %v1550 = vadd.f32 %v1019, %v1549
      %1551 = vmatmul.f32.gmra.mxu0 %v225
      %v1552 = vpop.f32.mrf.mxu0
      %v1553 = vadd.f32 %v1022, %v1552
      %1554 = vmatmul.f32.gmra.mxu0 %v227
      %v1555 = vpop.f32.mrf.mxu0
      %v1556 = vadd.f32 %v1025, %v1555
      %1557 = vmatmul.f32.gmra.mxu0 %v229
      %v1558 = vpop.f32.mrf.mxu0
      %v1559 = vadd.f32 %v1028, %v1558
      %1560 = vmatmul.f32.gmra.mxu0 %v231
      %v1561 = vpop.f32.mrf.mxu0
      %v1562 = vadd.f32 %v1031, %v1561
      %1563 = vmatmul.f32.gmra.mxu0 %v233
      %v1564 = vpop.f32.mrf.mxu0
      %v1565 = vadd.f32 %v1034, %v1564
      %1566 = vmatmul.f32.gmra.mxu0 %v235
      %v1567 = vpop.f32.mrf.mxu0
      %v1568 = vadd.f32 %v1037, %v1567
      %1569 = vmatmul.f32.gmra.mxu0 %v237
      %v1570 = vpop.f32.mrf.mxu0
      %v1571 = vadd.f32 %v1040, %v1570
      %1572 = vmatmul.f32.gmra.mxu0 %v239
      %v1573 = vpop.f32.mrf.mxu0
      %v1574 = vadd.f32 %v1043, %v1573
      %1575 = vmatmul.f32.gmra.mxu0 %v241
      %v1576 = vpop.f32.mrf.mxu0
      %v1577 = vadd.f32 %v1046, %v1576
      %1578 = vmatmul.f32.gmra.mxu0 %v243
      %v1579 = vpop.f32.mrf.mxu0
      %v1580 = vadd.f32 %v1049, %v1579
      %1581 = vmatmul.f32.gmra.mxu0 %v245
      %v1582 = vpop.f32.mrf.mxu0
      %v1583 = vadd.f32 %v1052, %v1582
      %1584 = vmatmul.f32.gmra.mxu0 %v247
      %v1585 = vpop.f32.mrf.mxu0
      %v1586 = vadd.f32 %v1055, %v1585
      %1587 = vmatmul.f32.gmra.mxu0 %v249
      %v1588 = vpop.f32.mrf.mxu0
      %v1589 = vadd.f32 %v1058, %v1588
      %1590 = vmatmul.f32.gmra.mxu0 %v251
      %v1591 = vpop.f32.mrf.mxu0
      %v1592 = vadd.f32 %v1061, %v1591
      %1593 = vmatmul.f32.gmra.mxu0 %v253
      %v1594 = vpop.f32.mrf.mxu0
      %v1595 = vadd.f32 %v1064, %v1594
      %1596 = vmatmul.f32.gmra.mxu0 %v255
      %v1597 = vpop.f32.mrf.mxu0
      %v1598 = vadd.f32 %v1067, %v1597
      %1599 = vmatmul.f32.gmra.mxu0 %v257
      %v1600 = vpop.f32.mrf.mxu0
      %v1601 = vadd.f32 %v1070, %v1600
      %1602 = vmatmul.f32.gmra.mxu0 %v259
      %v1603 = vpop.f32.mrf.mxu0
      %v1604 = vadd.f32 %v1073, %v1603
      %1605 = vmatmul.f32.gmra.mxu0 %v261
      %v1606 = vpop.f32.mrf.mxu0
      %v1607 = vadd.f32 %v1076, %v1606
      %1608 = vmatmul.f32.gmra.mxu0 %v263
      %v1609 = vpop.f32.mrf.mxu0
      %v1610 = vadd.f32 %v1079, %v1609
      %1611 = vmatmul.f32.gmra.mxu0 %v265
      %v1612 = vpop.f32.mrf.mxu0
      %v1613 = vadd.f32 %v1082, %v1612
      %1614 = vmatmul.f32.gmra.mxu0 %v267
      %v1615 = vpop.f32.mrf.mxu0
      %v1616 = vadd.f32 %v1085, %v1615
      %1617 = vmatmul.f32.gmra.mxu0 %v269
      %v1618 = vpop.f32.mrf.mxu0
      %v1619 = vadd.f32 %v1088, %v1618
      %1620 = vmatmul.f32.gmra.mxu0 %v271
      %v1621 = vpop.f32.mrf.mxu0
      %v1622 = vadd.f32 %v1091, %v1621
      %1623 = vmatmul.f32.gmra.mxu0 %v273
      %v1624 = vpop.f32.mrf.mxu0
      %v1625 = vadd.f32 %v1094, %v1624
      %1626 = vmatmul.f32.gmra.mxu0 %v275
      %v1627 = vpop.f32.mrf.mxu0
      %v1628 = vadd.f32 %v1097, %v1627
      %1629 = vmatmul.f32.gmra.mxu0 %v277
      %v1630 = vpop.f32.mrf.mxu0
      %v1631 = vadd.f32 %v1100, %v1630
      %1632 = vmatmul.f32.gmra.mxu0 %v279
      %v1633 = vpop.f32.mrf.mxu0
      %v1634 = vadd.f32 %v1103, %v1633
      %1635 = vmatmul.f32.gmra.mxu0 %v281
      %v1636 = vpop.f32.mrf.mxu0
      %v1637 = vadd.f32 %v1106, %v1636
      %1638 = vmatmul.f32.gmra.mxu0 %v283
      %v1639 = vpop.f32.mrf.mxu0
      %v1640 = vadd.f32 %v1109, %v1639
      %1641 = vmatmul.f32.gmra.mxu0 %v285
      %v1642 = vpop.f32.mrf.mxu0
      %v1643 = vadd.f32 %v1112, %v1642
      %1644 = vmatmul.f32.gmra.mxu0 %v287
      %v1645 = vpop.f32.mrf.mxu0
      %v1646 = vadd.f32 %v1115, %v1645
      %1647 = vmatmul.f32.gmra.mxu0 %v289
      %v1648 = vpop.f32.mrf.mxu0
      %v1649 = vadd.f32 %v1118, %v1648
      %1650 = vmatmul.f32.gmra.mxu0 %v291
      %v1651 = vpop.f32.mrf.mxu0
      %v1652 = vadd.f32 %v1121, %v1651
      %1653 = vmatmul.f32.gmra.mxu0 %v293
      %v1654 = vpop.f32.mrf.mxu0
      %v1655 = vadd.f32 %v1124, %v1654
      %1656 = vdwg.mxu0
      %1657 = vmatpush.msra.mxu0 0.0
      %1658 = vmatpush.msra.mxu0 0.0
      %1659 = vmatpush.msra.mxu0 0.0
      %1660 = vmatpush.msra.mxu0 0.0
      %1661 = vmatpush.msra.mxu0 0.0
      %1662 = vmatpush.msra.mxu0 0.0
      %1663 = vmatpush.msra.mxu0 0.0
      %1664 = vmatpush.msra.mxu0 0.0
      %1665 = vmatpush.msra.mxu0 0.0
      %1666 = vmatpush.msra.mxu0 0.0
      %1667 = vmatpush.msra.mxu0 0.0
      %1668 = vmatpush.msra.mxu0 0.0
      %1669 = vmatpush.msra.mxu0 %v334
      %1670 = vmatpush.msra.mxu0 %v332
      %1671 = vmatpush.msra.mxu0 %v330
      %1672 = vmatpush.msra.mxu0 %v328
      %1673 = vmatmul.f32.gmra.mxu0 %v1127
      %v1674 = vpop.f32.mrf.mxu0
      %v1675 = vadd.f32 %v1538, %v1674
      %1676 = vmatmul.f32.gmra.mxu0 %v1130
      %v1677 = vpop.f32.mrf.mxu0
      %v1678 = vadd.f32 %v1541, %v1677
      %1679 = vmatmul.f32.gmra.mxu0 %v1133
      %v1680 = vpop.f32.mrf.mxu0
      %v1681 = vadd.f32 %v1544, %v1680
      %1682 = vmatmul.f32.gmra.mxu0 %v1136
      %v1683 = vpop.f32.mrf.mxu0
      %v1684 = vadd.f32 %v1547, %v1683
      %1685 = vmatmul.f32.gmra.mxu0 %v1139
      %v1686 = vpop.f32.mrf.mxu0
      %v1687 = vadd.f32 %v1550, %v1686
      %1688 = vmatmul.f32.gmra.mxu0 %v1142
      %v1689 = vpop.f32.mrf.mxu0
      %v1690 = vadd.f32 %v1553, %v1689
      %1691 = vmatmul.f32.gmra.mxu0 %v1145
      %v1692 = vpop.f32.mrf.mxu0
      %v1693 = vadd.f32 %v1556, %v1692
      %1694 = vmatmul.f32.gmra.mxu0 %v1148
      %v1695 = vpop.f32.mrf.mxu0
      %v1696 = vadd.f32 %v1559, %v1695
      %1697 = vmatmul.f32.gmra.mxu0 %v1151
      %v1698 = vpop.f32.mrf.mxu0
      %v1699 = vadd.f32 %v1562, %v1698
      %1700 = vmatmul.f32.gmra.mxu0 %v1154
      %v1701 = vpop.f32.mrf.mxu0
      %v1702 = vadd.f32 %v1565, %v1701
      %1703 = vmatmul.f32.gmra.mxu0 %v1157
      %v1704 = vpop.f32.mrf.mxu0
      %v1705 = vadd.f32 %v1568, %v1704
      %1706 = vmatmul.f32.gmra.mxu0 %v1160
      %v1707 = vpop.f32.mrf.mxu0
      %v1708 = vadd.f32 %v1571, %v1707
      %1709 = vmatmul.f32.gmra.mxu0 %v1163
      %v1710 = vpop.f32.mrf.mxu0
      %v1711 = vadd.f32 %v1574, %v1710
      %1712 = vmatmul.f32.gmra.mxu0 %v1166
      %v1713 = vpop.f32.mrf.mxu0
      %v1714 = vadd.f32 %v1577, %v1713
      %1715 = vmatmul.f32.gmra.mxu0 %v1169
      %v1716 = vpop.f32.mrf.mxu0
      %v1717 = vadd.f32 %v1580, %v1716
      %1718 = vmatmul.f32.gmra.mxu0 %v1172
      %v1719 = vpop.f32.mrf.mxu0
      %v1720 = vadd.f32 %v1583, %v1719
      %1721 = vmatmul.f32.gmra.mxu0 %v1175
      %v1722 = vpop.f32.mrf.mxu0
      %v1723 = vadd.f32 %v1586, %v1722
      %1724 = vmatmul.f32.gmra.mxu0 %v1178
      %v1725 = vpop.f32.mrf.mxu0
      %v1726 = vadd.f32 %v1589, %v1725
      %1727 = vmatmul.f32.gmra.mxu0 %v1181
      %v1728 = vpop.f32.mrf.mxu0
      %v1729 = vadd.f32 %v1592, %v1728
      %1730 = vmatmul.f32.gmra.mxu0 %v1184
      %v1731 = vpop.f32.mrf.mxu0
      %v1732 = vadd.f32 %v1595, %v1731
      %1733 = vmatmul.f32.gmra.mxu0 %v1187
      %v1734 = vpop.f32.mrf.mxu0
      %v1735 = vadd.f32 %v1598, %v1734
      %1736 = vmatmul.f32.gmra.mxu0 %v1190
      %v1737 = vpop.f32.mrf.mxu0
      %v1738 = vadd.f32 %v1601, %v1737
      %1739 = vmatmul.f32.gmra.mxu0 %v1193
      %v1740 = vpop.f32.mrf.mxu0
      %v1741 = vadd.f32 %v1604, %v1740
      %1742 = vmatmul.f32.gmra.mxu0 %v1196
      %v1743 = vpop.f32.mrf.mxu0
      %v1744 = vadd.f32 %v1607, %v1743
      %1745 = vmatmul.f32.gmra.mxu0 %v1199
      %v1746 = vpop.f32.mrf.mxu0
      %v1747 = vadd.f32 %v1610, %v1746
      %1748 = vmatmul.f32.gmra.mxu0 %v1202
      %v1749 = vpop.f32.mrf.mxu0
      %v1750 = vadd.f32 %v1613, %v1749
      %1751 = vmatmul.f32.gmra.mxu0 %v1205
      %v1752 = vpop.f32.mrf.mxu0
      %v1753 = vadd.f32 %v1616, %v1752
      %1754 = vmatmul.f32.gmra.mxu0 %v1208
      %v1755 = vpop.f32.mrf.mxu0
      %v1756 = vadd.f32 %v1619, %v1755
      %1757 = vmatmul.f32.gmra.mxu0 %v1211
      %v1758 = vpop.f32.mrf.mxu0
      %v1759 = vadd.f32 %v1622, %v1758
      %1760 = vmatmul.f32.gmra.mxu0 %v1214
      %v1761 = vpop.f32.mrf.mxu0
      %v1762 = vadd.f32 %v1625, %v1761
      %1763 = vmatmul.f32.gmra.mxu0 %v1217
      %v1764 = vpop.f32.mrf.mxu0
      %v1765 = vadd.f32 %v1628, %v1764
      %1766 = vmatmul.f32.gmra.mxu0 %v1220
      %v1767 = vpop.f32.mrf.mxu0
      %v1768 = vadd.f32 %v1631, %v1767
      %1769 = vmatmul.f32.gmra.mxu0 %v1223
      %v1770 = vpop.f32.mrf.mxu0
      %v1771 = vadd.f32 %v1634, %v1770
      %1772 = vmatmul.f32.gmra.mxu0 %v1226
      %v1773 = vpop.f32.mrf.mxu0
      %v1774 = vadd.f32 %v1637, %v1773
      %1775 = vmatmul.f32.gmra.mxu0 %v1229
      %v1776 = vpop.f32.mrf.mxu0
      %v1777 = vadd.f32 %v1640, %v1776
      %1778 = vmatmul.f32.gmra.mxu0 %v1232
      %v1779 = vpop.f32.mrf.mxu0
      %v1780 = vadd.f32 %v1643, %v1779
      %1781 = vmatmul.f32.gmra.mxu0 %v1235
      %v1782 = vpop.f32.mrf.mxu0
      %v1783 = vadd.f32 %v1646, %v1782
      %1784 = vmatmul.f32.gmra.mxu0 %v1238
      %v1785 = vpop.f32.mrf.mxu0
      %v1786 = vadd.f32 %v1649, %v1785
      %1787 = vmatmul.f32.gmra.mxu0 %v1241
      %v1788 = vpop.f32.mrf.mxu0
      %v1789 = vadd.f32 %v1652, %v1788
      %1790 = vmatmul.f32.gmra.mxu0 %v1244
      %v1791 = vpop.f32.mrf.mxu0
      %v1792 = vadd.f32 %v1655, %v1791
      %1793 = vdwg.mxu0
      %s1794 = scalar_lea.vmem %s202, 320
      %v1795 = vld [vmem:[%s1794] sm:$0xff]
      %v1796 = vld [vmem:[%s1794 + $0x8] sm:$0xff]
      %v1797 = vld [vmem:[%s1794 + $0x10] sm:$0xff]
      %v1798 = vld [vmem:[%s1794 + $0x18] sm:$0xff]
      %v1799 = vld [vmem:[%s1794 + $0x20] sm:$0xff]
      %v1800 = vld [vmem:[%s1794 + $0x28] sm:$0xff]
      %v1801 = vld [vmem:[%s1794 + $0x30] sm:$0xff]
      %v1802 = vld [vmem:[%s1794 + $0x38] sm:$0xff]
      %v1803 = vld [vmem:[%s1794 + $0x40] sm:$0xff]
      %v1804 = vld [vmem:[%s1794 + $0x48] sm:$0xff]
      %v1805 = vld [vmem:[%s1794 + $0x50] sm:$0xff]
      %v1806 = vld [vmem:[%s1794 + $0x58] sm:$0xff]
      %v1807 = vld [vmem:[%s1794 + $0x60] sm:$0xff]
      %v1808 = vld [vmem:[%s1794 + $0x68] sm:$0xff]
      %v1809 = vld [vmem:[%s1794 + $0x70] sm:$0xff]
      %v1810 = vld [vmem:[%s1794 + $0x78] sm:$0xff]
      %v1811 = vld [vmem:[%s1794 + $0x80] sm:$0xff]
      %v1812 = vld [vmem:[%s1794 + $0x88] sm:$0xff]
      %v1813 = vld [vmem:[%s1794 + $0x90] sm:$0xff]
      %v1814 = vld [vmem:[%s1794 + $0x98] sm:$0xff]
      %v1815 = vld [vmem:[%s1794 + $0xa0] sm:$0xff]
      %v1816 = vld [vmem:[%s1794 + $0xa8] sm:$0xff]
      %v1817 = vld [vmem:[%s1794 + $0xb0] sm:$0xff]
      %v1818 = vld [vmem:[%s1794 + $0xb8] sm:$0xff]
      %v1819 = vld [vmem:[%s1794 + $0xc0] sm:$0xff]
      %v1820 = vld [vmem:[%s1794 + $0xc8] sm:$0xff]
      %v1821 = vld [vmem:[%s1794 + $0xd0] sm:$0xff]
      %v1822 = vld [vmem:[%s1794 + $0xd8] sm:$0xff]
      %v1823 = vld [vmem:[%s1794 + $0xe0] sm:$0xff]
      %v1824 = vld [vmem:[%s1794 + $0xe8] sm:$0xff]
      %v1825 = vld [vmem:[%s1794 + $0xf0] sm:$0xff]
      %v1826 = vld [vmem:[%s1794 + $0xf8] sm:$0xff]
      %v1827 = vld [vmem:[%s1794 + $0x100] sm:$0xff]
      %v1828 = vld [vmem:[%s1794 + $0x108] sm:$0xff]
      %v1829 = vld [vmem:[%s1794 + $0x110] sm:$0xff]
      %v1830 = vld [vmem:[%s1794 + $0x118] sm:$0xff]
      %v1831 = vld [vmem:[%s1794 + $0x120] sm:$0xff]
      %v1832 = vld [vmem:[%s1794 + $0x128] sm:$0xff]
      %v1833 = vld [vmem:[%s1794 + $0x130] sm:$0xff]
      %v1834 = vld [vmem:[%s1794 + $0x138] sm:$0xff]
      %v1835 = vld [vmem:[%s1794 + $0x140] sm:$0xff]
      %v1836 = vld [vmem:[%s1794 + $0x148] sm:$0xff]
      %v1837 = vld [vmem:[%s1794 + $0x150] sm:$0xff]
      %v1838 = vld [vmem:[%s1794 + $0x158] sm:$0xff]
      %v1839 = vld [vmem:[%s1794 + $0x160] sm:$0xff]
      %v1840 = vld [vmem:[%s1794 + $0x168] sm:$0xff]
      %v1841 = vld [vmem:[%s1794 + $0x170] sm:$0xff]
      %v1842 = vld [vmem:[%s1794 + $0x178] sm:$0xff]
      %v1843 = vld [vmem:[%s1794 + $0x180] sm:$0xff]
      %v1844 = vld [vmem:[%s1794 + $0x188] sm:$0xff]
      %v1845 = vld [vmem:[%s1794 + $0x190] sm:$0xff]
      %v1846 = vld [vmem:[%s1794 + $0x198] sm:$0xff]
      %v1847 = vld [vmem:[%s1794 + $0x1a0] sm:$0xff]
      %v1848 = vld [vmem:[%s1794 + $0x1a8] sm:$0xff]
      %v1849 = vld [vmem:[%s1794 + $0x1b0] sm:$0xff]
      %v1850 = vld [vmem:[%s1794 + $0x1b8] sm:$0xff]
      %v1851 = vld [vmem:[%s1794 + $0x1c0] sm:$0xff]
      %v1852 = vld [vmem:[%s1794 + $0x1c8] sm:$0xff]
      %v1853 = vld [vmem:[%s1794 + $0x1d0] sm:$0xff]
      %v1854 = vld [vmem:[%s1794 + $0x1d8] sm:$0xff]
      %v1855 = vld [vmem:[%s1794 + $0x1e0] sm:$0xff]
      %v1856 = vld [vmem:[%s1794 + $0x1e8] sm:$0xff]
      %v1857 = vld [vmem:[%s1794 + $0x1f0] sm:$0xff]
      %v1858 = vld [vmem:[%s1794 + $0x1f8] sm:$0xff]
      %v1859 = vld [vmem:[%s1794 + $0x200] sm:$0xff]
      %v1860 = vld [vmem:[%s1794 + $0x208] sm:$0xff]
      %v1861 = vld [vmem:[%s1794 + $0x210] sm:$0xff]
      %v1862 = vld [vmem:[%s1794 + $0x218] sm:$0xff]
      %v1863 = vld [vmem:[%s1794 + $0x220] sm:$0xff]
      %v1864 = vld [vmem:[%s1794 + $0x228] sm:$0xff]
      %v1865 = vld [vmem:[%s1794 + $0x230] sm:$0xff]
      %v1866 = vld [vmem:[%s1794 + $0x238] sm:$0xff]
      %v1867 = vld [vmem:[%s1794 + $0x240] sm:$0xff]
      %v1868 = vld [vmem:[%s1794 + $0x248] sm:$0xff]
      %v1869 = vld [vmem:[%s1794 + $0x250] sm:$0xff]
      %v1870 = vld [vmem:[%s1794 + $0x258] sm:$0xff]
      %v1871 = vld [vmem:[%s1794 + $0x260] sm:$0xff]
      %v1872 = vld [vmem:[%s1794 + $0x268] sm:$0xff]
      %v1873 = vld [vmem:[%s1794 + $0x270] sm:$0xff]
      %v1874 = vld [vmem:[%s1794 + $0x278] sm:$0xff]
      %s1875 = scalar_lea.vmem %s1, 640
      %v1876 = vld [vmem:[%s1875] sm:$0xff]
      %v1877 = vld [vmem:[%s1875 + $0x8] sm:$0xff]
      %v1878 = vld [vmem:[%s1875 + $0x10] sm:$0xff]
      %v1879 = vld [vmem:[%s1875 + $0x18] sm:$0xff]
      %v1880 = vld [vmem:[%s1875 + $0x20] sm:$0xff]
      %v1881 = vld [vmem:[%s1875 + $0x28] sm:$0xff]
      %v1882 = vld [vmem:[%s1875 + $0x30] sm:$0xff]
      %v1883 = vld [vmem:[%s1875 + $0x38] sm:$0xff]
      %v1884 = vld [vmem:[%s1875 + $0x40] sm:$0xff]
      %v1885 = vld [vmem:[%s1875 + $0x48] sm:$0xff]
      %v1886 = vld [vmem:[%s1875 + $0x50] sm:$0xff]
      %v1887 = vld [vmem:[%s1875 + $0x58] sm:$0xff]
      %v1888 = vld [vmem:[%s1875 + $0x60] sm:$0xff]
      %v1889 = vld [vmem:[%s1875 + $0x68] sm:$0xff]
      %v1890 = vld [vmem:[%s1875 + $0x70] sm:$0xff]
      %v1891 = vld [vmem:[%s1875 + $0x78] sm:$0xff]
      %v1892 = vld [vmem:[%s1875 + $0x80] sm:$0xff]
      %v1893 = vld [vmem:[%s1875 + $0x88] sm:$0xff]
      %v1894 = vld [vmem:[%s1875 + $0x90] sm:$0xff]
      %v1895 = vld [vmem:[%s1875 + $0x98] sm:$0xff]
      %v1896 = vld [vmem:[%s1875 + $0xa0] sm:$0xff]
      %v1897 = vld [vmem:[%s1875 + $0xa8] sm:$0xff]
      %v1898 = vld [vmem:[%s1875 + $0xb0] sm:$0xff]
      %v1899 = vld [vmem:[%s1875 + $0xb8] sm:$0xff]
      %v1900 = vld [vmem:[%s1875 + $0xc0] sm:$0xff]
      %v1901 = vld [vmem:[%s1875 + $0xc8] sm:$0xff]
      %v1902 = vld [vmem:[%s1875 + $0xd0] sm:$0xff]
      %v1903 = vld [vmem:[%s1875 + $0xd8] sm:$0xff]
      %v1904 = vld [vmem:[%s1875 + $0xe0] sm:$0xff]
      %v1905 = vld [vmem:[%s1875 + $0xe8] sm:$0xff]
      %v1906 = vld [vmem:[%s1875 + $0xf0] sm:$0xff]
      %v1907 = vld [vmem:[%s1875 + $0xf8] sm:$0xff]
      %v1908 = vld [vmem:[%s1875 + $0x100] sm:$0xff]
      %v1909 = vld [vmem:[%s1875 + $0x108] sm:$0xff]
      %v1910 = vld [vmem:[%s1875 + $0x110] sm:$0xff]
      %v1911 = vld [vmem:[%s1875 + $0x118] sm:$0xff]
      %v1912 = vld [vmem:[%s1875 + $0x120] sm:$0xff]
      %v1913 = vld [vmem:[%s1875 + $0x128] sm:$0xff]
      %v1914 = vld [vmem:[%s1875 + $0x130] sm:$0xff]
      %v1915 = vld [vmem:[%s1875 + $0x138] sm:$0xff]
      %v1917 = vsel %vm457, %v1796, 0
      %v1920 = vsel %vm457, %v1798, 0
      %v1923 = vsel %vm457, %v1800, 0
      %v1926 = vsel %vm457, %v1802, 0
      %v1929 = vsel %vm457, %v1804, 0
      %v1932 = vsel %vm457, %v1806, 0
      %v1935 = vsel %vm457, %v1808, 0
      %v1938 = vsel %vm457, %v1810, 0
      %v1941 = vsel %vm457, %v1812, 0
      %v1944 = vsel %vm457, %v1814, 0
      %v1947 = vsel %vm457, %v1816, 0
      %v1950 = vsel %vm457, %v1818, 0
      %v1953 = vsel %vm457, %v1820, 0
      %v1956 = vsel %vm457, %v1822, 0
      %v1959 = vsel %vm457, %v1824, 0
      %v1962 = vsel %vm457, %v1826, 0
      %v1965 = vsel %vm457, %v1828, 0
      %v1968 = vsel %vm457, %v1830, 0
      %v1971 = vsel %vm457, %v1832, 0
      %v1974 = vsel %vm457, %v1834, 0
      %v1977 = vsel %vm457, %v1836, 0
      %v1980 = vsel %vm457, %v1838, 0
      %v1983 = vsel %vm457, %v1840, 0
      %v1986 = vsel %vm457, %v1842, 0
      %v1989 = vsel %vm457, %v1844, 0
      %v1992 = vsel %vm457, %v1846, 0
      %v1995 = vsel %vm457, %v1848, 0
      %v1998 = vsel %vm457, %v1850, 0
      %v2001 = vsel %vm457, %v1852, 0
      %v2004 = vsel %vm457, %v1854, 0
      %v2007 = vsel %vm457, %v1856, 0
      %v2010 = vsel %vm457, %v1858, 0
      %v2013 = vsel %vm457, %v1860, 0
      %v2016 = vsel %vm457, %v1862, 0
      %v2019 = vsel %vm457, %v1864, 0
      %v2022 = vsel %vm457, %v1866, 0
      %v2025 = vsel %vm457, %v1868, 0
      %v2028 = vsel %vm457, %v1870, 0
      %v2031 = vsel %vm457, %v1872, 0
      %v2034 = vsel %vm457, %v1874, 0
      %2036 = vmatpush.msra.mxu0 %v1906
      %2037 = vmatpush.msra.mxu0 %v1904
      %2038 = vmatpush.msra.mxu0 %v1902
      %2039 = vmatpush.msra.mxu0 %v1900
      %2040 = vmatpush.msra.mxu0 %v1898
      %2041 = vmatpush.msra.mxu0 %v1896
      %2042 = vmatpush.msra.mxu0 %v1894
      %2043 = vmatpush.msra.mxu0 %v1892
      %2044 = vmatpush.msra.mxu0 %v1890
      %2045 = vmatpush.msra.mxu0 %v1888
      %2046 = vmatpush.msra.mxu0 %v1886
      %2047 = vmatpush.msra.mxu0 %v1884
      %2048 = vmatpush.msra.mxu0 %v1882
      %2049 = vmatpush.msra.mxu0 %v1880
      %2050 = vmatpush.msra.mxu0 %v1878
      %2051 = vmatpush.msra.mxu0 %v1876
      %2052 = vmatmul.f32.gmra.mxu0 %v1795
      %v2053 = vpop.f32.mrf.mxu0
      %v2054 = vadd.f32 0.0, %v2053
      %2055 = vmatmul.f32.gmra.mxu0 %v1797
      %v2056 = vpop.f32.mrf.mxu0
      %v2057 = vadd.f32 0.0, %v2056
      %2058 = vmatmul.f32.gmra.mxu0 %v1799
      %v2059 = vpop.f32.mrf.mxu0
      %v2060 = vadd.f32 0.0, %v2059
      %2061 = vmatmul.f32.gmra.mxu0 %v1801
      %v2062 = vpop.f32.mrf.mxu0
      %v2063 = vadd.f32 0.0, %v2062
      %2064 = vmatmul.f32.gmra.mxu0 %v1803
      %v2065 = vpop.f32.mrf.mxu0
      %v2066 = vadd.f32 0.0, %v2065
      %2067 = vmatmul.f32.gmra.mxu0 %v1805
      %v2068 = vpop.f32.mrf.mxu0
      %v2069 = vadd.f32 0.0, %v2068
      %2070 = vmatmul.f32.gmra.mxu0 %v1807
      %v2071 = vpop.f32.mrf.mxu0
      %v2072 = vadd.f32 0.0, %v2071
      %2073 = vmatmul.f32.gmra.mxu0 %v1809
      %v2074 = vpop.f32.mrf.mxu0
      %v2075 = vadd.f32 0.0, %v2074
      %2076 = vmatmul.f32.gmra.mxu0 %v1811
      %v2077 = vpop.f32.mrf.mxu0
      %v2078 = vadd.f32 0.0, %v2077
      %2079 = vmatmul.f32.gmra.mxu0 %v1813
      %v2080 = vpop.f32.mrf.mxu0
      %v2081 = vadd.f32 0.0, %v2080
      %2082 = vmatmul.f32.gmra.mxu0 %v1815
      %v2083 = vpop.f32.mrf.mxu0
      %v2084 = vadd.f32 0.0, %v2083
      %2085 = vmatmul.f32.gmra.mxu0 %v1817
      %v2086 = vpop.f32.mrf.mxu0
      %v2087 = vadd.f32 0.0, %v2086
      %2088 = vmatmul.f32.gmra.mxu0 %v1819
      %v2089 = vpop.f32.mrf.mxu0
      %v2090 = vadd.f32 0.0, %v2089
      %2091 = vmatmul.f32.gmra.mxu0 %v1821
      %v2092 = vpop.f32.mrf.mxu0
      %v2093 = vadd.f32 0.0, %v2092
      %2094 = vmatmul.f32.gmra.mxu0 %v1823
      %v2095 = vpop.f32.mrf.mxu0
      %v2096 = vadd.f32 0.0, %v2095
      %2097 = vmatmul.f32.gmra.mxu0 %v1825
      %v2098 = vpop.f32.mrf.mxu0
      %v2099 = vadd.f32 0.0, %v2098
      %2100 = vmatmul.f32.gmra.mxu0 %v1827
      %v2101 = vpop.f32.mrf.mxu0
      %v2102 = vadd.f32 0.0, %v2101
      %2103 = vmatmul.f32.gmra.mxu0 %v1829
      %v2104 = vpop.f32.mrf.mxu0
      %v2105 = vadd.f32 0.0, %v2104
      %2106 = vmatmul.f32.gmra.mxu0 %v1831
      %v2107 = vpop.f32.mrf.mxu0
      %v2108 = vadd.f32 0.0, %v2107
      %2109 = vmatmul.f32.gmra.mxu0 %v1833
      %v2110 = vpop.f32.mrf.mxu0
      %v2111 = vadd.f32 0.0, %v2110
      %2112 = vmatmul.f32.gmra.mxu0 %v1835
      %v2113 = vpop.f32.mrf.mxu0
      %v2114 = vadd.f32 0.0, %v2113
      %2115 = vmatmul.f32.gmra.mxu0 %v1837
      %v2116 = vpop.f32.mrf.mxu0
      %v2117 = vadd.f32 0.0, %v2116
      %2118 = vmatmul.f32.gmra.mxu0 %v1839
      %v2119 = vpop.f32.mrf.mxu0
      %v2120 = vadd.f32 0.0, %v2119
      %2121 = vmatmul.f32.gmra.mxu0 %v1841
      %v2122 = vpop.f32.mrf.mxu0
      %v2123 = vadd.f32 0.0, %v2122
      %2124 = vmatmul.f32.gmra.mxu0 %v1843
      %v2125 = vpop.f32.mrf.mxu0
      %v2126 = vadd.f32 0.0, %v2125
      %2127 = vmatmul.f32.gmra.mxu0 %v1845
      %v2128 = vpop.f32.mrf.mxu0
      %v2129 = vadd.f32 0.0, %v2128
      %2130 = vmatmul.f32.gmra.mxu0 %v1847
      %v2131 = vpop.f32.mrf.mxu0
      %v2132 = vadd.f32 0.0, %v2131
      %2133 = vmatmul.f32.gmra.mxu0 %v1849
      %v2134 = vpop.f32.mrf.mxu0
      %v2135 = vadd.f32 0.0, %v2134
      %2136 = vmatmul.f32.gmra.mxu0 %v1851
      %v2137 = vpop.f32.mrf.mxu0
      %v2138 = vadd.f32 0.0, %v2137
      %2139 = vmatmul.f32.gmra.mxu0 %v1853
      %v2140 = vpop.f32.mrf.mxu0
      %v2141 = vadd.f32 0.0, %v2140
      %2142 = vmatmul.f32.gmra.mxu0 %v1855
      %v2143 = vpop.f32.mrf.mxu0
      %v2144 = vadd.f32 0.0, %v2143
      %2145 = vmatmul.f32.gmra.mxu0 %v1857
      %v2146 = vpop.f32.mrf.mxu0
      %v2147 = vadd.f32 0.0, %v2146
      %2148 = vmatmul.f32.gmra.mxu0 %v1859
      %v2149 = vpop.f32.mrf.mxu0
      %v2150 = vadd.f32 0.0, %v2149
      %2151 = vmatmul.f32.gmra.mxu0 %v1861
      %v2152 = vpop.f32.mrf.mxu0
      %v2153 = vadd.f32 0.0, %v2152
      %2154 = vmatmul.f32.gmra.mxu0 %v1863
      %v2155 = vpop.f32.mrf.mxu0
      %v2156 = vadd.f32 0.0, %v2155
      %2157 = vmatmul.f32.gmra.mxu0 %v1865
      %v2158 = vpop.f32.mrf.mxu0
      %v2159 = vadd.f32 0.0, %v2158
      %2160 = vmatmul.f32.gmra.mxu0 %v1867
      %v2161 = vpop.f32.mrf.mxu0
      %v2162 = vadd.f32 0.0, %v2161
      %2163 = vmatmul.f32.gmra.mxu0 %v1869
      %v2164 = vpop.f32.mrf.mxu0
      %v2165 = vadd.f32 0.0, %v2164
      %2166 = vmatmul.f32.gmra.mxu0 %v1871
      %v2167 = vpop.f32.mrf.mxu0
      %v2168 = vadd.f32 0.0, %v2167
      %2169 = vmatmul.f32.gmra.mxu0 %v1873
      %v2170 = vpop.f32.mrf.mxu0
      %v2171 = vadd.f32 0.0, %v2170
      %2172 = vdwg.mxu0
      %2173 = vmatpush.msra.mxu0 0.0
      %2174 = vmatpush.msra.mxu0 0.0
      %2175 = vmatpush.msra.mxu0 0.0
      %2176 = vmatpush.msra.mxu0 0.0
      %2177 = vmatpush.msra.mxu0 0.0
      %2178 = vmatpush.msra.mxu0 0.0
      %2179 = vmatpush.msra.mxu0 0.0
      %2180 = vmatpush.msra.mxu0 0.0
      %2181 = vmatpush.msra.mxu0 0.0
      %2182 = vmatpush.msra.mxu0 0.0
      %2183 = vmatpush.msra.mxu0 0.0
      %2184 = vmatpush.msra.mxu0 0.0
      %2185 = vmatpush.msra.mxu0 %v1914
      %2186 = vmatpush.msra.mxu0 %v1912
      %2187 = vmatpush.msra.mxu0 %v1910
      %2188 = vmatpush.msra.mxu0 %v1908
      %2189 = vmatmul.f32.gmra.mxu0 %v1917
      %v2190 = vpop.f32.mrf.mxu0
      %v2191 = vadd.f32 %v2054, %v2190
      %2192 = vmatmul.f32.gmra.mxu0 %v1920
      %v2193 = vpop.f32.mrf.mxu0
      %v2194 = vadd.f32 %v2057, %v2193
      %2195 = vmatmul.f32.gmra.mxu0 %v1923
      %v2196 = vpop.f32.mrf.mxu0
      %v2197 = vadd.f32 %v2060, %v2196
      %2198 = vmatmul.f32.gmra.mxu0 %v1926
      %v2199 = vpop.f32.mrf.mxu0
      %v2200 = vadd.f32 %v2063, %v2199
      %2201 = vmatmul.f32.gmra.mxu0 %v1929
      %v2202 = vpop.f32.mrf.mxu0
      %v2203 = vadd.f32 %v2066, %v2202
      %2204 = vmatmul.f32.gmra.mxu0 %v1932
      %v2205 = vpop.f32.mrf.mxu0
      %v2206 = vadd.f32 %v2069, %v2205
      %2207 = vmatmul.f32.gmra.mxu0 %v1935
      %v2208 = vpop.f32.mrf.mxu0
      %v2209 = vadd.f32 %v2072, %v2208
      %2210 = vmatmul.f32.gmra.mxu0 %v1938
      %v2211 = vpop.f32.mrf.mxu0
      %v2212 = vadd.f32 %v2075, %v2211
      %2213 = vmatmul.f32.gmra.mxu0 %v1941
      %v2214 = vpop.f32.mrf.mxu0
      %v2215 = vadd.f32 %v2078, %v2214
      %2216 = vmatmul.f32.gmra.mxu0 %v1944
      %v2217 = vpop.f32.mrf.mxu0
      %v2218 = vadd.f32 %v2081, %v2217
      %2219 = vmatmul.f32.gmra.mxu0 %v1947
      %v2220 = vpop.f32.mrf.mxu0
      %v2221 = vadd.f32 %v2084, %v2220
      %2222 = vmatmul.f32.gmra.mxu0 %v1950
      %v2223 = vpop.f32.mrf.mxu0
      %v2224 = vadd.f32 %v2087, %v2223
      %2225 = vmatmul.f32.gmra.mxu0 %v1953
      %v2226 = vpop.f32.mrf.mxu0
      %v2227 = vadd.f32 %v2090, %v2226
      %2228 = vmatmul.f32.gmra.mxu0 %v1956
      %v2229 = vpop.f32.mrf.mxu0
      %v2230 = vadd.f32 %v2093, %v2229
      %2231 = vmatmul.f32.gmra.mxu0 %v1959
      %v2232 = vpop.f32.mrf.mxu0
      %v2233 = vadd.f32 %v2096, %v2232
      %2234 = vmatmul.f32.gmra.mxu0 %v1962
      %v2235 = vpop.f32.mrf.mxu0
      %v2236 = vadd.f32 %v2099, %v2235
      %2237 = vmatmul.f32.gmra.mxu0 %v1965
      %v2238 = vpop.f32.mrf.mxu0
      %v2239 = vadd.f32 %v2102, %v2238
      %2240 = vmatmul.f32.gmra.mxu0 %v1968
      %v2241 = vpop.f32.mrf.mxu0
      %v2242 = vadd.f32 %v2105, %v2241
      %2243 = vmatmul.f32.gmra.mxu0 %v1971
      %v2244 = vpop.f32.mrf.mxu0
      %v2245 = vadd.f32 %v2108, %v2244
      %2246 = vmatmul.f32.gmra.mxu0 %v1974
      %v2247 = vpop.f32.mrf.mxu0
      %v2248 = vadd.f32 %v2111, %v2247
      %2249 = vmatmul.f32.gmra.mxu0 %v1977
      %v2250 = vpop.f32.mrf.mxu0
      %v2251 = vadd.f32 %v2114, %v2250
      %2252 = vmatmul.f32.gmra.mxu0 %v1980
      %v2253 = vpop.f32.mrf.mxu0
      %v2254 = vadd.f32 %v2117, %v2253
      %2255 = vmatmul.f32.gmra.mxu0 %v1983
      %v2256 = vpop.f32.mrf.mxu0
      %v2257 = vadd.f32 %v2120, %v2256
      %2258 = vmatmul.f32.gmra.mxu0 %v1986
      %v2259 = vpop.f32.mrf.mxu0
      %v2260 = vadd.f32 %v2123, %v2259
      %2261 = vmatmul.f32.gmra.mxu0 %v1989
      %v2262 = vpop.f32.mrf.mxu0
      %v2263 = vadd.f32 %v2126, %v2262
      %2264 = vmatmul.f32.gmra.mxu0 %v1992
      %v2265 = vpop.f32.mrf.mxu0
      %v2266 = vadd.f32 %v2129, %v2265
      %2267 = vmatmul.f32.gmra.mxu0 %v1995
      %v2268 = vpop.f32.mrf.mxu0
      %v2269 = vadd.f32 %v2132, %v2268
      %2270 = vmatmul.f32.gmra.mxu0 %v1998
      %v2271 = vpop.f32.mrf.mxu0
      %v2272 = vadd.f32 %v2135, %v2271
      %2273 = vmatmul.f32.gmra.mxu0 %v2001
      %v2274 = vpop.f32.mrf.mxu0
      %v2275 = vadd.f32 %v2138, %v2274
      %2276 = vmatmul.f32.gmra.mxu0 %v2004
      %v2277 = vpop.f32.mrf.mxu0
      %v2278 = vadd.f32 %v2141, %v2277
      %2279 = vmatmul.f32.gmra.mxu0 %v2007
      %v2280 = vpop.f32.mrf.mxu0
      %v2281 = vadd.f32 %v2144, %v2280
      %2282 = vmatmul.f32.gmra.mxu0 %v2010
      %v2283 = vpop.f32.mrf.mxu0
      %v2284 = vadd.f32 %v2147, %v2283
      %2285 = vmatmul.f32.gmra.mxu0 %v2013
      %v2286 = vpop.f32.mrf.mxu0
      %v2287 = vadd.f32 %v2150, %v2286
      %2288 = vmatmul.f32.gmra.mxu0 %v2016
      %v2289 = vpop.f32.mrf.mxu0
      %v2290 = vadd.f32 %v2153, %v2289
      %2291 = vmatmul.f32.gmra.mxu0 %v2019
      %v2292 = vpop.f32.mrf.mxu0
      %v2293 = vadd.f32 %v2156, %v2292
      %2294 = vmatmul.f32.gmra.mxu0 %v2022
      %v2295 = vpop.f32.mrf.mxu0
      %v2296 = vadd.f32 %v2159, %v2295
      %2297 = vmatmul.f32.gmra.mxu0 %v2025
      %v2298 = vpop.f32.mrf.mxu0
      %v2299 = vadd.f32 %v2162, %v2298
      %2300 = vmatmul.f32.gmra.mxu0 %v2028
      %v2301 = vpop.f32.mrf.mxu0
      %v2302 = vadd.f32 %v2165, %v2301
      %2303 = vmatmul.f32.gmra.mxu0 %v2031
      %v2304 = vpop.f32.mrf.mxu0
      %v2305 = vadd.f32 %v2168, %v2304
      %2306 = vmatmul.f32.gmra.mxu0 %v2034
      %v2307 = vpop.f32.mrf.mxu0
      %v2308 = vadd.f32 %v2171, %v2307
      %2309 = vdwg.mxu0
      %2310 = vmatpush.msra.mxu0 %v1907
      %2311 = vmatpush.msra.mxu0 %v1905
      %2312 = vmatpush.msra.mxu0 %v1903
      %2313 = vmatpush.msra.mxu0 %v1901
      %2314 = vmatpush.msra.mxu0 %v1899
      %2315 = vmatpush.msra.mxu0 %v1897
      %2316 = vmatpush.msra.mxu0 %v1895
      %2317 = vmatpush.msra.mxu0 %v1893
      %2318 = vmatpush.msra.mxu0 %v1891
      %2319 = vmatpush.msra.mxu0 %v1889
      %2320 = vmatpush.msra.mxu0 %v1887
      %2321 = vmatpush.msra.mxu0 %v1885
      %2322 = vmatpush.msra.mxu0 %v1883
      %2323 = vmatpush.msra.mxu0 %v1881
      %2324 = vmatpush.msra.mxu0 %v1879
      %2325 = vmatpush.msra.mxu0 %v1877
      %2326 = vmatmul.f32.gmra.mxu0 %v1795
      %v2327 = vpop.f32.mrf.mxu0
      %v2328 = vadd.f32 0.0, %v2327
      %2329 = vmatmul.f32.gmra.mxu0 %v1797
      %v2330 = vpop.f32.mrf.mxu0
      %v2331 = vadd.f32 0.0, %v2330
      %2332 = vmatmul.f32.gmra.mxu0 %v1799
      %v2333 = vpop.f32.mrf.mxu0
      %v2334 = vadd.f32 0.0, %v2333
      %2335 = vmatmul.f32.gmra.mxu0 %v1801
      %v2336 = vpop.f32.mrf.mxu0
      %v2337 = vadd.f32 0.0, %v2336
      %2338 = vmatmul.f32.gmra.mxu0 %v1803
      %v2339 = vpop.f32.mrf.mxu0
      %v2340 = vadd.f32 0.0, %v2339
      %2341 = vmatmul.f32.gmra.mxu0 %v1805
      %v2342 = vpop.f32.mrf.mxu0
      %v2343 = vadd.f32 0.0, %v2342
      %2344 = vmatmul.f32.gmra.mxu0 %v1807
      %v2345 = vpop.f32.mrf.mxu0
      %v2346 = vadd.f32 0.0, %v2345
      %2347 = vmatmul.f32.gmra.mxu0 %v1809
      %v2348 = vpop.f32.mrf.mxu0
      %v2349 = vadd.f32 0.0, %v2348
      %2350 = vmatmul.f32.gmra.mxu0 %v1811
      %v2351 = vpop.f32.mrf.mxu0
      %v2352 = vadd.f32 0.0, %v2351
      %2353 = vmatmul.f32.gmra.mxu0 %v1813
      %v2354 = vpop.f32.mrf.mxu0
      %v2355 = vadd.f32 0.0, %v2354
      %2356 = vmatmul.f32.gmra.mxu0 %v1815
      %v2357 = vpop.f32.mrf.mxu0
      %v2358 = vadd.f32 0.0, %v2357
      %2359 = vmatmul.f32.gmra.mxu0 %v1817
      %v2360 = vpop.f32.mrf.mxu0
      %v2361 = vadd.f32 0.0, %v2360
      %2362 = vmatmul.f32.gmra.mxu0 %v1819
      %v2363 = vpop.f32.mrf.mxu0
      %v2364 = vadd.f32 0.0, %v2363
      %2365 = vmatmul.f32.gmra.mxu0 %v1821
      %v2366 = vpop.f32.mrf.mxu0
      %v2367 = vadd.f32 0.0, %v2366
      %2368 = vmatmul.f32.gmra.mxu0 %v1823
      %v2369 = vpop.f32.mrf.mxu0
      %v2370 = vadd.f32 0.0, %v2369
      %2371 = vmatmul.f32.gmra.mxu0 %v1825
      %v2372 = vpop.f32.mrf.mxu0
      %v2373 = vadd.f32 0.0, %v2372
      %2374 = vmatmul.f32.gmra.mxu0 %v1827
      %v2375 = vpop.f32.mrf.mxu0
      %v2376 = vadd.f32 0.0, %v2375
      %2377 = vmatmul.f32.gmra.mxu0 %v1829
      %v2378 = vpop.f32.mrf.mxu0
      %v2379 = vadd.f32 0.0, %v2378
      %2380 = vmatmul.f32.gmra.mxu0 %v1831
      %v2381 = vpop.f32.mrf.mxu0
      %v2382 = vadd.f32 0.0, %v2381
      %2383 = vmatmul.f32.gmra.mxu0 %v1833
      %v2384 = vpop.f32.mrf.mxu0
      %v2385 = vadd.f32 0.0, %v2384
      %2386 = vmatmul.f32.gmra.mxu0 %v1835
      %v2387 = vpop.f32.mrf.mxu0
      %v2388 = vadd.f32 0.0, %v2387
      %2389 = vmatmul.f32.gmra.mxu0 %v1837
      %v2390 = vpop.f32.mrf.mxu0
      %v2391 = vadd.f32 0.0, %v2390
      %2392 = vmatmul.f32.gmra.mxu0 %v1839
      %v2393 = vpop.f32.mrf.mxu0
      %v2394 = vadd.f32 0.0, %v2393
      %2395 = vmatmul.f32.gmra.mxu0 %v1841
      %v2396 = vpop.f32.mrf.mxu0
      %v2397 = vadd.f32 0.0, %v2396
      %2398 = vmatmul.f32.gmra.mxu0 %v1843
      %v2399 = vpop.f32.mrf.mxu0
      %v2400 = vadd.f32 0.0, %v2399
      %2401 = vmatmul.f32.gmra.mxu0 %v1845
      %v2402 = vpop.f32.mrf.mxu0
      %v2403 = vadd.f32 0.0, %v2402
      %2404 = vmatmul.f32.gmra.mxu0 %v1847
      %v2405 = vpop.f32.mrf.mxu0
      %v2406 = vadd.f32 0.0, %v2405
      %2407 = vmatmul.f32.gmra.mxu0 %v1849
      %v2408 = vpop.f32.mrf.mxu0
      %v2409 = vadd.f32 0.0, %v2408
      %2410 = vmatmul.f32.gmra.mxu0 %v1851
      %v2411 = vpop.f32.mrf.mxu0
      %v2412 = vadd.f32 0.0, %v2411
      %2413 = vmatmul.f32.gmra.mxu0 %v1853
      %v2414 = vpop.f32.mrf.mxu0
      %v2415 = vadd.f32 0.0, %v2414
      %2416 = vmatmul.f32.gmra.mxu0 %v1855
      %v2417 = vpop.f32.mrf.mxu0
      %v2418 = vadd.f32 0.0, %v2417
      %2419 = vmatmul.f32.gmra.mxu0 %v1857
      %v2420 = vpop.f32.mrf.mxu0
      %v2421 = vadd.f32 0.0, %v2420
      %2422 = vmatmul.f32.gmra.mxu0 %v1859
      %v2423 = vpop.f32.mrf.mxu0
      %v2424 = vadd.f32 0.0, %v2423
      %2425 = vmatmul.f32.gmra.mxu0 %v1861
      %v2426 = vpop.f32.mrf.mxu0
      %v2427 = vadd.f32 0.0, %v2426
      %2428 = vmatmul.f32.gmra.mxu0 %v1863
      %v2429 = vpop.f32.mrf.mxu0
      %v2430 = vadd.f32 0.0, %v2429
      %2431 = vmatmul.f32.gmra.mxu0 %v1865
      %v2432 = vpop.f32.mrf.mxu0
      %v2433 = vadd.f32 0.0, %v2432
      %2434 = vmatmul.f32.gmra.mxu0 %v1867
      %v2435 = vpop.f32.mrf.mxu0
      %v2436 = vadd.f32 0.0, %v2435
      %2437 = vmatmul.f32.gmra.mxu0 %v1869
      %v2438 = vpop.f32.mrf.mxu0
      %v2439 = vadd.f32 0.0, %v2438
      %2440 = vmatmul.f32.gmra.mxu0 %v1871
      %v2441 = vpop.f32.mrf.mxu0
      %v2442 = vadd.f32 0.0, %v2441
      %2443 = vmatmul.f32.gmra.mxu0 %v1873
      %v2444 = vpop.f32.mrf.mxu0
      %v2445 = vadd.f32 0.0, %v2444
      %2446 = vdwg.mxu0
      %2447 = vmatpush.msra.mxu0 0.0
      %2448 = vmatpush.msra.mxu0 0.0
      %2449 = vmatpush.msra.mxu0 0.0
      %2450 = vmatpush.msra.mxu0 0.0
      %2451 = vmatpush.msra.mxu0 0.0
      %2452 = vmatpush.msra.mxu0 0.0
      %2453 = vmatpush.msra.mxu0 0.0
      %2454 = vmatpush.msra.mxu0 0.0
      %2455 = vmatpush.msra.mxu0 0.0
      %2456 = vmatpush.msra.mxu0 0.0
      %2457 = vmatpush.msra.mxu0 0.0
      %2458 = vmatpush.msra.mxu0 0.0
      %2459 = vmatpush.msra.mxu0 %v1915
      %2460 = vmatpush.msra.mxu0 %v1913
      %2461 = vmatpush.msra.mxu0 %v1911
      %2462 = vmatpush.msra.mxu0 %v1909
      %2463 = vmatmul.f32.gmra.mxu0 %v1917
      %v2464 = vpop.f32.mrf.mxu0
      %v2465 = vadd.f32 %v2328, %v2464
      %2466 = vmatmul.f32.gmra.mxu0 %v1920
      %v2467 = vpop.f32.mrf.mxu0
      %v2468 = vadd.f32 %v2331, %v2467
      %2469 = vmatmul.f32.gmra.mxu0 %v1923
      %v2470 = vpop.f32.mrf.mxu0
      %v2471 = vadd.f32 %v2334, %v2470
      %2472 = vmatmul.f32.gmra.mxu0 %v1926
      %v2473 = vpop.f32.mrf.mxu0
      %v2474 = vadd.f32 %v2337, %v2473
      %2475 = vmatmul.f32.gmra.mxu0 %v1929
      %v2476 = vpop.f32.mrf.mxu0
      %v2477 = vadd.f32 %v2340, %v2476
      %2478 = vmatmul.f32.gmra.mxu0 %v1932
      %v2479 = vpop.f32.mrf.mxu0
      %v2480 = vadd.f32 %v2343, %v2479
      %2481 = vmatmul.f32.gmra.mxu0 %v1935
      %v2482 = vpop.f32.mrf.mxu0
      %v2483 = vadd.f32 %v2346, %v2482
      %2484 = vmatmul.f32.gmra.mxu0 %v1938
      %v2485 = vpop.f32.mrf.mxu0
      %v2486 = vadd.f32 %v2349, %v2485
      %2487 = vmatmul.f32.gmra.mxu0 %v1941
      %v2488 = vpop.f32.mrf.mxu0
      %v2489 = vadd.f32 %v2352, %v2488
      %2490 = vmatmul.f32.gmra.mxu0 %v1944
      %v2491 = vpop.f32.mrf.mxu0
      %v2492 = vadd.f32 %v2355, %v2491
      %2493 = vmatmul.f32.gmra.mxu0 %v1947
      %v2494 = vpop.f32.mrf.mxu0
      %v2495 = vadd.f32 %v2358, %v2494
      %2496 = vmatmul.f32.gmra.mxu0 %v1950
      %v2497 = vpop.f32.mrf.mxu0
      %v2498 = vadd.f32 %v2361, %v2497
      %2499 = vmatmul.f32.gmra.mxu0 %v1953
      %v2500 = vpop.f32.mrf.mxu0
      %v2501 = vadd.f32 %v2364, %v2500
      %2502 = vmatmul.f32.gmra.mxu0 %v1956
      %v2503 = vpop.f32.mrf.mxu0
      %v2504 = vadd.f32 %v2367, %v2503
      %2505 = vmatmul.f32.gmra.mxu0 %v1959
      %v2506 = vpop.f32.mrf.mxu0
      %v2507 = vadd.f32 %v2370, %v2506
      %2508 = vmatmul.f32.gmra.mxu0 %v1962
      %v2509 = vpop.f32.mrf.mxu0
      %v2510 = vadd.f32 %v2373, %v2509
      %2511 = vmatmul.f32.gmra.mxu0 %v1965
      %v2512 = vpop.f32.mrf.mxu0
      %v2513 = vadd.f32 %v2376, %v2512
      %2514 = vmatmul.f32.gmra.mxu0 %v1968
      %v2515 = vpop.f32.mrf.mxu0
      %v2516 = vadd.f32 %v2379, %v2515
      %2517 = vmatmul.f32.gmra.mxu0 %v1971
      %v2518 = vpop.f32.mrf.mxu0
      %v2519 = vadd.f32 %v2382, %v2518
      %2520 = vmatmul.f32.gmra.mxu0 %v1974
      %v2521 = vpop.f32.mrf.mxu0
      %v2522 = vadd.f32 %v2385, %v2521
      %2523 = vmatmul.f32.gmra.mxu0 %v1977
      %v2524 = vpop.f32.mrf.mxu0
      %v2525 = vadd.f32 %v2388, %v2524
      %2526 = vmatmul.f32.gmra.mxu0 %v1980
      %v2527 = vpop.f32.mrf.mxu0
      %v2528 = vadd.f32 %v2391, %v2527
      %2529 = vmatmul.f32.gmra.mxu0 %v1983
      %v2530 = vpop.f32.mrf.mxu0
      %v2531 = vadd.f32 %v2394, %v2530
      %2532 = vmatmul.f32.gmra.mxu0 %v1986
      %v2533 = vpop.f32.mrf.mxu0
      %v2534 = vadd.f32 %v2397, %v2533
      %2535 = vmatmul.f32.gmra.mxu0 %v1989
      %v2536 = vpop.f32.mrf.mxu0
      %v2537 = vadd.f32 %v2400, %v2536
      %2538 = vmatmul.f32.gmra.mxu0 %v1992
      %v2539 = vpop.f32.mrf.mxu0
      %v2540 = vadd.f32 %v2403, %v2539
      %2541 = vmatmul.f32.gmra.mxu0 %v1995
      %v2542 = vpop.f32.mrf.mxu0
      %v2543 = vadd.f32 %v2406, %v2542
      %2544 = vmatmul.f32.gmra.mxu0 %v1998
      %v2545 = vpop.f32.mrf.mxu0
      %v2546 = vadd.f32 %v2409, %v2545
      %2547 = vmatmul.f32.gmra.mxu0 %v2001
      %v2548 = vpop.f32.mrf.mxu0
      %v2549 = vadd.f32 %v2412, %v2548
      %2550 = vmatmul.f32.gmra.mxu0 %v2004
      %v2551 = vpop.f32.mrf.mxu0
      %v2552 = vadd.f32 %v2415, %v2551
      %2553 = vmatmul.f32.gmra.mxu0 %v2007
      %v2554 = vpop.f32.mrf.mxu0
      %v2555 = vadd.f32 %v2418, %v2554
      %2556 = vmatmul.f32.gmra.mxu0 %v2010
      %v2557 = vpop.f32.mrf.mxu0
      %v2558 = vadd.f32 %v2421, %v2557
      %2559 = vmatmul.f32.gmra.mxu0 %v2013
      %v2560 = vpop.f32.mrf.mxu0
      %v2561 = vadd.f32 %v2424, %v2560
      %2562 = vmatmul.f32.gmra.mxu0 %v2016
      %v2563 = vpop.f32.mrf.mxu0
      %v2564 = vadd.f32 %v2427, %v2563
      %2565 = vmatmul.f32.gmra.mxu0 %v2019
      %v2566 = vpop.f32.mrf.mxu0
      %v2567 = vadd.f32 %v2430, %v2566
      %2568 = vmatmul.f32.gmra.mxu0 %v2022
      %v2569 = vpop.f32.mrf.mxu0
      %v2570 = vadd.f32 %v2433, %v2569
      %2571 = vmatmul.f32.gmra.mxu0 %v2025
      %v2572 = vpop.f32.mrf.mxu0
      %v2573 = vadd.f32 %v2436, %v2572
      %2574 = vmatmul.f32.gmra.mxu0 %v2028
      %v2575 = vpop.f32.mrf.mxu0
      %v2576 = vadd.f32 %v2439, %v2575
      %2577 = vmatmul.f32.gmra.mxu0 %v2031
      %v2578 = vpop.f32.mrf.mxu0
      %v2579 = vadd.f32 %v2442, %v2578
      %2580 = vmatmul.f32.gmra.mxu0 %v2034
      %v2581 = vpop.f32.mrf.mxu0
      %v2582 = vadd.f32 %v2445, %v2581
      %2583 = vdwg.mxu0
      %v2584 = vadd.f32 %v1401, %v2191
      %v2585 = vadd.f32 %v1675, %v2465
      %v2586 = vadd.f32 %v1404, %v2194
      %v2587 = vadd.f32 %v1678, %v2468
      %v2588 = vadd.f32 %v1407, %v2197
      %v2589 = vadd.f32 %v1681, %v2471
      %v2590 = vadd.f32 %v1410, %v2200
      %v2591 = vadd.f32 %v1684, %v2474
      %v2592 = vadd.f32 %v1413, %v2203
      %v2593 = vadd.f32 %v1687, %v2477
      %v2594 = vadd.f32 %v1416, %v2206
      %v2595 = vadd.f32 %v1690, %v2480
      %v2596 = vadd.f32 %v1419, %v2209
      %v2597 = vadd.f32 %v1693, %v2483
      %v2598 = vadd.f32 %v1422, %v2212
      %v2599 = vadd.f32 %v1696, %v2486
      %v2600 = vadd.f32 %v1425, %v2215
      %v2601 = vadd.f32 %v1699, %v2489
      %v2602 = vadd.f32 %v1428, %v2218
      %v2603 = vadd.f32 %v1702, %v2492
      %v2604 = vadd.f32 %v1431, %v2221
      %v2605 = vadd.f32 %v1705, %v2495
      %v2606 = vadd.f32 %v1434, %v2224
      %v2607 = vadd.f32 %v1708, %v2498
      %v2608 = vadd.f32 %v1437, %v2227
      %v2609 = vadd.f32 %v1711, %v2501
      %v2610 = vadd.f32 %v1440, %v2230
      %v2611 = vadd.f32 %v1714, %v2504
      %v2612 = vadd.f32 %v1443, %v2233
      %v2613 = vadd.f32 %v1717, %v2507
      %v2614 = vadd.f32 %v1446, %v2236
      %v2615 = vadd.f32 %v1720, %v2510
      %v2616 = vadd.f32 %v1449, %v2239
      %v2617 = vadd.f32 %v1723, %v2513
      %v2618 = vadd.f32 %v1452, %v2242
      %v2619 = vadd.f32 %v1726, %v2516
      %v2620 = vadd.f32 %v1455, %v2245
      %v2621 = vadd.f32 %v1729, %v2519
      %v2622 = vadd.f32 %v1458, %v2248
      %v2623 = vadd.f32 %v1732, %v2522
      %v2624 = vadd.f32 %v1461, %v2251
      %v2625 = vadd.f32 %v1735, %v2525
      %v2626 = vadd.f32 %v1464, %v2254
      %v2627 = vadd.f32 %v1738, %v2528
      %v2628 = vadd.f32 %v1467, %v2257
      %v2629 = vadd.f32 %v1741, %v2531
      %v2630 = vadd.f32 %v1470, %v2260
      %v2631 = vadd.f32 %v1744, %v2534
      %v2632 = vadd.f32 %v1473, %v2263
      %v2633 = vadd.f32 %v1747, %v2537
      %v2634 = vadd.f32 %v1476, %v2266
      %v2635 = vadd.f32 %v1750, %v2540
      %v2636 = vadd.f32 %v1479, %v2269
      %v2637 = vadd.f32 %v1753, %v2543
      %v2638 = vadd.f32 %v1482, %v2272
      %v2639 = vadd.f32 %v1756, %v2546
      %v2640 = vadd.f32 %v1485, %v2275
      %v2641 = vadd.f32 %v1759, %v2549
      %v2642 = vadd.f32 %v1488, %v2278
      %v2643 = vadd.f32 %v1762, %v2552
      %v2644 = vadd.f32 %v1491, %v2281
      %v2645 = vadd.f32 %v1765, %v2555
      %v2646 = vadd.f32 %v1494, %v2284
      %v2647 = vadd.f32 %v1768, %v2558
      %v2648 = vadd.f32 %v1497, %v2287
      %v2649 = vadd.f32 %v1771, %v2561
      %v2650 = vadd.f32 %v1500, %v2290
      %v2651 = vadd.f32 %v1774, %v2564
      %v2652 = vadd.f32 %v1503, %v2293
      %v2653 = vadd.f32 %v1777, %v2567
      %v2654 = vadd.f32 %v1506, %v2296
      %v2655 = vadd.f32 %v1780, %v2570
      %v2656 = vadd.f32 %v1509, %v2299
      %v2657 = vadd.f32 %v1783, %v2573
      %v2658 = vadd.f32 %v1512, %v2302
      %v2659 = vadd.f32 %v1786, %v2576
      %v2660 = vadd.f32 %v1515, %v2305
      %v2661 = vadd.f32 %v1789, %v2579
      %v2662 = vadd.f32 %v1518, %v2308
      %v2663 = vadd.f32 %v1792, %v2582
      %v2664 = vld [vmem:[%s2] sm:$0x3]
      %v2666 = vperm.slane %v2664, 0
      %v2667 = vperm.slane %v2664, 1
      %v2670 = vadd.f32 %v2584, %v2666
      %v2671 = vadd.f32 %v2585, %v2667
      %v2672 = vadd.f32 %v2586, %v2666
      %v2673 = vadd.f32 %v2587, %v2667
      %v2674 = vadd.f32 %v2588, %v2666
      %v2675 = vadd.f32 %v2589, %v2667
      %v2676 = vadd.f32 %v2590, %v2666
      %v2677 = vadd.f32 %v2591, %v2667
      %v2678 = vadd.f32 %v2592, %v2666
      %v2679 = vadd.f32 %v2593, %v2667
      %v2680 = vadd.f32 %v2594, %v2666
      %v2681 = vadd.f32 %v2595, %v2667
      %v2682 = vadd.f32 %v2596, %v2666
      %v2683 = vadd.f32 %v2597, %v2667
      %v2684 = vadd.f32 %v2598, %v2666
      %v2685 = vadd.f32 %v2599, %v2667
      %v2686 = vadd.f32 %v2600, %v2666
      %v2687 = vadd.f32 %v2601, %v2667
      %v2688 = vadd.f32 %v2602, %v2666
      %v2689 = vadd.f32 %v2603, %v2667
      %v2690 = vadd.f32 %v2604, %v2666
      %v2691 = vadd.f32 %v2605, %v2667
      %v2692 = vadd.f32 %v2606, %v2666
      %v2693 = vadd.f32 %v2607, %v2667
      %v2694 = vadd.f32 %v2608, %v2666
      %v2695 = vadd.f32 %v2609, %v2667
      %v2696 = vadd.f32 %v2610, %v2666
      %v2697 = vadd.f32 %v2611, %v2667
      %v2698 = vadd.f32 %v2612, %v2666
      %v2699 = vadd.f32 %v2613, %v2667
      %v2700 = vadd.f32 %v2614, %v2666
      %v2701 = vadd.f32 %v2615, %v2667
      %v2702 = vadd.f32 %v2616, %v2666
      %v2703 = vadd.f32 %v2617, %v2667
      %v2704 = vadd.f32 %v2618, %v2666
      %v2705 = vadd.f32 %v2619, %v2667
      %v2706 = vadd.f32 %v2620, %v2666
      %v2707 = vadd.f32 %v2621, %v2667
      %v2708 = vadd.f32 %v2622, %v2666
      %v2709 = vadd.f32 %v2623, %v2667
      %v2710 = vadd.f32 %v2624, %v2666
      %v2711 = vadd.f32 %v2625, %v2667
      %v2712 = vadd.f32 %v2626, %v2666
      %v2713 = vadd.f32 %v2627, %v2667
      %v2714 = vadd.f32 %v2628, %v2666
      %v2715 = vadd.f32 %v2629, %v2667
      %v2716 = vadd.f32 %v2630, %v2666
      %v2717 = vadd.f32 %v2631, %v2667
      %v2718 = vadd.f32 %v2632, %v2666
      %v2719 = vadd.f32 %v2633, %v2667
      %v2720 = vadd.f32 %v2634, %v2666
      %v2721 = vadd.f32 %v2635, %v2667
      %v2722 = vadd.f32 %v2636, %v2666
      %v2723 = vadd.f32 %v2637, %v2667
      %v2724 = vadd.f32 %v2638, %v2666
      %v2725 = vadd.f32 %v2639, %v2667
      %v2726 = vadd.f32 %v2640, %v2666
      %v2727 = vadd.f32 %v2641, %v2667
      %v2728 = vadd.f32 %v2642, %v2666
      %v2729 = vadd.f32 %v2643, %v2667
      %v2730 = vadd.f32 %v2644, %v2666
      %v2731 = vadd.f32 %v2645, %v2667
      %v2732 = vadd.f32 %v2646, %v2666
      %v2733 = vadd.f32 %v2647, %v2667
      %v2734 = vadd.f32 %v2648, %v2666
      %v2735 = vadd.f32 %v2649, %v2667
      %v2736 = vadd.f32 %v2650, %v2666
      %v2737 = vadd.f32 %v2651, %v2667
      %v2738 = vadd.f32 %v2652, %v2666
      %v2739 = vadd.f32 %v2653, %v2667
      %v2740 = vadd.f32 %v2654, %v2666
      %v2741 = vadd.f32 %v2655, %v2667
      %v2742 = vadd.f32 %v2656, %v2666
      %v2743 = vadd.f32 %v2657, %v2667
      %v2744 = vadd.f32 %v2658, %v2666
      %v2745 = vadd.f32 %v2659, %v2667
      %v2746 = vadd.f32 %v2660, %v2666
      %v2747 = vadd.f32 %v2661, %v2667
      %v2748 = vadd.f32 %v2662, %v2666
      %v2749 = vadd.f32 %v2663, %v2667
      %v2750 = vmax.f32 %v2670, 0.0
      %v2751 = vmax.f32 %v2671, 0.0
      %v2752 = vmax.f32 %v2672, 0.0
      %v2753 = vmax.f32 %v2673, 0.0
      %v2754 = vmax.f32 %v2674, 0.0
      %v2755 = vmax.f32 %v2675, 0.0
      %v2756 = vmax.f32 %v2676, 0.0
      %v2757 = vmax.f32 %v2677, 0.0
      %v2758 = vmax.f32 %v2678, 0.0
      %v2759 = vmax.f32 %v2679, 0.0
      %v2760 = vmax.f32 %v2680, 0.0
      %v2761 = vmax.f32 %v2681, 0.0
      %v2762 = vmax.f32 %v2682, 0.0
      %v2763 = vmax.f32 %v2683, 0.0
      %v2764 = vmax.f32 %v2684, 0.0
      %v2765 = vmax.f32 %v2685, 0.0
      %v2766 = vmax.f32 %v2686, 0.0
      %v2767 = vmax.f32 %v2687, 0.0
      %v2768 = vmax.f32 %v2688, 0.0
      %v2769 = vmax.f32 %v2689, 0.0
      %v2770 = vmax.f32 %v2690, 0.0
      %v2771 = vmax.f32 %v2691, 0.0
      %v2772 = vmax.f32 %v2692, 0.0
      %v2773 = vmax.f32 %v2693, 0.0
      %v2774 = vmax.f32 %v2694, 0.0
      %v2775 = vmax.f32 %v2695, 0.0
      %v2776 = vmax.f32 %v2696, 0.0
      %v2777 = vmax.f32 %v2697, 0.0
      %v2778 = vmax.f32 %v2698, 0.0
      %v2779 = vmax.f32 %v2699, 0.0
      %v2780 = vmax.f32 %v2700, 0.0
      %v2781 = vmax.f32 %v2701, 0.0
      %v2782 = vmax.f32 %v2702, 0.0
      %v2783 = vmax.f32 %v2703, 0.0
      %v2784 = vmax.f32 %v2704, 0.0
      %v2785 = vmax.f32 %v2705, 0.0
      %v2786 = vmax.f32 %v2706, 0.0
      %v2787 = vmax.f32 %v2707, 0.0
      %v2788 = vmax.f32 %v2708, 0.0
      %v2789 = vmax.f32 %v2709, 0.0
      %v2790 = vmax.f32 %v2710, 0.0
      %v2791 = vmax.f32 %v2711, 0.0
      %v2792 = vmax.f32 %v2712, 0.0
      %v2793 = vmax.f32 %v2713, 0.0
      %v2794 = vmax.f32 %v2714, 0.0
      %v2795 = vmax.f32 %v2715, 0.0
      %v2796 = vmax.f32 %v2716, 0.0
      %v2797 = vmax.f32 %v2717, 0.0
      %v2798 = vmax.f32 %v2718, 0.0
      %v2799 = vmax.f32 %v2719, 0.0
      %v2800 = vmax.f32 %v2720, 0.0
      %v2801 = vmax.f32 %v2721, 0.0
      %v2802 = vmax.f32 %v2722, 0.0
      %v2803 = vmax.f32 %v2723, 0.0
      %v2804 = vmax.f32 %v2724, 0.0
      %v2805 = vmax.f32 %v2725, 0.0
      %v2806 = vmax.f32 %v2726, 0.0
      %v2807 = vmax.f32 %v2727, 0.0
      %v2808 = vmax.f32 %v2728, 0.0
      %v2809 = vmax.f32 %v2729, 0.0
      %v2810 = vmax.f32 %v2730, 0.0
      %v2811 = vmax.f32 %v2731, 0.0
      %v2812 = vmax.f32 %v2732, 0.0
      %v2813 = vmax.f32 %v2733, 0.0
      %v2814 = vmax.f32 %v2734, 0.0
      %v2815 = vmax.f32 %v2735, 0.0
      %v2816 = vmax.f32 %v2736, 0.0
      %v2817 = vmax.f32 %v2737, 0.0
      %v2818 = vmax.f32 %v2738, 0.0
      %v2819 = vmax.f32 %v2739, 0.0
      %v2820 = vmax.f32 %v2740, 0.0
      %v2821 = vmax.f32 %v2741, 0.0
      %v2822 = vmax.f32 %v2742, 0.0
      %v2823 = vmax.f32 %v2743, 0.0
      %v2824 = vmax.f32 %v2744, 0.0
      %v2825 = vmax.f32 %v2745, 0.0
      %v2826 = vmax.f32 %v2746, 0.0
      %v2827 = vmax.f32 %v2747, 0.0
      %v2828 = vmax.f32 %v2748, 0.0
      %v2829 = vmax.f32 %v2749, 0.0
      %2830 = vst [vmem:[%s213] sm:$0xff] %v2750
      %2831 = vst.msk [vmem:[%s213 + $0x8] sm:$0xff] %vm457, %v2751
      %2832 = vst [vmem:[%s213 + $0x10] sm:$0xff] %v2752
      %2833 = vst.msk [vmem:[%s213 + $0x18] sm:$0xff] %vm457, %v2753
      %2834 = vst [vmem:[%s213 + $0x20] sm:$0xff] %v2754
      %2835 = vst.msk [vmem:[%s213 + $0x28] sm:$0xff] %vm457, %v2755
      %2836 = vst [vmem:[%s213 + $0x30] sm:$0xff] %v2756
      %2837 = vst.msk [vmem:[%s213 + $0x38] sm:$0xff] %vm457, %v2757
      %2838 = vst [vmem:[%s213 + $0x40] sm:$0xff] %v2758
      %2839 = vst.msk [vmem:[%s213 + $0x48] sm:$0xff] %vm457, %v2759
      %2840 = vst [vmem:[%s213 + $0x50] sm:$0xff] %v2760
      %2841 = vst.msk [vmem:[%s213 + $0x58] sm:$0xff] %vm457, %v2761
      %2842 = vst [vmem:[%s213 + $0x60] sm:$0xff] %v2762
      %2843 = vst.msk [vmem:[%s213 + $0x68] sm:$0xff] %vm457, %v2763
      %2844 = vst [vmem:[%s213 + $0x70] sm:$0xff] %v2764
      %2845 = vst.msk [vmem:[%s213 + $0x78] sm:$0xff] %vm457, %v2765
      %2846 = vst [vmem:[%s213 + $0x80] sm:$0xff] %v2766
      %2847 = vst.msk [vmem:[%s213 + $0x88] sm:$0xff] %vm457, %v2767
      %2848 = vst [vmem:[%s213 + $0x90] sm:$0xff] %v2768
      %2849 = vst.msk [vmem:[%s213 + $0x98] sm:$0xff] %vm457, %v2769
      %2850 = vst [vmem:[%s213 + $0xa0] sm:$0xff] %v2770
      %2851 = vst.msk [vmem:[%s213 + $0xa8] sm:$0xff] %vm457, %v2771
      %2852 = vst [vmem:[%s213 + $0xb0] sm:$0xff] %v2772
      %2853 = vst.msk [vmem:[%s213 + $0xb8] sm:$0xff] %vm457, %v2773
      %2854 = vst [vmem:[%s213 + $0xc0] sm:$0xff] %v2774
      %2855 = vst.msk [vmem:[%s213 + $0xc8] sm:$0xff] %vm457, %v2775
      %2856 = vst [vmem:[%s213 + $0xd0] sm:$0xff] %v2776
      %2857 = vst.msk [vmem:[%s213 + $0xd8] sm:$0xff] %vm457, %v2777
      %2858 = vst [vmem:[%s213 + $0xe0] sm:$0xff] %v2778
      %2859 = vst.msk [vmem:[%s213 + $0xe8] sm:$0xff] %vm457, %v2779
      %2860 = vst [vmem:[%s213 + $0xf0] sm:$0xff] %v2780
      %2861 = vst.msk [vmem:[%s213 + $0xf8] sm:$0xff] %vm457, %v2781
      %2862 = vst [vmem:[%s213 + $0x100] sm:$0xff] %v2782
      %2863 = vst.msk [vmem:[%s213 + $0x108] sm:$0xff] %vm457, %v2783
      %2864 = vst [vmem:[%s213 + $0x110] sm:$0xff] %v2784
      %2865 = vst.msk [vmem:[%s213 + $0x118] sm:$0xff] %vm457, %v2785
      %2866 = vst [vmem:[%s213 + $0x120] sm:$0xff] %v2786
      %2867 = vst.msk [vmem:[%s213 + $0x128] sm:$0xff] %vm457, %v2787
      %2868 = vst [vmem:[%s213 + $0x130] sm:$0xff] %v2788
      %2869 = vst.msk [vmem:[%s213 + $0x138] sm:$0xff] %vm457, %v2789
      %2870 = vst [vmem:[%s213 + $0x140] sm:$0xff] %v2790
      %2871 = vst.msk [vmem:[%s213 + $0x148] sm:$0xff] %vm457, %v2791
      %2872 = vst [vmem:[%s213 + $0x150] sm:$0xff] %v2792
      %2873 = vst.msk [vmem:[%s213 + $0x158] sm:$0xff] %vm457, %v2793
      %2874 = vst [vmem:[%s213 + $0x160] sm:$0xff] %v2794
      %2875 = vst.msk [vmem:[%s213 + $0x168] sm:$0xff] %vm457, %v2795
      %2876 = vst [vmem:[%s213 + $0x170] sm:$0xff] %v2796
      %2877 = vst.msk [vmem:[%s213 + $0x178] sm:$0xff] %vm457, %v2797
      %2878 = vst [vmem:[%s213 + $0x180] sm:$0xff] %v2798
      %2879 = vst.msk [vmem:[%s213 + $0x188] sm:$0xff] %vm457, %v2799
      %2880 = vst [vmem:[%s213 + $0x190] sm:$0xff] %v2800
      %2881 = vst.msk [vmem:[%s213 + $0x198] sm:$0xff] %vm457, %v2801
      %2882 = vst [vmem:[%s213 + $0x1a0] sm:$0xff] %v2802
      %2883 = vst.msk [vmem:[%s213 + $0x1a8] sm:$0xff] %vm457, %v2803
      %2884 = vst [vmem:[%s213 + $0x1b0] sm:$0xff] %v2804
      %2885 = vst.msk [vmem:[%s213 + $0x1b8] sm:$0xff] %vm457, %v2805
      %2886 = vst [vmem:[%s213 + $0x1c0] sm:$0xff] %v2806
      %2887 = vst.msk [vmem:[%s213 + $0x1c8] sm:$0xff] %vm457, %v2807
      %2888 = vst [vmem:[%s213 + $0x1d0] sm:$0xff] %v2808
      %2889 = vst.msk [vmem:[%s213 + $0x1d8] sm:$0xff] %vm457, %v2809
      %2890 = vst [vmem:[%s213 + $0x1e0] sm:$0xff] %v2810
      %2891 = vst.msk [vmem:[%s213 + $0x1e8] sm:$0xff] %vm457, %v2811
      %2892 = vst [vmem:[%s213 + $0x1f0] sm:$0xff] %v2812
      %2893 = vst.msk [vmem:[%s213 + $0x1f8] sm:$0xff] %vm457, %v2813
      %2894 = vst [vmem:[%s213 + $0x200] sm:$0xff] %v2814
      %2895 = vst.msk [vmem:[%s213 + $0x208] sm:$0xff] %vm457, %v2815
      %2896 = vst [vmem:[%s213 + $0x210] sm:$0xff] %v2816
      %2897 = vst.msk [vmem:[%s213 + $0x218] sm:$0xff] %vm457, %v2817
      %2898 = vst [vmem:[%s213 + $0x220] sm:$0xff] %v2818
      %2899 = vst.msk [vmem:[%s213 + $0x228] sm:$0xff] %vm457, %v2819
      %2900 = vst [vmem:[%s213 + $0x230] sm:$0xff] %v2820
      %2901 = vst.msk [vmem:[%s213 + $0x238] sm:$0xff] %vm457, %v2821
      %2902 = vst [vmem:[%s213 + $0x240] sm:$0xff] %v2822
      %2903 = vst.msk [vmem:[%s213 + $0x248] sm:$0xff] %vm457, %v2823
      %2904 = vst [vmem:[%s213 + $0x250] sm:$0xff] %v2824
      %2905 = vst.msk [vmem:[%s213 + $0x258] sm:$0xff] %vm457, %v2825
      %2906 = vst [vmem:[%s213 + $0x260] sm:$0xff] %v2826
      %2907 = vst.msk [vmem:[%s213 + $0x268] sm:$0xff] %vm457, %v2827
      %2908 = vst [vmem:[%s213 + $0x270] sm:$0xff] %v2828
      %2909 = vst.msk [vmem:[%s213 + $0x278] sm:$0xff] %vm457, %v2829
      %s2910 = smul.u32 10, %s19
      %p2911 = scmp.lt.s32.totalorder %s18, 1
      %s2912 = scalar_select %p2911, %s18, 1
      %p2913 = scmp.lt.s32.totalorder %s2910, 9
      %s2914 = scalar_select %p2913, %s2910, 9
      %s2915 = smul.addr %s2914, 2
      %s2916 = smul.addr %s2912, 80
      %s2917 = sadd.s32 %s2915, %s2916
      %s2918 = smul.addr %s2917, 8
      %s2919 = scalar_lea.vmem %s3, %s2918
      // Predicated region
      $region33: #{mixed_3b_forward.5} parent=31 // pred_check
        %p2920 = pneg %p116
      $region34: #{mixed_3b_forward.5} parent=31 // pred_check_branch
        %2922 = sbr.rel (%p2920) target = $region36
      $region35: #{mixed_3b_forward.5} parent=31 // pred_region
        %s2923 = smul.u32 10, %s19
      $region36: #{mixed_3b_forward.5} parent=31 // pred_fallthru
        _
    $region32: #{mixed_3b_forward.5} parent=5 // pred_fallthru
      _
    %p2924 = scmp.le.s32.totalorder 2, %s9
    // Predicated region
    $region37: #{mixed_3b_forward.5} parent=5 // pred_check
      %p2925 = pneg %p2924
    $region38: #{mixed_3b_forward.5} parent=5 // pred_check_branch
      %2927 = sbr.rel (%p2925) target = $region40
    $region39: #{mixed_3b_forward.5} parent=5 // pred_region
      %s2928 = ssub.s32 %s9, 2
      // Predicated region
      $region41: #{mixed_3b_forward.5} parent=39 // pred_check
        %p2929 = pneg %p122
      $region42: #{mixed_3b_forward.5} parent=39 // pred_check_branch
        %2931 = sbr.rel (%p2929) target = $region44
      $region43: #{mixed_3b_forward.5} parent=39 // pred_region
        %s2932 = smul.u32 10, %s21
        %p2933 = scmp.lt.s32.totalorder %s20, 1
        %s2934 = scalar_select %p2933, %s20, 1
        %p2935 = scmp.lt.s32.totalorder %s2932, 9
        %s2936 = scalar_select %p2935, %s2932, 9
        %s2937 = smul.addr %s2936, 2
        %s2938 = smul.addr %s2934, 80
        %s2939 = sadd.s32 %s2937, %s2938
        %s2940 = smul.addr %s2939, 8
        %s2941 = scalar_lea.vmem %s3, %s2940
      $region44: #{mixed_3b_forward.5} parent=39 // pred_fallthru
        _
    $region40: #{mixed_3b_forward.5} parent=5 // pred_fallthru
      _
  $region6: #{mixed_3b_forward.5} parent=0 // loop_footer
    %s13 = sadd.s32 1, %s9
  $region7: #{mixed_3b_forward.5} parent=0 // loop_footer_branch
    %8 = sbr.rel target = $region3
  $region8: #{mixed_3b_forward.5} parent=0 // loop_exit
    _

</llo_original>
